<compile_context>
chip_gen: v5e
topology: v5e:2x2
jax: 0.10.0
libtpu: 0.0.40
codegen_flags: <defaults>
</compile_context>

<pallas_src>
import jax
import jax.numpy as jnp
import numpy as np
from jax.experimental import pallas as pl
from jax.experimental.pallas import tpu as pltpu

BN_EPS = 1e-5
NORM_EPS = 1e-12
CIN_PAD = 8  # pad the 3 image channels to 8 for friendlier TPU layouts (zero-padded weights)


# ----------------------------- in-kernel helpers ------------------------------

def _conv3x3_s1(xp, w_ref, Ho, Wo):
    """3x3 stride-1 conv on an already spatially padded value.

    xp: (Ho+2, Wo+2, Cin) value; w_ref: (3, 3*Cin, Cout) ref (kw-major, cin-minor rows).
    Returns (Ho*Wo, Cout) f32 accumulator.
    """
    Cin = xp.shape[-1]
    Cout = w_ref.shape[-1]
    M = Ho * Wo
    # concatenate the three kw-shifted slabs along channels -> single K=3*Cin contraction per kh
    xcat = jnp.concatenate([xp[:, kw:kw + Wo, :] for kw in range(3)], axis=-1)  # (Ho+2, Wo, 3Cin)
    acc = jnp.zeros((M, Cout), jnp.float32)
    for kh in range(3):
        acc = acc + jnp.dot(xcat[kh:kh + Ho].reshape(M, 3 * Cin), w_ref[kh],
                            preferred_element_type=jnp.float32)
    return acc


# ----------------------------- Pallas kernels ---------------------------------

def resblock_down_kernel(xe_ref, xo_ref, w1a_ref, w1b_ref, s1_ref, b1_ref,
                         w2_ref, s2_ref, b2_ref, wsc_ref, ssc_ref, bsc_ref,
                         o_ref, hpad_ref):
    # xe/xo: (1, Hp/2, Wp/2, 2*Cin) even/odd padded-row parity views; channel index = q*Cin + c
    # with q = w parity.  o_ref: (1, Ho+2, Wo+2, C) (output with zero halo).
    _, _, Wh, C2 = xe_ref.shape
    Cin = C2 // 2
    _, Hop, Wop, C = o_ref.shape
    Ho, Wo = Hop - 2, Wop - 2
    M = Ho * Wo

    xe = xe_ref[0]
    xo = xo_ref[0]

    # --- conv1: 3x3 stride-2 + BN + ReLU, computed directly at output resolution ---
    # padded row for output ho, tap kh is 2*ho + kh -> (source, row offset): kh=0 (even,0),
    # kh=1 (odd,0), kh=2 (even,1).  Columns: kw in {0,1} live at b=wo (both parities, K=2*Cin),
    # kw=2 lives at b=wo+1, parity 0 (K=Cin).
    taps = ((xe, 0), (xo, 0), (xe, 1))
    acc = jnp.zeros((M, C), jnp.float32)
    for kh in range(3):
        src, a0 = taps[kh]
        rows = src[a0:a0 + Ho]                                    # (Ho, Wp/2, 2*Cin)
        left = rows[:, 0:Wo, :].reshape(M, 2 * Cin)               # kw = 0, 1
        acc = acc + jnp.dot(left, w1a_ref[kh], preferred_element_type=jnp.float32)
        right = rows[:, 1:Wo + 1, 0:Cin].reshape(M, Cin)          # kw = 2
        acc = acc + jnp.dot(right, w1b_ref[kh], preferred_element_type=jnp.float32)
    h1 = jnp.maximum(acc * s1_ref[0] + b1_ref[0], 0.0)

    # --- re-pad h1 (zero halo) in VMEM for the second conv ---
    hpad_ref[...] = jnp.zeros_like(hpad_ref)
    hpad_ref[1:1 + Ho, 1:1 + Wo, :] = h1.reshape(Ho, Wo, C)

    # --- conv2: 3x3 stride-1 + BN ---
    h2 = _conv3x3_s1(hpad_ref[...], w2_ref, Ho, Wo)
    h2 = h2 * s2_ref[0] + b2_ref[0]

    # --- shortcut: 1x1 stride-2 conv + BN ---
    # unpadded input pixel (2ho, 2wo) == padded (2ho+1, 2wo+1) == odd row, odd column parity.
    xs = xo[0:Ho, 0:Wo, Cin:2 * Cin].reshape(M, Cin)
    sc = jnp.dot(xs, wsc_ref[...], preferred_element_type=jnp.float32)
    sc = sc * ssc_ref[0] + bsc_ref[0]

    out = jnp.maximum(h2 + sc, 0.0).reshape(Ho, Wo, C)
    o_ref[...] = jnp.zeros_like(o_ref)                            # zero halo for the next block
    o_ref[0, 1:1 + Ho, 1:1 + Wo, :] = out


def resblock_kernel(x_ref, w1_ref, s1_ref, b1_ref, w2_ref, s2_ref, b2_ref,
                    o_ref, hpad_ref):
    # x_ref / o_ref: (1, Ho+2, Wo+2, C) padded activation (zero halo), identity shortcut.
    _, Hop, Wop, C = o_ref.shape
    Ho, Wo = Hop - 2, Wop - 2
    M = Ho * Wo

    xp = x_ref[0]

    h1 = _conv3x3_s1(xp, w1_ref, Ho, Wo)
    h1 = jnp.maximum(h1 * s1_ref[0] + b1_ref[0], 0.0)

    hpad_ref[...] = jnp.zeros_like(hpad_ref)
    hpad_ref[1:1 + Ho, 1:1 + Wo, :] = h1.reshape(Ho, Wo, C)

    h2 = _conv3x3_s1(hpad_ref[...], w2_ref, Ho, Wo)
    h2 = h2 * s2_ref[0] + b2_ref[0]

    identity = xp[1:1 + Ho, 1:1 + Wo, :].reshape(M, C)
    out = jnp.maximum(h2 + identity, 0.0).reshape(Ho, Wo, C)
    o_ref[...] = jnp.zeros_like(o_ref)
    o_ref[0, 1:1 + Ho, 1:1 + Wo, :] = out


def head_kernel(x_ref, wd_ref, bd_ref, w1_ref, b1_ref, w2_ref, b2_ref, w3_ref, b3_ref, o_ref):
    # x_ref: (B, Ho+2, Wo+2, C) padded final activation -> relu -> global avg pool (interior)
    # -> dense -> L2 normalize -> 3-layer MLP head.
    _, Hp, Wp, _ = x_ref.shape
    Ho, Wo = Hp - 2, Wp - 2
    x = jnp.maximum(x_ref[...][:, 1:1 + Ho, 1:1 + Wo, :], 0.0)
    feat = jnp.mean(x, axis=(1, 2))                                        # (B, C)
    z = jnp.dot(feat, wd_ref[...], preferred_element_type=jnp.float32) + bd_ref[0]
    norm = jnp.sqrt(jnp.sum(z * z, axis=1, keepdims=True))
    z = z / jnp.maximum(norm, NORM_EPS)                                    # F.normalize(dim=1)
    h = jnp.maximum(jnp.dot(z, w1_ref[...], preferred_element_type=jnp.float32) + b1_ref[0], 0.0)
    h = jnp.maximum(jnp.dot(h, w2_ref[...], preferred_element_type=jnp.float32) + b2_ref[0], 0.0)
    o_ref[...] = jnp.dot(h, w3_ref[...], preferred_element_type=jnp.float32) + b3_ref[0]


# ----------------------------- Pallas wrappers --------------------------------

def resblock_down(x, p):
    # x: (B, Hp, Wp, Cin) padded (zero halo) activation; returns (B, Ho+2, Wo+2, C) padded output.
    B, Hp, Wp, Cin = x.shape
    Ho, Wo = (Hp - 2) // 2, (Wp - 2) // 2
    C = p["c2"]["w"].shape[-1]
    # parity split (free XLA reshape/slice): w parity folded into channels, h parity -> two views
    xr = x.reshape(B, Hp // 2, 2, Wp // 2, 2 * Cin)
    xe, xo = xr[:, :, 0], xr[:, :, 1]                                 # (B, Hp/2, Wp/2, 2*Cin)
    Hh, Wh, C2 = Hp // 2, Wp // 2, 2 * Cin

    return pl.pallas_call(
        resblock_down_kernel,
        out_shape=jax.ShapeDtypeStruct((B, Ho + 2, Wo + 2, C), jnp.float32),
        grid=(B,),
        in_specs=[
            pl.BlockSpec((1, Hh, Wh, C2), lambda n: (n, 0, 0, 0)),
            pl.BlockSpec((1, Hh, Wh, C2), lambda n: (n, 0, 0, 0)),
            pl.BlockSpec(p["c1"]["wa"].shape, lambda n: (0, 0, 0)),
            pl.BlockSpec(p["c1"]["wb"].shape, lambda n: (0, 0, 0)),
            pl.BlockSpec((1, C), lambda n: (0, 0)),
            pl.BlockSpec((1, C), lambda n: (0, 0)),
            pl.BlockSpec(p["c2"]["w"].shape, lambda n: (0, 0, 0)),
            pl.BlockSpec((1, C), lambda n: (0, 0)),
            pl.BlockSpec((1, C), lambda n: (0, 0)),
            pl.BlockSpec(p["sc"]["w"].shape, lambda n: (0, 0)),
            pl.BlockSpec((1, C), lambda n: (0, 0)),
            pl.BlockSpec((1, C), lambda n: (0, 0)),
        ],
        out_specs=pl.BlockSpec((1, Ho + 2, Wo + 2, C), lambda n: (n, 0, 0, 0)),
        scratch_shapes=[pltpu.VMEM((Ho + 2, Wo + 2, C), jnp.float32)],
        compiler_params=pltpu.CompilerParams(dimension_semantics=("parallel",)),
    )(xe, xo,
      p["c1"]["wa"], p["c1"]["wb"], p["c1"]["s"], p["c1"]["b"],
      p["c2"]["w"], p["c2"]["s"], p["c2"]["b"],
      p["sc"]["w"], p["sc"]["s"], p["sc"]["b"])


def resblock(x, p):
    # x: (B, Ho+2, Wo+2, C) padded activation; identity shortcut; padded output, same shape.
    B, Hp, Wp, C = x.shape
    return pl.pallas_call(
        resblock_kernel,
        out_shape=jax.ShapeDtypeStruct((B, Hp, Wp, C), jnp.float32),
        grid=(B,),
        in_specs=[
            pl.BlockSpec((1, Hp, Wp, C), lambda n: (n, 0, 0, 0)),
            pl.BlockSpec(p["c1"]["w"].shape, lambda n: (0, 0, 0)),
            pl.BlockSpec((1, C), lambda n: (0, 0)),
            pl.BlockSpec((1, C), lambda n: (0, 0)),
            pl.BlockSpec(p["c2"]["w"].shape, lambda n: (0, 0, 0)),
            pl.BlockSpec((1, C), lambda n: (0, 0)),
            pl.BlockSpec((1, C), lambda n: (0, 0)),
        ],
        out_specs=pl.BlockSpec((1, Hp, Wp, C), lambda n: (n, 0, 0, 0)),
        scratch_shapes=[pltpu.VMEM((Hp, Wp, C), jnp.float32)],
        compiler_params=pltpu.CompilerParams(dimension_semantics=("parallel",)),
    )(x, p["c1"]["w"], p["c1"]["s"], p["c1"]["b"],
      p["c2"]["w"], p["c2"]["s"], p["c2"]["b"])


def head_apply(x, p):
    B = x.shape[0]
    return pl.pallas_call(
        head_kernel,
        out_shape=jax.ShapeDtypeStruct((B, 1), jnp.float32),
    )(x, p["wd"], p["bd"], p["w1"], p["b1"], p["w2"], p["b2"], p["w3"], p["b3"])


# ----------------------------- Model wiring ------------------------------------

@jax.jit
def encoder_forward(x_nchw, packed):
    x = jnp.transpose(x_nchw, (0, 2, 3, 1)).astype(jnp.float32)            # NCHW -> NHWC
    # single wrapper-side pad: 1-pixel zero halo for the first 3x3 conv + channel pad to CIN_PAD
    x = jnp.pad(x, ((0, 0), (1, 1), (1, 1), (0, CIN_PAD - x.shape[-1])))
    x = resblock_down(x, packed["rb1"])      # (B, 10, 10, 128) padded
    x = resblock_down(x, packed["rb2"])      # (B, 6, 6, 128)  padded
    x = resblock(x, packed["rb3"])           # (B, 6, 6, 128)  padded
    x = resblock(x, packed["rb4"])           # (B, 6, 6, 128)  padded
    return head_apply(x, packed["head"])


# ----------------------------- Parameters --------------------------------------

def init_params(key, img_channels=3, latent_dim=128):
    keys = iter(jax.random.split(key, 128))

    def nrm(shape, scale=1.0):
        return scale * jax.random.normal(next(keys), shape, jnp.float32)

    def conv_bn(cin, cout, k):
        w = nrm((k, k, cin, cout), 1.0 / np.sqrt(cin * k * k))
        b = nrm((cout,), 0.01)
        gamma = 1.0 + nrm((cout,), 0.1)
        beta = nrm((cout,), 0.1)
        mean = nrm((cout,), 0.1)
        var = 0.5 + jax.random.uniform(next(keys), (cout,), jnp.float32)
        s = gamma / jnp.sqrt(var + BN_EPS)           # fold eval-mode BN into conv scale/bias
        return {"w": w, "scale": s, "bias": (b - mean) * s + beta}

    def pad_cin(p, cin):
        w = jnp.pad(p["w"], ((0, 0), (0, 0), (0, CIN_PAD - cin), (0, 0)))
        return {"w": w, "scale": p["scale"], "bias": p["bias"]}

    c = 128
    rb1 = {"c1": pad_cin(conv_bn(img_channels, c, 3), img_channels),
           "c2": conv_bn(c, c, 3),
           "sc": pad_cin(conv_bn(img_channels, c, 1), img_channels)}
    rb2 = {"c1": conv_bn(c, c, 3), "c2": conv_bn(c, c, 3), "sc": conv_bn(c, c, 1)}
    rb3 = {"c1": conv_bn(c, c, 3), "c2": conv_bn(c, c, 3)}
    rb4 = {"c1": conv_bn(c, c, 3), "c2": conv_bn(c, c, 3)}

    def linear(cin, cout):
        return nrm((cin, cout), 1.0 / np.sqrt(cin)), nrm((cout,), 0.01)

    wd, bd = linear(c, latent_dim)
    w1, b1 = linear(latent_dim, latent_dim)
    w2, b2 = linear(latent_dim, latent_dim)
    w3, b3 = linear(latent_dim, 1)
    head = {"wd": wd, "bd": bd, "w1": w1, "b1": b1, "w2": w2, "b2": b2, "w3": w3, "b3": b3}
    return {"rb1": rb1, "rb2": rb2, "rb3": rb3, "rb4": rb4, "head": head}


def pack_params(params):
    """Repack raw params into kernel-friendly layouts (done once, outside the kernels)."""
    def conv3(p):                               # stride-1 3x3: (3,3,Cin,Cout) -> (3, 3*Cin, Cout)
        _, _, cin, cout = p["w"].shape
        return {"w": p["w"].reshape(3, 3 * cin, cout),
                "s": p["scale"].reshape(1, cout), "b": p["bias"].reshape(1, cout)}

    def conv3_s2(p):                            # stride-2 3x3: split kw taps for the parity scheme
        _, _, cin, cout = p["w"].shape
        w = p["w"]
        return {"wa": jnp.concatenate([w[:, 0], w[:, 1]], axis=1),   # (3, 2*Cin, Cout)  kw=0,1
                "wb": w[:, 2],                                       # (3, Cin, Cout)    kw=2
                "s": p["scale"].reshape(1, cout), "b": p["bias"].reshape(1, cout)}

    def conv1(p):
        cin, cout = p["w"].shape[2], p["w"].shape[3]
        return {"w": p["w"].reshape(cin, cout),
                "s": p["scale"].reshape(1, cout), "b": p["bias"].reshape(1, cout)}

    def rbd(p):
        return {"c1": conv3_s2(p["c1"]), "c2": conv3(p["c2"]), "sc": conv1(p["sc"])}

    def rb(p):
        return {"c1": conv3(p["c1"]), "c2": conv3(p["c2"])}

    hp = params["head"]
    latent = hp["wd"].shape[1]
    head = {"wd": hp["wd"], "bd": hp["bd"].reshape(1, latent),
            "w1": hp["w1"], "b1": hp["b1"].reshape(1, latent),
            "w2": hp["w2"], "b2": hp["b2"].reshape(1, latent),
            "w3": hp["w3"], "b3": hp["b3"].reshape(1, 1)}
    return {"rb1": rbd(params["rb1"]), "rb2": rbd(params["rb2"]),
            "rb3": rb(params["rb3"]), "rb4": rb(params["rb4"]), "head": head}


# ----------------------------- Pure-JAX reference ------------------------------

def ref_forward(x_nchw, params):
    x = jnp.transpose(x_nchw, (0, 2, 3, 1)).astype(jnp.float32)
    x = jnp.pad(x, ((0, 0), (0, 0), (0, 0), (0, CIN_PAD - x.shape[-1])))

    def conv_bn(x, p, stride, pad):
        y = jax.lax.conv_general_dilated(x, p["w"], (stride, stride), pad,
                                         dimension_numbers=("NHWC", "HWIO", "NHWC"))
        return y * p["scale"] + p["bias"]

    def rbd(x, p):
        h = jax.nn.relu(conv_bn(x, p["c1"], 2, ((1, 1), (1, 1))))
        h = conv_bn(h, p["c2"], 1, ((1, 1), (1, 1)))
        s = conv_bn(x, p["sc"], 2, ((0, 0), (0, 0)))
        return jax.nn.relu(h + s)

    def rb(x, p):
        h = jax.nn.relu(conv_bn(x, p["c1"], 1, ((1, 1), (1, 1))))
        h = conv_bn(h, p["c2"], 1, ((1, 1), (1, 1)))
        return jax.nn.relu(h + x)

    x = rbd(x, params["rb1"])
    x = rbd(x, params["rb2"])
    x = rb(x, params["rb3"])
    x = rb(x, params["rb4"])
    x = jax.nn.relu(x)
    feat = jnp.mean(x, axis=(1, 2))
    hp = params["head"]
    z = feat @ hp["wd"] + hp["bd"]
    z = z / jnp.maximum(jnp.linalg.norm(z, axis=1, keepdims=True), NORM_EPS)
    h = jax.nn.relu(z @ hp["w1"] + hp["b1"])
    h = jax.nn.relu(h @ hp["w2"] + hp["b2"])
    return h @ hp["w3"] + hp["b3"]


# ----------------------------- Main ---------------------------------------------

if __name__ == "__main__":
    key = jax.random.PRNGKey(0)
    pkey, xkey = jax.random.split(key)
    params = init_params(pkey, img_channels=3, latent_dim=128)
    packed = pack_params(params)

    x = jax.random.normal(xkey, (2, 3, 16, 16), jnp.float32)   # small NCHW input

    out = encoder_forward(x, packed)
    out = jax.block_until_ready(out)
    assert out.shape == (2, 1)

    ref = ref_forward(x, params)
    np.testing.assert_allclose(np.asarray(out), np.asarray(ref), rtol=2e-3, atol=2e-3)

    print("KERNEL_OK")
</pallas_src>

<mosaic_0001>
module attributes {stable_mosaic.version = 11 : i64} {
  func.func @resblock_down_kernel(%arg0: i32, %arg1: memref<1x9x9x16xf32, #tpu.memory_space<vmem>>, %arg2: memref<1x9x9x16xf32, #tpu.memory_space<vmem>>, %arg3: memref<3x16x128xf32, #tpu.memory_space<vmem>>, %arg4: memref<3x8x128xf32, #tpu.memory_space<vmem>>, %arg5: memref<1x128xf32, #tpu.memory_space<vmem>>, %arg6: memref<1x128xf32, #tpu.memory_space<vmem>>, %arg7: memref<3x384x128xf32, #tpu.memory_space<vmem>>, %arg8: memref<1x128xf32, #tpu.memory_space<vmem>>, %arg9: memref<1x128xf32, #tpu.memory_space<vmem>>, %arg10: memref<8x128xf32, #tpu.memory_space<vmem>>, %arg11: memref<1x128xf32, #tpu.memory_space<vmem>>, %arg12: memref<1x128xf32, #tpu.memory_space<vmem>>, %arg13: memref<1x10x10x128xf32, #tpu.memory_space<vmem>>, %arg14: memref<10x10x128xf32, #tpu.memory_space<vmem>>) attributes {dimension_semantics = [#tpu.dimension_semantics<parallel>], iteration_bounds = array<i64: 2>, scalar_prefetch = 0 : i64, scratch_operands = 1 : i64, tpu.core_type = #tpu.core_type<tc>, window_params = [{transform_indices = @transform_0, window_bounds = array<i64: 1, 9, 9, 16>}, {transform_indices = @transform_1, window_bounds = array<i64: 1, 9, 9, 16>}, {pipeline_mode = #tpu.pipeline_mode<synchronous>, transform_indices = @transform_2, window_bounds = array<i64: 3, 16, 128>}, {pipeline_mode = #tpu.pipeline_mode<synchronous>, transform_indices = @transform_3, window_bounds = array<i64: 3, 8, 128>}, {pipeline_mode = #tpu.pipeline_mode<synchronous>, transform_indices = @transform_4, window_bounds = array<i64: 1, 128>}, {pipeline_mode = #tpu.pipeline_mode<synchronous>, transform_indices = @transform_5, window_bounds = array<i64: 1, 128>}, {pipeline_mode = #tpu.pipeline_mode<synchronous>, transform_indices = @transform_6, window_bounds = array<i64: 3, 384, 128>}, {pipeline_mode = #tpu.pipeline_mode<synchronous>, transform_indices = @transform_7, window_bounds = array<i64: 1, 128>}, {pipeline_mode = #tpu.pipeline_mode<synchronous>, transform_indices = @transform_8, window_bounds = array<i64: 1, 128>}, {pipeline_mode = #tpu.pipeline_mode<synchronous>, transform_indices = @transform_9, window_bounds = array<i64: 8, 128>}, {pipeline_mode = #tpu.pipeline_mode<synchronous>, transform_indices = @transform_10, window_bounds = array<i64: 1, 128>}, {pipeline_mode = #tpu.pipeline_mode<synchronous>, transform_indices = @transform_11, window_bounds = array<i64: 1, 128>}, {transform_indices = @transform_12, window_bounds = array<i64: 1, 10, 10, 128>}]} {
    %c0 = arith.constant 0 : index
    %c0_0 = arith.constant 0 : index
    %c0_1 = arith.constant 0 : index
    %c0_2 = arith.constant 0 : index
    %0 = vector.load %arg1[%c0, %c0_0, %c0_1, %c0_2] : memref<1x9x9x16xf32, #tpu.memory_space<vmem>>, vector<1x9x9x16xf32>
    %1 = vector.shape_cast %0 : vector<1x9x9x16xf32> to vector<9x9x16xf32>
    %c0_3 = arith.constant 0 : index
    %c0_4 = arith.constant 0 : index
    %c0_5 = arith.constant 0 : index
    %c0_6 = arith.constant 0 : index
    %2 = vector.load %arg2[%c0_3, %c0_4, %c0_5, %c0_6] : memref<1x9x9x16xf32, #tpu.memory_space<vmem>>, vector<1x9x9x16xf32>
    %3 = vector.shape_cast %2 : vector<1x9x9x16xf32> to vector<9x9x16xf32>
    %cst = arith.constant 0.000000e+00 : f32
    %4 = vector.broadcast %cst : f32 to vector<64x128xf32>
    %5 = vector.extract_strided_slice %1 {offsets = [0, 0, 0], sizes = [8, 9, 16], strides = [1, 1, 1]} : vector<9x9x16xf32> to vector<8x9x16xf32>
    %6 = vector.extract_strided_slice %5 {offsets = [0, 0, 0], sizes = [8, 8, 16], strides = [1, 1, 1]} : vector<8x9x16xf32> to vector<8x8x16xf32>
    %7 = vector.shape_cast %6 : vector<8x8x16xf32> to vector<64x16xf32>
    %c0_7 = arith.constant 0 : index
    %c0_8 = arith.constant 0 : index
    %c0_9 = arith.constant 0 : index
    %8 = vector.load %arg3[%c0_7, %c0_8, %c0_9] : memref<3x16x128xf32, #tpu.memory_space<vmem>>, vector<1x16x128xf32>
    %9 = vector.shape_cast %8 : vector<1x16x128xf32> to vector<16x128xf32>
    %cst_10 = arith.constant dense<0.000000e+00> : vector<64x128xf32>
    %10 = tpu.matmul %7, %9, %cst_10 {dimension_numbers = #tpu.dot_dimension_numbers<[1], [0], [0], [1], [0, 0, 1, 1], [], []>} : vector<64x16xf32>, vector<16x128xf32>, vector<64x128xf32> -> vector<64x128xf32>
    %11 = arith.addf %4, %10 : vector<64x128xf32>
    %12 = vector.extract_strided_slice %5 {offsets = [0, 1, 0], sizes = [8, 8, 8], strides = [1, 1, 1]} : vector<8x9x16xf32> to vector<8x8x8xf32>
    %13 = vector.shape_cast %12 : vector<8x8x8xf32> to vector<64x8xf32>
    %c0_11 = arith.constant 0 : index
    %c0_12 = arith.constant 0 : index
    %c0_13 = arith.constant 0 : index
    %14 = vector.load %arg4[%c0_11, %c0_12, %c0_13] : memref<3x8x128xf32, #tpu.memory_space<vmem>>, vector<1x8x128xf32>
    %15 = vector.shape_cast %14 : vector<1x8x128xf32> to vector<8x128xf32>
    %cst_14 = arith.constant dense<0.000000e+00> : vector<64x128xf32>
    %16 = tpu.matmul %13, %15, %cst_14 {dimension_numbers = #tpu.dot_dimension_numbers<[1], [0], [0], [1], [0, 0, 1, 1], [], []>} : vector<64x8xf32>, vector<8x128xf32>, vector<64x128xf32> -> vector<64x128xf32>
    %17 = arith.addf %11, %16 : vector<64x128xf32>
    %18 = vector.extract_strided_slice %3 {offsets = [0, 0, 0], sizes = [8, 9, 16], strides = [1, 1, 1]} : vector<9x9x16xf32> to vector<8x9x16xf32>
    %19 = vector.extract_strided_slice %18 {offsets = [0, 0, 0], sizes = [8, 8, 16], strides = [1, 1, 1]} : vector<8x9x16xf32> to vector<8x8x16xf32>
    %20 = vector.shape_cast %19 : vector<8x8x16xf32> to vector<64x16xf32>
    %c1 = arith.constant 1 : index
    %c0_15 = arith.constant 0 : index
    %c0_16 = arith.constant 0 : index
    %21 = vector.load %arg3[%c1, %c0_15, %c0_16] : memref<3x16x128xf32, #tpu.memory_space<vmem>>, vector<1x16x128xf32>
    %22 = vector.shape_cast %21 : vector<1x16x128xf32> to vector<16x128xf32>
    %cst_17 = arith.constant dense<0.000000e+00> : vector<64x128xf32>
    %23 = tpu.matmul %20, %22, %cst_17 {dimension_numbers = #tpu.dot_dimension_numbers<[1], [0], [0], [1], [0, 0, 1, 1], [], []>} : vector<64x16xf32>, vector<16x128xf32>, vector<64x128xf32> -> vector<64x128xf32>
    %24 = arith.addf %17, %23 : vector<64x128xf32>
    %25 = vector.extract_strided_slice %18 {offsets = [0, 1, 0], sizes = [8, 8, 8], strides = [1, 1, 1]} : vector<8x9x16xf32> to vector<8x8x8xf32>
    %26 = vector.shape_cast %25 : vector<8x8x8xf32> to vector<64x8xf32>
    %c1_18 = arith.constant 1 : index
    %c0_19 = arith.constant 0 : index
    %c0_20 = arith.constant 0 : index
    %27 = vector.load %arg4[%c1_18, %c0_19, %c0_20] : memref<3x8x128xf32, #tpu.memory_space<vmem>>, vector<1x8x128xf32>
    %28 = vector.shape_cast %27 : vector<1x8x128xf32> to vector<8x128xf32>
    %cst_21 = arith.constant dense<0.000000e+00> : vector<64x128xf32>
    %29 = tpu.matmul %26, %28, %cst_21 {dimension_numbers = #tpu.dot_dimension_numbers<[1], [0], [0], [1], [0, 0, 1, 1], [], []>} : vector<64x8xf32>, vector<8x128xf32>, vector<64x128xf32> -> vector<64x128xf32>
    %30 = arith.addf %24, %29 : vector<64x128xf32>
    %31 = vector.extract_strided_slice %1 {offsets = [1, 0, 0], sizes = [8, 9, 16], strides = [1, 1, 1]} : vector<9x9x16xf32> to vector<8x9x16xf32>
    %32 = vector.extract_strided_slice %31 {offsets = [0, 0, 0], sizes = [8, 8, 16], strides = [1, 1, 1]} : vector<8x9x16xf32> to vector<8x8x16xf32>
    %33 = vector.shape_cast %32 : vector<8x8x16xf32> to vector<64x16xf32>
    %c2 = arith.constant 2 : index
    %c0_22 = arith.constant 0 : index
    %c0_23 = arith.constant 0 : index
    %34 = vector.load %arg3[%c2, %c0_22, %c0_23] : memref<3x16x128xf32, #tpu.memory_space<vmem>>, vector<1x16x128xf32>
    %35 = vector.shape_cast %34 : vector<1x16x128xf32> to vector<16x128xf32>
    %cst_24 = arith.constant dense<0.000000e+00> : vector<64x128xf32>
    %36 = tpu.matmul %33, %35, %cst_24 {dimension_numbers = #tpu.dot_dimension_numbers<[1], [0], [0], [1], [0, 0, 1, 1], [], []>} : vector<64x16xf32>, vector<16x128xf32>, vector<64x128xf32> -> vector<64x128xf32>
    %37 = arith.addf %30, %36 : vector<64x128xf32>
    %38 = vector.extract_strided_slice %31 {offsets = [0, 1, 0], sizes = [8, 8, 8], strides = [1, 1, 1]} : vector<8x9x16xf32> to vector<8x8x8xf32>
    %39 = vector.shape_cast %38 : vector<8x8x8xf32> to vector<64x8xf32>
    %c2_25 = arith.constant 2 : index
    %c0_26 = arith.constant 0 : index
    %c0_27 = arith.constant 0 : index
    %40 = vector.load %arg4[%c2_25, %c0_26, %c0_27] : memref<3x8x128xf32, #tpu.memory_space<vmem>>, vector<1x8x128xf32>
    %41 = vector.shape_cast %40 : vector<1x8x128xf32> to vector<8x128xf32>
    %cst_28 = arith.constant dense<0.000000e+00> : vector<64x128xf32>
    %42 = tpu.matmul %39, %41, %cst_28 {dimension_numbers = #tpu.dot_dimension_numbers<[1], [0], [0], [1], [0, 0, 1, 1], [], []>} : vector<64x8xf32>, vector<8x128xf32>, vector<64x128xf32> -> vector<64x128xf32>
    %43 = arith.addf %37, %42 : vector<64x128xf32>
    %c0_29 = arith.constant 0 : index
    %c0_30 = arith.constant 0 : index
    %44 = vector.load %arg5[%c0_29, %c0_30] : memref<1x128xf32, #tpu.memory_space<vmem>>, vector<1x128xf32>
    %45 = vector.shape_cast %44 : vector<1x128xf32> to vector<128xf32>
    %46 = vector.shape_cast %45 : vector<128xf32> to vector<1x128xf32>
    %47 = vector.broadcast %46 : vector<1x128xf32> to vector<64x128xf32>
    %48 = arith.mulf %43, %47 : vector<64x128xf32>
    %c0_31 = arith.constant 0 : index
    %c0_32 = arith.constant 0 : index
    %49 = vector.load %arg6[%c0_31, %c0_32] : memref<1x128xf32, #tpu.memory_space<vmem>>, vector<1x128xf32>
    %50 = vector.shape_cast %49 : vector<1x128xf32> to vector<128xf32>
    %51 = vector.shape_cast %50 : vector<128xf32> to vector<1x128xf32>
    %52 = vector.broadcast %51 : vector<1x128xf32> to vector<64x128xf32>
    %53 = arith.addf %48, %52 : vector<64x128xf32>
    %cst_33 = arith.constant 0.000000e+00 : f32
    %54 = vector.broadcast %cst_33 : f32 to vector<64x128xf32>
    %55 = arith.maximumf %53, %54 : vector<64x128xf32>
    %cst_34 = arith.constant 0.000000e+00 : f32
    %56 = vector.broadcast %cst_34 : f32 to vector<10x10x128xf32>
    %c0_35 = arith.constant 0 : index
    %c0_36 = arith.constant 0 : index
    %c0_37 = arith.constant 0 : index
    %57 = vector.load %arg14[%c0_35, %c0_36, %c0_37] : memref<10x10x128xf32, #tpu.memory_space<vmem>>, vector<10x10x128xf32>
    tpu.vector_store %arg14[%c0_35, %c0_36, %c0_37], %56 {strides = array<i32>} : memref<10x10x128xf32, #tpu.memory_space<vmem>>, vector<10x10x128xf32>,
    %58 = vector.shape_cast %55 : vector<64x128xf32> to vector<8x8x128xf32>
    %c1_38 = arith.constant 1 : index
    %c1_39 = arith.constant 1 : index
    %c0_40 = arith.constant 0 : index
    %59 = vector.load %arg14[%c1_38, %c1_39, %c0_40] : memref<10x10x128xf32, #tpu.memory_space<vmem>>, vector<8x8x128xf32>
    tpu.vector_store %arg14[%c1_38, %c1_39, %c0_40], %58 {strides = array<i32>} : memref<10x10x128xf32, #tpu.memory_space<vmem>>, vector<8x8x128xf32>,
    %c0_41 = arith.constant 0 : index
    %c0_42 = arith.constant 0 : index
    %c0_43 = arith.constant 0 : index
    %60 = vector.load %arg14[%c0_41, %c0_42, %c0_43] : memref<10x10x128xf32, #tpu.memory_space<vmem>>, vector<10x10x128xf32>
    %61 = vector.extract_strided_slice %60 {offsets = [0, 0, 0], sizes = [10, 8, 128], strides = [1, 1, 1]} : vector<10x10x128xf32> to vector<10x8x128xf32>
    %62 = vector.extract_strided_slice %60 {offsets = [0, 1, 0], sizes = [10, 8, 128], strides = [1, 1, 1]} : vector<10x10x128xf32> to vector<10x8x128xf32>
    %63 = vector.extract_strided_slice %60 {offsets = [0, 2, 0], sizes = [10, 8, 128], strides = [1, 1, 1]} : vector<10x10x128xf32> to vector<10x8x128xf32>
    %64 = tpu.concatenate %61, %62, %63 in 2 : vector<10x8x128xf32>, vector<10x8x128xf32>, vector<10x8x128xf32> -> vector<10x8x384xf32>
    %cst_44 = arith.constant 0.000000e+00 : f32
    %65 = vector.broadcast %cst_44 : f32 to vector<64x128xf32>
    %66 = vector.extract_strided_slice %64 {offsets = [0, 0, 0], sizes = [8, 8, 384], strides = [1, 1, 1]} : vector<10x8x384xf32> to vector<8x8x384xf32>
    %67 = vector.shape_cast %66 : vector<8x8x384xf32> to vector<64x384xf32>
    %c0_45 = arith.constant 0 : index
    %c0_46 = arith.constant 0 : index
    %c0_47 = arith.constant 0 : index
    %68 = vector.load %arg7[%c0_45, %c0_46, %c0_47] : memref<3x384x128xf32, #tpu.memory_space<vmem>>, vector<1x384x128xf32>
    %69 = vector.shape_cast %68 : vector<1x384x128xf32> to vector<384x128xf32>
    %cst_48 = arith.constant dense<0.000000e+00> : vector<64x128xf32>
    %70 = tpu.matmul %67, %69, %cst_48 {dimension_numbers = #tpu.dot_dimension_numbers<[1], [0], [0], [1], [0, 0, 1, 1], [], []>} : vector<64x384xf32>, vector<384x128xf32>, vector<64x128xf32> -> vector<64x128xf32>
    %71 = arith.addf %65, %70 : vector<64x128xf32>
    %72 = vector.extract_strided_slice %64 {offsets = [1, 0, 0], sizes = [8, 8, 384], strides = [1, 1, 1]} : vector<10x8x384xf32> to vector<8x8x384xf32>
    %73 = vector.shape_cast %72 : vector<8x8x384xf32> to vector<64x384xf32>
    %c1_49 = arith.constant 1 : index
    %c0_50 = arith.constant 0 : index
    %c0_51 = arith.constant 0 : index
    %74 = vector.load %arg7[%c1_49, %c0_50, %c0_51] : memref<3x384x128xf32, #tpu.memory_space<vmem>>, vector<1x384x128xf32>
    %75 = vector.shape_cast %74 : vector<1x384x128xf32> to vector<384x128xf32>
    %cst_52 = arith.constant dense<0.000000e+00> : vector<64x128xf32>
    %76 = tpu.matmul %73, %75, %cst_52 {dimension_numbers = #tpu.dot_dimension_numbers<[1], [0], [0], [1], [0, 0, 1, 1], [], []>} : vector<64x384xf32>, vector<384x128xf32>, vector<64x128xf32> -> vector<64x128xf32>
    %77 = arith.addf %71, %76 : vector<64x128xf32>
    %78 = vector.extract_strided_slice %64 {offsets = [2, 0, 0], sizes = [8, 8, 384], strides = [1, 1, 1]} : vector<10x8x384xf32> to vector<8x8x384xf32>
    %79 = vector.shape_cast %78 : vector<8x8x384xf32> to vector<64x384xf32>
    %c2_53 = arith.constant 2 : index
    %c0_54 = arith.constant 0 : index
    %c0_55 = arith.constant 0 : index
    %80 = vector.load %arg7[%c2_53, %c0_54, %c0_55] : memref<3x384x128xf32, #tpu.memory_space<vmem>>, vector<1x384x128xf32>
    %81 = vector.shape_cast %80 : vector<1x384x128xf32> to vector<384x128xf32>
    %cst_56 = arith.constant dense<0.000000e+00> : vector<64x128xf32>
    %82 = tpu.matmul %79, %81, %cst_56 {dimension_numbers = #tpu.dot_dimension_numbers<[1], [0], [0], [1], [0, 0, 1, 1], [], []>} : vector<64x384xf32>, vector<384x128xf32>, vector<64x128xf32> -> vector<64x128xf32>
    %83 = arith.addf %77, %82 : vector<64x128xf32>
    %c0_57 = arith.constant 0 : index
    %c0_58 = arith.constant 0 : index
    %84 = vector.load %arg8[%c0_57, %c0_58] : memref<1x128xf32, #tpu.memory_space<vmem>>, vector<1x128xf32>
    %85 = vector.shape_cast %84 : vector<1x128xf32> to vector<128xf32>
    %86 = vector.shape_cast %85 : vector<128xf32> to vector<1x128xf32>
    %87 = vector.broadcast %86 : vector<1x128xf32> to vector<64x128xf32>
    %88 = arith.mulf %83, %87 : vector<64x128xf32>
    %c0_59 = arith.constant 0 : index
    %c0_60 = arith.constant 0 : index
    %89 = vector.load %arg9[%c0_59, %c0_60] : memref<1x128xf32, #tpu.memory_space<vmem>>, vector<1x128xf32>
    %90 = vector.shape_cast %89 : vector<1x128xf32> to vector<128xf32>
    %91 = vector.shape_cast %90 : vector<128xf32> to vector<1x128xf32>
    %92 = vector.broadcast %91 : vector<1x128xf32> to vector<64x128xf32>
    %93 = arith.addf %88, %92 : vector<64x128xf32>
    %94 = vector.extract_strided_slice %3 {offsets = [0, 0, 8], sizes = [8, 8, 8], strides = [1, 1, 1]} : vector<9x9x16xf32> to vector<8x8x8xf32>
    %95 = vector.shape_cast %94 : vector<8x8x8xf32> to vector<64x8xf32>
    %c0_61 = arith.constant 0 : index
    %c0_62 = arith.constant 0 : index
    %96 = vector.load %arg10[%c0_61, %c0_62] : memref<8x128xf32, #tpu.memory_space<vmem>>, vector<8x128xf32>
    %cst_63 = arith.constant dense<0.000000e+00> : vector<64x128xf32>
    %97 = tpu.matmul %95, %96, %cst_63 {dimension_numbers = #tpu.dot_dimension_numbers<[1], [0], [0], [1], [0, 0, 1, 1], [], []>} : vector<64x8xf32>, vector<8x128xf32>, vector<64x128xf32> -> vector<64x128xf32>
    %c0_64 = arith.constant 0 : index
    %c0_65 = arith.constant 0 : index
    %98 = vector.load %arg11[%c0_64, %c0_65] : memref<1x128xf32, #tpu.memory_space<vmem>>, vector<1x128xf32>
    %99 = vector.shape_cast %98 : vector<1x128xf32> to vector<128xf32>
    %100 = vector.shape_cast %99 : vector<128xf32> to vector<1x128xf32>
    %101 = vector.broadcast %100 : vector<1x128xf32> to vector<64x128xf32>
    %102 = arith.mulf %97, %101 : vector<64x128xf32>
    %c0_66 = arith.constant 0 : index
    %c0_67 = arith.constant 0 : index
    %103 = vector.load %arg12[%c0_66, %c0_67] : memref<1x128xf32, #tpu.memory_space<vmem>>, vector<1x128xf32>
    %104 = vector.shape_cast %103 : vector<1x128xf32> to vector<128xf32>
    %105 = vector.shape_cast %104 : vector<128xf32> to vector<1x128xf32>
    %106 = vector.broadcast %105 : vector<1x128xf32> to vector<64x128xf32>
    %107 = arith.addf %102, %106 : vector<64x128xf32>
    %108 = arith.addf %93, %107 : vector<64x128xf32>
    %cst_68 = arith.constant 0.000000e+00 : f32
    %109 = vector.broadcast %cst_68 : f32 to vector<64x128xf32>
    %110 = arith.maximumf %108, %109 : vector<64x128xf32>
    %111 = vector.shape_cast %110 : vector<64x128xf32> to vector<8x8x128xf32>
    %cst_69 = arith.constant 0.000000e+00 : f32
    %112 = vector.broadcast %cst_69 : f32 to vector<1x10x10x128xf32>
    %c0_70 = arith.constant 0 : index
    %c0_71 = arith.constant 0 : index
    %c0_72 = arith.constant 0 : index
    %c0_73 = arith.constant 0 : index
    %113 = vector.load %arg13[%c0_70, %c0_71, %c0_72, %c0_73] : memref<1x10x10x128xf32, #tpu.memory_space<vmem>>, vector<1x10x10x128xf32>
    tpu.vector_store %arg13[%c0_70, %c0_71, %c0_72, %c0_73], %112 {strides = array<i32>} : memref<1x10x10x128xf32, #tpu.memory_space<vmem>>, vector<1x10x10x128xf32>,
    %c0_74 = arith.constant 0 : index
    %c1_75 = arith.constant 1 : index
    %c1_76 = arith.constant 1 : index
    %c0_77 = arith.constant 0 : index
    %114 = vector.load %arg13[%c0_74, %c1_75, %c1_76, %c0_77] : memref<1x10x10x128xf32, #tpu.memory_space<vmem>>, vector<1x8x8x128xf32>
    %115 = vector.shape_cast %114 : vector<1x8x8x128xf32> to vector<8x8x128xf32>
    %116 = vector.shape_cast %111 : vector<8x8x128xf32> to vector<1x8x8x128xf32>
    tpu.vector_store %arg13[%c0_74, %c1_75, %c1_76, %c0_77], %116 {strides = array<i32>} : memref<1x10x10x128xf32, #tpu.memory_space<vmem>>, vector<1x8x8x128xf32>,
    return
  }
  func.func @transform_0(%arg0: i32) -> (i32, i32, i32, i32) {
    %c0_i32 = arith.constant 0 : i32
    %c0_i32_0 = arith.constant 0 : i32
    %c0_i32_1 = arith.constant 0 : i32
    %c0_i32_2 = arith.constant 0 : i32
    return %arg0, %c0_i32, %c0_i32_0, %c0_i32_1 : i32, i32, i32, i32
  }
  func.func @transform_1(%arg0: i32) -> (i32, i32, i32, i32) {
    %c0_i32 = arith.constant 0 : i32
    %c0_i32_0 = arith.constant 0 : i32
    %c0_i32_1 = arith.constant 0 : i32
    %c0_i32_2 = arith.constant 0 : i32
    return %arg0, %c0_i32, %c0_i32_0, %c0_i32_1 : i32, i32, i32, i32
  }
  func.func @transform_2(%arg0: i32) -> (i32, i32, i32) {
    %c0_i32 = arith.constant 0 : i32
    %c0_i32_0 = arith.constant 0 : i32
    %c0_i32_1 = arith.constant 0 : i32
    %c0_i32_2 = arith.constant 0 : i32
    return %c0_i32, %c0_i32_0, %c0_i32_1 : i32, i32, i32
  }
  func.func @transform_3(%arg0: i32) -> (i32, i32, i32) {
    %c0_i32 = arith.constant 0 : i32
    %c0_i32_0 = arith.constant 0 : i32
    %c0_i32_1 = arith.constant 0 : i32
    %c0_i32_2 = arith.constant 0 : i32
    return %c0_i32, %c0_i32_0, %c0_i32_1 : i32, i32, i32
  }
  func.func @transform_4(%arg0: i32) -> (i32, i32) {
    %c0_i32 = arith.constant 0 : i32
    %c0_i32_0 = arith.constant 0 : i32
    %c0_i32_1 = arith.constant 0 : i32
    return %c0_i32, %c0_i32_0 : i32, i32
  }
  func.func @transform_5(%arg0: i32) -> (i32, i32) {
    %c0_i32 = arith.constant 0 : i32
    %c0_i32_0 = arith.constant 0 : i32
    %c0_i32_1 = arith.constant 0 : i32
    return %c0_i32, %c0_i32_0 : i32, i32
  }
  func.func @transform_6(%arg0: i32) -> (i32, i32, i32) {
    %c0_i32 = arith.constant 0 : i32
    %c0_i32_0 = arith.constant 0 : i32
    %c0_i32_1 = arith.constant 0 : i32
    %c0_i32_2 = arith.constant 0 : i32
    return %c0_i32, %c0_i32_0, %c0_i32_1 : i32, i32, i32
  }
  func.func @transform_7(%arg0: i32) -> (i32, i32) {
    %c0_i32 = arith.constant 0 : i32
    %c0_i32_0 = arith.constant 0 : i32
    %c0_i32_1 = arith.constant 0 : i32
    return %c0_i32, %c0_i32_0 : i32, i32
  }
  func.func @transform_8(%arg0: i32) -> (i32, i32) {
    %c0_i32 = arith.constant 0 : i32
    %c0_i32_0 = arith.constant 0 : i32
    %c0_i32_1 = arith.constant 0 : i32
    return %c0_i32, %c0_i32_0 : i32, i32
  }
  func.func @transform_9(%arg0: i32) -> (i32, i32) {
    %c0_i32 = arith.constant 0 : i32
    %c0_i32_0 = arith.constant 0 : i32
    %c0_i32_1 = arith.constant 0 : i32
    return %c0_i32, %c0_i32_0 : i32, i32
  }
  func.func @transform_10(%arg0: i32) -> (i32, i32) {
    %c0_i32 = arith.constant 0 : i32
    %c0_i32_0 = arith.constant 0 : i32
    %c0_i32_1 = arith.constant 0 : i32
    return %c0_i32, %c0_i32_0 : i32, i32
  }
  func.func @transform_11(%arg0: i32) -> (i32, i32) {
    %c0_i32 = arith.constant 0 : i32
    %c0_i32_0 = arith.constant 0 : i32
    %c0_i32_1 = arith.constant 0 : i32
    return %c0_i32, %c0_i32_0 : i32, i32
  }
  func.func @transform_12(%arg0: i32) -> (i32, i32, i32, i32) {
    %c0_i32 = arith.constant 0 : i32
    %c0_i32_0 = arith.constant 0 : i32
    %c0_i32_1 = arith.constant 0 : i32
    %c0_i32_2 = arith.constant 0 : i32
    return %arg0, %c0_i32, %c0_i32_0, %c0_i32_1 : i32, i32, i32, i32
  }
}

module attributes {stable_mosaic.version = 11 : i64} {
  func.func @resblock_kernel(%arg0: i32, %arg1: memref<1x6x6x128xf32, #tpu.memory_space<vmem>>, %arg2: memref<3x384x128xf32, #tpu.memory_space<vmem>>, %arg3: memref<1x128xf32, #tpu.memory_space<vmem>>, %arg4: memref<1x128xf32, #tpu.memory_space<vmem>>, %arg5: memref<3x384x128xf32, #tpu.memory_space<vmem>>, %arg6: memref<1x128xf32, #tpu.memory_space<vmem>>, %arg7: memref<1x128xf32, #tpu.memory_space<vmem>>, %arg8: memref<1x6x6x128xf32, #tpu.memory_space<vmem>>, %arg9: memref<6x6x128xf32, #tpu.memory_space<vmem>>) attributes {dimension_semantics = [#tpu.dimension_semantics<parallel>], iteration_bounds = array<i64: 2>, scalar_prefetch = 0 : i64, scratch_operands = 1 : i64, tpu.core_type = #tpu.core_type<tc>, window_params = [{transform_indices = @transform_0, window_bounds = array<i64: 1, 6, 6, 128>}, {pipeline_mode = #tpu.pipeline_mode<synchronous>, transform_indices = @transform_1, window_bounds = array<i64: 3, 384, 128>}, {pipeline_mode = #tpu.pipeline_mode<synchronous>, transform_indices = @transform_2, window_bounds = array<i64: 1, 128>}, {pipeline_mode = #tpu.pipeline_mode<synchronous>, transform_indices = @transform_3, window_bounds = array<i64: 1, 128>}, {pipeline_mode = #tpu.pipeline_mode<synchronous>, transform_indices = @transform_4, window_bounds = array<i64: 3, 384, 128>}, {pipeline_mode = #tpu.pipeline_mode<synchronous>, transform_indices = @transform_5, window_bounds = array<i64: 1, 128>}, {pipeline_mode = #tpu.pipeline_mode<synchronous>, transform_indices = @transform_6, window_bounds = array<i64: 1, 128>}, {transform_indices = @transform_7, window_bounds = array<i64: 1, 6, 6, 128>}]} {
    %c0 = arith.constant 0 : index
    %c0_0 = arith.constant 0 : index
    %c0_1 = arith.constant 0 : index
    %c0_2 = arith.constant 0 : index
    %0 = vector.load %arg1[%c0, %c0_0, %c0_1, %c0_2] : memref<1x6x6x128xf32, #tpu.memory_space<vmem>>, vector<1x6x6x128xf32>
    %1 = vector.shape_cast %0 : vector<1x6x6x128xf32> to vector<6x6x128xf32>
    %2 = vector.extract_strided_slice %1 {offsets = [0, 0, 0], sizes = [6, 4, 128], strides = [1, 1, 1]} : vector<6x6x128xf32> to vector<6x4x128xf32>
    %3 = vector.extract_strided_slice %1 {offsets = [0, 1, 0], sizes = [6, 4, 128], strides = [1, 1, 1]} : vector<6x6x128xf32> to vector<6x4x128xf32>
    %4 = vector.extract_strided_slice %1 {offsets = [0, 2, 0], sizes = [6, 4, 128], strides = [1, 1, 1]} : vector<6x6x128xf32> to vector<6x4x128xf32>
    %5 = tpu.concatenate %2, %3, %4 in 2 : vector<6x4x128xf32>, vector<6x4x128xf32>, vector<6x4x128xf32> -> vector<6x4x384xf32>
    %cst = arith.constant 0.000000e+00 : f32
    %6 = vector.broadcast %cst : f32 to vector<16x128xf32>
    %7 = vector.extract_strided_slice %5 {offsets = [0, 0, 0], sizes = [4, 4, 384], strides = [1, 1, 1]} : vector<6x4x384xf32> to vector<4x4x384xf32>
    %8 = vector.shape_cast %7 : vector<4x4x384xf32> to vector<16x384xf32>
    %c0_3 = arith.constant 0 : index
    %c0_4 = arith.constant 0 : index
    %c0_5 = arith.constant 0 : index
    %9 = vector.load %arg2[%c0_3, %c0_4, %c0_5] : memref<3x384x128xf32, #tpu.memory_space<vmem>>, vector<1x384x128xf32>
    %10 = vector.shape_cast %9 : vector<1x384x128xf32> to vector<384x128xf32>
    %cst_6 = arith.constant dense<0.000000e+00> : vector<16x128xf32>
    %11 = tpu.matmul %8, %10, %cst_6 {dimension_numbers = #tpu.dot_dimension_numbers<[1], [0], [0], [1], [0, 0, 1, 1], [], []>} : vector<16x384xf32>, vector<384x128xf32>, vector<16x128xf32> -> vector<16x128xf32>
    %12 = arith.addf %6, %11 : vector<16x128xf32>
    %13 = vector.extract_strided_slice %5 {offsets = [1, 0, 0], sizes = [4, 4, 384], strides = [1, 1, 1]} : vector<6x4x384xf32> to vector<4x4x384xf32>
    %14 = vector.shape_cast %13 : vector<4x4x384xf32> to vector<16x384xf32>
    %c1 = arith.constant 1 : index
    %c0_7 = arith.constant 0 : index
    %c0_8 = arith.constant 0 : index
    %15 = vector.load %arg2[%c1, %c0_7, %c0_8] : memref<3x384x128xf32, #tpu.memory_space<vmem>>, vector<1x384x128xf32>
    %16 = vector.shape_cast %15 : vector<1x384x128xf32> to vector<384x128xf32>
    %cst_9 = arith.constant dense<0.000000e+00> : vector<16x128xf32>
    %17 = tpu.matmul %14, %16, %cst_9 {dimension_numbers = #tpu.dot_dimension_numbers<[1], [0], [0], [1], [0, 0, 1, 1], [], []>} : vector<16x384xf32>, vector<384x128xf32>, vector<16x128xf32> -> vector<16x128xf32>
    %18 = arith.addf %12, %17 : vector<16x128xf32>
    %19 = vector.extract_strided_slice %5 {offsets = [2, 0, 0], sizes = [4, 4, 384], strides = [1, 1, 1]} : vector<6x4x384xf32> to vector<4x4x384xf32>
    %20 = vector.shape_cast %19 : vector<4x4x384xf32> to vector<16x384xf32>
    %c2 = arith.constant 2 : index
    %c0_10 = arith.constant 0 : index
    %c0_11 = arith.constant 0 : index
    %21 = vector.load %arg2[%c2, %c0_10, %c0_11] : memref<3x384x128xf32, #tpu.memory_space<vmem>>, vector<1x384x128xf32>
    %22 = vector.shape_cast %21 : vector<1x384x128xf32> to vector<384x128xf32>
    %cst_12 = arith.constant dense<0.000000e+00> : vector<16x128xf32>
    %23 = tpu.matmul %20, %22, %cst_12 {dimension_numbers = #tpu.dot_dimension_numbers<[1], [0], [0], [1], [0, 0, 1, 1], [], []>} : vector<16x384xf32>, vector<384x128xf32>, vector<16x128xf32> -> vector<16x128xf32>
    %24 = arith.addf %18, %23 : vector<16x128xf32>
    %c0_13 = arith.constant 0 : index
    %c0_14 = arith.constant 0 : index
    %25 = vector.load %arg3[%c0_13, %c0_14] : memref<1x128xf32, #tpu.memory_space<vmem>>, vector<1x128xf32>
    %26 = vector.shape_cast %25 : vector<1x128xf32> to vector<128xf32>
    %27 = vector.shape_cast %26 : vector<128xf32> to vector<1x128xf32>
    %28 = vector.broadcast %27 : vector<1x128xf32> to vector<16x128xf32>
    %29 = arith.mulf %24, %28 : vector<16x128xf32>
    %c0_15 = arith.constant 0 : index
    %c0_16 = arith.constant 0 : index
    %30 = vector.load %arg4[%c0_15, %c0_16] : memref<1x128xf32, #tpu.memory_space<vmem>>, vector<1x128xf32>
    %31 = vector.shape_cast %30 : vector<1x128xf32> to vector<128xf32>
    %32 = vector.shape_cast %31 : vector<128xf32> to vector<1x128xf32>
    %33 = vector.broadcast %32 : vector<1x128xf32> to vector<16x128xf32>
    %34 = arith.addf %29, %33 : vector<16x128xf32>
    %cst_17 = arith.constant 0.000000e+00 : f32
    %35 = vector.broadcast %cst_17 : f32 to vector<16x128xf32>
    %36 = arith.maximumf %34, %35 : vector<16x128xf32>
    %cst_18 = arith.constant 0.000000e+00 : f32
    %37 = vector.broadcast %cst_18 : f32 to vector<6x6x128xf32>
    %c0_19 = arith.constant 0 : index
    %c0_20 = arith.constant 0 : index
    %c0_21 = arith.constant 0 : index
    %38 = vector.load %arg9[%c0_19, %c0_20, %c0_21] : memref<6x6x128xf32, #tpu.memory_space<vmem>>, vector<6x6x128xf32>
    tpu.vector_store %arg9[%c0_19, %c0_20, %c0_21], %37 {strides = array<i32>} : memref<6x6x128xf32, #tpu.memory_space<vmem>>, vector<6x6x128xf32>,
    %39 = vector.shape_cast %36 : vector<16x128xf32> to vector<4x4x128xf32>
    %c1_22 = arith.constant 1 : index
    %c1_23 = arith.constant 1 : index
    %c0_24 = arith.constant 0 : index
    %40 = vector.load %arg9[%c1_22, %c1_23, %c0_24] : memref<6x6x128xf32, #tpu.memory_space<vmem>>, vector<4x4x128xf32>
    tpu.vector_store %arg9[%c1_22, %c1_23, %c0_24], %39 {strides = array<i32>} : memref<6x6x128xf32, #tpu.memory_space<vmem>>, vector<4x4x128xf32>,
    %c0_25 = arith.constant 0 : index
    %c0_26 = arith.constant 0 : index
    %c0_27 = arith.constant 0 : index
    %41 = vector.load %arg9[%c0_25, %c0_26, %c0_27] : memref<6x6x128xf32, #tpu.memory_space<vmem>>, vector<6x6x128xf32>
    %42 = vector.extract_strided_slice %41 {offsets = [0, 0, 0], sizes = [6, 4, 128], strides = [1, 1, 1]} : vector<6x6x128xf32> to vector<6x4x128xf32>
    %43 = vector.extract_strided_slice %41 {offsets = [0, 1, 0], sizes = [6, 4, 128], strides = [1, 1, 1]} : vector<6x6x128xf32> to vector<6x4x128xf32>
    %44 = vector.extract_strided_slice %41 {offsets = [0, 2, 0], sizes = [6, 4, 128], strides = [1, 1, 1]} : vector<6x6x128xf32> to vector<6x4x128xf32>
    %45 = tpu.concatenate %42, %43, %44 in 2 : vector<6x4x128xf32>, vector<6x4x128xf32>, vector<6x4x128xf32> -> vector<6x4x384xf32>
    %cst_28 = arith.constant 0.000000e+00 : f32
    %46 = vector.broadcast %cst_28 : f32 to vector<16x128xf32>
    %47 = vector.extract_strided_slice %45 {offsets = [0, 0, 0], sizes = [4, 4, 384], strides = [1, 1, 1]} : vector<6x4x384xf32> to vector<4x4x384xf32>
    %48 = vector.shape_cast %47 : vector<4x4x384xf32> to vector<16x384xf32>
    %c0_29 = arith.constant 0 : index
    %c0_30 = arith.constant 0 : index
    %c0_31 = arith.constant 0 : index
    %49 = vector.load %arg5[%c0_29, %c0_30, %c0_31] : memref<3x384x128xf32, #tpu.memory_space<vmem>>, vector<1x384x128xf32>
    %50 = vector.shape_cast %49 : vector<1x384x128xf32> to vector<384x128xf32>
    %cst_32 = arith.constant dense<0.000000e+00> : vector<16x128xf32>
    %51 = tpu.matmul %48, %50, %cst_32 {dimension_numbers = #tpu.dot_dimension_numbers<[1], [0], [0], [1], [0, 0, 1, 1], [], []>} : vector<16x384xf32>, vector<384x128xf32>, vector<16x128xf32> -> vector<16x128xf32>
    %52 = arith.addf %46, %51 : vector<16x128xf32>
    %53 = vector.extract_strided_slice %45 {offsets = [1, 0, 0], sizes = [4, 4, 384], strides = [1, 1, 1]} : vector<6x4x384xf32> to vector<4x4x384xf32>
    %54 = vector.shape_cast %53 : vector<4x4x384xf32> to vector<16x384xf32>
    %c1_33 = arith.constant 1 : index
    %c0_34 = arith.constant 0 : index
    %c0_35 = arith.constant 0 : index
    %55 = vector.load %arg5[%c1_33, %c0_34, %c0_35] : memref<3x384x128xf32, #tpu.memory_space<vmem>>, vector<1x384x128xf32>
    %56 = vector.shape_cast %55 : vector<1x384x128xf32> to vector<384x128xf32>
    %cst_36 = arith.constant dense<0.000000e+00> : vector<16x128xf32>
    %57 = tpu.matmul %54, %56, %cst_36 {dimension_numbers = #tpu.dot_dimension_numbers<[1], [0], [0], [1], [0, 0, 1, 1], [], []>} : vector<16x384xf32>, vector<384x128xf32>, vector<16x128xf32> -> vector<16x128xf32>
    %58 = arith.addf %52, %57 : vector<16x128xf32>
    %59 = vector.extract_strided_slice %45 {offsets = [2, 0, 0], sizes = [4, 4, 384], strides = [1, 1, 1]} : vector<6x4x384xf32> to vector<4x4x384xf32>
    %60 = vector.shape_cast %59 : vector<4x4x384xf32> to vector<16x384xf32>
    %c2_37 = arith.constant 2 : index
    %c0_38 = arith.constant 0 : index
    %c0_39 = arith.constant 0 : index
    %61 = vector.load %arg5[%c2_37, %c0_38, %c0_39] : memref<3x384x128xf32, #tpu.memory_space<vmem>>, vector<1x384x128xf32>
    %62 = vector.shape_cast %61 : vector<1x384x128xf32> to vector<384x128xf32>
    %cst_40 = arith.constant dense<0.000000e+00> : vector<16x128xf32>
    %63 = tpu.matmul %60, %62, %cst_40 {dimension_numbers = #tpu.dot_dimension_numbers<[1], [0], [0], [1], [0, 0, 1, 1], [], []>} : vector<16x384xf32>, vector<384x128xf32>, vector<16x128xf32> -> vector<16x128xf32>
    %64 = arith.addf %58, %63 : vector<16x128xf32>
    %c0_41 = arith.constant 0 : index
    %c0_42 = arith.constant 0 : index
    %65 = vector.load %arg6[%c0_41, %c0_42] : memref<1x128xf32, #tpu.memory_space<vmem>>, vector<1x128xf32>
    %66 = vector.shape_cast %65 : vector<1x128xf32> to vector<128xf32>
    %67 = vector.shape_cast %66 : vector<128xf32> to vector<1x128xf32>
    %68 = vector.broadcast %67 : vector<1x128xf32> to vector<16x128xf32>
    %69 = arith.mulf %64, %68 : vector<16x128xf32>
    %c0_43 = arith.constant 0 : index
    %c0_44 = arith.constant 0 : index
    %70 = vector.load %arg7[%c0_43, %c0_44] : memref<1x128xf32, #tpu.memory_space<vmem>>, vector<1x128xf32>
    %71 = vector.shape_cast %70 : vector<1x128xf32> to vector<128xf32>
    %72 = vector.shape_cast %71 : vector<128xf32> to vector<1x128xf32>
    %73 = vector.broadcast %72 : vector<1x128xf32> to vector<16x128xf32>
    %74 = arith.addf %69, %73 : vector<16x128xf32>
    %75 = vector.extract_strided_slice %1 {offsets = [1, 1, 0], sizes = [4, 4, 128], strides = [1, 1, 1]} : vector<6x6x128xf32> to vector<4x4x128xf32>
    %76 = vector.shape_cast %75 : vector<4x4x128xf32> to vector<16x128xf32>
    %77 = arith.addf %74, %76 : vector<16x128xf32>
    %cst_45 = arith.constant 0.000000e+00 : f32
    %78 = vector.broadcast %cst_45 : f32 to vector<16x128xf32>
    %79 = arith.maximumf %77, %78 : vector<16x128xf32>
    %80 = vector.shape_cast %79 : vector<16x128xf32> to vector<4x4x128xf32>
    %cst_46 = arith.constant 0.000000e+00 : f32
    %81 = vector.broadcast %cst_46 : f32 to vector<1x6x6x128xf32>
    %c0_47 = arith.constant 0 : index
    %c0_48 = arith.constant 0 : index
    %c0_49 = arith.constant 0 : index
    %c0_50 = arith.constant 0 : index
    %82 = vector.load %arg8[%c0_47, %c0_48, %c0_49, %c0_50] : memref<1x6x6x128xf32, #tpu.memory_space<vmem>>, vector<1x6x6x128xf32>
    tpu.vector_store %arg8[%c0_47, %c0_48, %c0_49, %c0_50], %81 {strides = array<i32>} : memref<1x6x6x128xf32, #tpu.memory_space<vmem>>, vector<1x6x6x128xf32>,
    %c0_51 = arith.constant 0 : index
    %c1_52 = arith.constant 1 : index
    %c1_53 = arith.constant 1 : index
    %c0_54 = arith.constant 0 : index
    %83 = vector.load %arg8[%c0_51, %c1_52, %c1_53, %c0_54] : memref<1x6x6x128xf32, #tpu.memory_space<vmem>>, vector<1x4x4x128xf32>
    %84 = vector.shape_cast %83 : vector<1x4x4x128xf32> to vector<4x4x128xf32>
    %85 = vector.shape_cast %80 : vector<4x4x128xf32> to vector<1x4x4x128xf32>
    tpu.vector_store %arg8[%c0_51, %c1_52, %c1_53, %c0_54], %85 {strides = array<i32>} : memref<1x6x6x128xf32, #tpu.memory_space<vmem>>, vector<1x4x4x128xf32>,
    return
  }
  func.func @transform_0(%arg0: i32) -> (i32, i32, i32, i32) {
    %c0_i32 = arith.constant 0 : i32
    %c0_i32_0 = arith.constant 0 : i32
    %c0_i32_1 = arith.constant 0 : i32
    %c0_i32_2 = arith.constant 0 : i32
    return %arg0, %c0_i32, %c0_i32_0, %c0_i32_1 : i32, i32, i32, i32
  }
  func.func @transform_1(%arg0: i32) -> (i32, i32, i32) {
    %c0_i32 = arith.constant 0 : i32
    %c0_i32_0 = arith.constant 0 : i32
    %c0_i32_1 = arith.constant 0 : i32
    %c0_i32_2 = arith.constant 0 : i32
    return %c0_i32, %c0_i32_0, %c0_i32_1 : i32, i32, i32
  }
  func.func @transform_2(%arg0: i32) -> (i32, i32) {
    %c0_i32 = arith.constant 0 : i32
    %c0_i32_0 = arith.constant 0 : i32
    %c0_i32_1 = arith.constant 0 : i32
    return %c0_i32, %c0_i32_0 : i32, i32
  }
  func.func @transform_3(%arg0: i32) -> (i32, i32) {
    %c0_i32 = arith.constant 0 : i32
    %c0_i32_0 = arith.constant 0 : i32
    %c0_i32_1 = arith.constant 0 : i32
    return %c0_i32, %c0_i32_0 : i32, i32
  }
  func.func @transform_4(%arg0: i32) -> (i32, i32, i32) {
    %c0_i32 = arith.constant 0 : i32
    %c0_i32_0 = arith.constant 0 : i32
    %c0_i32_1 = arith.constant 0 : i32
    %c0_i32_2 = arith.constant 0 : i32
    return %c0_i32, %c0_i32_0, %c0_i32_1 : i32, i32, i32
  }
  func.func @transform_5(%arg0: i32) -> (i32, i32) {
    %c0_i32 = arith.constant 0 : i32
    %c0_i32_0 = arith.constant 0 : i32
    %c0_i32_1 = arith.constant 0 : i32
    return %c0_i32, %c0_i32_0 : i32, i32
  }
  func.func @transform_6(%arg0: i32) -> (i32, i32) {
    %c0_i32 = arith.constant 0 : i32
    %c0_i32_0 = arith.constant 0 : i32
    %c0_i32_1 = arith.constant 0 : i32
    return %c0_i32, %c0_i32_0 : i32, i32
  }
  func.func @transform_7(%arg0: i32) -> (i32, i32, i32, i32) {
    %c0_i32 = arith.constant 0 : i32
    %c0_i32_0 = arith.constant 0 : i32
    %c0_i32_1 = arith.constant 0 : i32
    %c0_i32_2 = arith.constant 0 : i32
    return %arg0, %c0_i32, %c0_i32_0, %c0_i32_1 : i32, i32, i32, i32
  }
}

module attributes {stable_mosaic.version = 11 : i64} {
  func.func @resblock_kernel(%arg0: i32, %arg1: memref<1x6x6x128xf32, #tpu.memory_space<vmem>>, %arg2: memref<3x384x128xf32, #tpu.memory_space<vmem>>, %arg3: memref<1x128xf32, #tpu.memory_space<vmem>>, %arg4: memref<1x128xf32, #tpu.memory_space<vmem>>, %arg5: memref<3x384x128xf32, #tpu.memory_space<vmem>>, %arg6: memref<1x128xf32, #tpu.memory_space<vmem>>, %arg7: memref<1x128xf32, #tpu.memory_space<vmem>>, %arg8: memref<1x6x6x128xf32, #tpu.memory_space<vmem>>, %arg9: memref<6x6x128xf32, #tpu.memory_space<vmem>>) attributes {dimension_semantics = [#tpu.dimension_semantics<parallel>], iteration_bounds = array<i64: 2>, scalar_prefetch = 0 : i64, scratch_operands = 1 : i64, tpu.core_type = #tpu.core_type<tc>, window_params = [{transform_indices = @transform_0, window_bounds = array<i64: 1, 6, 6, 128>}, {pipeline_mode = #tpu.pipeline_mode<synchronous>, transform_indices = @transform_1, window_bounds = array<i64: 3, 384, 128>}, {pipeline_mode = #tpu.pipeline_mode<synchronous>, transform_indices = @transform_2, window_bounds = array<i64: 1, 128>}, {pipeline_mode = #tpu.pipeline_mode<synchronous>, transform_indices = @transform_3, window_bounds = array<i64: 1, 128>}, {pipeline_mode = #tpu.pipeline_mode<synchronous>, transform_indices = @transform_4, window_bounds = array<i64: 3, 384, 128>}, {pipeline_mode = #tpu.pipeline_mode<synchronous>, transform_indices = @transform_5, window_bounds = array<i64: 1, 128>}, {pipeline_mode = #tpu.pipeline_mode<synchronous>, transform_indices = @transform_6, window_bounds = array<i64: 1, 128>}, {transform_indices = @transform_7, window_bounds = array<i64: 1, 6, 6, 128>}]} {
    %c0 = arith.constant 0 : index
    %c0_0 = arith.constant 0 : index
    %c0_1 = arith.constant 0 : index
    %c0_2 = arith.constant 0 : index
    %0 = vector.load %arg1[%c0, %c0_0, %c0_1, %c0_2] : memref<1x6x6x128xf32, #tpu.memory_space<vmem>>, vector<1x6x6x128xf32>
    %1 = vector.shape_cast %0 : vector<1x6x6x128xf32> to vector<6x6x128xf32>
    %2 = vector.extract_strided_slice %1 {offsets = [0, 0, 0], sizes = [6, 4, 128], strides = [1, 1, 1]} : vector<6x6x128xf32> to vector<6x4x128xf32>
    %3 = vector.extract_strided_slice %1 {offsets = [0, 1, 0], sizes = [6, 4, 128], strides = [1, 1, 1]} : vector<6x6x128xf32> to vector<6x4x128xf32>
    %4 = vector.extract_strided_slice %1 {offsets = [0, 2, 0], sizes = [6, 4, 128], strides = [1, 1, 1]} : vector<6x6x128xf32> to vector<6x4x128xf32>
    %5 = tpu.concatenate %2, %3, %4 in 2 : vector<6x4x128xf32>, vector<6x4x128xf32>, vector<6x4x128xf32> -> vector<6x4x384xf32>
    %cst = arith.constant 0.000000e+00 : f32
    %6 = vector.broadcast %cst : f32 to vector<16x128xf32>
    %7 = vector.extract_strided_slice %5 {offsets = [0, 0, 0], sizes = [4, 4, 384], strides = [1, 1, 1]} : vector<6x4x384xf32> to vector<4x4x384xf32>
    %8 = vector.shape_cast %7 : vector<4x4x384xf32> to vector<16x384xf32>
    %c0_3 = arith.constant 0 : index
    %c0_4 = arith.constant 0 : index
    %c0_5 = arith.constant 0 : index
    %9 = vector.load %arg2[%c0_3, %c0_4, %c0_5] : memref<3x384x128xf32, #tpu.memory_space<vmem>>, vector<1x384x128xf32>
    %10 = vector.shape_cast %9 : vector<1x384x128xf32> to vector<384x128xf32>
    %cst_6 = arith.constant dense<0.000000e+00> : vector<16x128xf32>
    %11 = tpu.matmul %8, %10, %cst_6 {dimension_numbers = #tpu.dot_dimension_numbers<[1], [0], [0], [1], [0, 0, 1, 1], [], []>} : vector<16x384xf32>, vector<384x128xf32>, vector<16x128xf32> -> vector<16x128xf32>
    %12 = arith.addf %6, %11 : vector<16x128xf32>
    %13 = vector.extract_strided_slice %5 {offsets = [1, 0, 0], sizes = [4, 4, 384], strides = [1, 1, 1]} : vector<6x4x384xf32> to vector<4x4x384xf32>
    %14 = vector.shape_cast %13 : vector<4x4x384xf32> to vector<16x384xf32>
    %c1 = arith.constant 1 : index
    %c0_7 = arith.constant 0 : index
    %c0_8 = arith.constant 0 : index
    %15 = vector.load %arg2[%c1, %c0_7, %c0_8] : memref<3x384x128xf32, #tpu.memory_space<vmem>>, vector<1x384x128xf32>
    %16 = vector.shape_cast %15 : vector<1x384x128xf32> to vector<384x128xf32>
    %cst_9 = arith.constant dense<0.000000e+00> : vector<16x128xf32>
    %17 = tpu.matmul %14, %16, %cst_9 {dimension_numbers = #tpu.dot_dimension_numbers<[1], [0], [0], [1], [0, 0, 1, 1], [], []>} : vector<16x384xf32>, vector<384x128xf32>, vector<16x128xf32> -> vector<16x128xf32>
    %18 = arith.addf %12, %17 : vector<16x128xf32>
    %19 = vector.extract_strided_slice %5 {offsets = [2, 0, 0], sizes = [4, 4, 384], strides = [1, 1, 1]} : vector<6x4x384xf32> to vector<4x4x384xf32>
    %20 = vector.shape_cast %19 : vector<4x4x384xf32> to vector<16x384xf32>
    %c2 = arith.constant 2 : index
    %c0_10 = arith.constant 0 : index
    %c0_11 = arith.constant 0 : index
    %21 = vector.load %arg2[%c2, %c0_10, %c0_11] : memref<3x384x128xf32, #tpu.memory_space<vmem>>, vector<1x384x128xf32>
    %22 = vector.shape_cast %21 : vector<1x384x128xf32> to vector<384x128xf32>
    %cst_12 = arith.constant dense<0.000000e+00> : vector<16x128xf32>
    %23 = tpu.matmul %20, %22, %cst_12 {dimension_numbers = #tpu.dot_dimension_numbers<[1], [0], [0], [1], [0, 0, 1, 1], [], []>} : vector<16x384xf32>, vector<384x128xf32>, vector<16x128xf32> -> vector<16x128xf32>
    %24 = arith.addf %18, %23 : vector<16x128xf32>
    %c0_13 = arith.constant 0 : index
    %c0_14 = arith.constant 0 : index
    %25 = vector.load %arg3[%c0_13, %c0_14] : memref<1x128xf32, #tpu.memory_space<vmem>>, vector<1x128xf32>
    %26 = vector.shape_cast %25 : vector<1x128xf32> to vector<128xf32>
    %27 = vector.shape_cast %26 : vector<128xf32> to vector<1x128xf32>
    %28 = vector.broadcast %27 : vector<1x128xf32> to vector<16x128xf32>
    %29 = arith.mulf %24, %28 : vector<16x128xf32>
    %c0_15 = arith.constant 0 : index
    %c0_16 = arith.constant 0 : index
    %30 = vector.load %arg4[%c0_15, %c0_16] : memref<1x128xf32, #tpu.memory_space<vmem>>, vector<1x128xf32>
    %31 = vector.shape_cast %30 : vector<1x128xf32> to vector<128xf32>
    %32 = vector.shape_cast %31 : vector<128xf32> to vector<1x128xf32>
    %33 = vector.broadcast %32 : vector<1x128xf32> to vector<16x128xf32>
    %34 = arith.addf %29, %33 : vector<16x128xf32>
    %cst_17 = arith.constant 0.000000e+00 : f32
    %35 = vector.broadcast %cst_17 : f32 to vector<16x128xf32>
    %36 = arith.maximumf %34, %35 : vector<16x128xf32>
    %cst_18 = arith.constant 0.000000e+00 : f32
    %37 = vector.broadcast %cst_18 : f32 to vector<6x6x128xf32>
    %c0_19 = arith.constant 0 : index
    %c0_20 = arith.constant 0 : index
    %c0_21 = arith.constant 0 : index
    %38 = vector.load %arg9[%c0_19, %c0_20, %c0_21] : memref<6x6x128xf32, #tpu.memory_space<vmem>>, vector<6x6x128xf32>
    tpu.vector_store %arg9[%c0_19, %c0_20, %c0_21], %37 {strides = array<i32>} : memref<6x6x128xf32, #tpu.memory_space<vmem>>, vector<6x6x128xf32>,
    %39 = vector.shape_cast %36 : vector<16x128xf32> to vector<4x4x128xf32>
    %c1_22 = arith.constant 1 : index
    %c1_23 = arith.constant 1 : index
    %c0_24 = arith.constant 0 : index
    %40 = vector.load %arg9[%c1_22, %c1_23, %c0_24] : memref<6x6x128xf32, #tpu.memory_space<vmem>>, vector<4x4x128xf32>
    tpu.vector_store %arg9[%c1_22, %c1_23, %c0_24], %39 {strides = array<i32>} : memref<6x6x128xf32, #tpu.memory_space<vmem>>, vector<4x4x128xf32>,
    %c0_25 = arith.constant 0 : index
    %c0_26 = arith.constant 0 : index
    %c0_27 = arith.constant 0 : index
    %41 = vector.load %arg9[%c0_25, %c0_26, %c0_27] : memref<6x6x128xf32, #tpu.memory_space<vmem>>, vector<6x6x128xf32>
    %42 = vector.extract_strided_slice %41 {offsets = [0, 0, 0], sizes = [6, 4, 128], strides = [1, 1, 1]} : vector<6x6x128xf32> to vector<6x4x128xf32>
    %43 = vector.extract_strided_slice %41 {offsets = [0, 1, 0], sizes = [6, 4, 128], strides = [1, 1, 1]} : vector<6x6x128xf32> to vector<6x4x128xf32>
    %44 = vector.extract_strided_slice %41 {offsets = [0, 2, 0], sizes = [6, 4, 128], strides = [1, 1, 1]} : vector<6x6x128xf32> to vector<6x4x128xf32>
    %45 = tpu.concatenate %42, %43, %44 in 2 : vector<6x4x128xf32>, vector<6x4x128xf32>, vector<6x4x128xf32> -> vector<6x4x384xf32>
    %cst_28 = arith.constant 0.000000e+00 : f32
    %46 = vector.broadcast %cst_28 : f32 to vector<16x128xf32>
    %47 = vector.extract_strided_slice %45 {offsets = [0, 0, 0], sizes = [4, 4, 384], strides = [1, 1, 1]} : vector<6x4x384xf32> to vector<4x4x384xf32>
    %48 = vector.shape_cast %47 : vector<4x4x384xf32> to vector<16x384xf32>
    %c0_29 = arith.constant 0 : index
    %c0_30 = arith.constant 0 : index
    %c0_31 = arith.constant 0 : index
    %49 = vector.load %arg5[%c0_29, %c0_30, %c0_31] : memref<3x384x128xf32, #tpu.memory_space<vmem>>, vector<1x384x128xf32>
    %50 = vector.shape_cast %49 : vector<1x384x128xf32> to vector<384x128xf32>
    %cst_32 = arith.constant dense<0.000000e+00> : vector<16x128xf32>
    %51 = tpu.matmul %48, %50, %cst_32 {dimension_numbers = #tpu.dot_dimension_numbers<[1], [0], [0], [1], [0, 0, 1, 1], [], []>} : vector<16x384xf32>, vector<384x128xf32>, vector<16x128xf32> -> vector<16x128xf32>
    %52 = arith.addf %46, %51 : vector<16x128xf32>
    %53 = vector.extract_strided_slice %45 {offsets = [1, 0, 0], sizes = [4, 4, 384], strides = [1, 1, 1]} : vector<6x4x384xf32> to vector<4x4x384xf32>
    %54 = vector.shape_cast %53 : vector<4x4x384xf32> to vector<16x384xf32>
    %c1_33 = arith.constant 1 : index
    %c0_34 = arith.constant 0 : index
    %c0_35 = arith.constant 0 : index
    %55 = vector.load %arg5[%c1_33, %c0_34, %c0_35] : memref<3x384x128xf32, #tpu.memory_space<vmem>>, vector<1x384x128xf32>
    %56 = vector.shape_cast %55 : vector<1x384x128xf32> to vector<384x128xf32>
    %cst_36 = arith.constant dense<0.000000e+00> : vector<16x128xf32>
    %57 = tpu.matmul %54, %56, %cst_36 {dimension_numbers = #tpu.dot_dimension_numbers<[1], [0], [0], [1], [0, 0, 1, 1], [], []>} : vector<16x384xf32>, vector<384x128xf32>, vector<16x128xf32> -> vector<16x128xf32>
    %58 = arith.addf %52, %57 : vector<16x128xf32>
    %59 = vector.extract_strided_slice %45 {offsets = [2, 0, 0], sizes = [4, 4, 384], strides = [1, 1, 1]} : vector<6x4x384xf32> to vector<4x4x384xf32>
    %60 = vector.shape_cast %59 : vector<4x4x384xf32> to vector<16x384xf32>
    %c2_37 = arith.constant 2 : index
    %c0_38 = arith.constant 0 : index
    %c0_39 = arith.constant 0 : index
    %61 = vector.load %arg5[%c2_37, %c0_38, %c0_39] : memref<3x384x128xf32, #tpu.memory_space<vmem>>, vector<1x384x128xf32>
    %62 = vector.shape_cast %61 : vector<1x384x128xf32> to vector<384x128xf32>
    %cst_40 = arith.constant dense<0.000000e+00> : vector<16x128xf32>
    %63 = tpu.matmul %60, %62, %cst_40 {dimension_numbers = #tpu.dot_dimension_numbers<[1], [0], [0], [1], [0, 0, 1, 1], [], []>} : vector<16x384xf32>, vector<384x128xf32>, vector<16x128xf32> -> vector<16x128xf32>
    %64 = arith.addf %58, %63 : vector<16x128xf32>
    %c0_41 = arith.constant 0 : index
    %c0_42 = arith.constant 0 : index
    %65 = vector.load %arg6[%c0_41, %c0_42] : memref<1x128xf32, #tpu.memory_space<vmem>>, vector<1x128xf32>
    %66 = vector.shape_cast %65 : vector<1x128xf32> to vector<128xf32>
    %67 = vector.shape_cast %66 : vector<128xf32> to vector<1x128xf32>
    %68 = vector.broadcast %67 : vector<1x128xf32> to vector<16x128xf32>
    %69 = arith.mulf %64, %68 : vector<16x128xf32>
    %c0_43 = arith.constant 0 : index
    %c0_44 = arith.constant 0 : index
    %70 = vector.load %arg7[%c0_43, %c0_44] : memref<1x128xf32, #tpu.memory_space<vmem>>, vector<1x128xf32>
    %71 = vector.shape_cast %70 : vector<1x128xf32> to vector<128xf32>
    %72 = vector.shape_cast %71 : vector<128xf32> to vector<1x128xf32>
    %73 = vector.broadcast %72 : vector<1x128xf32> to vector<16x128xf32>
    %74 = arith.addf %69, %73 : vector<16x128xf32>
    %75 = vector.extract_strided_slice %1 {offsets = [1, 1, 0], sizes = [4, 4, 128], strides = [1, 1, 1]} : vector<6x6x128xf32> to vector<4x4x128xf32>
    %76 = vector.shape_cast %75 : vector<4x4x128xf32> to vector<16x128xf32>
    %77 = arith.addf %74, %76 : vector<16x128xf32>
    %cst_45 = arith.constant 0.000000e+00 : f32
    %78 = vector.broadcast %cst_45 : f32 to vector<16x128xf32>
    %79 = arith.maximumf %77, %78 : vector<16x128xf32>
    %80 = vector.shape_cast %79 : vector<16x128xf32> to vector<4x4x128xf32>
    %cst_46 = arith.constant 0.000000e+00 : f32
    %81 = vector.broadcast %cst_46 : f32 to vector<1x6x6x128xf32>
    %c0_47 = arith.constant 0 : index
    %c0_48 = arith.constant 0 : index
    %c0_49 = arith.constant 0 : index
    %c0_50 = arith.constant 0 : index
    %82 = vector.load %arg8[%c0_47, %c0_48, %c0_49, %c0_50] : memref<1x6x6x128xf32, #tpu.memory_space<vmem>>, vector<1x6x6x128xf32>
    tpu.vector_store %arg8[%c0_47, %c0_48, %c0_49, %c0_50], %81 {strides = array<i32>} : memref<1x6x6x128xf32, #tpu.memory_space<vmem>>, vector<1x6x6x128xf32>,
    %c0_51 = arith.constant 0 : index
    %c1_52 = arith.constant 1 : index
    %c1_53 = arith.constant 1 : index
    %c0_54 = arith.constant 0 : index
    %83 = vector.load %arg8[%c0_51, %c1_52, %c1_53, %c0_54] : memref<1x6x6x128xf32, #tpu.memory_space<vmem>>, vector<1x4x4x128xf32>
    %84 = vector.shape_cast %83 : vector<1x4x4x128xf32> to vector<4x4x128xf32>
    %85 = vector.shape_cast %80 : vector<4x4x128xf32> to vector<1x4x4x128xf32>
    tpu.vector_store %arg8[%c0_51, %c1_52, %c1_53, %c0_54], %85 {strides = array<i32>} : memref<1x6x6x128xf32, #tpu.memory_space<vmem>>, vector<1x4x4x128xf32>,
    return
  }
  func.func @transform_0(%arg0: i32) -> (i32, i32, i32, i32) {
    %c0_i32 = arith.constant 0 : i32
    %c0_i32_0 = arith.constant 0 : i32
    %c0_i32_1 = arith.constant 0 : i32
    %c0_i32_2 = arith.constant 0 : i32
    return %arg0, %c0_i32, %c0_i32_0, %c0_i32_1 : i32, i32, i32, i32
  }
  func.func @transform_1(%arg0: i32) -> (i32, i32, i32) {
    %c0_i32 = arith.constant 0 : i32
    %c0_i32_0 = arith.constant 0 : i32
    %c0_i32_1 = arith.constant 0 : i32
    %c0_i32_2 = arith.constant 0 : i32
    return %c0_i32, %c0_i32_0, %c0_i32_1 : i32, i32, i32
  }
  func.func @transform_2(%arg0: i32) -> (i32, i32) {
    %c0_i32 = arith.constant 0 : i32
    %c0_i32_0 = arith.constant 0 : i32
    %c0_i32_1 = arith.constant 0 : i32
    return %c0_i32, %c0_i32_0 : i32, i32
  }
  func.func @transform_3(%arg0: i32) -> (i32, i32) {
    %c0_i32 = arith.constant 0 : i32
    %c0_i32_0 = arith.constant 0 : i32
    %c0_i32_1 = arith.constant 0 : i32
    return %c0_i32, %c0_i32_0 : i32, i32
  }
  func.func @transform_4(%arg0: i32) -> (i32, i32, i32) {
    %c0_i32 = arith.constant 0 : i32
    %c0_i32_0 = arith.constant 0 : i32
    %c0_i32_1 = arith.constant 0 : i32
    %c0_i32_2 = arith.constant 0 : i32
    return %c0_i32, %c0_i32_0, %c0_i32_1 : i32, i32, i32
  }
  func.func @transform_5(%arg0: i32) -> (i32, i32) {
    %c0_i32 = arith.constant 0 : i32
    %c0_i32_0 = arith.constant 0 : i32
    %c0_i32_1 = arith.constant 0 : i32
    return %c0_i32, %c0_i32_0 : i32, i32
  }
  func.func @transform_6(%arg0: i32) -> (i32, i32) {
    %c0_i32 = arith.constant 0 : i32
    %c0_i32_0 = arith.constant 0 : i32
    %c0_i32_1 = arith.constant 0 : i32
    return %c0_i32, %c0_i32_0 : i32, i32
  }
  func.func @transform_7(%arg0: i32) -> (i32, i32, i32, i32) {
    %c0_i32 = arith.constant 0 : i32
    %c0_i32_0 = arith.constant 0 : i32
    %c0_i32_1 = arith.constant 0 : i32
    %c0_i32_2 = arith.constant 0 : i32
    return %arg0, %c0_i32, %c0_i32_0, %c0_i32_1 : i32, i32, i32, i32
  }
}

module attributes {stable_mosaic.version = 11 : i64} {
  func.func @resblock_down_kernel(%arg0: i32, %arg1: memref<1x5x5x256xf32, #tpu.memory_space<vmem>>, %arg2: memref<1x5x5x256xf32, #tpu.memory_space<vmem>>, %arg3: memref<3x256x128xf32, #tpu.memory_space<vmem>>, %arg4: memref<3x128x128xf32, #tpu.memory_space<vmem>>, %arg5: memref<1x128xf32, #tpu.memory_space<vmem>>, %arg6: memref<1x128xf32, #tpu.memory_space<vmem>>, %arg7: memref<3x384x128xf32, #tpu.memory_space<vmem>>, %arg8: memref<1x128xf32, #tpu.memory_space<vmem>>, %arg9: memref<1x128xf32, #tpu.memory_space<vmem>>, %arg10: memref<128x128xf32, #tpu.memory_space<vmem>>, %arg11: memref<1x128xf32, #tpu.memory_space<vmem>>, %arg12: memref<1x128xf32, #tpu.memory_space<vmem>>, %arg13: memref<1x6x6x128xf32, #tpu.memory_space<vmem>>, %arg14: memref<6x6x128xf32, #tpu.memory_space<vmem>>) attributes {dimension_semantics = [#tpu.dimension_semantics<parallel>], iteration_bounds = array<i64: 2>, scalar_prefetch = 0 : i64, scratch_operands = 1 : i64, tpu.core_type = #tpu.core_type<tc>, window_params = [{transform_indices = @transform_0, window_bounds = array<i64: 1, 5, 5, 256>}, {transform_indices = @transform_1, window_bounds = array<i64: 1, 5, 5, 256>}, {pipeline_mode = #tpu.pipeline_mode<synchronous>, transform_indices = @transform_2, window_bounds = array<i64: 3, 256, 128>}, {pipeline_mode = #tpu.pipeline_mode<synchronous>, transform_indices = @transform_3, window_bounds = array<i64: 3, 128, 128>}, {pipeline_mode = #tpu.pipeline_mode<synchronous>, transform_indices = @transform_4, window_bounds = array<i64: 1, 128>}, {pipeline_mode = #tpu.pipeline_mode<synchronous>, transform_indices = @transform_5, window_bounds = array<i64: 1, 128>}, {pipeline_mode = #tpu.pipeline_mode<synchronous>, transform_indices = @transform_6, window_bounds = array<i64: 3, 384, 128>}, {pipeline_mode = #tpu.pipeline_mode<synchronous>, transform_indices = @transform_7, window_bounds = array<i64: 1, 128>}, {pipeline_mode = #tpu.pipeline_mode<synchronous>, transform_indices = @transform_8, window_bounds = array<i64: 1, 128>}, {pipeline_mode = #tpu.pipeline_mode<synchronous>, transform_indices = @transform_9, window_bounds = array<i64: 128, 128>}, {pipeline_mode = #tpu.pipeline_mode<synchronous>, transform_indices = @transform_10, window_bounds = array<i64: 1, 128>}, {pipeline_mode = #tpu.pipeline_mode<synchronous>, transform_indices = @transform_11, window_bounds = array<i64: 1, 128>}, {transform_indices = @transform_12, window_bounds = array<i64: 1, 6, 6, 128>}]} {
    %c0 = arith.constant 0 : index
    %c0_0 = arith.constant 0 : index
    %c0_1 = arith.constant 0 : index
    %c0_2 = arith.constant 0 : index
    %0 = vector.load %arg1[%c0, %c0_0, %c0_1, %c0_2] : memref<1x5x5x256xf32, #tpu.memory_space<vmem>>, vector<1x5x5x256xf32>
    %1 = vector.shape_cast %0 : vector<1x5x5x256xf32> to vector<5x5x256xf32>
    %c0_3 = arith.constant 0 : index
    %c0_4 = arith.constant 0 : index
    %c0_5 = arith.constant 0 : index
    %c0_6 = arith.constant 0 : index
    %2 = vector.load %arg2[%c0_3, %c0_4, %c0_5, %c0_6] : memref<1x5x5x256xf32, #tpu.memory_space<vmem>>, vector<1x5x5x256xf32>
    %3 = vector.shape_cast %2 : vector<1x5x5x256xf32> to vector<5x5x256xf32>
    %cst = arith.constant 0.000000e+00 : f32
    %4 = vector.broadcast %cst : f32 to vector<16x128xf32>
    %5 = vector.extract_strided_slice %1 {offsets = [0, 0, 0], sizes = [4, 5, 256], strides = [1, 1, 1]} : vector<5x5x256xf32> to vector<4x5x256xf32>
    %6 = vector.extract_strided_slice %5 {offsets = [0, 0, 0], sizes = [4, 4, 256], strides = [1, 1, 1]} : vector<4x5x256xf32> to vector<4x4x256xf32>
    %7 = vector.shape_cast %6 : vector<4x4x256xf32> to vector<16x256xf32>
    %c0_7 = arith.constant 0 : index
    %c0_8 = arith.constant 0 : index
    %c0_9 = arith.constant 0 : index
    %8 = vector.load %arg3[%c0_7, %c0_8, %c0_9] : memref<3x256x128xf32, #tpu.memory_space<vmem>>, vector<1x256x128xf32>
    %9 = vector.shape_cast %8 : vector<1x256x128xf32> to vector<256x128xf32>
    %cst_10 = arith.constant dense<0.000000e+00> : vector<16x128xf32>
    %10 = tpu.matmul %7, %9, %cst_10 {dimension_numbers = #tpu.dot_dimension_numbers<[1], [0], [0], [1], [0, 0, 1, 1], [], []>} : vector<16x256xf32>, vector<256x128xf32>, vector<16x128xf32> -> vector<16x128xf32>
    %11 = arith.addf %4, %10 : vector<16x128xf32>
    %12 = vector.extract_strided_slice %5 {offsets = [0, 1, 0], sizes = [4, 4, 128], strides = [1, 1, 1]} : vector<4x5x256xf32> to vector<4x4x128xf32>
    %13 = vector.shape_cast %12 : vector<4x4x128xf32> to vector<16x128xf32>
    %c0_11 = arith.constant 0 : index
    %c0_12 = arith.constant 0 : index
    %c0_13 = arith.constant 0 : index
    %14 = vector.load %arg4[%c0_11, %c0_12, %c0_13] : memref<3x128x128xf32, #tpu.memory_space<vmem>>, vector<1x128x128xf32>
    %15 = vector.shape_cast %14 : vector<1x128x128xf32> to vector<128x128xf32>
    %cst_14 = arith.constant dense<0.000000e+00> : vector<16x128xf32>
    %16 = tpu.matmul %13, %15, %cst_14 {dimension_numbers = #tpu.dot_dimension_numbers<[1], [0], [0], [1], [0, 0, 1, 1], [], []>} : vector<16x128xf32>, vector<128x128xf32>, vector<16x128xf32> -> vector<16x128xf32>
    %17 = arith.addf %11, %16 : vector<16x128xf32>
    %18 = vector.extract_strided_slice %3 {offsets = [0, 0, 0], sizes = [4, 5, 256], strides = [1, 1, 1]} : vector<5x5x256xf32> to vector<4x5x256xf32>
    %19 = vector.extract_strided_slice %18 {offsets = [0, 0, 0], sizes = [4, 4, 256], strides = [1, 1, 1]} : vector<4x5x256xf32> to vector<4x4x256xf32>
    %20 = vector.shape_cast %19 : vector<4x4x256xf32> to vector<16x256xf32>
    %c1 = arith.constant 1 : index
    %c0_15 = arith.constant 0 : index
    %c0_16 = arith.constant 0 : index
    %21 = vector.load %arg3[%c1, %c0_15, %c0_16] : memref<3x256x128xf32, #tpu.memory_space<vmem>>, vector<1x256x128xf32>
    %22 = vector.shape_cast %21 : vector<1x256x128xf32> to vector<256x128xf32>
    %cst_17 = arith.constant dense<0.000000e+00> : vector<16x128xf32>
    %23 = tpu.matmul %20, %22, %cst_17 {dimension_numbers = #tpu.dot_dimension_numbers<[1], [0], [0], [1], [0, 0, 1, 1], [], []>} : vector<16x256xf32>, vector<256x128xf32>, vector<16x128xf32> -> vector<16x128xf32>
    %24 = arith.addf %17, %23 : vector<16x128xf32>
    %25 = vector.extract_strided_slice %18 {offsets = [0, 1, 0], sizes = [4, 4, 128], strides = [1, 1, 1]} : vector<4x5x256xf32> to vector<4x4x128xf32>
    %26 = vector.shape_cast %25 : vector<4x4x128xf32> to vector<16x128xf32>
    %c1_18 = arith.constant 1 : index
    %c0_19 = arith.constant 0 : index
    %c0_20 = arith.constant 0 : index
    %27 = vector.load %arg4[%c1_18, %c0_19, %c0_20] : memref<3x128x128xf32, #tpu.memory_space<vmem>>, vector<1x128x128xf32>
    %28 = vector.shape_cast %27 : vector<1x128x128xf32> to vector<128x128xf32>
    %cst_21 = arith.constant dense<0.000000e+00> : vector<16x128xf32>
    %29 = tpu.matmul %26, %28, %cst_21 {dimension_numbers = #tpu.dot_dimension_numbers<[1], [0], [0], [1], [0, 0, 1, 1], [], []>} : vector<16x128xf32>, vector<128x128xf32>, vector<16x128xf32> -> vector<16x128xf32>
    %30 = arith.addf %24, %29 : vector<16x128xf32>
    %31 = vector.extract_strided_slice %1 {offsets = [1, 0, 0], sizes = [4, 5, 256], strides = [1, 1, 1]} : vector<5x5x256xf32> to vector<4x5x256xf32>
    %32 = vector.extract_strided_slice %31 {offsets = [0, 0, 0], sizes = [4, 4, 256], strides = [1, 1, 1]} : vector<4x5x256xf32> to vector<4x4x256xf32>
    %33 = vector.shape_cast %32 : vector<4x4x256xf32> to vector<16x256xf32>
    %c2 = arith.constant 2 : index
    %c0_22 = arith.constant 0 : index
    %c0_23 = arith.constant 0 : index
    %34 = vector.load %arg3[%c2, %c0_22, %c0_23] : memref<3x256x128xf32, #tpu.memory_space<vmem>>, vector<1x256x128xf32>
    %35 = vector.shape_cast %34 : vector<1x256x128xf32> to vector<256x128xf32>
    %cst_24 = arith.constant dense<0.000000e+00> : vector<16x128xf32>
    %36 = tpu.matmul %33, %35, %cst_24 {dimension_numbers = #tpu.dot_dimension_numbers<[1], [0], [0], [1], [0, 0, 1, 1], [], []>} : vector<16x256xf32>, vector<256x128xf32>, vector<16x128xf32> -> vector<16x128xf32>
    %37 = arith.addf %30, %36 : vector<16x128xf32>
    %38 = vector.extract_strided_slice %31 {offsets = [0, 1, 0], sizes = [4, 4, 128], strides = [1, 1, 1]} : vector<4x5x256xf32> to vector<4x4x128xf32>
    %39 = vector.shape_cast %38 : vector<4x4x128xf32> to vector<16x128xf32>
    %c2_25 = arith.constant 2 : index
    %c0_26 = arith.constant 0 : index
    %c0_27 = arith.constant 0 : index
    %40 = vector.load %arg4[%c2_25, %c0_26, %c0_27] : memref<3x128x128xf32, #tpu.memory_space<vmem>>, vector<1x128x128xf32>
    %41 = vector.shape_cast %40 : vector<1x128x128xf32> to vector<128x128xf32>
    %cst_28 = arith.constant dense<0.000000e+00> : vector<16x128xf32>
    %42 = tpu.matmul %39, %41, %cst_28 {dimension_numbers = #tpu.dot_dimension_numbers<[1], [0], [0], [1], [0, 0, 1, 1], [], []>} : vector<16x128xf32>, vector<128x128xf32>, vector<16x128xf32> -> vector<16x128xf32>
    %43 = arith.addf %37, %42 : vector<16x128xf32>
    %c0_29 = arith.constant 0 : index
    %c0_30 = arith.constant 0 : index
    %44 = vector.load %arg5[%c0_29, %c0_30] : memref<1x128xf32, #tpu.memory_space<vmem>>, vector<1x128xf32>
    %45 = vector.shape_cast %44 : vector<1x128xf32> to vector<128xf32>
    %46 = vector.shape_cast %45 : vector<128xf32> to vector<1x128xf32>
    %47 = vector.broadcast %46 : vector<1x128xf32> to vector<16x128xf32>
    %48 = arith.mulf %43, %47 : vector<16x128xf32>
    %c0_31 = arith.constant 0 : index
    %c0_32 = arith.constant 0 : index
    %49 = vector.load %arg6[%c0_31, %c0_32] : memref<1x128xf32, #tpu.memory_space<vmem>>, vector<1x128xf32>
    %50 = vector.shape_cast %49 : vector<1x128xf32> to vector<128xf32>
    %51 = vector.shape_cast %50 : vector<128xf32> to vector<1x128xf32>
    %52 = vector.broadcast %51 : vector<1x128xf32> to vector<16x128xf32>
    %53 = arith.addf %48, %52 : vector<16x128xf32>
    %cst_33 = arith.constant 0.000000e+00 : f32
    %54 = vector.broadcast %cst_33 : f32 to vector<16x128xf32>
    %55 = arith.maximumf %53, %54 : vector<16x128xf32>
    %cst_34 = arith.constant 0.000000e+00 : f32
    %56 = vector.broadcast %cst_34 : f32 to vector<6x6x128xf32>
    %c0_35 = arith.constant 0 : index
    %c0_36 = arith.constant 0 : index
    %c0_37 = arith.constant 0 : index
    %57 = vector.load %arg14[%c0_35, %c0_36, %c0_37] : memref<6x6x128xf32, #tpu.memory_space<vmem>>, vector<6x6x128xf32>
    tpu.vector_store %arg14[%c0_35, %c0_36, %c0_37], %56 {strides = array<i32>} : memref<6x6x128xf32, #tpu.memory_space<vmem>>, vector<6x6x128xf32>,
    %58 = vector.shape_cast %55 : vector<16x128xf32> to vector<4x4x128xf32>
    %c1_38 = arith.constant 1 : index
    %c1_39 = arith.constant 1 : index
    %c0_40 = arith.constant 0 : index
    %59 = vector.load %arg14[%c1_38, %c1_39, %c0_40] : memref<6x6x128xf32, #tpu.memory_space<vmem>>, vector<4x4x128xf32>
    tpu.vector_store %arg14[%c1_38, %c1_39, %c0_40], %58 {strides = array<i32>} : memref<6x6x128xf32, #tpu.memory_space<vmem>>, vector<4x4x128xf32>,
    %c0_41 = arith.constant 0 : index
    %c0_42 = arith.constant 0 : index
    %c0_43 = arith.constant 0 : index
    %60 = vector.load %arg14[%c0_41, %c0_42, %c0_43] : memref<6x6x128xf32, #tpu.memory_space<vmem>>, vector<6x6x128xf32>
    %61 = vector.extract_strided_slice %60 {offsets = [0, 0, 0], sizes = [6, 4, 128], strides = [1, 1, 1]} : vector<6x6x128xf32> to vector<6x4x128xf32>
    %62 = vector.extract_strided_slice %60 {offsets = [0, 1, 0], sizes = [6, 4, 128], strides = [1, 1, 1]} : vector<6x6x128xf32> to vector<6x4x128xf32>
    %63 = vector.extract_strided_slice %60 {offsets = [0, 2, 0], sizes = [6, 4, 128], strides = [1, 1, 1]} : vector<6x6x128xf32> to vector<6x4x128xf32>
    %64 = tpu.concatenate %61, %62, %63 in 2 : vector<6x4x128xf32>, vector<6x4x128xf32>, vector<6x4x128xf32> -> vector<6x4x384xf32>
    %cst_44 = arith.constant 0.000000e+00 : f32
    %65 = vector.broadcast %cst_44 : f32 to vector<16x128xf32>
    %66 = vector.extract_strided_slice %64 {offsets = [0, 0, 0], sizes = [4, 4, 384], strides = [1, 1, 1]} : vector<6x4x384xf32> to vector<4x4x384xf32>
    %67 = vector.shape_cast %66 : vector<4x4x384xf32> to vector<16x384xf32>
    %c0_45 = arith.constant 0 : index
    %c0_46 = arith.constant 0 : index
    %c0_47 = arith.constant 0 : index
    %68 = vector.load %arg7[%c0_45, %c0_46, %c0_47] : memref<3x384x128xf32, #tpu.memory_space<vmem>>, vector<1x384x128xf32>
    %69 = vector.shape_cast %68 : vector<1x384x128xf32> to vector<384x128xf32>
    %cst_48 = arith.constant dense<0.000000e+00> : vector<16x128xf32>
    %70 = tpu.matmul %67, %69, %cst_48 {dimension_numbers = #tpu.dot_dimension_numbers<[1], [0], [0], [1], [0, 0, 1, 1], [], []>} : vector<16x384xf32>, vector<384x128xf32>, vector<16x128xf32> -> vector<16x128xf32>
    %71 = arith.addf %65, %70 : vector<16x128xf32>
    %72 = vector.extract_strided_slice %64 {offsets = [1, 0, 0], sizes = [4, 4, 384], strides = [1, 1, 1]} : vector<6x4x384xf32> to vector<4x4x384xf32>
    %73 = vector.shape_cast %72 : vector<4x4x384xf32> to vector<16x384xf32>
    %c1_49 = arith.constant 1 : index
    %c0_50 = arith.constant 0 : index
    %c0_51 = arith.constant 0 : index
    %74 = vector.load %arg7[%c1_49, %c0_50, %c0_51] : memref<3x384x128xf32, #tpu.memory_space<vmem>>, vector<1x384x128xf32>
    %75 = vector.shape_cast %74 : vector<1x384x128xf32> to vector<384x128xf32>
    %cst_52 = arith.constant dense<0.000000e+00> : vector<16x128xf32>
    %76 = tpu.matmul %73, %75, %cst_52 {dimension_numbers = #tpu.dot_dimension_numbers<[1], [0], [0], [1], [0, 0, 1, 1], [], []>} : vector<16x384xf32>, vector<384x128xf32>, vector<16x128xf32> -> vector<16x128xf32>
    %77 = arith.addf %71, %76 : vector<16x128xf32>
    %78 = vector.extract_strided_slice %64 {offsets = [2, 0, 0], sizes = [4, 4, 384], strides = [1, 1, 1]} : vector<6x4x384xf32> to vector<4x4x384xf32>
    %79 = vector.shape_cast %78 : vector<4x4x384xf32> to vector<16x384xf32>
    %c2_53 = arith.constant 2 : index
    %c0_54 = arith.constant 0 : index
    %c0_55 = arith.constant 0 : index
    %80 = vector.load %arg7[%c2_53, %c0_54, %c0_55] : memref<3x384x128xf32, #tpu.memory_space<vmem>>, vector<1x384x128xf32>
    %81 = vector.shape_cast %80 : vector<1x384x128xf32> to vector<384x128xf32>
    %cst_56 = arith.constant dense<0.000000e+00> : vector<16x128xf32>
    %82 = tpu.matmul %79, %81, %cst_56 {dimension_numbers = #tpu.dot_dimension_numbers<[1], [0], [0], [1], [0, 0, 1, 1], [], []>} : vector<16x384xf32>, vector<384x128xf32>, vector<16x128xf32> -> vector<16x128xf32>
    %83 = arith.addf %77, %82 : vector<16x128xf32>
    %c0_57 = arith.constant 0 : index
    %c0_58 = arith.constant 0 : index
    %84 = vector.load %arg8[%c0_57, %c0_58] : memref<1x128xf32, #tpu.memory_space<vmem>>, vector<1x128xf32>
    %85 = vector.shape_cast %84 : vector<1x128xf32> to vector<128xf32>
    %86 = vector.shape_cast %85 : vector<128xf32> to vector<1x128xf32>
    %87 = vector.broadcast %86 : vector<1x128xf32> to vector<16x128xf32>
    %88 = arith.mulf %83, %87 : vector<16x128xf32>
    %c0_59 = arith.constant 0 : index
    %c0_60 = arith.constant 0 : index
    %89 = vector.load %arg9[%c0_59, %c0_60] : memref<1x128xf32, #tpu.memory_space<vmem>>, vector<1x128xf32>
    %90 = vector.shape_cast %89 : vector<1x128xf32> to vector<128xf32>
    %91 = vector.shape_cast %90 : vector<128xf32> to vector<1x128xf32>
    %92 = vector.broadcast %91 : vector<1x128xf32> to vector<16x128xf32>
    %93 = arith.addf %88, %92 : vector<16x128xf32>
    %94 = vector.extract_strided_slice %3 {offsets = [0, 0, 128], sizes = [4, 4, 128], strides = [1, 1, 1]} : vector<5x5x256xf32> to vector<4x4x128xf32>
    %95 = vector.shape_cast %94 : vector<4x4x128xf32> to vector<16x128xf32>
    %c0_61 = arith.constant 0 : index
    %c0_62 = arith.constant 0 : index
    %96 = vector.load %arg10[%c0_61, %c0_62] : memref<128x128xf32, #tpu.memory_space<vmem>>, vector<128x128xf32>
    %cst_63 = arith.constant dense<0.000000e+00> : vector<16x128xf32>
    %97 = tpu.matmul %95, %96, %cst_63 {dimension_numbers = #tpu.dot_dimension_numbers<[1], [0], [0], [1], [0, 0, 1, 1], [], []>} : vector<16x128xf32>, vector<128x128xf32>, vector<16x128xf32> -> vector<16x128xf32>
    %c0_64 = arith.constant 0 : index
    %c0_65 = arith.constant 0 : index
    %98 = vector.load %arg11[%c0_64, %c0_65] : memref<1x128xf32, #tpu.memory_space<vmem>>, vector<1x128xf32>
    %99 = vector.shape_cast %98 : vector<1x128xf32> to vector<128xf32>
    %100 = vector.shape_cast %99 : vector<128xf32> to vector<1x128xf32>
    %101 = vector.broadcast %100 : vector<1x128xf32> to vector<16x128xf32>
    %102 = arith.mulf %97, %101 : vector<16x128xf32>
    %c0_66 = arith.constant 0 : index
    %c0_67 = arith.constant 0 : index
    %103 = vector.load %arg12[%c0_66, %c0_67] : memref<1x128xf32, #tpu.memory_space<vmem>>, vector<1x128xf32>
    %104 = vector.shape_cast %103 : vector<1x128xf32> to vector<128xf32>
    %105 = vector.shape_cast %104 : vector<128xf32> to vector<1x128xf32>
    %106 = vector.broadcast %105 : vector<1x128xf32> to vector<16x128xf32>
    %107 = arith.addf %102, %106 : vector<16x128xf32>
    %108 = arith.addf %93, %107 : vector<16x128xf32>
    %cst_68 = arith.constant 0.000000e+00 : f32
    %109 = vector.broadcast %cst_68 : f32 to vector<16x128xf32>
    %110 = arith.maximumf %108, %109 : vector<16x128xf32>
    %111 = vector.shape_cast %110 : vector<16x128xf32> to vector<4x4x128xf32>
    %cst_69 = arith.constant 0.000000e+00 : f32
    %112 = vector.broadcast %cst_69 : f32 to vector<1x6x6x128xf32>
    %c0_70 = arith.constant 0 : index
    %c0_71 = arith.constant 0 : index
    %c0_72 = arith.constant 0 : index
    %c0_73 = arith.constant 0 : index
    %113 = vector.load %arg13[%c0_70, %c0_71, %c0_72, %c0_73] : memref<1x6x6x128xf32, #tpu.memory_space<vmem>>, vector<1x6x6x128xf32>
    tpu.vector_store %arg13[%c0_70, %c0_71, %c0_72, %c0_73], %112 {strides = array<i32>} : memref<1x6x6x128xf32, #tpu.memory_space<vmem>>, vector<1x6x6x128xf32>,
    %c0_74 = arith.constant 0 : index
    %c1_75 = arith.constant 1 : index
    %c1_76 = arith.constant 1 : index
    %c0_77 = arith.constant 0 : index
    %114 = vector.load %arg13[%c0_74, %c1_75, %c1_76, %c0_77] : memref<1x6x6x128xf32, #tpu.memory_space<vmem>>, vector<1x4x4x128xf32>
    %115 = vector.shape_cast %114 : vector<1x4x4x128xf32> to vector<4x4x128xf32>
    %116 = vector.shape_cast %111 : vector<4x4x128xf32> to vector<1x4x4x128xf32>
    tpu.vector_store %arg13[%c0_74, %c1_75, %c1_76, %c0_77], %116 {strides = array<i32>} : memref<1x6x6x128xf32, #tpu.memory_space<vmem>>, vector<1x4x4x128xf32>,
    return
  }
  func.func @transform_0(%arg0: i32) -> (i32, i32, i32, i32) {
    %c0_i32 = arith.constant 0 : i32
    %c0_i32_0 = arith.constant 0 : i32
    %c0_i32_1 = arith.constant 0 : i32
    %c0_i32_2 = arith.constant 0 : i32
    return %arg0, %c0_i32, %c0_i32_0, %c0_i32_1 : i32, i32, i32, i32
  }
  func.func @transform_1(%arg0: i32) -> (i32, i32, i32, i32) {
    %c0_i32 = arith.constant 0 : i32
    %c0_i32_0 = arith.constant 0 : i32
    %c0_i32_1 = arith.constant 0 : i32
    %c0_i32_2 = arith.constant 0 : i32
    return %arg0, %c0_i32, %c0_i32_0, %c0_i32_1 : i32, i32, i32, i32
  }
  func.func @transform_2(%arg0: i32) -> (i32, i32, i32) {
    %c0_i32 = arith.constant 0 : i32
    %c0_i32_0 = arith.constant 0 : i32
    %c0_i32_1 = arith.constant 0 : i32
    %c0_i32_2 = arith.constant 0 : i32
    return %c0_i32, %c0_i32_0, %c0_i32_1 : i32, i32, i32
  }
  func.func @transform_3(%arg0: i32) -> (i32, i32, i32) {
    %c0_i32 = arith.constant 0 : i32
    %c0_i32_0 = arith.constant 0 : i32
    %c0_i32_1 = arith.constant 0 : i32
    %c0_i32_2 = arith.constant 0 : i32
    return %c0_i32, %c0_i32_0, %c0_i32_1 : i32, i32, i32
  }
  func.func @transform_4(%arg0: i32) -> (i32, i32) {
    %c0_i32 = arith.constant 0 : i32
    %c0_i32_0 = arith.constant 0 : i32
    %c0_i32_1 = arith.constant 0 : i32
    return %c0_i32, %c0_i32_0 : i32, i32
  }
  func.func @transform_5(%arg0: i32) -> (i32, i32) {
    %c0_i32 = arith.constant 0 : i32
    %c0_i32_0 = arith.constant 0 : i32
    %c0_i32_1 = arith.constant 0 : i32
    return %c0_i32, %c0_i32_0 : i32, i32
  }
  func.func @transform_6(%arg0: i32) -> (i32, i32, i32) {
    %c0_i32 = arith.constant 0 : i32
    %c0_i32_0 = arith.constant 0 : i32
    %c0_i32_1 = arith.constant 0 : i32
    %c0_i32_2 = arith.constant 0 : i32
    return %c0_i32, %c0_i32_0, %c0_i32_1 : i32, i32, i32
  }
  func.func @transform_7(%arg0: i32) -> (i32, i32) {
    %c0_i32 = arith.constant 0 : i32
    %c0_i32_0 = arith.constant 0 : i32
    %c0_i32_1 = arith.constant 0 : i32
    return %c0_i32, %c0_i32_0 : i32, i32
  }
  func.func @transform_8(%arg0: i32) -> (i32, i32) {
    %c0_i32 = arith.constant 0 : i32
    %c0_i32_0 = arith.constant 0 : i32
    %c0_i32_1 = arith.constant 0 : i32
    return %c0_i32, %c0_i32_0 : i32, i32
  }
  func.func @transform_9(%arg0: i32) -> (i32, i32) {
    %c0_i32 = arith.constant 0 : i32
    %c0_i32_0 = arith.constant 0 : i32
    %c0_i32_1 = arith.constant 0 : i32
    return %c0_i32, %c0_i32_0 : i32, i32
  }
  func.func @transform_10(%arg0: i32) -> (i32, i32) {
    %c0_i32 = arith.constant 0 : i32
    %c0_i32_0 = arith.constant 0 : i32
    %c0_i32_1 = arith.constant 0 : i32
    return %c0_i32, %c0_i32_0 : i32, i32
  }
  func.func @transform_11(%arg0: i32) -> (i32, i32) {
    %c0_i32 = arith.constant 0 : i32
    %c0_i32_0 = arith.constant 0 : i32
    %c0_i32_1 = arith.constant 0 : i32
    return %c0_i32, %c0_i32_0 : i32, i32
  }
  func.func @transform_12(%arg0: i32) -> (i32, i32, i32, i32) {
    %c0_i32 = arith.constant 0 : i32
    %c0_i32_0 = arith.constant 0 : i32
    %c0_i32_1 = arith.constant 0 : i32
    %c0_i32_2 = arith.constant 0 : i32
    return %arg0, %c0_i32, %c0_i32_0, %c0_i32_1 : i32, i32, i32, i32
  }
}

module attributes {stable_mosaic.version = 11 : i64} {
  func.func @head_kernel(%arg0: memref<2x6x6x128xf32, #tpu.memory_space<vmem>>, %arg1: memref<128x128xf32, #tpu.memory_space<vmem>>, %arg2: memref<1x128xf32, #tpu.memory_space<vmem>>, %arg3: memref<128x128xf32, #tpu.memory_space<vmem>>, %arg4: memref<1x128xf32, #tpu.memory_space<vmem>>, %arg5: memref<128x128xf32, #tpu.memory_space<vmem>>, %arg6: memref<1x128xf32, #tpu.memory_space<vmem>>, %arg7: memref<128x1xf32, #tpu.memory_space<vmem>>, %arg8: memref<1x1xf32, #tpu.memory_space<vmem>>, %arg9: memref<2x1xf32, #tpu.memory_space<vmem>>) attributes {dimension_semantics = [], scalar_prefetch = 0 : i64, scratch_operands = 0 : i64, tpu.core_type = #tpu.core_type<tc>} {
    %c0 = arith.constant 0 : index
    %c0_0 = arith.constant 0 : index
    %c0_1 = arith.constant 0 : index
    %c0_2 = arith.constant 0 : index
    %0 = vector.load %arg0[%c0, %c0_0, %c0_1, %c0_2] : memref<2x6x6x128xf32, #tpu.memory_space<vmem>>, vector<2x6x6x128xf32>
    %1 = vector.extract_strided_slice %0 {offsets = [0, 1, 1, 0], sizes = [2, 4, 4, 128], strides = [1, 1, 1, 1]} : vector<2x6x6x128xf32> to vector<2x4x4x128xf32>
    %cst = arith.constant 0.000000e+00 : f32
    %2 = vector.broadcast %cst : f32 to vector<2x4x4x128xf32>
    %3 = arith.maximumf %1, %2 : vector<2x4x4x128xf32>
    %cst_3 = arith.constant dense<0.000000e+00> : vector<2x128xf32>
    %4 = vector.multi_reduction <add>, %3, %cst_3 [1, 2] : vector<2x4x4x128xf32> to vector<2x128xf32>
    %cst_4 = arith.constant 1.600000e+01 : f32
    %5 = vector.broadcast %cst_4 : f32 to vector<2x128xf32>
    %6 = arith.divf %4, %5 : vector<2x128xf32>
    %c0_5 = arith.constant 0 : index
    %c0_6 = arith.constant 0 : index
    %7 = vector.load %arg1[%c0_5, %c0_6] : memref<128x128xf32, #tpu.memory_space<vmem>>, vector<128x128xf32>
    %cst_7 = arith.constant dense<0.000000e+00> : vector<2x128xf32>
    %8 = tpu.matmul %6, %7, %cst_7 {dimension_numbers = #tpu.dot_dimension_numbers<[1], [0], [0], [1], [0, 0, 1, 1], [], []>} : vector<2x128xf32>, vector<128x128xf32>, vector<2x128xf32> -> vector<2x128xf32>
    %c0_8 = arith.constant 0 : index
    %c0_9 = arith.constant 0 : index
    %9 = vector.load %arg2[%c0_8, %c0_9] : memref<1x128xf32, #tpu.memory_space<vmem>>, vector<1x128xf32>
    %10 = vector.shape_cast %9 : vector<1x128xf32> to vector<128xf32>
    %11 = vector.shape_cast %10 : vector<128xf32> to vector<1x128xf32>
    %12 = vector.broadcast %11 : vector<1x128xf32> to vector<2x128xf32>
    %13 = arith.addf %8, %12 : vector<2x128xf32>
    %14 = arith.mulf %13, %13 : vector<2x128xf32>
    %cst_10 = arith.constant dense<0.000000e+00> : vector<2xf32>
    %15 = vector.multi_reduction <add>, %14, %cst_10 [1] : vector<2x128xf32> to vector<2xf32>
    %16 = vector.shape_cast %15 : vector<2xf32> to vector<2x1xf32>
    %17 = math.sqrt %16 : vector<2x1xf32>
    %cst_11 = arith.constant 9.99999996E-13 : f32
    %18 = vector.broadcast %cst_11 : f32 to vector<2x1xf32>
    %19 = arith.maximumf %17, %18 : vector<2x1xf32>
    %20 = vector.broadcast %19 : vector<2x1xf32> to vector<2x128xf32>
    %21 = arith.divf %13, %20 : vector<2x128xf32>
    %c0_12 = arith.constant 0 : index
    %c0_13 = arith.constant 0 : index
    %22 = vector.load %arg3[%c0_12, %c0_13] : memref<128x128xf32, #tpu.memory_space<vmem>>, vector<128x128xf32>
    %cst_14 = arith.constant dense<0.000000e+00> : vector<2x128xf32>
    %23 = tpu.matmul %21, %22, %cst_14 {dimension_numbers = #tpu.dot_dimension_numbers<[1], [0], [0], [1], [0, 0, 1, 1], [], []>} : vector<2x128xf32>, vector<128x128xf32>, vector<2x128xf32> -> vector<2x128xf32>
    %c0_15 = arith.constant 0 : index
    %c0_16 = arith.constant 0 : index
    %24 = vector.load %arg4[%c0_15, %c0_16] : memref<1x128xf32, #tpu.memory_space<vmem>>, vector<1x128xf32>
    %25 = vector.shape_cast %24 : vector<1x128xf32> to vector<128xf32>
    %26 = vector.shape_cast %25 : vector<128xf32> to vector<1x128xf32>
    %27 = vector.broadcast %26 : vector<1x128xf32> to vector<2x128xf32>
    %28 = arith.addf %23, %27 : vector<2x128xf32>
    %cst_17 = arith.constant 0.000000e+00 : f32
    %29 = vector.broadcast %cst_17 : f32 to vector<2x128xf32>
    %30 = arith.maximumf %28, %29 : vector<2x128xf32>
    %c0_18 = arith.constant 0 : index
    %c0_19 = arith.constant 0 : index
    %31 = vector.load %arg5[%c0_18, %c0_19] : memref<128x128xf32, #tpu.memory_space<vmem>>, vector<128x128xf32>
    %cst_20 = arith.constant dense<0.000000e+00> : vector<2x128xf32>
    %32 = tpu.matmul %30, %31, %cst_20 {dimension_numbers = #tpu.dot_dimension_numbers<[1], [0], [0], [1], [0, 0, 1, 1], [], []>} : vector<2x128xf32>, vector<128x128xf32>, vector<2x128xf32> -> vector<2x128xf32>
    %c0_21 = arith.constant 0 : index
    %c0_22 = arith.constant 0 : index
    %33 = vector.load %arg6[%c0_21, %c0_22] : memref<1x128xf32, #tpu.memory_space<vmem>>, vector<1x128xf32>
    %34 = vector.shape_cast %33 : vector<1x128xf32> to vector<128xf32>
    %35 = vector.shape_cast %34 : vector<128xf32> to vector<1x128xf32>
    %36 = vector.broadcast %35 : vector<1x128xf32> to vector<2x128xf32>
    %37 = arith.addf %32, %36 : vector<2x128xf32>
    %cst_23 = arith.constant 0.000000e+00 : f32
    %38 = vector.broadcast %cst_23 : f32 to vector<2x128xf32>
    %39 = arith.maximumf %37, %38 : vector<2x128xf32>
    %c0_24 = arith.constant 0 : index
    %c0_25 = arith.constant 0 : index
    %40 = vector.load %arg7[%c0_24, %c0_25] : memref<128x1xf32, #tpu.memory_space<vmem>>, vector<128x1xf32>
    %cst_26 = arith.constant dense<0.000000e+00> : vector<2x1xf32>
    %41 = tpu.matmul %39, %40, %cst_26 {dimension_numbers = #tpu.dot_dimension_numbers<[1], [0], [0], [1], [0, 0, 1, 1], [], []>} : vector<2x128xf32>, vector<128x1xf32>, vector<2x1xf32> -> vector<2x1xf32>
    %c0_27 = arith.constant 0 : index
    %c0_28 = arith.constant 0 : index
    %42 = vector.load %arg8[%c0_27, %c0_28] : memref<1x1xf32, #tpu.memory_space<vmem>>, vector<1x1xf32>
    %43 = vector.shape_cast %42 : vector<1x1xf32> to vector<1xf32>
    %44 = vector.shape_cast %43 : vector<1xf32> to vector<1x1xf32>
    %45 = vector.broadcast %44 : vector<1x1xf32> to vector<2x1xf32>
    %46 = arith.addf %41, %45 : vector<2x1xf32>
    %c0_29 = arith.constant 0 : index
    %c0_30 = arith.constant 0 : index
    %47 = vector.load %arg9[%c0_29, %c0_30] : memref<2x1xf32, #tpu.memory_space<vmem>>, vector<2x1xf32>
    tpu.vector_store %arg9[%c0_29, %c0_30], %46 {strides = array<i32>} : memref<2x1xf32, #tpu.memory_space<vmem>>, vector<2x1xf32>,
    return
  }
}

</mosaic_0001>

<llo_original>
// kernel: encoder_forward.5
$region0: #{encoder_forward.5}
  #allocation0 [shape = 'u32[]', space=smem, size = 0x4, offset = 0x4, fixed_abs, tag = 'smem constant byte address 0x4 - core index']
  #allocation1 [shape = 'u32[72,128]{1,0:T(1,128)}', space=vmem, size = 0x9000, scoped, tag = 'internal scratch']
  #allocation2 [shape = 'f32[10,10,128]{2,1,0:T(8,128)}', space=vmem, size = 0x14000, scoped, tag = 'scratch operand']
  %s0 = inlined_call_operand.vmem [shape: f32[2,9,9,16], index: 0, kind: input, shape index: {}]
  %s1 = inlined_call_operand.vmem [shape: f32[2,9,9,16], index: 1, kind: input, shape index: {}]
  %s2 = inlined_call_operand.vmem [shape: f32[3,16,128], index: 2, kind: input, shape index: {}]
  %s3 = inlined_call_operand.vmem [shape: f32[3,8,128], index: 3, kind: input, shape index: {}]
  %s4 = inlined_call_operand.vmem [shape: f32[1,128], index: 4, kind: input, shape index: {}]
  %s5 = inlined_call_operand.vmem [shape: f32[1,128], index: 5, kind: input, shape index: {}]
  %s6 = inlined_call_operand.vmem [shape: f32[3,384,128], index: 6, kind: input, shape index: {}]
  %s7 = inlined_call_operand.vmem [shape: f32[1,128], index: 7, kind: input, shape index: {}]
  %s8 = inlined_call_operand.vmem [shape: f32[1,128], index: 8, kind: input, shape index: {}]
  %s9 = inlined_call_operand.vmem [shape: f32[8,128], index: 9, kind: input, shape index: {}]
  %s10 = inlined_call_operand.vmem [shape: f32[1,128], index: 10, kind: input, shape index: {}]
  %s11 = inlined_call_operand.vmem [shape: f32[1,128], index: 11, kind: input, shape index: {}]
  %s12 = inlined_call_operand.vmem [shape: f32[2,10,10,128], index: 12, kind: output, shape index: {}]
  %s13 = sld [smem:[#allocation0]]
  $region81: #{encoder_forward.5} parent=0
    _
  %s15 = ssub.s32 1, %s13
  %s16 = scalar_select 0, %s15, %s13
  loop: start=0, step=1, limit=4
  $region2: #{encoder_forward.5} parent=0 // loop_pre_header
    _
  $region3: #{encoder_forward.5} parent=0 // loop_header
    %s18 = sphi 0, %s22
    %p19 = scmp.ge.s32.totalorder %s18, 4
    %s28 = sphi 0, %s30
    %s31 = sphi 0, %s28
    %s32 = sphi 0, %s31
    %s48 = sphi 0, %s32
    %s54 = sphi 0, %s56
    %s57 = sphi 0, %s54
    %s58 = sphi 0, %s57
    %s74 = sphi 0, %s58
    %s78 = sphi 0, %s78
    %s80 = sphi 0, %s78
    %s81 = sphi 0, %s80
    %s95 = sphi 0, %s81
    %s99 = sphi 0, %s99
    %s101 = sphi 0, %s99
    %s102 = sphi 0, %s101
    %s116 = sphi 0, %s102
    %s120 = sphi 0, %s120
    %s122 = sphi 0, %s120
    %s123 = sphi 0, %s122
    %s137 = sphi 0, %s123
    %s141 = sphi 0, %s141
    %s143 = sphi 0, %s141
    %s144 = sphi 0, %s143
    %s158 = sphi 0, %s144
    %s162 = sphi 0, %s162
    %s164 = sphi 0, %s162
    %s165 = sphi 0, %s164
    %s179 = sphi 0, %s165
    %s183 = sphi 0, %s183
    %s185 = sphi 0, %s183
    %s186 = sphi 0, %s185
    %s200 = sphi 0, %s186
    %s204 = sphi 0, %s204
    %s206 = sphi 0, %s204
    %s207 = sphi 0, %s206
    %s221 = sphi 0, %s207
    %s225 = sphi 0, %s225
    %s227 = sphi 0, %s225
    %s228 = sphi 0, %s227
    %s242 = sphi 0, %s228
    %s246 = sphi 0, %s246
    %s248 = sphi 0, %s246
    %s249 = sphi 0, %s248
    %s263 = sphi 0, %s249
    %s267 = sphi 0, %s267
    %s269 = sphi 0, %s267
    %s270 = sphi 0, %s269
    %s284 = sphi 0, %s270
    %s290 = sphi 0, %s292
    %s293 = sphi 0, %s290
    %s294 = sphi 0, %s293
    %s310 = sphi 0, %s294
  $region4: #{encoder_forward.5} parent=0 // loop_header_branch
    %21 = sbr.rel (%p19) target = $region8
  $region5: #{encoder_forward.5} parent=0 // loop_body
    %s23 = ssub.s32 %s18, 1
    %s24 = ssub.s32 %s18, 2
    %s25 = sadd.s32 %s18, 1
    %s26 = ssub.s32 %s18, %s25
    %p27 = scmp.eq.s32.totalorder %s26, 0
    %s29 = sadd.s32 %s28, 1
    %s30 = scalar_select %p27, %s28, %s29
    %p33 = pneg %p27
    %p34 = scmp.eq.s32.totalorder %s18, 1
    %p35 = por %p33, %p34
    %p36 = scmp.ne.s32.totalorder %s28, %s31
    %p37 = scmp.eq.s32.totalorder %s18, 0
    %p38 = por %p36, %p37
    %p39 = scmp.ne.s32.totalorder %s28, %s31
    %p40 = scmp.eq.s32.totalorder %s23, 1
    %p41 = por %p39, %p40
    %p42 = scmp.ne.s32.totalorder %s31, %s32
    %p43 = scmp.eq.s32.totalorder %s23, 0
    %p44 = por %p42, %p43
    %p45 = scmp.ne.s32.totalorder %s31, %s32
    %p46 = scmp.eq.s32.totalorder %s24, 1
    %p47 = por %p45, %p46
    %p49 = scmp.ne.s32.totalorder %s32, %s48
    %p50 = scmp.eq.s32.totalorder %s24, 0
    %p51 = por %p49, %p50
    %s52 = ssub.s32 %s18, %s25
    %p53 = scmp.eq.s32.totalorder %s52, 0
    %s55 = sadd.s32 %s54, 1
    %s56 = scalar_select %p53, %s54, %s55
    %p59 = pneg %p53
    %p60 = scmp.eq.s32.totalorder %s18, 1
    %p61 = por %p59, %p60
    %p62 = scmp.ne.s32.totalorder %s54, %s57
    %p63 = scmp.eq.s32.totalorder %s18, 0
    %p64 = por %p62, %p63
    %p65 = scmp.ne.s32.totalorder %s54, %s57
    %p66 = scmp.eq.s32.totalorder %s23, 1
    %p67 = por %p65, %p66
    %p68 = scmp.ne.s32.totalorder %s57, %s58
    %p69 = scmp.eq.s32.totalorder %s23, 0
    %p70 = por %p68, %p69
    %p71 = scmp.ne.s32.totalorder %s57, %s58
    %p72 = scmp.eq.s32.totalorder %s24, 1
    %p73 = por %p71, %p72
    %p75 = scmp.ne.s32.totalorder %s58, %s74
    %p76 = scmp.eq.s32.totalorder %s24, 0
    %p77 = por %p75, %p76
    %s79 = sadd.s32 %s78, 1
    %p82 = scmp.eq.s32.totalorder %s18, 1
    %p83 = scmp.ne.s32.totalorder %s78, %s80
    %p84 = scmp.eq.s32.totalorder %s18, 0
    %p85 = por %p83, %p84
    %p86 = scmp.ne.s32.totalorder %s78, %s80
    %p87 = scmp.eq.s32.totalorder %s23, 1
    %p88 = por %p86, %p87
    %p89 = scmp.ne.s32.totalorder %s80, %s81
    %p90 = scmp.eq.s32.totalorder %s23, 0
    %p91 = por %p89, %p90
    %p92 = scmp.ne.s32.totalorder %s80, %s81
    %p93 = scmp.eq.s32.totalorder %s24, 1
    %p94 = por %p92, %p93
    %p96 = scmp.ne.s32.totalorder %s81, %s95
    %p97 = scmp.eq.s32.totalorder %s24, 0
    %p98 = por %p96, %p97
    %s100 = sadd.s32 %s99, 1
    %p103 = scmp.eq.s32.totalorder %s18, 1
    %p104 = scmp.ne.s32.totalorder %s99, %s101
    %p105 = scmp.eq.s32.totalorder %s18, 0
    %p106 = por %p104, %p105
    %p107 = scmp.ne.s32.totalorder %s99, %s101
    %p108 = scmp.eq.s32.totalorder %s23, 1
    %p109 = por %p107, %p108
    %p110 = scmp.ne.s32.totalorder %s101, %s102
    %p111 = scmp.eq.s32.totalorder %s23, 0
    %p112 = por %p110, %p111
    %p113 = scmp.ne.s32.totalorder %s101, %s102
    %p114 = scmp.eq.s32.totalorder %s24, 1
    %p115 = por %p113, %p114
    %p117 = scmp.ne.s32.totalorder %s102, %s116
    %p118 = scmp.eq.s32.totalorder %s24, 0
    %p119 = por %p117, %p118
    %s121 = sadd.s32 %s120, 1
    %p124 = scmp.eq.s32.totalorder %s18, 1
    %p125 = scmp.ne.s32.totalorder %s120, %s122
    %p126 = scmp.eq.s32.totalorder %s18, 0
    %p127 = por %p125, %p126
    %p128 = scmp.ne.s32.totalorder %s120, %s122
    %p129 = scmp.eq.s32.totalorder %s23, 1
    %p130 = por %p128, %p129
    %p131 = scmp.ne.s32.totalorder %s122, %s123
    %p132 = scmp.eq.s32.totalorder %s23, 0
    %p133 = por %p131, %p132
    %p134 = scmp.ne.s32.totalorder %s122, %s123
    %p135 = scmp.eq.s32.totalorder %s24, 1
    %p136 = por %p134, %p135
    %p138 = scmp.ne.s32.totalorder %s123, %s137
    %p139 = scmp.eq.s32.totalorder %s24, 0
    %p140 = por %p138, %p139
    %s142 = sadd.s32 %s141, 1
    %p145 = scmp.eq.s32.totalorder %s18, 1
    %p146 = scmp.ne.s32.totalorder %s141, %s143
    %p147 = scmp.eq.s32.totalorder %s18, 0
    %p148 = por %p146, %p147
    %p149 = scmp.ne.s32.totalorder %s141, %s143
    %p150 = scmp.eq.s32.totalorder %s23, 1
    %p151 = por %p149, %p150
    %p152 = scmp.ne.s32.totalorder %s143, %s144
    %p153 = scmp.eq.s32.totalorder %s23, 0
    %p154 = por %p152, %p153
    %p155 = scmp.ne.s32.totalorder %s143, %s144
    %p156 = scmp.eq.s32.totalorder %s24, 1
    %p157 = por %p155, %p156
    %p159 = scmp.ne.s32.totalorder %s144, %s158
    %p160 = scmp.eq.s32.totalorder %s24, 0
    %p161 = por %p159, %p160
    %s163 = sadd.s32 %s162, 1
    %p166 = scmp.eq.s32.totalorder %s18, 1
    %p167 = scmp.ne.s32.totalorder %s162, %s164
    %p168 = scmp.eq.s32.totalorder %s18, 0
    %p169 = por %p167, %p168
    %p170 = scmp.ne.s32.totalorder %s162, %s164
    %p171 = scmp.eq.s32.totalorder %s23, 1
    %p172 = por %p170, %p171
    %p173 = scmp.ne.s32.totalorder %s164, %s165
    %p174 = scmp.eq.s32.totalorder %s23, 0
    %p175 = por %p173, %p174
    %p176 = scmp.ne.s32.totalorder %s164, %s165
    %p177 = scmp.eq.s32.totalorder %s24, 1
    %p178 = por %p176, %p177
    %p180 = scmp.ne.s32.totalorder %s165, %s179
    %p181 = scmp.eq.s32.totalorder %s24, 0
    %p182 = por %p180, %p181
    %s184 = sadd.s32 %s183, 1
    %p187 = scmp.eq.s32.totalorder %s18, 1
    %p188 = scmp.ne.s32.totalorder %s183, %s185
    %p189 = scmp.eq.s32.totalorder %s18, 0
    %p190 = por %p188, %p189
    %p191 = scmp.ne.s32.totalorder %s183, %s185
    %p192 = scmp.eq.s32.totalorder %s23, 1
    %p193 = por %p191, %p192
    %p194 = scmp.ne.s32.totalorder %s185, %s186
    %p195 = scmp.eq.s32.totalorder %s23, 0
    %p196 = por %p194, %p195
    %p197 = scmp.ne.s32.totalorder %s185, %s186
    %p198 = scmp.eq.s32.totalorder %s24, 1
    %p199 = por %p197, %p198
    %p201 = scmp.ne.s32.totalorder %s186, %s200
    %p202 = scmp.eq.s32.totalorder %s24, 0
    %p203 = por %p201, %p202
    %s205 = sadd.s32 %s204, 1
    %p208 = scmp.eq.s32.totalorder %s18, 1
    %p209 = scmp.ne.s32.totalorder %s204, %s206
    %p210 = scmp.eq.s32.totalorder %s18, 0
    %p211 = por %p209, %p210
    %p212 = scmp.ne.s32.totalorder %s204, %s206
    %p213 = scmp.eq.s32.totalorder %s23, 1
    %p214 = por %p212, %p213
    %p215 = scmp.ne.s32.totalorder %s206, %s207
    %p216 = scmp.eq.s32.totalorder %s23, 0
    %p217 = por %p215, %p216
    %p218 = scmp.ne.s32.totalorder %s206, %s207
    %p219 = scmp.eq.s32.totalorder %s24, 1
    %p220 = por %p218, %p219
    %p222 = scmp.ne.s32.totalorder %s207, %s221
    %p223 = scmp.eq.s32.totalorder %s24, 0
    %p224 = por %p222, %p223
    %s226 = sadd.s32 %s225, 1
    %p229 = scmp.eq.s32.totalorder %s18, 1
    %p230 = scmp.ne.s32.totalorder %s225, %s227
    %p231 = scmp.eq.s32.totalorder %s18, 0
    %p232 = por %p230, %p231
    %p233 = scmp.ne.s32.totalorder %s225, %s227
    %p234 = scmp.eq.s32.totalorder %s23, 1
    %p235 = por %p233, %p234
    %p236 = scmp.ne.s32.totalorder %s227, %s228
    %p237 = scmp.eq.s32.totalorder %s23, 0
    %p238 = por %p236, %p237
    %p239 = scmp.ne.s32.totalorder %s227, %s228
    %p240 = scmp.eq.s32.totalorder %s24, 1
    %p241 = por %p239, %p240
    %p243 = scmp.ne.s32.totalorder %s228, %s242
    %p244 = scmp.eq.s32.totalorder %s24, 0
    %p245 = por %p243, %p244
    %s247 = sadd.s32 %s246, 1
    %p250 = scmp.eq.s32.totalorder %s18, 1
    %p251 = scmp.ne.s32.totalorder %s246, %s248
    %p252 = scmp.eq.s32.totalorder %s18, 0
    %p253 = por %p251, %p252
    %p254 = scmp.ne.s32.totalorder %s246, %s248
    %p255 = scmp.eq.s32.totalorder %s23, 1
    %p256 = por %p254, %p255
    %p257 = scmp.ne.s32.totalorder %s248, %s249
    %p258 = scmp.eq.s32.totalorder %s23, 0
    %p259 = por %p257, %p258
    %p260 = scmp.ne.s32.totalorder %s248, %s249
    %p261 = scmp.eq.s32.totalorder %s24, 1
    %p262 = por %p260, %p261
    %p264 = scmp.ne.s32.totalorder %s249, %s263
    %p265 = scmp.eq.s32.totalorder %s24, 0
    %p266 = por %p264, %p265
    %s268 = sadd.s32 %s267, 1
    %p271 = scmp.eq.s32.totalorder %s18, 1
    %p272 = scmp.ne.s32.totalorder %s267, %s269
    %p273 = scmp.eq.s32.totalorder %s18, 0
    %p274 = por %p272, %p273
    %p275 = scmp.ne.s32.totalorder %s267, %s269
    %p276 = scmp.eq.s32.totalorder %s23, 1
    %p277 = por %p275, %p276
    %p278 = scmp.ne.s32.totalorder %s269, %s270
    %p279 = scmp.eq.s32.totalorder %s23, 0
    %p280 = por %p278, %p279
    %p281 = scmp.ne.s32.totalorder %s269, %s270
    %p282 = scmp.eq.s32.totalorder %s24, 1
    %p283 = por %p281, %p282
    %p285 = scmp.ne.s32.totalorder %s270, %s284
    %p286 = scmp.eq.s32.totalorder %s24, 0
    %p287 = por %p285, %p286
    %s288 = ssub.s32 %s18, %s25
    %p289 = scmp.eq.s32.totalorder %s288, 0
    %s291 = sadd.s32 %s290, 1
    %s292 = scalar_select %p289, %s290, %s291
    %p295 = pneg %p289
    %p296 = scmp.eq.s32.totalorder %s18, 1
    %p297 = por %p295, %p296
    %p298 = scmp.ne.s32.totalorder %s290, %s293
    %p299 = scmp.eq.s32.totalorder %s18, 0
    %p300 = por %p298, %p299
    %p301 = scmp.ne.s32.totalorder %s290, %s293
    %p302 = scmp.eq.s32.totalorder %s23, 1
    %p303 = por %p301, %p302
    %p304 = scmp.ne.s32.totalorder %s293, %s294
    %p305 = scmp.eq.s32.totalorder %s23, 0
    %p306 = por %p304, %p305
    %p307 = scmp.ne.s32.totalorder %s293, %s294
    %p308 = scmp.eq.s32.totalorder %s24, 1
    %p309 = por %p307, %p308
    %p311 = scmp.ne.s32.totalorder %s294, %s310
    %p312 = scmp.eq.s32.totalorder %s24, 0
    %p313 = por %p311, %p312
    %p314 = scmp.le.s32.totalorder 1, %s18
    %p315 = scmp.lt.s32.totalorder %s18, 3
    %p316 = pnand %p314, %p315
    %p317 = pneg %p316
    // Predicated region
    $region9: #{encoder_forward.5} parent=5 // pred_check
      _
    $region10: #{encoder_forward.5} parent=5 // pred_check_branch
      %319 = sbr.rel (%p316) target = $region12
    $region11: #{encoder_forward.5} parent=5 // pred_region
      %s320 = ssub.s32 %s18, 1
      // Predicated region
      $region13: #{encoder_forward.5} parent=11 // pred_check
        %p321 = pneg %p91
      $region14: #{encoder_forward.5} parent=11 // pred_check_branch
        %323 = sbr.rel (%p321) target = $region16
      $region15: #{encoder_forward.5} parent=11 // pred_region
        _
      $region16: #{encoder_forward.5} parent=11 // pred_fallthru
        _
      // Predicated region
      $region17: #{encoder_forward.5} parent=11 // pred_check
        %p324 = pneg %p112
      $region18: #{encoder_forward.5} parent=11 // pred_check_branch
        %326 = sbr.rel (%p324) target = $region20
      $region19: #{encoder_forward.5} parent=11 // pred_region
        _
      $region20: #{encoder_forward.5} parent=11 // pred_fallthru
        _
      // Predicated region
      $region21: #{encoder_forward.5} parent=11 // pred_check
        %p327 = pneg %p133
      $region22: #{encoder_forward.5} parent=11 // pred_check_branch
        %329 = sbr.rel (%p327) target = $region24
      $region23: #{encoder_forward.5} parent=11 // pred_region
        _
      $region24: #{encoder_forward.5} parent=11 // pred_fallthru
        _
      // Predicated region
      $region25: #{encoder_forward.5} parent=11 // pred_check
        %p330 = pneg %p154
      $region26: #{encoder_forward.5} parent=11 // pred_check_branch
        %332 = sbr.rel (%p330) target = $region28
      $region27: #{encoder_forward.5} parent=11 // pred_region
        _
      $region28: #{encoder_forward.5} parent=11 // pred_fallthru
        _
      // Predicated region
      $region29: #{encoder_forward.5} parent=11 // pred_check
        %p333 = pneg %p175
      $region30: #{encoder_forward.5} parent=11 // pred_check_branch
        %335 = sbr.rel (%p333) target = $region32
      $region31: #{encoder_forward.5} parent=11 // pred_region
        _
      $region32: #{encoder_forward.5} parent=11 // pred_fallthru
        _
      // Predicated region
      $region33: #{encoder_forward.5} parent=11 // pred_check
        %p336 = pneg %p196
      $region34: #{encoder_forward.5} parent=11 // pred_check_branch
        %338 = sbr.rel (%p336) target = $region36
      $region35: #{encoder_forward.5} parent=11 // pred_region
        _
      $region36: #{encoder_forward.5} parent=11 // pred_fallthru
        _
      // Predicated region
      $region37: #{encoder_forward.5} parent=11 // pred_check
        %p339 = pneg %p217
      $region38: #{encoder_forward.5} parent=11 // pred_check_branch
        %341 = sbr.rel (%p339) target = $region40
      $region39: #{encoder_forward.5} parent=11 // pred_region
        _
      $region40: #{encoder_forward.5} parent=11 // pred_fallthru
        _
      // Predicated region
      $region41: #{encoder_forward.5} parent=11 // pred_check
        %p342 = pneg %p238
      $region42: #{encoder_forward.5} parent=11 // pred_check_branch
        %344 = sbr.rel (%p342) target = $region44
      $region43: #{encoder_forward.5} parent=11 // pred_region
        _
      $region44: #{encoder_forward.5} parent=11 // pred_fallthru
        _
      // Predicated region
      $region45: #{encoder_forward.5} parent=11 // pred_check
        %p345 = pneg %p259
      $region46: #{encoder_forward.5} parent=11 // pred_check_branch
        %347 = sbr.rel (%p345) target = $region48
      $region47: #{encoder_forward.5} parent=11 // pred_region
        _
      $region48: #{encoder_forward.5} parent=11 // pred_fallthru
        _
      // Predicated region
      $region49: #{encoder_forward.5} parent=11 // pred_check
        %p348 = pneg %p280
      $region50: #{encoder_forward.5} parent=11 // pred_check_branch
        %350 = sbr.rel (%p348) target = $region52
      $region51: #{encoder_forward.5} parent=11 // pred_region
        _
      $region52: #{encoder_forward.5} parent=11 // pred_fallthru
        _
    $region12: #{encoder_forward.5} parent=5 // pred_fallthru
      _
    %p351 = scmp.lt.s32.totalorder %s18, 2
    // Predicated region
    $region53: #{encoder_forward.5} parent=5 // pred_check
      %p352 = pneg %p351
    $region54: #{encoder_forward.5} parent=5 // pred_check_branch
      %354 = sbr.rel (%p352) target = $region56
    $region55: #{encoder_forward.5} parent=5 // pred_region
      // Predicated region
      $region57: #{encoder_forward.5} parent=55 // pred_check
        %p355 = pneg %p38
      $region58: #{encoder_forward.5} parent=55 // pred_check_branch
        %357 = sbr.rel (%p355) target = $region60
      $region59: #{encoder_forward.5} parent=55 // pred_region
        %p358 = scmp.lt.s32.totalorder %s18, 1
        %s359 = scalar_select %p358, %s18, 1
        %s360 = smul.addr %s359, 18
        %s361 = smul.addr %s360, 8
        %s362 = scalar_lea.vmem %s0, %s361
      $region60: #{encoder_forward.5} parent=55 // pred_fallthru
        _
      // Predicated region
      $region61: #{encoder_forward.5} parent=55 // pred_check
        %p363 = pneg %p64
      $region62: #{encoder_forward.5} parent=55 // pred_check_branch
        %365 = sbr.rel (%p363) target = $region64
      $region63: #{encoder_forward.5} parent=55 // pred_region
        %p366 = scmp.lt.s32.totalorder %s18, 1
        %s367 = scalar_select %p366, %s18, 1
        %s368 = smul.addr %s367, 18
        %s369 = smul.addr %s368, 8
        %s370 = scalar_lea.vmem %s1, %s369
      $region64: #{encoder_forward.5} parent=55 // pred_fallthru
        _
    $region56: #{encoder_forward.5} parent=5 // pred_fallthru
      _
    %p371 = scmp.le.s32.totalorder 1, %s18
    %p372 = scmp.lt.s32.totalorder %s18, 3
    %p373 = pnand %p371, %p372
    %p374 = pneg %p373
    // Predicated region
    $region65: #{encoder_forward.5} parent=5 // pred_check
      _
    $region66: #{encoder_forward.5} parent=5 // pred_check_branch
      %376 = sbr.rel (%p373) target = $region68
    $region67: #{encoder_forward.5} parent=5 // pred_region
      %s377 = ssub.s32 %s18, 1
      %p378 = scmp.lt.s32.totalorder %s23, 1
      %s379 = scalar_select %p378, %s23, 1
      %s380 = smul.addr %s379, 18
      %s381 = smul.addr %s380, 8
      %s382 = scalar_lea.vmem %s0, %s381
      %p383 = pneg %p44
      %p384 = pneg %p41
      %p385 = scmp.lt.s32.totalorder %s23, 1
      %s386 = scalar_select %p385, %s23, 1
      %s387 = smul.addr %s386, 18
      %s388 = smul.addr %s387, 8
      %s389 = scalar_lea.vmem %s1, %s388
      %p390 = pneg %p70
      %p391 = pneg %p67
      %p392 = pneg %p91
      %p393 = pneg %p88
      %p394 = pneg %p112
      %p395 = pneg %p109
      %p396 = pneg %p133
      %p397 = pneg %p130
      %p398 = pneg %p154
      %p399 = pneg %p151
      %p400 = pneg %p175
      %p401 = pneg %p172
      %p402 = pneg %p196
      %p403 = pneg %p193
      %p404 = pneg %p217
      %p405 = pneg %p214
      %p406 = pneg %p238
      %p407 = pneg %p235
      %p408 = pneg %p259
      %p409 = pneg %p256
      %p410 = pneg %p280
      %p411 = pneg %p277
      %p412 = pneg %p306
      %p413 = pneg %p303
      %p414 = scmp.lt.s32.totalorder %s23, 1
      %s415 = scalar_select %p414, %s23, 1
      %s416 = smul.addr %s415, 20
      %s417 = smul.addr %s416, 8
      %s418 = scalar_lea.vmem %s12, %s417
      %p419 = scmp.lt.s32.totalorder %s23, 1
      %s420 = scalar_select %p419, %s23, 1
      %s421 = smul.addr %s420, 18
      %s422 = smul.addr %s421, 8
      %s423 = scalar_lea.vmem %s0, %s422
      %p424 = scmp.lt.s32.totalorder %s23, 1
      %s425 = scalar_select %p424, %s23, 1
      %s426 = smul.addr %s425, 18
      %s427 = smul.addr %s426, 8
      %s428 = scalar_lea.vmem %s1, %s427
      %p429 = scmp.lt.s32.totalorder %s23, 1
      %s430 = scalar_select %p429, %s23, 1
      %s431 = smul.addr %s430, 20
      %s432 = smul.addr %s431, 8
      %s433 = scalar_lea.vmem %s12, %s432
      %v434 = vld [vmem:[%s423] sm:$0xff]
      %v435 = vld [vmem:[%s423 + $0x8] sm:$0x1]
      %v436 = vld [vmem:[%s423 + $0x10] sm:$0xff]
      %v437 = vld [vmem:[%s423 + $0x18] sm:$0x1]
      %v438 = vld [vmem:[%s423 + $0x20] sm:$0xff]
      %v439 = vld [vmem:[%s423 + $0x28] sm:$0x1]
      %v440 = vld [vmem:[%s423 + $0x30] sm:$0xff]
      %v441 = vld [vmem:[%s423 + $0x38] sm:$0x1]
      %v442 = vld [vmem:[%s423 + $0x40] sm:$0xff]
      %v443 = vld [vmem:[%s423 + $0x48] sm:$0x1]
      %v444 = vld [vmem:[%s423 + $0x50] sm:$0xff]
      %v445 = vld [vmem:[%s423 + $0x58] sm:$0x1]
      %v446 = vld [vmem:[%s423 + $0x60] sm:$0xff]
      %v447 = vld [vmem:[%s423 + $0x68] sm:$0x1]
      %v448 = vld [vmem:[%s423 + $0x70] sm:$0xff]
      %v449 = vld [vmem:[%s423 + $0x78] sm:$0x1]
      %v450 = vld [vmem:[%s423 + $0x80] sm:$0xff]
      %v451 = vld [vmem:[%s423 + $0x88] sm:$0x1]
      %v452 = vld [vmem:[%s428] sm:$0xff]
      %v453 = vld [vmem:[%s428 + $0x8] sm:$0x1]
      %v454 = vld [vmem:[%s428 + $0x10] sm:$0xff]
      %v455 = vld [vmem:[%s428 + $0x18] sm:$0x1]
      %v456 = vld [vmem:[%s428 + $0x20] sm:$0xff]
      %v457 = vld [vmem:[%s428 + $0x28] sm:$0x1]
      %v458 = vld [vmem:[%s428 + $0x30] sm:$0xff]
      %v459 = vld [vmem:[%s428 + $0x38] sm:$0x1]
      %v460 = vld [vmem:[%s428 + $0x40] sm:$0xff]
      %v461 = vld [vmem:[%s428 + $0x48] sm:$0x1]
      %v462 = vld [vmem:[%s428 + $0x50] sm:$0xff]
      %v463 = vld [vmem:[%s428 + $0x58] sm:$0x1]
      %v464 = vld [vmem:[%s428 + $0x60] sm:$0xff]
      %v465 = vld [vmem:[%s428 + $0x68] sm:$0x1]
      %v466 = vld [vmem:[%s428 + $0x70] sm:$0xff]
      %v467 = vld [vmem:[%s428 + $0x78] sm:$0x1]
      %v468 = vld [vmem:[%s2] sm:$0xff]
      %v469 = vld [vmem:[%s2 + $0x8] sm:$0xff]
      %vm486 = vcmask 1046528
      %v487 = vrot.slane %v434, 1
      %v488 = vrot.slane %v435, 1
      %v489 = vsel %vm486, %v487, %v488
      %v490 = vrot.slane %v436, 1
      %v491 = vrot.slane %v437, 1
      %v492 = vsel %vm486, %v490, %v491
      %v493 = vrot.slane %v438, 1
      %v494 = vrot.slane %v439, 1
      %v495 = vsel %vm486, %v493, %v494
      %v496 = vrot.slane %v440, 1
      %v497 = vrot.slane %v441, 1
      %v498 = vsel %vm486, %v496, %v497
      %v499 = vrot.slane %v442, 1
      %v500 = vrot.slane %v443, 1
      %v501 = vsel %vm486, %v499, %v500
      %v502 = vrot.slane %v444, 1
      %v503 = vrot.slane %v445, 1
      %v504 = vsel %vm486, %v502, %v503
      %v505 = vrot.slane %v446, 1
      %v506 = vrot.slane %v447, 1
      %v507 = vsel %vm486, %v505, %v506
      %v508 = vrot.slane %v448, 1
      %v509 = vrot.slane %v449, 1
      %v510 = vsel %vm486, %v508, %v509
      %v511 = vld [vmem:[%s3] sm:$0xff]
      %vm512 = vcmask 64512
      %v513 = vsel %vm512, %v489, 0
      %v515 = vsel %vm512, %v492, 0
      %v517 = vsel %vm512, %v495, 0
      %v519 = vsel %vm512, %v498, 0
      %v521 = vsel %vm512, %v501, 0
      %v523 = vsel %vm512, %v504, 0
      %v525 = vsel %vm512, %v507, 0
      %v527 = vsel %vm512, %v510, 0
      %529 = vmatpush.msra.mxu0 0.0
      %530 = vmatpush.msra.mxu0 0.0
      %531 = vmatpush.msra.mxu0 0.0
      %532 = vmatpush.msra.mxu0 0.0
      %533 = vmatpush.msra.mxu0 0.0
      %534 = vmatpush.msra.mxu0 0.0
      %535 = vmatpush.msra.mxu0 0.0
      %536 = vmatpush.msra.mxu0 0.0
      %537 = vmatpush.msra.mxu0 0.0
      %538 = vmatpush.msra.mxu0 0.0
      %539 = vmatpush.msra.mxu0 0.0
      %540 = vmatpush.msra.mxu0 0.0
      %541 = vmatpush.msra.mxu0 0.0
      %542 = vmatpush.msra.mxu0 0.0
      %543 = vmatpush.msra.mxu0 0.0
      %544 = vmatpush.msra.mxu0 %v511
      %545 = vmatmul.f32.gmra.mxu0 %v513
      %v546 = vpop.f32.mrf.mxu0
      %v547 = vadd.f32 0.0, %v546
      %548 = vmatmul.f32.gmra.mxu0 %v515
      %v549 = vpop.f32.mrf.mxu0
      %v550 = vadd.f32 0.0, %v549
      %551 = vmatmul.f32.gmra.mxu0 %v517
      %v552 = vpop.f32.mrf.mxu0
      %v553 = vadd.f32 0.0, %v552
      %554 = vmatmul.f32.gmra.mxu0 %v519
      %v555 = vpop.f32.mrf.mxu0
      %v556 = vadd.f32 0.0, %v555
      %557 = vmatmul.f32.gmra.mxu0 %v521
      %v558 = vpop.f32.mrf.mxu0
      %v559 = vadd.f32 0.0, %v558
      %560 = vmatmul.f32.gmra.mxu0 %v523
      %v561 = vpop.f32.mrf.mxu0
      %v562 = vadd.f32 0.0, %v561
      %563 = vmatmul.f32.gmra.mxu0 %v525
      %v564 = vpop.f32.mrf.mxu0
      %v565 = vadd.f32 0.0, %v564
      %566 = vmatmul.f32.gmra.mxu0 %v527
      %v567 = vpop.f32.mrf.mxu0
      %v568 = vadd.f32 0.0, %v567
      %569 = vdwg.mxu0
      %vm570 = vcmask 130048
      %v571 = vsel %vm570, %v434, 0
      %v573 = vsel %vm570, %v436, 0
      %v575 = vsel %vm570, %v438, 0
      %v577 = vsel %vm570, %v440, 0
      %v579 = vsel %vm570, %v442, 0
      %v581 = vsel %vm570, %v444, 0
      %v583 = vsel %vm570, %v446, 0
      %v585 = vsel %vm570, %v448, 0
      %587 = vmatpush.msra.mxu0 0.0
      %588 = vmatpush.msra.mxu0 0.0
      %589 = vmatpush.msra.mxu0 0.0
      %590 = vmatpush.msra.mxu0 0.0
      %591 = vmatpush.msra.mxu0 0.0
      %592 = vmatpush.msra.mxu0 0.0
      %593 = vmatpush.msra.mxu0 0.0
      %594 = vmatpush.msra.mxu0 0.0
      %595 = vmatpush.msra.mxu0 0.0
      %596 = vmatpush.msra.mxu0 0.0
      %597 = vmatpush.msra.mxu0 0.0
      %598 = vmatpush.msra.mxu0 0.0
      %599 = vmatpush.msra.mxu0 0.0
      %600 = vmatpush.msra.mxu0 0.0
      %601 = vmatpush.msra.mxu0 %v469
      %602 = vmatpush.msra.mxu0 %v468
      %603 = vmatmul.f32.gmra.mxu0 %v571
      %v604 = vpop.f32.mrf.mxu0
      %v605 = vadd.f32 %v547, %v604
      %606 = vmatmul.f32.gmra.mxu0 %v573
      %v607 = vpop.f32.mrf.mxu0
      %v608 = vadd.f32 %v550, %v607
      %609 = vmatmul.f32.gmra.mxu0 %v575
      %v610 = vpop.f32.mrf.mxu0
      %v611 = vadd.f32 %v553, %v610
      %612 = vmatmul.f32.gmra.mxu0 %v577
      %v613 = vpop.f32.mrf.mxu0
      %v614 = vadd.f32 %v556, %v613
      %615 = vmatmul.f32.gmra.mxu0 %v579
      %v616 = vpop.f32.mrf.mxu0
      %v617 = vadd.f32 %v559, %v616
      %618 = vmatmul.f32.gmra.mxu0 %v581
      %v619 = vpop.f32.mrf.mxu0
      %v620 = vadd.f32 %v562, %v619
      %621 = vmatmul.f32.gmra.mxu0 %v583
      %v622 = vpop.f32.mrf.mxu0
      %v623 = vadd.f32 %v565, %v622
      %624 = vmatmul.f32.gmra.mxu0 %v585
      %v625 = vpop.f32.mrf.mxu0
      %v626 = vadd.f32 %v568, %v625
      %627 = vdwg.mxu0
      %s628 = scalar_lea.vmem %s2, 16
      %v629 = vld [vmem:[%s628] sm:$0xff]
      %v630 = vld [vmem:[%s628 + $0x8] sm:$0xff]
      %v632 = vsel %vm570, %v452, 0
      %v635 = vsel %vm570, %v454, 0
      %v638 = vsel %vm570, %v456, 0
      %v641 = vsel %vm570, %v458, 0
      %v644 = vsel %vm570, %v460, 0
      %v647 = vsel %vm570, %v462, 0
      %v650 = vsel %vm570, %v464, 0
      %v653 = vsel %vm570, %v466, 0
      %655 = vmatpush.msra.mxu0 0.0
      %656 = vmatpush.msra.mxu0 0.0
      %657 = vmatpush.msra.mxu0 0.0
      %658 = vmatpush.msra.mxu0 0.0
      %659 = vmatpush.msra.mxu0 0.0
      %660 = vmatpush.msra.mxu0 0.0
      %661 = vmatpush.msra.mxu0 0.0
      %662 = vmatpush.msra.mxu0 0.0
      %663 = vmatpush.msra.mxu0 0.0
      %664 = vmatpush.msra.mxu0 0.0
      %665 = vmatpush.msra.mxu0 0.0
      %666 = vmatpush.msra.mxu0 0.0
      %667 = vmatpush.msra.mxu0 0.0
      %668 = vmatpush.msra.mxu0 0.0
      %669 = vmatpush.msra.mxu0 %v630
      %670 = vmatpush.msra.mxu0 %v629
      %671 = vmatmul.f32.gmra.mxu0 %v632
      %v672 = vpop.f32.mrf.mxu0
      %v673 = vadd.f32 0.0, %v672
      %674 = vmatmul.f32.gmra.mxu0 %v635
      %v675 = vpop.f32.mrf.mxu0
      %v676 = vadd.f32 0.0, %v675
      %677 = vmatmul.f32.gmra.mxu0 %v638
      %v678 = vpop.f32.mrf.mxu0
      %v679 = vadd.f32 0.0, %v678
      %680 = vmatmul.f32.gmra.mxu0 %v641
      %v681 = vpop.f32.mrf.mxu0
      %v682 = vadd.f32 0.0, %v681
      %683 = vmatmul.f32.gmra.mxu0 %v644
      %v684 = vpop.f32.mrf.mxu0
      %v685 = vadd.f32 0.0, %v684
      %686 = vmatmul.f32.gmra.mxu0 %v647
      %v687 = vpop.f32.mrf.mxu0
      %v688 = vadd.f32 0.0, %v687
      %689 = vmatmul.f32.gmra.mxu0 %v650
      %v690 = vpop.f32.mrf.mxu0
      %v691 = vadd.f32 0.0, %v690
      %692 = vmatmul.f32.gmra.mxu0 %v653
      %v693 = vpop.f32.mrf.mxu0
      %v694 = vadd.f32 0.0, %v693
      %695 = vdwg.mxu0
      %v696 = vadd.f32 %v605, %v673
      %v697 = vadd.f32 %v608, %v676
      %v698 = vadd.f32 %v611, %v679
      %v699 = vadd.f32 %v614, %v682
      %v700 = vadd.f32 %v617, %v685
      %v701 = vadd.f32 %v620, %v688
      %v702 = vadd.f32 %v623, %v691
      %v703 = vadd.f32 %v626, %v694
      %v712 = vrot.slane %v452, 1
      %v713 = vrot.slane %v453, 1
      %v714 = vsel %vm486, %v712, %v713
      %v715 = vrot.slane %v454, 1
      %v716 = vrot.slane %v455, 1
      %v717 = vsel %vm486, %v715, %v716
      %v718 = vrot.slane %v456, 1
      %v719 = vrot.slane %v457, 1
      %v720 = vsel %vm486, %v718, %v719
      %v721 = vrot.slane %v458, 1
      %v722 = vrot.slane %v459, 1
      %v723 = vsel %vm486, %v721, %v722
      %v724 = vrot.slane %v460, 1
      %v725 = vrot.slane %v461, 1
      %v726 = vsel %vm486, %v724, %v725
      %v727 = vrot.slane %v462, 1
      %v728 = vrot.slane %v463, 1
      %v729 = vsel %vm486, %v727, %v728
      %v730 = vrot.slane %v464, 1
      %v731 = vrot.slane %v465, 1
      %v732 = vsel %vm486, %v730, %v731
      %v733 = vrot.slane %v466, 1
      %v734 = vrot.slane %v467, 1
      %v735 = vsel %vm486, %v733, %v734
      %s736 = scalar_lea.vmem %s3, 8
      %v737 = vld [vmem:[%s736] sm:$0xff]
      %v738 = vsel %vm512, %v714, 0
      %v740 = vsel %vm512, %v717, 0
      %v742 = vsel %vm512, %v720, 0
      %v744 = vsel %vm512, %v723, 0
      %v746 = vsel %vm512, %v726, 0
      %v748 = vsel %vm512, %v729, 0
      %v750 = vsel %vm512, %v732, 0
      %v752 = vsel %vm512, %v735, 0
      %754 = vmatpush.msra.mxu0 0.0
      %755 = vmatpush.msra.mxu0 0.0
      %756 = vmatpush.msra.mxu0 0.0
      %757 = vmatpush.msra.mxu0 0.0
      %758 = vmatpush.msra.mxu0 0.0
      %759 = vmatpush.msra.mxu0 0.0
      %760 = vmatpush.msra.mxu0 0.0
      %761 = vmatpush.msra.mxu0 0.0
      %762 = vmatpush.msra.mxu0 0.0
      %763 = vmatpush.msra.mxu0 0.0
      %764 = vmatpush.msra.mxu0 0.0
      %765 = vmatpush.msra.mxu0 0.0
      %766 = vmatpush.msra.mxu0 0.0
      %767 = vmatpush.msra.mxu0 0.0
      %768 = vmatpush.msra.mxu0 0.0
      %769 = vmatpush.msra.mxu0 %v737
      %770 = vmatmul.f32.gmra.mxu0 %v738
      %v771 = vpop.f32.mrf.mxu0
      %v772 = vadd.f32 0.0, %v771
      %773 = vmatmul.f32.gmra.mxu0 %v740
      %v774 = vpop.f32.mrf.mxu0
      %v775 = vadd.f32 0.0, %v774
      %776 = vmatmul.f32.gmra.mxu0 %v742
      %v777 = vpop.f32.mrf.mxu0
      %v778 = vadd.f32 0.0, %v777
      %779 = vmatmul.f32.gmra.mxu0 %v744
      %v780 = vpop.f32.mrf.mxu0
      %v781 = vadd.f32 0.0, %v780
      %782 = vmatmul.f32.gmra.mxu0 %v746
      %v783 = vpop.f32.mrf.mxu0
      %v784 = vadd.f32 0.0, %v783
      %785 = vmatmul.f32.gmra.mxu0 %v748
      %v786 = vpop.f32.mrf.mxu0
      %v787 = vadd.f32 0.0, %v786
      %788 = vmatmul.f32.gmra.mxu0 %v750
      %v789 = vpop.f32.mrf.mxu0
      %v790 = vadd.f32 0.0, %v789
      %791 = vmatmul.f32.gmra.mxu0 %v752
      %v792 = vpop.f32.mrf.mxu0
      %v793 = vadd.f32 0.0, %v792
      %794 = vdwg.mxu0
      %v795 = vadd.f32 %v696, %v772
      %v796 = vadd.f32 %v697, %v775
      %v797 = vadd.f32 %v698, %v778
      %v798 = vadd.f32 %v699, %v781
      %v799 = vadd.f32 %v700, %v784
      %v800 = vadd.f32 %v701, %v787
      %v801 = vadd.f32 %v702, %v790
      %v802 = vadd.f32 %v703, %v793
      %s803 = scalar_lea.vmem %s2, 32
      %v804 = vld [vmem:[%s803] sm:$0xff]
      %v805 = vld [vmem:[%s803 + $0x8] sm:$0xff]
      %v807 = vsel %vm570, %v450, 0
      %809 = vmatpush.msra.mxu0 0.0
      %810 = vmatpush.msra.mxu0 0.0
      %811 = vmatpush.msra.mxu0 0.0
      %812 = vmatpush.msra.mxu0 0.0
      %813 = vmatpush.msra.mxu0 0.0
      %814 = vmatpush.msra.mxu0 0.0
      %815 = vmatpush.msra.mxu0 0.0
      %816 = vmatpush.msra.mxu0 0.0
      %817 = vmatpush.msra.mxu0 0.0
      %818 = vmatpush.msra.mxu0 0.0
      %819 = vmatpush.msra.mxu0 0.0
      %820 = vmatpush.msra.mxu0 0.0
      %821 = vmatpush.msra.mxu0 0.0
      %822 = vmatpush.msra.mxu0 0.0
      %823 = vmatpush.msra.mxu0 %v805
      %824 = vmatpush.msra.mxu0 %v804
      %825 = vmatmul.f32.gmra.mxu0 %v573
      %v826 = vpop.f32.mrf.mxu0
      %v827 = vadd.f32 0.0, %v826
      %828 = vmatmul.f32.gmra.mxu0 %v575
      %v829 = vpop.f32.mrf.mxu0
      %v830 = vadd.f32 0.0, %v829
      %831 = vmatmul.f32.gmra.mxu0 %v577
      %v832 = vpop.f32.mrf.mxu0
      %v833 = vadd.f32 0.0, %v832
      %834 = vmatmul.f32.gmra.mxu0 %v579
      %v835 = vpop.f32.mrf.mxu0
      %v836 = vadd.f32 0.0, %v835
      %837 = vmatmul.f32.gmra.mxu0 %v581
      %v838 = vpop.f32.mrf.mxu0
      %v839 = vadd.f32 0.0, %v838
      %840 = vmatmul.f32.gmra.mxu0 %v583
      %v841 = vpop.f32.mrf.mxu0
      %v842 = vadd.f32 0.0, %v841
      %843 = vmatmul.f32.gmra.mxu0 %v585
      %v844 = vpop.f32.mrf.mxu0
      %v845 = vadd.f32 0.0, %v844
      %846 = vmatmul.f32.gmra.mxu0 %v807
      %v847 = vpop.f32.mrf.mxu0
      %v848 = vadd.f32 0.0, %v847
      %849 = vdwg.mxu0
      %v850 = vadd.f32 %v795, %v827
      %v851 = vadd.f32 %v796, %v830
      %v852 = vadd.f32 %v797, %v833
      %v853 = vadd.f32 %v798, %v836
      %v854 = vadd.f32 %v799, %v839
      %v855 = vadd.f32 %v800, %v842
      %v856 = vadd.f32 %v801, %v845
      %v857 = vadd.f32 %v802, %v848
      %v859 = vrot.slane %v450, 1
      %v860 = vrot.slane %v451, 1
      %v861 = vsel %vm486, %v859, %v860
      %s862 = scalar_lea.vmem %s3, 16
      %v863 = vld [vmem:[%s862] sm:$0xff]
      %v864 = vsel %vm512, %v861, 0
      %866 = vmatpush.msra.mxu0 0.0
      %867 = vmatpush.msra.mxu0 0.0
      %868 = vmatpush.msra.mxu0 0.0
      %869 = vmatpush.msra.mxu0 0.0
      %870 = vmatpush.msra.mxu0 0.0
      %871 = vmatpush.msra.mxu0 0.0
      %872 = vmatpush.msra.mxu0 0.0
      %873 = vmatpush.msra.mxu0 0.0
      %874 = vmatpush.msra.mxu0 0.0
      %875 = vmatpush.msra.mxu0 0.0
      %876 = vmatpush.msra.mxu0 0.0
      %877 = vmatpush.msra.mxu0 0.0
      %878 = vmatpush.msra.mxu0 0.0
      %879 = vmatpush.msra.mxu0 0.0
      %880 = vmatpush.msra.mxu0 0.0
      %881 = vmatpush.msra.mxu0 %v863
      %882 = vmatmul.f32.gmra.mxu0 %v515
      %v883 = vpop.f32.mrf.mxu0
      %v884 = vadd.f32 0.0, %v883
      %885 = vmatmul.f32.gmra.mxu0 %v517
      %v886 = vpop.f32.mrf.mxu0
      %v887 = vadd.f32 0.0, %v886
      %888 = vmatmul.f32.gmra.mxu0 %v519
      %v889 = vpop.f32.mrf.mxu0
      %v890 = vadd.f32 0.0, %v889
      %891 = vmatmul.f32.gmra.mxu0 %v521
      %v892 = vpop.f32.mrf.mxu0
      %v893 = vadd.f32 0.0, %v892
      %894 = vmatmul.f32.gmra.mxu0 %v523
      %v895 = vpop.f32.mrf.mxu0
      %v896 = vadd.f32 0.0, %v895
      %897 = vmatmul.f32.gmra.mxu0 %v525
      %v898 = vpop.f32.mrf.mxu0
      %v899 = vadd.f32 0.0, %v898
      %900 = vmatmul.f32.gmra.mxu0 %v527
      %v901 = vpop.f32.mrf.mxu0
      %v902 = vadd.f32 0.0, %v901
      %903 = vmatmul.f32.gmra.mxu0 %v864
      %v904 = vpop.f32.mrf.mxu0
      %v905 = vadd.f32 0.0, %v904
      %906 = vdwg.mxu0
      %v907 = vadd.f32 %v850, %v884
      %v908 = vadd.f32 %v851, %v887
      %v909 = vadd.f32 %v852, %v890
      %v910 = vadd.f32 %v853, %v893
      %v911 = vadd.f32 %v854, %v896
      %v912 = vadd.f32 %v855, %v899
      %v913 = vadd.f32 %v856, %v902
      %v914 = vadd.f32 %v857, %v905
      %v915 = vld [vmem:[%s4] sm:$0x1]
      %v917 = vperm.slane %v915, 0
      %v919 = vmul.f32 %v907, %v917
      %v920 = vmul.f32 %v908, %v917
      %v921 = vmul.f32 %v909, %v917
      %v922 = vmul.f32 %v910, %v917
      %v923 = vmul.f32 %v911, %v917
      %v924 = vmul.f32 %v912, %v917
      %v925 = vmul.f32 %v913, %v917
      %v926 = vmul.f32 %v914, %v917
      %v927 = vld [vmem:[%s5] sm:$0x1]
      %v929 = vperm.slane %v927, 0
      %v931 = vadd.f32 %v919, %v929
      %v932 = vadd.f32 %v920, %v929
      %v933 = vadd.f32 %v921, %v929
      %v934 = vadd.f32 %v922, %v929
      %v935 = vadd.f32 %v923, %v929
      %v936 = vadd.f32 %v924, %v929
      %v937 = vadd.f32 %v925, %v929
      %v938 = vadd.f32 %v926, %v929
      %v939 = vmax.f32 %v931, 0.0
      %v940 = vmax.f32 %v932, 0.0
      %v941 = vmax.f32 %v933, 0.0
      %v942 = vmax.f32 %v934, 0.0
      %v943 = vmax.f32 %v935, 0.0
      %v944 = vmax.f32 %v936, 0.0
      %v945 = vmax.f32 %v937, 0.0
      %v946 = vmax.f32 %v938, 0.0
      %947 = vst [vmem:[#allocation2] sm:$0xff] 0.0
      %948 = vst [vmem:[#allocation2 + $0x8] sm:$0x3] 0.0
      %949 = vst [vmem:[#allocation2 + $0x10] sm:$0xff] 0.0
      %950 = vst [vmem:[#allocation2 + $0x18] sm:$0x3] 0.0
      %951 = vst [vmem:[#allocation2 + $0x20] sm:$0xff] 0.0
      %952 = vst [vmem:[#allocation2 + $0x28] sm:$0x3] 0.0
      %953 = vst [vmem:[#allocation2 + $0x30] sm:$0xff] 0.0
      %954 = vst [vmem:[#allocation2 + $0x38] sm:$0x3] 0.0
      %955 = vst [vmem:[#allocation2 + $0x40] sm:$0xff] 0.0
      %956 = vst [vmem:[#allocation2 + $0x48] sm:$0x3] 0.0
      %957 = vst [vmem:[#allocation2 + $0x50] sm:$0xff] 0.0
      %958 = vst [vmem:[#allocation2 + $0x58] sm:$0x3] 0.0
      %959 = vst [vmem:[#allocation2 + $0x60] sm:$0xff] 0.0
      %960 = vst [vmem:[#allocation2 + $0x68] sm:$0x3] 0.0
      %961 = vst [vmem:[#allocation2 + $0x70] sm:$0xff] 0.0
      %962 = vst [vmem:[#allocation2 + $0x78] sm:$0x3] 0.0
      %963 = vst [vmem:[#allocation2 + $0x80] sm:$0xff] 0.0
      %964 = vst [vmem:[#allocation2 + $0x88] sm:$0x3] 0.0
      %965 = vst [vmem:[#allocation2 + $0x90] sm:$0xff] 0.0
      %966 = vst [vmem:[#allocation2 + $0x98] sm:$0x3] 0.0
      %s967 = scalar_lea.vmem [#allocation2], 16
      %968 = vst [vmem:[%s967 + $0x1] sm:$0xff] %v939
      %969 = vst [vmem:[%s967 + $0x11] sm:$0xff] %v940
      %970 = vst [vmem:[%s967 + $0x21] sm:$0xff] %v941
      %971 = vst [vmem:[%s967 + $0x31] sm:$0xff] %v942
      %972 = vst [vmem:[%s967 + $0x41] sm:$0xff] %v943
      %973 = vst [vmem:[%s967 + $0x51] sm:$0xff] %v944
      %974 = vst [vmem:[%s967 + $0x61] sm:$0xff] %v945
      %975 = vst [vmem:[%s967 + $0x71] sm:$0xff] %v946
      %v976 = vld [vmem:[#allocation2] sm:$0xff]
      %v977 = vld [vmem:[#allocation2 + $0x8] sm:$0x3]
      %v978 = vld [vmem:[#allocation2 + $0x10] sm:$0xff]
      %v979 = vld [vmem:[#allocation2 + $0x18] sm:$0x3]
      %v980 = vld [vmem:[#allocation2 + $0x20] sm:$0xff]
      %v981 = vld [vmem:[#allocation2 + $0x28] sm:$0x3]
      %v982 = vld [vmem:[#allocation2 + $0x30] sm:$0xff]
      %v983 = vld [vmem:[#allocation2 + $0x38] sm:$0x3]
      %v984 = vld [vmem:[#allocation2 + $0x40] sm:$0xff]
      %v985 = vld [vmem:[#allocation2 + $0x48] sm:$0x3]
      %v986 = vld [vmem:[#allocation2 + $0x50] sm:$0xff]
      %v987 = vld [vmem:[#allocation2 + $0x58] sm:$0x3]
      %v988 = vld [vmem:[#allocation2 + $0x60] sm:$0xff]
      %v989 = vld [vmem:[#allocation2 + $0x68] sm:$0x3]
      %v990 = vld [vmem:[#allocation2 + $0x70] sm:$0xff]
      %v991 = vld [vmem:[#allocation2 + $0x78] sm:$0x3]
      %v992 = vld [vmem:[#allocation2 + $0x80] sm:$0xff]
      %v993 = vld [vmem:[#allocation2 + $0x88] sm:$0x3]
      %v994 = vld [vmem:[#allocation2 + $0x90] sm:$0xff]
      %v995 = vld [vmem:[#allocation2 + $0x98] sm:$0x3]
      %v1016 = vrot.slane %v976, 1
      %v1017 = vrot.slane %v977, 1
      %v1018 = vsel %vm486, %v1016, %v1017
      %v1019 = vrot.slane %v978, 1
      %v1020 = vrot.slane %v979, 1
      %v1021 = vsel %vm486, %v1019, %v1020
      %v1022 = vrot.slane %v980, 1
      %v1023 = vrot.slane %v981, 1
      %v1024 = vsel %vm486, %v1022, %v1023
      %v1025 = vrot.slane %v982, 1
      %v1026 = vrot.slane %v983, 1
      %v1027 = vsel %vm486, %v1025, %v1026
      %v1028 = vrot.slane %v984, 1
      %v1029 = vrot.slane %v985, 1
      %v1030 = vsel %vm486, %v1028, %v1029
      %v1031 = vrot.slane %v986, 1
      %v1032 = vrot.slane %v987, 1
      %v1033 = vsel %vm486, %v1031, %v1032
      %v1034 = vrot.slane %v988, 1
      %v1035 = vrot.slane %v989, 1
      %v1036 = vsel %vm486, %v1034, %v1035
      %v1037 = vrot.slane %v990, 1
      %v1038 = vrot.slane %v991, 1
      %v1039 = vsel %vm486, %v1037, %v1038
      %v1040 = vrot.slane %v992, 1
      %v1041 = vrot.slane %v993, 1
      %v1042 = vsel %vm486, %v1040, %v1041
      %v1043 = vrot.slane %v994, 1
      %v1044 = vrot.slane %v995, 1
      %v1045 = vsel %vm486, %v1043, %v1044
      %vm1056 = vcmask 1045504
      %v1057 = vrot.slane %v976, 2
      %v1058 = vrot.slane %v977, 2
      %v1059 = vsel %vm1056, %v1057, %v1058
      %v1060 = vrot.slane %v978, 2
      %v1061 = vrot.slane %v979, 2
      %v1062 = vsel %vm1056, %v1060, %v1061
      %v1063 = vrot.slane %v980, 2
      %v1064 = vrot.slane %v981, 2
      %v1065 = vsel %vm1056, %v1063, %v1064
      %v1066 = vrot.slane %v982, 2
      %v1067 = vrot.slane %v983, 2
      %v1068 = vsel %vm1056, %v1066, %v1067
      %v1069 = vrot.slane %v984, 2
      %v1070 = vrot.slane %v985, 2
      %v1071 = vsel %vm1056, %v1069, %v1070
      %v1072 = vrot.slane %v986, 2
      %v1073 = vrot.slane %v987, 2
      %v1074 = vsel %vm1056, %v1072, %v1073
      %v1075 = vrot.slane %v988, 2
      %v1076 = vrot.slane %v989, 2
      %v1077 = vsel %vm1056, %v1075, %v1076
      %v1078 = vrot.slane %v990, 2
      %v1079 = vrot.slane %v991, 2
      %v1080 = vsel %vm1056, %v1078, %v1079
      %v1081 = vrot.slane %v992, 2
      %v1082 = vrot.slane %v993, 2
      %v1083 = vsel %vm1056, %v1081, %v1082
      %v1084 = vrot.slane %v994, 2
      %v1085 = vrot.slane %v995, 2
      %v1086 = vsel %vm1056, %v1084, %v1085
      %v1097 = vld [vmem:[%s6] sm:$0xff]
      %v1098 = vld [vmem:[%s6 + $0x8] sm:$0xff]
      %v1099 = vld [vmem:[%s6 + $0x10] sm:$0xff]
      %v1100 = vld [vmem:[%s6 + $0x18] sm:$0xff]
      %v1101 = vld [vmem:[%s6 + $0x20] sm:$0xff]
      %v1102 = vld [vmem:[%s6 + $0x28] sm:$0xff]
      %v1103 = vld [vmem:[%s6 + $0x30] sm:$0xff]
      %v1104 = vld [vmem:[%s6 + $0x38] sm:$0xff]
      %v1105 = vld [vmem:[%s6 + $0x40] sm:$0xff]
      %v1106 = vld [vmem:[%s6 + $0x48] sm:$0xff]
      %v1107 = vld [vmem:[%s6 + $0x50] sm:$0xff]
      %v1108 = vld [vmem:[%s6 + $0x58] sm:$0xff]
      %v1109 = vld [vmem:[%s6 + $0x60] sm:$0xff]
      %v1110 = vld [vmem:[%s6 + $0x68] sm:$0xff]
      %v1111 = vld [vmem:[%s6 + $0x70] sm:$0xff]
      %v1112 = vld [vmem:[%s6 + $0x78] sm:$0xff]
      %v1113 = vld [vmem:[%s6 + $0x80] sm:$0xff]
      %v1114 = vld [vmem:[%s6 + $0x88] sm:$0xff]
      %v1115 = vld [vmem:[%s6 + $0x90] sm:$0xff]
      %v1116 = vld [vmem:[%s6 + $0x98] sm:$0xff]
      %v1117 = vld [vmem:[%s6 + $0xa0] sm:$0xff]
      %v1118 = vld [vmem:[%s6 + $0xa8] sm:$0xff]
      %v1119 = vld [vmem:[%s6 + $0xb0] sm:$0xff]
      %v1120 = vld [vmem:[%s6 + $0xb8] sm:$0xff]
      %v1121 = vld [vmem:[%s6 + $0xc0] sm:$0xff]
      %v1122 = vld [vmem:[%s6 + $0xc8] sm:$0xff]
      %v1123 = vld [vmem:[%s6 + $0xd0] sm:$0xff]
      %v1124 = vld [vmem:[%s6 + $0xd8] sm:$0xff]
      %v1125 = vld [vmem:[%s6 + $0xe0] sm:$0xff]
      %v1126 = vld [vmem:[%s6 + $0xe8] sm:$0xff]
      %v1127 = vld [vmem:[%s6 + $0xf0] sm:$0xff]
      %v1128 = vld [vmem:[%s6 + $0xf8] sm:$0xff]
      %v1129 = vld [vmem:[%s6 + $0x100] sm:$0xff]
      %v1130 = vld [vmem:[%s6 + $0x108] sm:$0xff]
      %v1131 = vld [vmem:[%s6 + $0x110] sm:$0xff]
      %v1132 = vld [vmem:[%s6 + $0x118] sm:$0xff]
      %v1133 = vld [vmem:[%s6 + $0x120] sm:$0xff]
      %v1134 = vld [vmem:[%s6 + $0x128] sm:$0xff]
      %v1135 = vld [vmem:[%s6 + $0x130] sm:$0xff]
      %v1136 = vld [vmem:[%s6 + $0x138] sm:$0xff]
      %v1137 = vld [vmem:[%s6 + $0x140] sm:$0xff]
      %v1138 = vld [vmem:[%s6 + $0x148] sm:$0xff]
      %v1139 = vld [vmem:[%s6 + $0x150] sm:$0xff]
      %v1140 = vld [vmem:[%s6 + $0x158] sm:$0xff]
      %v1141 = vld [vmem:[%s6 + $0x160] sm:$0xff]
      %v1142 = vld [vmem:[%s6 + $0x168] sm:$0xff]
      %v1143 = vld [vmem:[%s6 + $0x170] sm:$0xff]
      %v1144 = vld [vmem:[%s6 + $0x178] sm:$0xff]
      %s1145 = scalar_lea.vmem %s6, 384
      %v1146 = vld [vmem:[%s1145] sm:$0xff]
      %v1147 = vld [vmem:[%s1145 + $0x8] sm:$0xff]
      %v1148 = vld [vmem:[%s1145 + $0x10] sm:$0xff]
      %v1149 = vld [vmem:[%s1145 + $0x18] sm:$0xff]
      %v1150 = vld [vmem:[%s1145 + $0x20] sm:$0xff]
      %v1151 = vld [vmem:[%s1145 + $0x28] sm:$0xff]
      %v1152 = vld [vmem:[%s1145 + $0x30] sm:$0xff]
      %v1153 = vld [vmem:[%s1145 + $0x38] sm:$0xff]
      %v1154 = vld [vmem:[%s1145 + $0x40] sm:$0xff]
      %v1155 = vld [vmem:[%s1145 + $0x48] sm:$0xff]
      %v1156 = vld [vmem:[%s1145 + $0x50] sm:$0xff]
      %v1157 = vld [vmem:[%s1145 + $0x58] sm:$0xff]
      %v1158 = vld [vmem:[%s1145 + $0x60] sm:$0xff]
      %v1159 = vld [vmem:[%s1145 + $0x68] sm:$0xff]
      %v1160 = vld [vmem:[%s1145 + $0x70] sm:$0xff]
      %v1161 = vld [vmem:[%s1145 + $0x78] sm:$0xff]
      %v1162 = vld [vmem:[%s1145 + $0x80] sm:$0xff]
      %v1163 = vld [vmem:[%s1145 + $0x88] sm:$0xff]
      %v1164 = vld [vmem:[%s1145 + $0x90] sm:$0xff]
      %v1165 = vld [vmem:[%s1145 + $0x98] sm:$0xff]
      %v1166 = vld [vmem:[%s1145 + $0xa0] sm:$0xff]
      %v1167 = vld [vmem:[%s1145 + $0xa8] sm:$0xff]
      %v1168 = vld [vmem:[%s1145 + $0xb0] sm:$0xff]
      %v1169 = vld [vmem:[%s1145 + $0xb8] sm:$0xff]
      %v1170 = vld [vmem:[%s1145 + $0xc0] sm:$0xff]
      %v1171 = vld [vmem:[%s1145 + $0xc8] sm:$0xff]
      %v1172 = vld [vmem:[%s1145 + $0xd0] sm:$0xff]
      %v1173 = vld [vmem:[%s1145 + $0xd8] sm:$0xff]
      %v1174 = vld [vmem:[%s1145 + $0xe0] sm:$0xff]
      %v1175 = vld [vmem:[%s1145 + $0xe8] sm:$0xff]
      %v1176 = vld [vmem:[%s1145 + $0xf0] sm:$0xff]
      %v1177 = vld [vmem:[%s1145 + $0xf8] sm:$0xff]
      %v1178 = vld [vmem:[%s1145 + $0x100] sm:$0xff]
      %v1179 = vld [vmem:[%s1145 + $0x108] sm:$0xff]
      %v1180 = vld [vmem:[%s1145 + $0x110] sm:$0xff]
      %v1181 = vld [vmem:[%s1145 + $0x118] sm:$0xff]
      %v1182 = vld [vmem:[%s1145 + $0x120] sm:$0xff]
      %v1183 = vld [vmem:[%s1145 + $0x128] sm:$0xff]
      %v1184 = vld [vmem:[%s1145 + $0x130] sm:$0xff]
      %v1185 = vld [vmem:[%s1145 + $0x138] sm:$0xff]
      %v1186 = vld [vmem:[%s1145 + $0x140] sm:$0xff]
      %v1187 = vld [vmem:[%s1145 + $0x148] sm:$0xff]
      %v1188 = vld [vmem:[%s1145 + $0x150] sm:$0xff]
      %v1189 = vld [vmem:[%s1145 + $0x158] sm:$0xff]
      %v1190 = vld [vmem:[%s1145 + $0x160] sm:$0xff]
      %v1191 = vld [vmem:[%s1145 + $0x168] sm:$0xff]
      %v1192 = vld [vmem:[%s1145 + $0x170] sm:$0xff]
      %v1193 = vld [vmem:[%s1145 + $0x178] sm:$0xff]
      %1194 = vmatpush.msra.mxu0 %v1161
      %1195 = vmatpush.msra.mxu0 %v1160
      %1196 = vmatpush.msra.mxu0 %v1159
      %1197 = vmatpush.msra.mxu0 %v1158
      %1198 = vmatpush.msra.mxu0 %v1157
      %1199 = vmatpush.msra.mxu0 %v1156
      %1200 = vmatpush.msra.mxu0 %v1155
      %1201 = vmatpush.msra.mxu0 %v1154
      %1202 = vmatpush.msra.mxu0 %v1153
      %1203 = vmatpush.msra.mxu0 %v1152
      %1204 = vmatpush.msra.mxu0 %v1151
      %1205 = vmatpush.msra.mxu0 %v1150
      %1206 = vmatpush.msra.mxu0 %v1149
      %1207 = vmatpush.msra.mxu0 %v1148
      %1208 = vmatpush.msra.mxu0 %v1147
      %1209 = vmatpush.msra.mxu0 %v1146
      %1210 = vmatmul.f32.gmra.mxu0 %v978
      %v1211 = vpop.f32.mrf.mxu0
      %v1212 = vadd.f32 0.0, %v1211
      %1213 = vmatmul.f32.gmra.mxu0 %v980
      %v1214 = vpop.f32.mrf.mxu0
      %v1215 = vadd.f32 0.0, %v1214
      %1216 = vmatmul.f32.gmra.mxu0 %v982
      %v1217 = vpop.f32.mrf.mxu0
      %v1218 = vadd.f32 0.0, %v1217
      %1219 = vmatmul.f32.gmra.mxu0 %v984
      %v1220 = vpop.f32.mrf.mxu0
      %v1221 = vadd.f32 0.0, %v1220
      %1222 = vmatmul.f32.gmra.mxu0 %v986
      %v1223 = vpop.f32.mrf.mxu0
      %v1224 = vadd.f32 0.0, %v1223
      %1225 = vmatmul.f32.gmra.mxu0 %v988
      %v1226 = vpop.f32.mrf.mxu0
      %v1227 = vadd.f32 0.0, %v1226
      %1228 = vmatmul.f32.gmra.mxu0 %v990
      %v1229 = vpop.f32.mrf.mxu0
      %v1230 = vadd.f32 0.0, %v1229
      %1231 = vmatmul.f32.gmra.mxu0 %v992
      %v1232 = vpop.f32.mrf.mxu0
      %v1233 = vadd.f32 0.0, %v1232
      %1234 = vdwg.mxu0
      %1235 = vmatpush.msra.mxu0 %v1177
      %1236 = vmatpush.msra.mxu0 %v1176
      %1237 = vmatpush.msra.mxu0 %v1175
      %1238 = vmatpush.msra.mxu0 %v1174
      %1239 = vmatpush.msra.mxu0 %v1173
      %1240 = vmatpush.msra.mxu0 %v1172
      %1241 = vmatpush.msra.mxu0 %v1171
      %1242 = vmatpush.msra.mxu0 %v1170
      %1243 = vmatpush.msra.mxu0 %v1169
      %1244 = vmatpush.msra.mxu0 %v1168
      %1245 = vmatpush.msra.mxu0 %v1167
      %1246 = vmatpush.msra.mxu0 %v1166
      %1247 = vmatpush.msra.mxu0 %v1165
      %1248 = vmatpush.msra.mxu0 %v1164
      %1249 = vmatpush.msra.mxu0 %v1163
      %1250 = vmatpush.msra.mxu0 %v1162
      %1251 = vmatmul.f32.gmra.mxu0 %v1021
      %v1252 = vpop.f32.mrf.mxu0
      %v1253 = vadd.f32 %v1212, %v1252
      %1254 = vmatmul.f32.gmra.mxu0 %v1024
      %v1255 = vpop.f32.mrf.mxu0
      %v1256 = vadd.f32 %v1215, %v1255
      %1257 = vmatmul.f32.gmra.mxu0 %v1027
      %v1258 = vpop.f32.mrf.mxu0
      %v1259 = vadd.f32 %v1218, %v1258
      %1260 = vmatmul.f32.gmra.mxu0 %v1030
      %v1261 = vpop.f32.mrf.mxu0
      %v1262 = vadd.f32 %v1221, %v1261
      %1263 = vmatmul.f32.gmra.mxu0 %v1033
      %v1264 = vpop.f32.mrf.mxu0
      %v1265 = vadd.f32 %v1224, %v1264
      %1266 = vmatmul.f32.gmra.mxu0 %v1036
      %v1267 = vpop.f32.mrf.mxu0
      %v1268 = vadd.f32 %v1227, %v1267
      %1269 = vmatmul.f32.gmra.mxu0 %v1039
      %v1270 = vpop.f32.mrf.mxu0
      %v1271 = vadd.f32 %v1230, %v1270
      %1272 = vmatmul.f32.gmra.mxu0 %v1042
      %v1273 = vpop.f32.mrf.mxu0
      %v1274 = vadd.f32 %v1233, %v1273
      %1275 = vdwg.mxu0
      %1276 = vmatpush.msra.mxu0 %v1193
      %1277 = vmatpush.msra.mxu0 %v1192
      %1278 = vmatpush.msra.mxu0 %v1191
      %1279 = vmatpush.msra.mxu0 %v1190
      %1280 = vmatpush.msra.mxu0 %v1189
      %1281 = vmatpush.msra.mxu0 %v1188
      %1282 = vmatpush.msra.mxu0 %v1187
      %1283 = vmatpush.msra.mxu0 %v1186
      %1284 = vmatpush.msra.mxu0 %v1185
      %1285 = vmatpush.msra.mxu0 %v1184
      %1286 = vmatpush.msra.mxu0 %v1183
      %1287 = vmatpush.msra.mxu0 %v1182
      %1288 = vmatpush.msra.mxu0 %v1181
      %1289 = vmatpush.msra.mxu0 %v1180
      %1290 = vmatpush.msra.mxu0 %v1179
      %1291 = vmatpush.msra.mxu0 %v1178
      %1292 = vmatmul.f32.gmra.mxu0 %v1062
      %v1293 = vpop.f32.mrf.mxu0
      %v1294 = vadd.f32 %v1253, %v1293
      %1295 = vmatmul.f32.gmra.mxu0 %v1065
      %v1296 = vpop.f32.mrf.mxu0
      %v1297 = vadd.f32 %v1256, %v1296
      %1298 = vmatmul.f32.gmra.mxu0 %v1068
      %v1299 = vpop.f32.mrf.mxu0
      %v1300 = vadd.f32 %v1259, %v1299
      %1301 = vmatmul.f32.gmra.mxu0 %v1071
      %v1302 = vpop.f32.mrf.mxu0
      %v1303 = vadd.f32 %v1262, %v1302
      %1304 = vmatmul.f32.gmra.mxu0 %v1074
      %v1305 = vpop.f32.mrf.mxu0
      %v1306 = vadd.f32 %v1265, %v1305
      %1307 = vmatmul.f32.gmra.mxu0 %v1077
      %v1308 = vpop.f32.mrf.mxu0
      %v1309 = vadd.f32 %v1268, %v1308
      %1310 = vmatmul.f32.gmra.mxu0 %v1080
      %v1311 = vpop.f32.mrf.mxu0
      %v1312 = vadd.f32 %v1271, %v1311
      %1313 = vmatmul.f32.gmra.mxu0 %v1083
      %v1314 = vpop.f32.mrf.mxu0
      %v1315 = vadd.f32 %v1274, %v1314
      %1316 = vdwg.mxu0
      %1317 = vmatpush.msra.mxu0 %v1112
      %1318 = vmatpush.msra.mxu0 %v1111
      %1319 = vmatpush.msra.mxu0 %v1110
      %1320 = vmatpush.msra.mxu0 %v1109
      %1321 = vmatpush.msra.mxu0 %v1108
      %1322 = vmatpush.msra.mxu0 %v1107
      %1323 = vmatpush.msra.mxu0 %v1106
      %1324 = vmatpush.msra.mxu0 %v1105
      %1325 = vmatpush.msra.mxu0 %v1104
      %1326 = vmatpush.msra.mxu0 %v1103
      %1327 = vmatpush.msra.mxu0 %v1102
      %1328 = vmatpush.msra.mxu0 %v1101
      %1329 = vmatpush.msra.mxu0 %v1100
      %1330 = vmatpush.msra.mxu0 %v1099
      %1331 = vmatpush.msra.mxu0 %v1098
      %1332 = vmatpush.msra.mxu0 %v1097
      %1333 = vmatmul.f32.gmra.mxu0 %v976
      %v1334 = vpop.f32.mrf.mxu0
      %v1335 = vadd.f32 %v1294, %v1334
      %1336 = vmatmul.f32.gmra.mxu0 %v978
      %v1337 = vpop.f32.mrf.mxu0
      %v1338 = vadd.f32 %v1297, %v1337
      %1339 = vmatmul.f32.gmra.mxu0 %v980
      %v1340 = vpop.f32.mrf.mxu0
      %v1341 = vadd.f32 %v1300, %v1340
      %1342 = vmatmul.f32.gmra.mxu0 %v982
      %v1343 = vpop.f32.mrf.mxu0
      %v1344 = vadd.f32 %v1303, %v1343
      %1345 = vmatmul.f32.gmra.mxu0 %v984
      %v1346 = vpop.f32.mrf.mxu0
      %v1347 = vadd.f32 %v1306, %v1346
      %1348 = vmatmul.f32.gmra.mxu0 %v986
      %v1349 = vpop.f32.mrf.mxu0
      %v1350 = vadd.f32 %v1309, %v1349
      %1351 = vmatmul.f32.gmra.mxu0 %v988
      %v1352 = vpop.f32.mrf.mxu0
      %v1353 = vadd.f32 %v1312, %v1352
      %1354 = vmatmul.f32.gmra.mxu0 %v990
      %v1355 = vpop.f32.mrf.mxu0
      %v1356 = vadd.f32 %v1315, %v1355
      %1357 = vdwg.mxu0
      %1358 = vmatpush.msra.mxu0 %v1128
      %1359 = vmatpush.msra.mxu0 %v1127
      %1360 = vmatpush.msra.mxu0 %v1126
      %1361 = vmatpush.msra.mxu0 %v1125
      %1362 = vmatpush.msra.mxu0 %v1124
      %1363 = vmatpush.msra.mxu0 %v1123
      %1364 = vmatpush.msra.mxu0 %v1122
      %1365 = vmatpush.msra.mxu0 %v1121
      %1366 = vmatpush.msra.mxu0 %v1120
      %1367 = vmatpush.msra.mxu0 %v1119
      %1368 = vmatpush.msra.mxu0 %v1118
      %1369 = vmatpush.msra.mxu0 %v1117
      %1370 = vmatpush.msra.mxu0 %v1116
      %1371 = vmatpush.msra.mxu0 %v1115
      %1372 = vmatpush.msra.mxu0 %v1114
      %1373 = vmatpush.msra.mxu0 %v1113
      %1374 = vmatmul.f32.gmra.mxu0 %v1018
      %v1375 = vpop.f32.mrf.mxu0
      %v1376 = vadd.f32 %v1335, %v1375
      %1377 = vmatmul.f32.gmra.mxu0 %v1021
      %v1378 = vpop.f32.mrf.mxu0
      %v1379 = vadd.f32 %v1338, %v1378
      %1380 = vmatmul.f32.gmra.mxu0 %v1024
      %v1381 = vpop.f32.mrf.mxu0
      %v1382 = vadd.f32 %v1341, %v1381
      %1383 = vmatmul.f32.gmra.mxu0 %v1027
      %v1384 = vpop.f32.mrf.mxu0
      %v1385 = vadd.f32 %v1344, %v1384
      %1386 = vmatmul.f32.gmra.mxu0 %v1030
      %v1387 = vpop.f32.mrf.mxu0
      %v1388 = vadd.f32 %v1347, %v1387
      %1389 = vmatmul.f32.gmra.mxu0 %v1033
      %v1390 = vpop.f32.mrf.mxu0
      %v1391 = vadd.f32 %v1350, %v1390
      %1392 = vmatmul.f32.gmra.mxu0 %v1036
      %v1393 = vpop.f32.mrf.mxu0
      %v1394 = vadd.f32 %v1353, %v1393
      %1395 = vmatmul.f32.gmra.mxu0 %v1039
      %v1396 = vpop.f32.mrf.mxu0
      %v1397 = vadd.f32 %v1356, %v1396
      %1398 = vdwg.mxu0
      %1399 = vmatpush.msra.mxu0 %v1144
      %1400 = vmatpush.msra.mxu0 %v1143
      %1401 = vmatpush.msra.mxu0 %v1142
      %1402 = vmatpush.msra.mxu0 %v1141
      %1403 = vmatpush.msra.mxu0 %v1140
      %1404 = vmatpush.msra.mxu0 %v1139
      %1405 = vmatpush.msra.mxu0 %v1138
      %1406 = vmatpush.msra.mxu0 %v1137
      %1407 = vmatpush.msra.mxu0 %v1136
      %1408 = vmatpush.msra.mxu0 %v1135
      %1409 = vmatpush.msra.mxu0 %v1134
      %1410 = vmatpush.msra.mxu0 %v1133
      %1411 = vmatpush.msra.mxu0 %v1132
      %1412 = vmatpush.msra.mxu0 %v1131
      %1413 = vmatpush.msra.mxu0 %v1130
      %1414 = vmatpush.msra.mxu0 %v1129
      %1415 = vmatmul.f32.gmra.mxu0 %v1059
      %v1416 = vpop.f32.mrf.mxu0
      %v1417 = vadd.f32 %v1376, %v1416
      %1418 = vmatmul.f32.gmra.mxu0 %v1062
      %v1419 = vpop.f32.mrf.mxu0
      %v1420 = vadd.f32 %v1379, %v1419
      %1421 = vmatmul.f32.gmra.mxu0 %v1065
      %v1422 = vpop.f32.mrf.mxu0
      %v1423 = vadd.f32 %v1382, %v1422
      %1424 = vmatmul.f32.gmra.mxu0 %v1068
      %v1425 = vpop.f32.mrf.mxu0
      %v1426 = vadd.f32 %v1385, %v1425
      %1427 = vmatmul.f32.gmra.mxu0 %v1071
      %v1428 = vpop.f32.mrf.mxu0
      %v1429 = vadd.f32 %v1388, %v1428
      %1430 = vmatmul.f32.gmra.mxu0 %v1074
      %v1431 = vpop.f32.mrf.mxu0
      %v1432 = vadd.f32 %v1391, %v1431
      %1433 = vmatmul.f32.gmra.mxu0 %v1077
      %v1434 = vpop.f32.mrf.mxu0
      %v1435 = vadd.f32 %v1394, %v1434
      %1436 = vmatmul.f32.gmra.mxu0 %v1080
      %v1437 = vpop.f32.mrf.mxu0
      %v1438 = vadd.f32 %v1397, %v1437
      %1439 = vdwg.mxu0
      %s1440 = scalar_lea.vmem %s6, 768
      %v1441 = vld [vmem:[%s1440] sm:$0xff]
      %v1442 = vld [vmem:[%s1440 + $0x8] sm:$0xff]
      %v1443 = vld [vmem:[%s1440 + $0x10] sm:$0xff]
      %v1444 = vld [vmem:[%s1440 + $0x18] sm:$0xff]
      %v1445 = vld [vmem:[%s1440 + $0x20] sm:$0xff]
      %v1446 = vld [vmem:[%s1440 + $0x28] sm:$0xff]
      %v1447 = vld [vmem:[%s1440 + $0x30] sm:$0xff]
      %v1448 = vld [vmem:[%s1440 + $0x38] sm:$0xff]
      %v1449 = vld [vmem:[%s1440 + $0x40] sm:$0xff]
      %v1450 = vld [vmem:[%s1440 + $0x48] sm:$0xff]
      %v1451 = vld [vmem:[%s1440 + $0x50] sm:$0xff]
      %v1452 = vld [vmem:[%s1440 + $0x58] sm:$0xff]
      %v1453 = vld [vmem:[%s1440 + $0x60] sm:$0xff]
      %v1454 = vld [vmem:[%s1440 + $0x68] sm:$0xff]
      %v1455 = vld [vmem:[%s1440 + $0x70] sm:$0xff]
      %v1456 = vld [vmem:[%s1440 + $0x78] sm:$0xff]
      %v1457 = vld [vmem:[%s1440 + $0x80] sm:$0xff]
      %v1458 = vld [vmem:[%s1440 + $0x88] sm:$0xff]
      %v1459 = vld [vmem:[%s1440 + $0x90] sm:$0xff]
      %v1460 = vld [vmem:[%s1440 + $0x98] sm:$0xff]
      %v1461 = vld [vmem:[%s1440 + $0xa0] sm:$0xff]
      %v1462 = vld [vmem:[%s1440 + $0xa8] sm:$0xff]
      %v1463 = vld [vmem:[%s1440 + $0xb0] sm:$0xff]
      %v1464 = vld [vmem:[%s1440 + $0xb8] sm:$0xff]
      %v1465 = vld [vmem:[%s1440 + $0xc0] sm:$0xff]
      %v1466 = vld [vmem:[%s1440 + $0xc8] sm:$0xff]
      %v1467 = vld [vmem:[%s1440 + $0xd0] sm:$0xff]
      %v1468 = vld [vmem:[%s1440 + $0xd8] sm:$0xff]
      %v1469 = vld [vmem:[%s1440 + $0xe0] sm:$0xff]
      %v1470 = vld [vmem:[%s1440 + $0xe8] sm:$0xff]
      %v1471 = vld [vmem:[%s1440 + $0xf0] sm:$0xff]
      %v1472 = vld [vmem:[%s1440 + $0xf8] sm:$0xff]
      %v1473 = vld [vmem:[%s1440 + $0x100] sm:$0xff]
      %v1474 = vld [vmem:[%s1440 + $0x108] sm:$0xff]
      %v1475 = vld [vmem:[%s1440 + $0x110] sm:$0xff]
      %v1476 = vld [vmem:[%s1440 + $0x118] sm:$0xff]
      %v1477 = vld [vmem:[%s1440 + $0x120] sm:$0xff]
      %v1478 = vld [vmem:[%s1440 + $0x128] sm:$0xff]
      %v1479 = vld [vmem:[%s1440 + $0x130] sm:$0xff]
      %v1480 = vld [vmem:[%s1440 + $0x138] sm:$0xff]
      %v1481 = vld [vmem:[%s1440 + $0x140] sm:$0xff]
      %v1482 = vld [vmem:[%s1440 + $0x148] sm:$0xff]
      %v1483 = vld [vmem:[%s1440 + $0x150] sm:$0xff]
      %v1484 = vld [vmem:[%s1440 + $0x158] sm:$0xff]
      %v1485 = vld [vmem:[%s1440 + $0x160] sm:$0xff]
      %v1486 = vld [vmem:[%s1440 + $0x168] sm:$0xff]
      %v1487 = vld [vmem:[%s1440 + $0x170] sm:$0xff]
      %v1488 = vld [vmem:[%s1440 + $0x178] sm:$0xff]
      %1489 = vmatpush.msra.mxu0 %v1456
      %1490 = vmatpush.msra.mxu0 %v1455
      %1491 = vmatpush.msra.mxu0 %v1454
      %1492 = vmatpush.msra.mxu0 %v1453
      %1493 = vmatpush.msra.mxu0 %v1452
      %1494 = vmatpush.msra.mxu0 %v1451
      %1495 = vmatpush.msra.mxu0 %v1450
      %1496 = vmatpush.msra.mxu0 %v1449
      %1497 = vmatpush.msra.mxu0 %v1448
      %1498 = vmatpush.msra.mxu0 %v1447
      %1499 = vmatpush.msra.mxu0 %v1446
      %1500 = vmatpush.msra.mxu0 %v1445
      %1501 = vmatpush.msra.mxu0 %v1444
      %1502 = vmatpush.msra.mxu0 %v1443
      %1503 = vmatpush.msra.mxu0 %v1442
      %1504 = vmatpush.msra.mxu0 %v1441
      %1505 = vmatmul.f32.gmra.mxu0 %v980
      %v1506 = vpop.f32.mrf.mxu0
      %v1507 = vadd.f32 0.0, %v1506
      %1508 = vmatmul.f32.gmra.mxu0 %v982
      %v1509 = vpop.f32.mrf.mxu0
      %v1510 = vadd.f32 0.0, %v1509
      %1511 = vmatmul.f32.gmra.mxu0 %v984
      %v1512 = vpop.f32.mrf.mxu0
      %v1513 = vadd.f32 0.0, %v1512
      %1514 = vmatmul.f32.gmra.mxu0 %v986
      %v1515 = vpop.f32.mrf.mxu0
      %v1516 = vadd.f32 0.0, %v1515
      %1517 = vmatmul.f32.gmra.mxu0 %v988
      %v1518 = vpop.f32.mrf.mxu0
      %v1519 = vadd.f32 0.0, %v1518
      %1520 = vmatmul.f32.gmra.mxu0 %v990
      %v1521 = vpop.f32.mrf.mxu0
      %v1522 = vadd.f32 0.0, %v1521
      %1523 = vmatmul.f32.gmra.mxu0 %v992
      %v1524 = vpop.f32.mrf.mxu0
      %v1525 = vadd.f32 0.0, %v1524
      %1526 = vmatmul.f32.gmra.mxu0 %v994
      %v1527 = vpop.f32.mrf.mxu0
      %v1528 = vadd.f32 0.0, %v1527
      %1529 = vdwg.mxu0
      %1530 = vmatpush.msra.mxu0 %v1472
      %1531 = vmatpush.msra.mxu0 %v1471
      %1532 = vmatpush.msra.mxu0 %v1470
      %1533 = vmatpush.msra.mxu0 %v1469
      %1534 = vmatpush.msra.mxu0 %v1468
      %1535 = vmatpush.msra.mxu0 %v1467
      %1536 = vmatpush.msra.mxu0 %v1466
      %1537 = vmatpush.msra.mxu0 %v1465
      %1538 = vmatpush.msra.mxu0 %v1464
      %1539 = vmatpush.msra.mxu0 %v1463
      %1540 = vmatpush.msra.mxu0 %v1462
      %1541 = vmatpush.msra.mxu0 %v1461
      %1542 = vmatpush.msra.mxu0 %v1460
      %1543 = vmatpush.msra.mxu0 %v1459
      %1544 = vmatpush.msra.mxu0 %v1458
      %1545 = vmatpush.msra.mxu0 %v1457
      %1546 = vmatmul.f32.gmra.mxu0 %v1024
      %v1547 = vpop.f32.mrf.mxu0
      %v1548 = vadd.f32 %v1507, %v1547
      %1549 = vmatmul.f32.gmra.mxu0 %v1027
      %v1550 = vpop.f32.mrf.mxu0
      %v1551 = vadd.f32 %v1510, %v1550
      %1552 = vmatmul.f32.gmra.mxu0 %v1030
      %v1553 = vpop.f32.mrf.mxu0
      %v1554 = vadd.f32 %v1513, %v1553
      %1555 = vmatmul.f32.gmra.mxu0 %v1033
      %v1556 = vpop.f32.mrf.mxu0
      %v1557 = vadd.f32 %v1516, %v1556
      %1558 = vmatmul.f32.gmra.mxu0 %v1036
      %v1559 = vpop.f32.mrf.mxu0
      %v1560 = vadd.f32 %v1519, %v1559
      %1561 = vmatmul.f32.gmra.mxu0 %v1039
      %v1562 = vpop.f32.mrf.mxu0
      %v1563 = vadd.f32 %v1522, %v1562
      %1564 = vmatmul.f32.gmra.mxu0 %v1042
      %v1565 = vpop.f32.mrf.mxu0
      %v1566 = vadd.f32 %v1525, %v1565
      %1567 = vmatmul.f32.gmra.mxu0 %v1045
      %v1568 = vpop.f32.mrf.mxu0
      %v1569 = vadd.f32 %v1528, %v1568
      %1570 = vdwg.mxu0
      %1571 = vmatpush.msra.mxu0 %v1488
      %1572 = vmatpush.msra.mxu0 %v1487
      %1573 = vmatpush.msra.mxu0 %v1486
      %1574 = vmatpush.msra.mxu0 %v1485
      %1575 = vmatpush.msra.mxu0 %v1484
      %1576 = vmatpush.msra.mxu0 %v1483
      %1577 = vmatpush.msra.mxu0 %v1482
      %1578 = vmatpush.msra.mxu0 %v1481
      %1579 = vmatpush.msra.mxu0 %v1480
      %1580 = vmatpush.msra.mxu0 %v1479
      %1581 = vmatpush.msra.mxu0 %v1478
      %1582 = vmatpush.msra.mxu0 %v1477
      %1583 = vmatpush.msra.mxu0 %v1476
      %1584 = vmatpush.msra.mxu0 %v1475
      %1585 = vmatpush.msra.mxu0 %v1474
      %1586 = vmatpush.msra.mxu0 %v1473
      %1587 = vmatmul.f32.gmra.mxu0 %v1065
      %v1588 = vpop.f32.mrf.mxu0
      %v1589 = vadd.f32 %v1548, %v1588
      %1590 = vmatmul.f32.gmra.mxu0 %v1068
      %v1591 = vpop.f32.mrf.mxu0
      %v1592 = vadd.f32 %v1551, %v1591
      %1593 = vmatmul.f32.gmra.mxu0 %v1071
      %v1594 = vpop.f32.mrf.mxu0
      %v1595 = vadd.f32 %v1554, %v1594
      %1596 = vmatmul.f32.gmra.mxu0 %v1074
      %v1597 = vpop.f32.mrf.mxu0
      %v1598 = vadd.f32 %v1557, %v1597
      %1599 = vmatmul.f32.gmra.mxu0 %v1077
      %v1600 = vpop.f32.mrf.mxu0
      %v1601 = vadd.f32 %v1560, %v1600
      %1602 = vmatmul.f32.gmra.mxu0 %v1080
      %v1603 = vpop.f32.mrf.mxu0
      %v1604 = vadd.f32 %v1563, %v1603
      %1605 = vmatmul.f32.gmra.mxu0 %v1083
      %v1606 = vpop.f32.mrf.mxu0
      %v1607 = vadd.f32 %v1566, %v1606
      %1608 = vmatmul.f32.gmra.mxu0 %v1086
      %v1609 = vpop.f32.mrf.mxu0
      %v1610 = vadd.f32 %v1569, %v1609
      %1611 = vdwg.mxu0
      %v1612 = vadd.f32 %v1417, %v1589
      %v1613 = vadd.f32 %v1420, %v1592
      %v1614 = vadd.f32 %v1423, %v1595
      %v1615 = vadd.f32 %v1426, %v1598
      %v1616 = vadd.f32 %v1429, %v1601
      %v1617 = vadd.f32 %v1432, %v1604
      %v1618 = vadd.f32 %v1435, %v1607
      %v1619 = vadd.f32 %v1438, %v1610
      %v1620 = vld [vmem:[%s7] sm:$0x1]
      %v1622 = vperm.slane %v1620, 0
      %v1624 = vmul.f32 %v1612, %v1622
      %v1625 = vmul.f32 %v1613, %v1622
      %v1626 = vmul.f32 %v1614, %v1622
      %v1627 = vmul.f32 %v1615, %v1622
      %v1628 = vmul.f32 %v1616, %v1622
      %v1629 = vmul.f32 %v1617, %v1622
      %v1630 = vmul.f32 %v1618, %v1622
      %v1631 = vmul.f32 %v1619, %v1622
      %v1632 = vld [vmem:[%s8] sm:$0x1]
      %v1634 = vperm.slane %v1632, 0
      %v1636 = vadd.f32 %v1624, %v1634
      %v1637 = vadd.f32 %v1625, %v1634
      %v1638 = vadd.f32 %v1626, %v1634
      %v1639 = vadd.f32 %v1627, %v1634
      %v1640 = vadd.f32 %v1628, %v1634
      %v1641 = vadd.f32 %v1629, %v1634
      %v1642 = vadd.f32 %v1630, %v1634
      %v1643 = vadd.f32 %v1631, %v1634
      %v1644 = vld [vmem:[%s9] sm:$0xff]
      %1645 = vrot.lane.b32.xlu0 %v452, 120
      %v1646 = vpop.permute.xlu0 %1645
      %1647 = vrot.lane.b32.xlu0 %v454, 120
      %v1648 = vpop.permute.xlu0 %1647
      %1649 = vrot.lane.b32.xlu0 %v456, 120
      %v1650 = vpop.permute.xlu0 %1649
      %1651 = vrot.lane.b32.xlu0 %v458, 120
      %v1652 = vpop.permute.xlu0 %1651
      %1653 = vrot.lane.b32.xlu0 %v460, 120
      %v1654 = vpop.permute.xlu0 %1653
      %1655 = vrot.lane.b32.xlu0 %v462, 120
      %v1656 = vpop.permute.xlu0 %1655
      %1657 = vrot.lane.b32.xlu0 %v464, 120
      %v1658 = vpop.permute.xlu0 %1657
      %1659 = vrot.lane.b32.xlu0 %v466, 120
      %v1660 = vpop.permute.xlu0 %1659
      %v1661 = vsel %vm512, %v1646, 0
      %v1663 = vsel %vm512, %v1648, 0
      %v1665 = vsel %vm512, %v1650, 0
      %v1667 = vsel %vm512, %v1652, 0
      %v1669 = vsel %vm512, %v1654, 0
      %v1671 = vsel %vm512, %v1656, 0
      %v1673 = vsel %vm512, %v1658, 0
      %v1675 = vsel %vm512, %v1660, 0
      %1677 = vmatpush.msra.mxu0 0.0
      %1678 = vmatpush.msra.mxu0 0.0
      %1679 = vmatpush.msra.mxu0 0.0
      %1680 = vmatpush.msra.mxu0 0.0
      %1681 = vmatpush.msra.mxu0 0.0
      %1682 = vmatpush.msra.mxu0 0.0
      %1683 = vmatpush.msra.mxu0 0.0
      %1684 = vmatpush.msra.mxu0 0.0
      %1685 = vmatpush.msra.mxu0 0.0
      %1686 = vmatpush.msra.mxu0 0.0
      %1687 = vmatpush.msra.mxu0 0.0
      %1688 = vmatpush.msra.mxu0 0.0
      %1689 = vmatpush.msra.mxu0 0.0
      %1690 = vmatpush.msra.mxu0 0.0
      %1691 = vmatpush.msra.mxu0 0.0
      %1692 = vmatpush.msra.mxu0 %v1644
      %1693 = vmatmul.f32.gmra.mxu0 %v1661
      %v1694 = vpop.f32.mrf.mxu0
      %v1695 = vadd.f32 0.0, %v1694
      %1696 = vmatmul.f32.gmra.mxu0 %v1663
      %v1697 = vpop.f32.mrf.mxu0
      %v1698 = vadd.f32 0.0, %v1697
      %1699 = vmatmul.f32.gmra.mxu0 %v1665
      %v1700 = vpop.f32.mrf.mxu0
      %v1701 = vadd.f32 0.0, %v1700
      %1702 = vmatmul.f32.gmra.mxu0 %v1667
      %v1703 = vpop.f32.mrf.mxu0
      %v1704 = vadd.f32 0.0, %v1703
      %1705 = vmatmul.f32.gmra.mxu0 %v1669
      %v1706 = vpop.f32.mrf.mxu0
      %v1707 = vadd.f32 0.0, %v1706
      %1708 = vmatmul.f32.gmra.mxu0 %v1671
      %v1709 = vpop.f32.mrf.mxu0
      %v1710 = vadd.f32 0.0, %v1709
      %1711 = vmatmul.f32.gmra.mxu0 %v1673
      %v1712 = vpop.f32.mrf.mxu0
      %v1713 = vadd.f32 0.0, %v1712
      %1714 = vmatmul.f32.gmra.mxu0 %v1675
      %v1715 = vpop.f32.mrf.mxu0
      %v1716 = vadd.f32 0.0, %v1715
      %1717 = vdwg.mxu0
      %v1718 = vld [vmem:[%s10] sm:$0x1]
      %v1720 = vperm.slane %v1718, 0
      %v1722 = vmul.f32 %v1695, %v1720
      %v1723 = vmul.f32 %v1698, %v1720
      %v1724 = vmul.f32 %v1701, %v1720
      %v1725 = vmul.f32 %v1704, %v1720
      %v1726 = vmul.f32 %v1707, %v1720
      %v1727 = vmul.f32 %v1710, %v1720
      %v1728 = vmul.f32 %v1713, %v1720
      %v1729 = vmul.f32 %v1716, %v1720
      %v1730 = vld [vmem:[%s11] sm:$0x1]
      %v1732 = vperm.slane %v1730, 0
      %v1734 = vadd.f32 %v1722, %v1732
      %v1735 = vadd.f32 %v1723, %v1732
      %v1736 = vadd.f32 %v1724, %v1732
      %v1737 = vadd.f32 %v1725, %v1732
      %v1738 = vadd.f32 %v1726, %v1732
      %v1739 = vadd.f32 %v1727, %v1732
      %v1740 = vadd.f32 %v1728, %v1732
      %v1741 = vadd.f32 %v1729, %v1732
      %v1742 = vadd.f32 %v1636, %v1734
      %v1743 = vadd.f32 %v1637, %v1735
      %v1744 = vadd.f32 %v1638, %v1736
      %v1745 = vadd.f32 %v1639, %v1737
      %v1746 = vadd.f32 %v1640, %v1738
      %v1747 = vadd.f32 %v1641, %v1739
      %v1748 = vadd.f32 %v1642, %v1740
      %v1749 = vadd.f32 %v1643, %v1741
      %v1750 = vmax.f32 %v1742, 0.0
      %v1751 = vmax.f32 %v1743, 0.0
      %v1752 = vmax.f32 %v1744, 0.0
      %v1753 = vmax.f32 %v1745, 0.0
      %v1754 = vmax.f32 %v1746, 0.0
      %v1755 = vmax.f32 %v1747, 0.0
      %v1756 = vmax.f32 %v1748, 0.0
      %v1757 = vmax.f32 %v1749, 0.0
      %1758 = vst [vmem:[%s433] sm:$0xff] 0.0
      %1759 = vst [vmem:[%s433 + $0x8] sm:$0x3] 0.0
      %1760 = vst [vmem:[%s433 + $0x10] sm:$0xff] 0.0
      %1761 = vst [vmem:[%s433 + $0x18] sm:$0x3] 0.0
      %1762 = vst [vmem:[%s433 + $0x20] sm:$0xff] 0.0
      %1763 = vst [vmem:[%s433 + $0x28] sm:$0x3] 0.0
      %1764 = vst [vmem:[%s433 + $0x30] sm:$0xff] 0.0
      %1765 = vst [vmem:[%s433 + $0x38] sm:$0x3] 0.0
      %1766 = vst [vmem:[%s433 + $0x40] sm:$0xff] 0.0
      %1767 = vst [vmem:[%s433 + $0x48] sm:$0x3] 0.0
      %1768 = vst [vmem:[%s433 + $0x50] sm:$0xff] 0.0
      %1769 = vst [vmem:[%s433 + $0x58] sm:$0x3] 0.0
      %1770 = vst [vmem:[%s433 + $0x60] sm:$0xff] 0.0
      %1771 = vst [vmem:[%s433 + $0x68] sm:$0x3] 0.0
      %1772 = vst [vmem:[%s433 + $0x70] sm:$0xff] 0.0
      %1773 = vst [vmem:[%s433 + $0x78] sm:$0x3] 0.0
      %1774 = vst [vmem:[%s433 + $0x80] sm:$0xff] 0.0
      %1775 = vst [vmem:[%s433 + $0x88] sm:$0x3] 0.0
      %1776 = vst [vmem:[%s433 + $0x90] sm:$0xff] 0.0
      %1777 = vst [vmem:[%s433 + $0x98] sm:$0x3] 0.0
      %s1778 = scalar_lea.vmem %s433, 16
      %1779 = vst [vmem:[%s1778 + $0x1] sm:$0xff] %v1750
      %1780 = vst [vmem:[%s1778 + $0x11] sm:$0xff] %v1751
      %1781 = vst [vmem:[%s1778 + $0x21] sm:$0xff] %v1752
      %1782 = vst [vmem:[%s1778 + $0x31] sm:$0xff] %v1753
      %1783 = vst [vmem:[%s1778 + $0x41] sm:$0xff] %v1754
      %1784 = vst [vmem:[%s1778 + $0x51] sm:$0xff] %v1755
      %1785 = vst [vmem:[%s1778 + $0x61] sm:$0xff] %v1756
      %1786 = vst [vmem:[%s1778 + $0x71] sm:$0xff] %v1757
      %p1787 = scmp.lt.s32.totalorder %s23, 1
      %s1788 = scalar_select %p1787, %s23, 1
      %s1789 = smul.addr %s1788, 20
      %s1790 = smul.addr %s1789, 8
      %s1791 = scalar_lea.vmem %s12, %s1790
      // Predicated region
      $region69: #{encoder_forward.5} parent=67 // pred_check
        %p1792 = pneg %p303
      $region70: #{encoder_forward.5} parent=67 // pred_check_branch
        %1794 = sbr.rel (%p1792) target = $region72
      $region71: #{encoder_forward.5} parent=67 // pred_region
        _
      $region72: #{encoder_forward.5} parent=67 // pred_fallthru
        _
    $region68: #{encoder_forward.5} parent=5 // pred_fallthru
      _
    %p1795 = scmp.le.s32.totalorder 2, %s18
    // Predicated region
    $region73: #{encoder_forward.5} parent=5 // pred_check
      %p1796 = pneg %p1795
    $region74: #{encoder_forward.5} parent=5 // pred_check_branch
      %1798 = sbr.rel (%p1796) target = $region76
    $region75: #{encoder_forward.5} parent=5 // pred_region
      %s1799 = ssub.s32 %s18, 2
      // Predicated region
      $region77: #{encoder_forward.5} parent=75 // pred_check
        %p1800 = pneg %p309
      $region78: #{encoder_forward.5} parent=75 // pred_check_branch
        %1802 = sbr.rel (%p1800) target = $region80
      $region79: #{encoder_forward.5} parent=75 // pred_region
        %p1803 = scmp.lt.s32.totalorder %s24, 1
        %s1804 = scalar_select %p1803, %s24, 1
        %s1805 = smul.addr %s1804, 20
        %s1806 = smul.addr %s1805, 8
        %s1807 = scalar_lea.vmem %s12, %s1806
      $region80: #{encoder_forward.5} parent=75 // pred_fallthru
        _
    $region76: #{encoder_forward.5} parent=5 // pred_fallthru
      _
  $region6: #{encoder_forward.5} parent=0 // loop_footer
    %s22 = sadd.s32 1, %s18
  $region7: #{encoder_forward.5} parent=0 // loop_footer_branch
    %17 = sbr.rel target = $region3
  $region8: #{encoder_forward.5} parent=0 // loop_exit
    _

// kernel: encoder_forward.8
$region0: #{encoder_forward.8}
  #allocation0 [shape = 'u32[]', space=smem, size = 0x4, offset = 0x4, fixed_abs, tag = 'smem constant byte address 0x4 - core index']
  #allocation1 [shape = 'u32[72,128]{1,0:T(1,128)}', space=vmem, size = 0x9000, scoped, tag = 'internal scratch']
  #allocation2 [shape = 'f32[6,6,128]{2,1,0:T(8,128)}', space=vmem, size = 0x6000, scoped, tag = 'scratch operand']
  %s0 = inlined_call_operand.vmem [shape: f32[2,6,6,128], index: 0, kind: input, shape index: {}]
  %s1 = inlined_call_operand.vmem [shape: f32[3,384,128], index: 1, kind: input, shape index: {}]
  %s2 = inlined_call_operand.vmem [shape: f32[1,128], index: 2, kind: input, shape index: {}]
  %s3 = inlined_call_operand.vmem [shape: f32[1,128], index: 3, kind: input, shape index: {}]
  %s4 = inlined_call_operand.hbm [shape: f32[3,384,128], index: 4, kind: input, shape index: {}]
  %s5 = inlined_call_operand.vmem [shape: f32[1,128], index: 5, kind: input, shape index: {}]
  %s6 = inlined_call_operand.vmem [shape: f32[1,128], index: 6, kind: input, shape index: {}]
  %s7 = inlined_call_operand.vmem [shape: f32[2,6,6,128], index: 7, kind: output, shape index: {}]
  %s8 = sld [smem:[#allocation0]]
  $region65: #{encoder_forward.8} parent=0
    _
  %s10 = ssub.s32 1, %s8
  %s11 = scalar_select 0, %s10, %s8
  $region1: #{encoder_forward.8} parent=0
    #allocation3 [shape = 'u8[589824]{0}', space=vmem, size = 0x90000, scoped, tag = 'input window, operand 4, single buffered']
    #allocation4 [shape = 's32[2]{0}', space=sflag, size = 0x8, scoped, tag = 'scoped memory for encoder_forward.8']
    %12 = vsyncpa [#allocation4], 0
    loop: start=0, step=1, limit=4
    $region2: #{encoder_forward.8} parent=1 // loop_pre_header
      _
    $region3: #{encoder_forward.8} parent=1 // loop_header
      %s14 = sphi 0, %s18
      %p15 = scmp.ge.s32.totalorder %s14, 4
      %s24 = sphi 0, %s26
      %s27 = sphi 0, %s24
      %s28 = sphi 0, %s27
      %s44 = sphi 0, %s28
      %s48 = sphi 0, %s48
      %s50 = sphi 0, %s48
      %s51 = sphi 0, %s50
      %s65 = sphi 0, %s51
      %s69 = sphi 0, %s69
      %s71 = sphi 0, %s69
      %s72 = sphi 0, %s71
      %s86 = sphi 0, %s72
      %s90 = sphi 0, %s90
      %s92 = sphi 0, %s90
      %s93 = sphi 0, %s92
      %s107 = sphi 0, %s93
      %s111 = sphi 0, %s111
      %s113 = sphi 0, %s111
      %s114 = sphi 0, %s113
      %s128 = sphi 0, %s114
      %s132 = sphi 0, %s132
      %s134 = sphi 0, %s132
      %s135 = sphi 0, %s134
      %s149 = sphi 0, %s135
      %s153 = sphi 0, %s153
      %s155 = sphi 0, %s153
      %s156 = sphi 0, %s155
      %s170 = sphi 0, %s156
      %s176 = sphi 0, %s178
      %s179 = sphi 0, %s176
      %s180 = sphi 0, %s179
      %s196 = sphi 0, %s180
    $region4: #{encoder_forward.8} parent=1 // loop_header_branch
      %17 = sbr.rel (%p15) target = $region8
    $region5: #{encoder_forward.8} parent=1 // loop_body
      %s19 = ssub.s32 %s14, 1
      %s20 = ssub.s32 %s14, 2
      %s21 = sadd.s32 %s14, 1
      %s22 = ssub.s32 %s14, %s21
      %p23 = scmp.eq.s32.totalorder %s22, 0
      %s25 = sadd.s32 %s24, 1
      %s26 = scalar_select %p23, %s24, %s25
      %p29 = pneg %p23
      %p30 = scmp.eq.s32.totalorder %s14, 1
      %p31 = por %p29, %p30
      %p32 = scmp.ne.s32.totalorder %s24, %s27
      %p33 = scmp.eq.s32.totalorder %s14, 0
      %p34 = por %p32, %p33
      %p35 = scmp.ne.s32.totalorder %s24, %s27
      %p36 = scmp.eq.s32.totalorder %s19, 1
      %p37 = por %p35, %p36
      %p38 = scmp.ne.s32.totalorder %s27, %s28
      %p39 = scmp.eq.s32.totalorder %s19, 0
      %p40 = por %p38, %p39
      %p41 = scmp.ne.s32.totalorder %s27, %s28
      %p42 = scmp.eq.s32.totalorder %s20, 1
      %p43 = por %p41, %p42
      %p45 = scmp.ne.s32.totalorder %s28, %s44
      %p46 = scmp.eq.s32.totalorder %s20, 0
      %p47 = por %p45, %p46
      %s49 = sadd.s32 %s48, 1
      %p52 = scmp.eq.s32.totalorder %s14, 1
      %p53 = scmp.ne.s32.totalorder %s48, %s50
      %p54 = scmp.eq.s32.totalorder %s14, 0
      %p55 = por %p53, %p54
      %p56 = scmp.ne.s32.totalorder %s48, %s50
      %p57 = scmp.eq.s32.totalorder %s19, 1
      %p58 = por %p56, %p57
      %p59 = scmp.ne.s32.totalorder %s50, %s51
      %p60 = scmp.eq.s32.totalorder %s19, 0
      %p61 = por %p59, %p60
      %p62 = scmp.ne.s32.totalorder %s50, %s51
      %p63 = scmp.eq.s32.totalorder %s20, 1
      %p64 = por %p62, %p63
      %p66 = scmp.ne.s32.totalorder %s51, %s65
      %p67 = scmp.eq.s32.totalorder %s20, 0
      %p68 = por %p66, %p67
      %s70 = sadd.s32 %s69, 1
      %p73 = scmp.eq.s32.totalorder %s14, 1
      %p74 = scmp.ne.s32.totalorder %s69, %s71
      %p75 = scmp.eq.s32.totalorder %s14, 0
      %p76 = por %p74, %p75
      %p77 = scmp.ne.s32.totalorder %s69, %s71
      %p78 = scmp.eq.s32.totalorder %s19, 1
      %p79 = por %p77, %p78
      %p80 = scmp.ne.s32.totalorder %s71, %s72
      %p81 = scmp.eq.s32.totalorder %s19, 0
      %p82 = por %p80, %p81
      %p83 = scmp.ne.s32.totalorder %s71, %s72
      %p84 = scmp.eq.s32.totalorder %s20, 1
      %p85 = por %p83, %p84
      %p87 = scmp.ne.s32.totalorder %s72, %s86
      %p88 = scmp.eq.s32.totalorder %s20, 0
      %p89 = por %p87, %p88
      %s91 = sadd.s32 %s90, 1
      %p94 = scmp.eq.s32.totalorder %s14, 1
      %p95 = scmp.ne.s32.totalorder %s90, %s92
      %p96 = scmp.eq.s32.totalorder %s14, 0
      %p97 = por %p95, %p96
      %p98 = scmp.ne.s32.totalorder %s90, %s92
      %p99 = scmp.eq.s32.totalorder %s19, 1
      %p100 = por %p98, %p99
      %p101 = scmp.ne.s32.totalorder %s92, %s93
      %p102 = scmp.eq.s32.totalorder %s19, 0
      %p103 = por %p101, %p102
      %p104 = scmp.ne.s32.totalorder %s92, %s93
      %p105 = scmp.eq.s32.totalorder %s20, 1
      %p106 = por %p104, %p105
      %p108 = scmp.ne.s32.totalorder %s93, %s107
      %p109 = scmp.eq.s32.totalorder %s20, 0
      %p110 = por %p108, %p109
      %s112 = sadd.s32 %s111, 1
      %p115 = scmp.eq.s32.totalorder %s14, 1
      %p116 = scmp.ne.s32.totalorder %s111, %s113
      %p117 = scmp.eq.s32.totalorder %s14, 0
      %p118 = por %p116, %p117
      %p119 = scmp.ne.s32.totalorder %s111, %s113
      %p120 = scmp.eq.s32.totalorder %s19, 1
      %p121 = por %p119, %p120
      %p122 = scmp.ne.s32.totalorder %s113, %s114
      %p123 = scmp.eq.s32.totalorder %s19, 0
      %p124 = por %p122, %p123
      %p125 = scmp.ne.s32.totalorder %s113, %s114
      %p126 = scmp.eq.s32.totalorder %s20, 1
      %p127 = por %p125, %p126
      %p129 = scmp.ne.s32.totalorder %s114, %s128
      %p130 = scmp.eq.s32.totalorder %s20, 0
      %p131 = por %p129, %p130
      %s133 = sadd.s32 %s132, 1
      %p136 = scmp.eq.s32.totalorder %s14, 1
      %p137 = scmp.ne.s32.totalorder %s132, %s134
      %p138 = scmp.eq.s32.totalorder %s14, 0
      %p139 = por %p137, %p138
      %p140 = scmp.ne.s32.totalorder %s132, %s134
      %p141 = scmp.eq.s32.totalorder %s19, 1
      %p142 = por %p140, %p141
      %p143 = scmp.ne.s32.totalorder %s134, %s135
      %p144 = scmp.eq.s32.totalorder %s19, 0
      %p145 = por %p143, %p144
      %p146 = scmp.ne.s32.totalorder %s134, %s135
      %p147 = scmp.eq.s32.totalorder %s20, 1
      %p148 = por %p146, %p147
      %p150 = scmp.ne.s32.totalorder %s135, %s149
      %p151 = scmp.eq.s32.totalorder %s20, 0
      %p152 = por %p150, %p151
      %s154 = sadd.s32 %s153, 1
      %p157 = scmp.eq.s32.totalorder %s14, 1
      %p158 = scmp.ne.s32.totalorder %s153, %s155
      %p159 = scmp.eq.s32.totalorder %s14, 0
      %p160 = por %p158, %p159
      %p161 = scmp.ne.s32.totalorder %s153, %s155
      %p162 = scmp.eq.s32.totalorder %s19, 1
      %p163 = por %p161, %p162
      %p164 = scmp.ne.s32.totalorder %s155, %s156
      %p165 = scmp.eq.s32.totalorder %s19, 0
      %p166 = por %p164, %p165
      %p167 = scmp.ne.s32.totalorder %s155, %s156
      %p168 = scmp.eq.s32.totalorder %s20, 1
      %p169 = por %p167, %p168
      %p171 = scmp.ne.s32.totalorder %s156, %s170
      %p172 = scmp.eq.s32.totalorder %s20, 0
      %p173 = por %p171, %p172
      %s174 = ssub.s32 %s14, %s21
      %p175 = scmp.eq.s32.totalorder %s174, 0
      %s177 = sadd.s32 %s176, 1
      %s178 = scalar_select %p175, %s176, %s177
      %p181 = pneg %p175
      %p182 = scmp.eq.s32.totalorder %s14, 1
      %p183 = por %p181, %p182
      %p184 = scmp.ne.s32.totalorder %s176, %s179
      %p185 = scmp.eq.s32.totalorder %s14, 0
      %p186 = por %p184, %p185
      %p187 = scmp.ne.s32.totalorder %s176, %s179
      %p188 = scmp.eq.s32.totalorder %s19, 1
      %p189 = por %p187, %p188
      %p190 = scmp.ne.s32.totalorder %s179, %s180
      %p191 = scmp.eq.s32.totalorder %s19, 0
      %p192 = por %p190, %p191
      %p193 = scmp.ne.s32.totalorder %s179, %s180
      %p194 = scmp.eq.s32.totalorder %s20, 1
      %p195 = por %p193, %p194
      %p197 = scmp.ne.s32.totalorder %s180, %s196
      %p198 = scmp.eq.s32.totalorder %s20, 0
      %p199 = por %p197, %p198
      %p200 = scmp.le.s32.totalorder 1, %s14
      %p201 = scmp.lt.s32.totalorder %s14, 3
      %p202 = pnand %p200, %p201
      %p203 = pneg %p202
      // Predicated region
      $region9: #{encoder_forward.8} parent=5 // pred_check
        _
      $region10: #{encoder_forward.8} parent=5 // pred_check_branch
        %205 = sbr.rel (%p202) target = $region12
      $region11: #{encoder_forward.8} parent=5 // pred_region
        %s206 = ssub.s32 %s14, 1
        // Predicated region
        $region13: #{encoder_forward.8} parent=11 // pred_check
          %p207 = pneg %p61
        $region14: #{encoder_forward.8} parent=11 // pred_check_branch
          %209 = sbr.rel (%p207) target = $region16
        $region15: #{encoder_forward.8} parent=11 // pred_region
          _
        $region16: #{encoder_forward.8} parent=11 // pred_fallthru
          _
        // Predicated region
        $region17: #{encoder_forward.8} parent=11 // pred_check
          %p210 = pneg %p82
        $region18: #{encoder_forward.8} parent=11 // pred_check_branch
          %212 = sbr.rel (%p210) target = $region20
        $region19: #{encoder_forward.8} parent=11 // pred_region
          _
        $region20: #{encoder_forward.8} parent=11 // pred_fallthru
          _
        // Predicated region
        $region21: #{encoder_forward.8} parent=11 // pred_check
          %p213 = pneg %p103
        $region22: #{encoder_forward.8} parent=11 // pred_check_branch
          %215 = sbr.rel (%p213) target = $region24
        $region23: #{encoder_forward.8} parent=11 // pred_region
          _
        $region24: #{encoder_forward.8} parent=11 // pred_fallthru
          _
        // Predicated region
        $region25: #{encoder_forward.8} parent=11 // pred_check
          %p216 = pneg %p124
        $region26: #{encoder_forward.8} parent=11 // pred_check_branch
          %218 = sbr.rel (%p216) target = $region28
        $region27: #{encoder_forward.8} parent=11 // pred_region
          %220 = vsyncadd [#allocation4], 0
          %s221 = sshll.u32 %s4, 4
          %s222 = int_to_ptr.hbm [resolvable:$true] %s221
          %s223 = sshll.u32 [#allocation3], 4
          %s224 = int_to_ptr.vmem [resolvable:$true] %s223
          %229 = dma.hbm_to_vmem [thread:$0]  %s222, 18432, %s224, [#allocation4], 128, 128, 8
        $region28: #{encoder_forward.8} parent=11 // pred_fallthru
          _
        // Predicated region
        $region29: #{encoder_forward.8} parent=11 // pred_check
          %p230 = pneg %p145
        $region30: #{encoder_forward.8} parent=11 // pred_check_branch
          %232 = sbr.rel (%p230) target = $region32
        $region31: #{encoder_forward.8} parent=11 // pred_region
          _
        $region32: #{encoder_forward.8} parent=11 // pred_fallthru
          _
        // Predicated region
        $region33: #{encoder_forward.8} parent=11 // pred_check
          %p233 = pneg %p166
        $region34: #{encoder_forward.8} parent=11 // pred_check_branch
          %235 = sbr.rel (%p233) target = $region36
        $region35: #{encoder_forward.8} parent=11 // pred_region
          _
        $region36: #{encoder_forward.8} parent=11 // pred_fallthru
          _
      $region12: #{encoder_forward.8} parent=5 // pred_fallthru
        _
      %p236 = scmp.lt.s32.totalorder %s14, 2
      // Predicated region
      $region37: #{encoder_forward.8} parent=5 // pred_check
        %p237 = pneg %p236
      $region38: #{encoder_forward.8} parent=5 // pred_check_branch
        %239 = sbr.rel (%p237) target = $region40
      $region39: #{encoder_forward.8} parent=5 // pred_region
        // Predicated region
        $region41: #{encoder_forward.8} parent=39 // pred_check
          %p240 = pneg %p34
        $region42: #{encoder_forward.8} parent=39 // pred_check_branch
          %242 = sbr.rel (%p240) target = $region44
        $region43: #{encoder_forward.8} parent=39 // pred_region
          %p243 = scmp.lt.s32.totalorder %s14, 1
          %s244 = scalar_select %p243, %s14, 1
          %s245 = smul.addr %s244, 6
          %s246 = smul.addr %s245, 8
          %s247 = scalar_lea.vmem %s0, %s246
        $region44: #{encoder_forward.8} parent=39 // pred_fallthru
          _
      $region40: #{encoder_forward.8} parent=5 // pred_fallthru
        _
      %p248 = scmp.le.s32.totalorder 1, %s14
      %p249 = scmp.lt.s32.totalorder %s14, 3
      %p250 = pnand %p248, %p249
      %p251 = pneg %p250
      // Predicated region
      $region45: #{encoder_forward.8} parent=5 // pred_check
        _
      $region46: #{encoder_forward.8} parent=5 // pred_check_branch
        %253 = sbr.rel (%p250) target = $region48
      $region47: #{encoder_forward.8} parent=5 // pred_region
        %s254 = ssub.s32 %s14, 1
        // Predicated region
        $region49: #{encoder_forward.8} parent=47 // pred_check
          %p255 = pneg %p124
        $region50: #{encoder_forward.8} parent=47 // pred_check_branch
          %257 = sbr.rel (%p255) target = $region52
        $region51: #{encoder_forward.8} parent=47 // pred_region
          %259 = dma.done [#allocation4], 18432
        $region52: #{encoder_forward.8} parent=47 // pred_fallthru
          _
        %p260 = scmp.lt.s32.totalorder %s19, 1
        %s261 = scalar_select %p260, %s19, 1
        %s262 = smul.addr %s261, 6
        %s263 = smul.addr %s262, 8
        %s264 = scalar_lea.vmem %s0, %s263
        %p265 = pneg %p40
        %p266 = pneg %p37
        %p267 = pneg %p61
        %p268 = pneg %p58
        %p269 = pneg %p82
        %p270 = pneg %p79
        %p271 = pneg %p103
        %p272 = pneg %p100
        %p273 = pneg %p124
        %p274 = pneg %p121
        %p275 = pneg %p145
        %p276 = pneg %p142
        %p277 = pneg %p166
        %p278 = pneg %p163
        %p279 = pneg %p192
        %p280 = pneg %p189
        %p281 = scmp.lt.s32.totalorder %s19, 1
        %s282 = scalar_select %p281, %s19, 1
        %s283 = smul.addr %s282, 6
        %s284 = smul.addr %s283, 8
        %s285 = scalar_lea.vmem %s7, %s284
        %p286 = scmp.lt.s32.totalorder %s19, 1
        %s287 = scalar_select %p286, %s19, 1
        %s288 = smul.addr %s287, 6
        %s289 = smul.addr %s288, 8
        %s290 = scalar_lea.vmem %s0, %s289
        %p291 = scmp.lt.s32.totalorder %s19, 1
        %s292 = scalar_select %p291, %s19, 1
        %s293 = smul.addr %s292, 6
        %s294 = smul.addr %s293, 8
        %s295 = scalar_lea.vmem %s7, %s294
        %v296 = vld [vmem:[%s290] sm:$0x3f]
        %v297 = vld [vmem:[%s290 + $0x8] sm:$0x3f]
        %v298 = vld [vmem:[%s290 + $0x10] sm:$0x3f]
        %v299 = vld [vmem:[%s290 + $0x18] sm:$0x3f]
        %v300 = vld [vmem:[%s290 + $0x20] sm:$0x3f]
        %v301 = vld [vmem:[%s290 + $0x28] sm:$0x3f]
        %v308 = vrot.slane %v296, 1
        %v309 = vrot.slane %v297, 1
        %v310 = vrot.slane %v298, 1
        %v311 = vrot.slane %v299, 1
        %v312 = vrot.slane %v300, 1
        %v313 = vrot.slane %v301, 1
        %v314 = vrot.slane %v296, 2
        %v315 = vrot.slane %v297, 2
        %v316 = vrot.slane %v298, 2
        %v317 = vrot.slane %v299, 2
        %v318 = vrot.slane %v300, 2
        %v319 = vrot.slane %v301, 2
        %v320 = vrot.slane %v308, 4
        %v321 = vrot.slane %v309, 4
        %v322 = vrot.slane %v310, 4
        %v323 = vrot.slane %v311, 4
        %vm324 = vcmask 1043456
        %v325 = vsel %vm324, %v296, %v320
        %v326 = vsel %vm324, %v297, %v321
        %v327 = vsel %vm324, %v298, %v322
        %v328 = vsel %vm324, %v299, %v323
        %v329 = vld [vmem:[%s1] sm:$0xff]
        %v330 = vld [vmem:[%s1 + $0x8] sm:$0xff]
        %v331 = vld [vmem:[%s1 + $0x10] sm:$0xff]
        %v332 = vld [vmem:[%s1 + $0x18] sm:$0xff]
        %v333 = vld [vmem:[%s1 + $0x20] sm:$0xff]
        %v334 = vld [vmem:[%s1 + $0x28] sm:$0xff]
        %v335 = vld [vmem:[%s1 + $0x30] sm:$0xff]
        %v336 = vld [vmem:[%s1 + $0x38] sm:$0xff]
        %v337 = vld [vmem:[%s1 + $0x40] sm:$0xff]
        %v338 = vld [vmem:[%s1 + $0x48] sm:$0xff]
        %v339 = vld [vmem:[%s1 + $0x50] sm:$0xff]
        %v340 = vld [vmem:[%s1 + $0x58] sm:$0xff]
        %v341 = vld [vmem:[%s1 + $0x60] sm:$0xff]
        %v342 = vld [vmem:[%s1 + $0x68] sm:$0xff]
        %v343 = vld [vmem:[%s1 + $0x70] sm:$0xff]
        %v344 = vld [vmem:[%s1 + $0x78] sm:$0xff]
        %v345 = vld [vmem:[%s1 + $0x80] sm:$0xff]
        %v346 = vld [vmem:[%s1 + $0x88] sm:$0xff]
        %v347 = vld [vmem:[%s1 + $0x90] sm:$0xff]
        %v348 = vld [vmem:[%s1 + $0x98] sm:$0xff]
        %v349 = vld [vmem:[%s1 + $0xa0] sm:$0xff]
        %v350 = vld [vmem:[%s1 + $0xa8] sm:$0xff]
        %v351 = vld [vmem:[%s1 + $0xb0] sm:$0xff]
        %v352 = vld [vmem:[%s1 + $0xb8] sm:$0xff]
        %v353 = vld [vmem:[%s1 + $0xc0] sm:$0xff]
        %v354 = vld [vmem:[%s1 + $0xc8] sm:$0xff]
        %v355 = vld [vmem:[%s1 + $0xd0] sm:$0xff]
        %v356 = vld [vmem:[%s1 + $0xd8] sm:$0xff]
        %v357 = vld [vmem:[%s1 + $0xe0] sm:$0xff]
        %v358 = vld [vmem:[%s1 + $0xe8] sm:$0xff]
        %v359 = vld [vmem:[%s1 + $0xf0] sm:$0xff]
        %v360 = vld [vmem:[%s1 + $0xf8] sm:$0xff]
        %v361 = vld [vmem:[%s1 + $0x100] sm:$0xff]
        %v362 = vld [vmem:[%s1 + $0x108] sm:$0xff]
        %v363 = vld [vmem:[%s1 + $0x110] sm:$0xff]
        %v364 = vld [vmem:[%s1 + $0x118] sm:$0xff]
        %v365 = vld [vmem:[%s1 + $0x120] sm:$0xff]
        %v366 = vld [vmem:[%s1 + $0x128] sm:$0xff]
        %v367 = vld [vmem:[%s1 + $0x130] sm:$0xff]
        %v368 = vld [vmem:[%s1 + $0x138] sm:$0xff]
        %v369 = vld [vmem:[%s1 + $0x140] sm:$0xff]
        %v370 = vld [vmem:[%s1 + $0x148] sm:$0xff]
        %v371 = vld [vmem:[%s1 + $0x150] sm:$0xff]
        %v372 = vld [vmem:[%s1 + $0x158] sm:$0xff]
        %v373 = vld [vmem:[%s1 + $0x160] sm:$0xff]
        %v374 = vld [vmem:[%s1 + $0x168] sm:$0xff]
        %v375 = vld [vmem:[%s1 + $0x170] sm:$0xff]
        %v376 = vld [vmem:[%s1 + $0x178] sm:$0xff]
        %v377 = vrot.slane %v312, 4
        %v378 = vsel %vm324, %v300, %v377
        %s379 = scalar_lea.vmem %s1, 384
        %v380 = vld [vmem:[%s379] sm:$0xff]
        %v381 = vld [vmem:[%s379 + $0x8] sm:$0xff]
        %v382 = vld [vmem:[%s379 + $0x10] sm:$0xff]
        %v383 = vld [vmem:[%s379 + $0x18] sm:$0xff]
        %v384 = vld [vmem:[%s379 + $0x20] sm:$0xff]
        %v385 = vld [vmem:[%s379 + $0x28] sm:$0xff]
        %v386 = vld [vmem:[%s379 + $0x30] sm:$0xff]
        %v387 = vld [vmem:[%s379 + $0x38] sm:$0xff]
        %v388 = vld [vmem:[%s379 + $0x40] sm:$0xff]
        %v389 = vld [vmem:[%s379 + $0x48] sm:$0xff]
        %v390 = vld [vmem:[%s379 + $0x50] sm:$0xff]
        %v391 = vld [vmem:[%s379 + $0x58] sm:$0xff]
        %v392 = vld [vmem:[%s379 + $0x60] sm:$0xff]
        %v393 = vld [vmem:[%s379 + $0x68] sm:$0xff]
        %v394 = vld [vmem:[%s379 + $0x70] sm:$0xff]
        %v395 = vld [vmem:[%s379 + $0x78] sm:$0xff]
        %v396 = vld [vmem:[%s379 + $0x80] sm:$0xff]
        %v397 = vld [vmem:[%s379 + $0x88] sm:$0xff]
        %v398 = vld [vmem:[%s379 + $0x90] sm:$0xff]
        %v399 = vld [vmem:[%s379 + $0x98] sm:$0xff]
        %v400 = vld [vmem:[%s379 + $0xa0] sm:$0xff]
        %v401 = vld [vmem:[%s379 + $0xa8] sm:$0xff]
        %v402 = vld [vmem:[%s379 + $0xb0] sm:$0xff]
        %v403 = vld [vmem:[%s379 + $0xb8] sm:$0xff]
        %v404 = vld [vmem:[%s379 + $0xc0] sm:$0xff]
        %v405 = vld [vmem:[%s379 + $0xc8] sm:$0xff]
        %v406 = vld [vmem:[%s379 + $0xd0] sm:$0xff]
        %v407 = vld [vmem:[%s379 + $0xd8] sm:$0xff]
        %v408 = vld [vmem:[%s379 + $0xe0] sm:$0xff]
        %v409 = vld [vmem:[%s379 + $0xe8] sm:$0xff]
        %v410 = vld [vmem:[%s379 + $0xf0] sm:$0xff]
        %v411 = vld [vmem:[%s379 + $0xf8] sm:$0xff]
        %v412 = vld [vmem:[%s379 + $0x100] sm:$0xff]
        %v413 = vld [vmem:[%s379 + $0x108] sm:$0xff]
        %v414 = vld [vmem:[%s379 + $0x110] sm:$0xff]
        %v415 = vld [vmem:[%s379 + $0x118] sm:$0xff]
        %v416 = vld [vmem:[%s379 + $0x120] sm:$0xff]
        %v417 = vld [vmem:[%s379 + $0x128] sm:$0xff]
        %v418 = vld [vmem:[%s379 + $0x130] sm:$0xff]
        %v419 = vld [vmem:[%s379 + $0x138] sm:$0xff]
        %v420 = vld [vmem:[%s379 + $0x140] sm:$0xff]
        %v421 = vld [vmem:[%s379 + $0x148] sm:$0xff]
        %v422 = vld [vmem:[%s379 + $0x150] sm:$0xff]
        %v423 = vld [vmem:[%s379 + $0x158] sm:$0xff]
        %v424 = vld [vmem:[%s379 + $0x160] sm:$0xff]
        %v425 = vld [vmem:[%s379 + $0x168] sm:$0xff]
        %v426 = vld [vmem:[%s379 + $0x170] sm:$0xff]
        %v427 = vld [vmem:[%s379 + $0x178] sm:$0xff]
        %428 = vst [vmem:[#allocation1] ss:$2 sm:$0xff] %v326
        %s429 = scalar_lea.vmem [#allocation1], 1
        %430 = vst [vmem:[%s429] ss:$2 sm:$0xff] %v327
        %s431 = scalar_lea.vmem [#allocation1], 16
        %432 = vst [vmem:[%s431] ss:$2 sm:$0xff] %v315
        %s433 = scalar_lea.vmem [#allocation1], 17
        %434 = vst [vmem:[%s433] ss:$2 sm:$0xff] %v316
        %s435 = scalar_lea.vmem [#allocation1], 32
        %436 = vst [vmem:[%s435] ss:$2 sm:$0xff] %v328
        %s437 = scalar_lea.vmem [#allocation1], 33
        %438 = vst [vmem:[%s437] ss:$2 sm:$0xff] %v378
        %s439 = scalar_lea.vmem [#allocation1], 48
        %440 = vst [vmem:[%s439] ss:$2 sm:$0xff] %v317
        %s441 = scalar_lea.vmem [#allocation1], 49
        %442 = vst [vmem:[%s441] ss:$2 sm:$0xff] %v318
        %v443 = vld.sshfl [vmem:[#allocation1] sm:$0xff pattern:$0x75316420]
        %v444 = vld.sshfl [vmem:[#allocation1 + $0x8] sm:$0xff pattern:$0x75316420]
        %v445 = vld.sshfl [vmem:[#allocation1 + $0x10] sm:$0xff pattern:$0x75316420]
        %v446 = vld.sshfl [vmem:[#allocation1 + $0x20] sm:$0xff pattern:$0x75316420]
        %v447 = vld.sshfl [vmem:[#allocation1 + $0x28] sm:$0xff pattern:$0x75316420]
        %v448 = vld.sshfl [vmem:[#allocation1 + $0x30] sm:$0xff pattern:$0x75316420]
        %455 = vmatpush.msra.mxu0 %v395
        %456 = vmatpush.msra.mxu0 %v394
        %457 = vmatpush.msra.mxu0 %v393
        %458 = vmatpush.msra.mxu0 %v392
        %459 = vmatpush.msra.mxu0 %v391
        %460 = vmatpush.msra.mxu0 %v390
        %461 = vmatpush.msra.mxu0 %v389
        %462 = vmatpush.msra.mxu0 %v388
        %463 = vmatpush.msra.mxu0 %v387
        %464 = vmatpush.msra.mxu0 %v386
        %465 = vmatpush.msra.mxu0 %v385
        %466 = vmatpush.msra.mxu0 %v384
        %467 = vmatpush.msra.mxu0 %v383
        %468 = vmatpush.msra.mxu0 %v382
        %469 = vmatpush.msra.mxu0 %v381
        %470 = vmatpush.msra.mxu0 %v380
        %471 = vmatmul.f32.gmra.mxu0 %v443
        %v472 = vpop.f32.mrf.mxu0
        %v473 = vadd.f32 0.0, %v472
        %474 = vmatmul.f32.gmra.mxu0 %v446
        %v475 = vpop.f32.mrf.mxu0
        %v476 = vadd.f32 0.0, %v475
        %477 = vdwg.mxu0
        %478 = vmatpush.msra.mxu0 %v411
        %479 = vmatpush.msra.mxu0 %v410
        %480 = vmatpush.msra.mxu0 %v409
        %481 = vmatpush.msra.mxu0 %v408
        %482 = vmatpush.msra.mxu0 %v407
        %483 = vmatpush.msra.mxu0 %v406
        %484 = vmatpush.msra.mxu0 %v405
        %485 = vmatpush.msra.mxu0 %v404
        %486 = vmatpush.msra.mxu0 %v403
        %487 = vmatpush.msra.mxu0 %v402
        %488 = vmatpush.msra.mxu0 %v401
        %489 = vmatpush.msra.mxu0 %v400
        %490 = vmatpush.msra.mxu0 %v399
        %491 = vmatpush.msra.mxu0 %v398
        %492 = vmatpush.msra.mxu0 %v397
        %493 = vmatpush.msra.mxu0 %v396
        %494 = vmatmul.f32.gmra.mxu0 %v444
        %v495 = vpop.f32.mrf.mxu0
        %v496 = vadd.f32 %v473, %v495
        %497 = vmatmul.f32.gmra.mxu0 %v447
        %v498 = vpop.f32.mrf.mxu0
        %v499 = vadd.f32 %v476, %v498
        %500 = vdwg.mxu0
        %501 = vmatpush.msra.mxu0 %v427
        %502 = vmatpush.msra.mxu0 %v426
        %503 = vmatpush.msra.mxu0 %v425
        %504 = vmatpush.msra.mxu0 %v424
        %505 = vmatpush.msra.mxu0 %v423
        %506 = vmatpush.msra.mxu0 %v422
        %507 = vmatpush.msra.mxu0 %v421
        %508 = vmatpush.msra.mxu0 %v420
        %509 = vmatpush.msra.mxu0 %v419
        %510 = vmatpush.msra.mxu0 %v418
        %511 = vmatpush.msra.mxu0 %v417
        %512 = vmatpush.msra.mxu0 %v416
        %513 = vmatpush.msra.mxu0 %v415
        %514 = vmatpush.msra.mxu0 %v414
        %515 = vmatpush.msra.mxu0 %v413
        %516 = vmatpush.msra.mxu0 %v412
        %517 = vmatmul.f32.gmra.mxu0 %v445
        %v518 = vpop.f32.mrf.mxu0
        %v519 = vadd.f32 %v496, %v518
        %520 = vmatmul.f32.gmra.mxu0 %v448
        %v521 = vpop.f32.mrf.mxu0
        %v522 = vadd.f32 %v499, %v521
        %523 = vdwg.mxu0
        %524 = vst [vmem:[#allocation1] ss:$2 sm:$0xff] %v325
        %s525 = scalar_lea.vmem [#allocation1], 1
        %526 = vst [vmem:[%s525] ss:$2 sm:$0xff] %v326
        %s527 = scalar_lea.vmem [#allocation1], 16
        %528 = vst [vmem:[%s527] ss:$2 sm:$0xff] %v314
        %s529 = scalar_lea.vmem [#allocation1], 17
        %530 = vst [vmem:[%s529] ss:$2 sm:$0xff] %v315
        %s531 = scalar_lea.vmem [#allocation1], 32
        %532 = vst [vmem:[%s531] ss:$2 sm:$0xff] %v327
        %s533 = scalar_lea.vmem [#allocation1], 33
        %534 = vst [vmem:[%s533] ss:$2 sm:$0xff] %v328
        %s535 = scalar_lea.vmem [#allocation1], 48
        %536 = vst [vmem:[%s535] ss:$2 sm:$0xff] %v316
        %s537 = scalar_lea.vmem [#allocation1], 49
        %538 = vst [vmem:[%s537] ss:$2 sm:$0xff] %v317
        %v539 = vld.sshfl [vmem:[#allocation1] sm:$0xff pattern:$0x75316420]
        %v540 = vld.sshfl [vmem:[#allocation1 + $0x8] sm:$0xff pattern:$0x75316420]
        %v541 = vld.sshfl [vmem:[#allocation1 + $0x10] sm:$0xff pattern:$0x75316420]
        %v542 = vld.sshfl [vmem:[#allocation1 + $0x20] sm:$0xff pattern:$0x75316420]
        %v543 = vld.sshfl [vmem:[#allocation1 + $0x28] sm:$0xff pattern:$0x75316420]
        %v544 = vld.sshfl [vmem:[#allocation1 + $0x30] sm:$0xff pattern:$0x75316420]
        %551 = vmatpush.msra.mxu0 %v344
        %552 = vmatpush.msra.mxu0 %v343
        %553 = vmatpush.msra.mxu0 %v342
        %554 = vmatpush.msra.mxu0 %v341
        %555 = vmatpush.msra.mxu0 %v340
        %556 = vmatpush.msra.mxu0 %v339
        %557 = vmatpush.msra.mxu0 %v338
        %558 = vmatpush.msra.mxu0 %v337
        %559 = vmatpush.msra.mxu0 %v336
        %560 = vmatpush.msra.mxu0 %v335
        %561 = vmatpush.msra.mxu0 %v334
        %562 = vmatpush.msra.mxu0 %v333
        %563 = vmatpush.msra.mxu0 %v332
        %564 = vmatpush.msra.mxu0 %v331
        %565 = vmatpush.msra.mxu0 %v330
        %566 = vmatpush.msra.mxu0 %v329
        %567 = vmatmul.f32.gmra.mxu0 %v539
        %v568 = vpop.f32.mrf.mxu0
        %v569 = vadd.f32 %v519, %v568
        %570 = vmatmul.f32.gmra.mxu0 %v542
        %v571 = vpop.f32.mrf.mxu0
        %v572 = vadd.f32 %v522, %v571
        %573 = vdwg.mxu0
        %574 = vmatpush.msra.mxu0 %v360
        %575 = vmatpush.msra.mxu0 %v359
        %576 = vmatpush.msra.mxu0 %v358
        %577 = vmatpush.msra.mxu0 %v357
        %578 = vmatpush.msra.mxu0 %v356
        %579 = vmatpush.msra.mxu0 %v355
        %580 = vmatpush.msra.mxu0 %v354
        %581 = vmatpush.msra.mxu0 %v353
        %582 = vmatpush.msra.mxu0 %v352
        %583 = vmatpush.msra.mxu0 %v351
        %584 = vmatpush.msra.mxu0 %v350
        %585 = vmatpush.msra.mxu0 %v349
        %586 = vmatpush.msra.mxu0 %v348
        %587 = vmatpush.msra.mxu0 %v347
        %588 = vmatpush.msra.mxu0 %v346
        %589 = vmatpush.msra.mxu0 %v345
        %590 = vmatmul.f32.gmra.mxu0 %v540
        %v591 = vpop.f32.mrf.mxu0
        %v592 = vadd.f32 %v569, %v591
        %593 = vmatmul.f32.gmra.mxu0 %v543
        %v594 = vpop.f32.mrf.mxu0
        %v595 = vadd.f32 %v572, %v594
        %596 = vdwg.mxu0
        %597 = vmatpush.msra.mxu0 %v376
        %598 = vmatpush.msra.mxu0 %v375
        %599 = vmatpush.msra.mxu0 %v374
        %600 = vmatpush.msra.mxu0 %v373
        %601 = vmatpush.msra.mxu0 %v372
        %602 = vmatpush.msra.mxu0 %v371
        %603 = vmatpush.msra.mxu0 %v370
        %604 = vmatpush.msra.mxu0 %v369
        %605 = vmatpush.msra.mxu0 %v368
        %606 = vmatpush.msra.mxu0 %v367
        %607 = vmatpush.msra.mxu0 %v366
        %608 = vmatpush.msra.mxu0 %v365
        %609 = vmatpush.msra.mxu0 %v364
        %610 = vmatpush.msra.mxu0 %v363
        %611 = vmatpush.msra.mxu0 %v362
        %612 = vmatpush.msra.mxu0 %v361
        %613 = vmatmul.f32.gmra.mxu0 %v541
        %v614 = vpop.f32.mrf.mxu0
        %v615 = vadd.f32 %v592, %v614
        %616 = vmatmul.f32.gmra.mxu0 %v544
        %v617 = vpop.f32.mrf.mxu0
        %v618 = vadd.f32 %v595, %v617
        %619 = vdwg.mxu0
        %v620 = vrot.slane %v313, 4
        %v621 = vsel %vm324, %v301, %v620
        %s622 = scalar_lea.vmem %s1, 768
        %v623 = vld [vmem:[%s622] sm:$0xff]
        %v624 = vld [vmem:[%s622 + $0x8] sm:$0xff]
        %v625 = vld [vmem:[%s622 + $0x10] sm:$0xff]
        %v626 = vld [vmem:[%s622 + $0x18] sm:$0xff]
        %v627 = vld [vmem:[%s622 + $0x20] sm:$0xff]
        %v628 = vld [vmem:[%s622 + $0x28] sm:$0xff]
        %v629 = vld [vmem:[%s622 + $0x30] sm:$0xff]
        %v630 = vld [vmem:[%s622 + $0x38] sm:$0xff]
        %v631 = vld [vmem:[%s622 + $0x40] sm:$0xff]
        %v632 = vld [vmem:[%s622 + $0x48] sm:$0xff]
        %v633 = vld [vmem:[%s622 + $0x50] sm:$0xff]
        %v634 = vld [vmem:[%s622 + $0x58] sm:$0xff]
        %v635 = vld [vmem:[%s622 + $0x60] sm:$0xff]
        %v636 = vld [vmem:[%s622 + $0x68] sm:$0xff]
        %v637 = vld [vmem:[%s622 + $0x70] sm:$0xff]
        %v638 = vld [vmem:[%s622 + $0x78] sm:$0xff]
        %v639 = vld [vmem:[%s622 + $0x80] sm:$0xff]
        %v640 = vld [vmem:[%s622 + $0x88] sm:$0xff]
        %v641 = vld [vmem:[%s622 + $0x90] sm:$0xff]
        %v642 = vld [vmem:[%s622 + $0x98] sm:$0xff]
        %v643 = vld [vmem:[%s622 + $0xa0] sm:$0xff]
        %v644 = vld [vmem:[%s622 + $0xa8] sm:$0xff]
        %v645 = vld [vmem:[%s622 + $0xb0] sm:$0xff]
        %v646 = vld [vmem:[%s622 + $0xb8] sm:$0xff]
        %v647 = vld [vmem:[%s622 + $0xc0] sm:$0xff]
        %v648 = vld [vmem:[%s622 + $0xc8] sm:$0xff]
        %v649 = vld [vmem:[%s622 + $0xd0] sm:$0xff]
        %v650 = vld [vmem:[%s622 + $0xd8] sm:$0xff]
        %v651 = vld [vmem:[%s622 + $0xe0] sm:$0xff]
        %v652 = vld [vmem:[%s622 + $0xe8] sm:$0xff]
        %v653 = vld [vmem:[%s622 + $0xf0] sm:$0xff]
        %v654 = vld [vmem:[%s622 + $0xf8] sm:$0xff]
        %v655 = vld [vmem:[%s622 + $0x100] sm:$0xff]
        %v656 = vld [vmem:[%s622 + $0x108] sm:$0xff]
        %v657 = vld [vmem:[%s622 + $0x110] sm:$0xff]
        %v658 = vld [vmem:[%s622 + $0x118] sm:$0xff]
        %v659 = vld [vmem:[%s622 + $0x120] sm:$0xff]
        %v660 = vld [vmem:[%s622 + $0x128] sm:$0xff]
        %v661 = vld [vmem:[%s622 + $0x130] sm:$0xff]
        %v662 = vld [vmem:[%s622 + $0x138] sm:$0xff]
        %v663 = vld [vmem:[%s622 + $0x140] sm:$0xff]
        %v664 = vld [vmem:[%s622 + $0x148] sm:$0xff]
        %v665 = vld [vmem:[%s622 + $0x150] sm:$0xff]
        %v666 = vld [vmem:[%s622 + $0x158] sm:$0xff]
        %v667 = vld [vmem:[%s622 + $0x160] sm:$0xff]
        %v668 = vld [vmem:[%s622 + $0x168] sm:$0xff]
        %v669 = vld [vmem:[%s622 + $0x170] sm:$0xff]
        %v670 = vld [vmem:[%s622 + $0x178] sm:$0xff]
        %671 = vst [vmem:[#allocation1] ss:$2 sm:$0xff] %v327
        %s672 = scalar_lea.vmem [#allocation1], 1
        %673 = vst [vmem:[%s672] ss:$2 sm:$0xff] %v328
        %s674 = scalar_lea.vmem [#allocation1], 16
        %675 = vst [vmem:[%s674] ss:$2 sm:$0xff] %v316
        %s676 = scalar_lea.vmem [#allocation1], 17
        %677 = vst [vmem:[%s676] ss:$2 sm:$0xff] %v317
        %s678 = scalar_lea.vmem [#allocation1], 32
        %679 = vst [vmem:[%s678] ss:$2 sm:$0xff] %v378
        %s680 = scalar_lea.vmem [#allocation1], 33
        %681 = vst [vmem:[%s680] ss:$2 sm:$0xff] %v621
        %s682 = scalar_lea.vmem [#allocation1], 48
        %683 = vst [vmem:[%s682] ss:$2 sm:$0xff] %v318
        %s684 = scalar_lea.vmem [#allocation1], 49
        %685 = vst [vmem:[%s684] ss:$2 sm:$0xff] %v319
        %v686 = vld.sshfl [vmem:[#allocation1] sm:$0xff pattern:$0x75316420]
        %v687 = vld.sshfl [vmem:[#allocation1 + $0x8] sm:$0xff pattern:$0x75316420]
        %v688 = vld.sshfl [vmem:[#allocation1 + $0x10] sm:$0xff pattern:$0x75316420]
        %v689 = vld.sshfl [vmem:[#allocation1 + $0x20] sm:$0xff pattern:$0x75316420]
        %v690 = vld.sshfl [vmem:[#allocation1 + $0x28] sm:$0xff pattern:$0x75316420]
        %v691 = vld.sshfl [vmem:[#allocation1 + $0x30] sm:$0xff pattern:$0x75316420]
        %698 = vmatpush.msra.mxu0 %v638
        %699 = vmatpush.msra.mxu0 %v637
        %700 = vmatpush.msra.mxu0 %v636
        %701 = vmatpush.msra.mxu0 %v635
        %702 = vmatpush.msra.mxu0 %v634
        %703 = vmatpush.msra.mxu0 %v633
        %704 = vmatpush.msra.mxu0 %v632
        %705 = vmatpush.msra.mxu0 %v631
        %706 = vmatpush.msra.mxu0 %v630
        %707 = vmatpush.msra.mxu0 %v629
        %708 = vmatpush.msra.mxu0 %v628
        %709 = vmatpush.msra.mxu0 %v627
        %710 = vmatpush.msra.mxu0 %v626
        %711 = vmatpush.msra.mxu0 %v625
        %712 = vmatpush.msra.mxu0 %v624
        %713 = vmatpush.msra.mxu0 %v623
        %714 = vmatmul.f32.gmra.mxu0 %v686
        %v715 = vpop.f32.mrf.mxu0
        %v716 = vadd.f32 0.0, %v715
        %717 = vmatmul.f32.gmra.mxu0 %v689
        %v718 = vpop.f32.mrf.mxu0
        %v719 = vadd.f32 0.0, %v718
        %720 = vdwg.mxu0
        %721 = vmatpush.msra.mxu0 %v654
        %722 = vmatpush.msra.mxu0 %v653
        %723 = vmatpush.msra.mxu0 %v652
        %724 = vmatpush.msra.mxu0 %v651
        %725 = vmatpush.msra.mxu0 %v650
        %726 = vmatpush.msra.mxu0 %v649
        %727 = vmatpush.msra.mxu0 %v648
        %728 = vmatpush.msra.mxu0 %v647
        %729 = vmatpush.msra.mxu0 %v646
        %730 = vmatpush.msra.mxu0 %v645
        %731 = vmatpush.msra.mxu0 %v644
        %732 = vmatpush.msra.mxu0 %v643
        %733 = vmatpush.msra.mxu0 %v642
        %734 = vmatpush.msra.mxu0 %v641
        %735 = vmatpush.msra.mxu0 %v640
        %736 = vmatpush.msra.mxu0 %v639
        %737 = vmatmul.f32.gmra.mxu0 %v687
        %v738 = vpop.f32.mrf.mxu0
        %v739 = vadd.f32 %v716, %v738
        %740 = vmatmul.f32.gmra.mxu0 %v690
        %v741 = vpop.f32.mrf.mxu0
        %v742 = vadd.f32 %v719, %v741
        %743 = vdwg.mxu0
        %744 = vmatpush.msra.mxu0 %v670
        %745 = vmatpush.msra.mxu0 %v669
        %746 = vmatpush.msra.mxu0 %v668
        %747 = vmatpush.msra.mxu0 %v667
        %748 = vmatpush.msra.mxu0 %v666
        %749 = vmatpush.msra.mxu0 %v665
        %750 = vmatpush.msra.mxu0 %v664
        %751 = vmatpush.msra.mxu0 %v663
        %752 = vmatpush.msra.mxu0 %v662
        %753 = vmatpush.msra.mxu0 %v661
        %754 = vmatpush.msra.mxu0 %v660
        %755 = vmatpush.msra.mxu0 %v659
        %756 = vmatpush.msra.mxu0 %v658
        %757 = vmatpush.msra.mxu0 %v657
        %758 = vmatpush.msra.mxu0 %v656
        %759 = vmatpush.msra.mxu0 %v655
        %760 = vmatmul.f32.gmra.mxu0 %v688
        %v761 = vpop.f32.mrf.mxu0
        %v762 = vadd.f32 %v739, %v761
        %763 = vmatmul.f32.gmra.mxu0 %v691
        %v764 = vpop.f32.mrf.mxu0
        %v765 = vadd.f32 %v742, %v764
        %766 = vdwg.mxu0
        %v767 = vadd.f32 %v615, %v762
        %v768 = vadd.f32 %v618, %v765
        %v769 = vld [vmem:[%s2] sm:$0x1]
        %v771 = vperm.slane %v769, 0
        %v773 = vmul.f32 %v767, %v771
        %v774 = vmul.f32 %v768, %v771
        %v775 = vld [vmem:[%s3] sm:$0x1]
        %v777 = vperm.slane %v775, 0
        %v779 = vadd.f32 %v773, %v777
        %v780 = vadd.f32 %v774, %v777
        %v781 = vmax.f32 %v779, 0.0
        %v782 = vmax.f32 %v780, 0.0
        %783 = vst [vmem:[#allocation2] sm:$0x3f] 0.0
        %784 = vst [vmem:[#allocation2 + $0x8] sm:$0x3f] 0.0
        %785 = vst [vmem:[#allocation2 + $0x10] sm:$0x3f] 0.0
        %786 = vst [vmem:[#allocation2 + $0x18] sm:$0x3f] 0.0
        %787 = vst [vmem:[#allocation2 + $0x20] sm:$0x3f] 0.0
        %788 = vst [vmem:[#allocation2 + $0x28] sm:$0x3f] 0.0
        %v791 = vrot.slane %v781, 4
        %v792 = vrot.slane %v782, 4
        %s795 = scalar_lea.vmem [#allocation2], 8
        %796 = vst [vmem:[%s795 + $0x1] sm:$0xf] %v781
        %797 = vst [vmem:[%s795 + $0x9] sm:$0xf] %v791
        %798 = vst [vmem:[%s795 + $0x11] sm:$0xf] %v782
        %799 = vst [vmem:[%s795 + $0x19] sm:$0xf] %v792
        %v800 = vld [vmem:[#allocation2] sm:$0x3f]
        %v801 = vld [vmem:[#allocation2 + $0x8] sm:$0x3f]
        %v802 = vld [vmem:[#allocation2 + $0x10] sm:$0x3f]
        %v803 = vld [vmem:[#allocation2 + $0x18] sm:$0x3f]
        %v804 = vld [vmem:[#allocation2 + $0x20] sm:$0x3f]
        %v805 = vld [vmem:[#allocation2 + $0x28] sm:$0x3f]
        %v812 = vrot.slane %v800, 1
        %v813 = vrot.slane %v801, 1
        %v814 = vrot.slane %v802, 1
        %v815 = vrot.slane %v803, 1
        %v816 = vrot.slane %v804, 1
        %v817 = vrot.slane %v805, 1
        %v818 = vrot.slane %v800, 2
        %v819 = vrot.slane %v801, 2
        %v820 = vrot.slane %v802, 2
        %v821 = vrot.slane %v803, 2
        %v822 = vrot.slane %v804, 2
        %v823 = vrot.slane %v805, 2
        %v824 = vrot.slane %v812, 4
        %v825 = vrot.slane %v813, 4
        %v826 = vrot.slane %v814, 4
        %v827 = vrot.slane %v815, 4
        %v828 = vsel %vm324, %v800, %v824
        %v829 = vsel %vm324, %v801, %v825
        %v830 = vsel %vm324, %v802, %v826
        %v831 = vsel %vm324, %v803, %v827
        %v832 = vld [vmem:[#allocation3] sm:$0xff]
        %v833 = vld [vmem:[#allocation3 + $0x8] sm:$0xff]
        %v834 = vld [vmem:[#allocation3 + $0x10] sm:$0xff]
        %v835 = vld [vmem:[#allocation3 + $0x18] sm:$0xff]
        %v836 = vld [vmem:[#allocation3 + $0x20] sm:$0xff]
        %v837 = vld [vmem:[#allocation3 + $0x28] sm:$0xff]
        %v838 = vld [vmem:[#allocation3 + $0x30] sm:$0xff]
        %v839 = vld [vmem:[#allocation3 + $0x38] sm:$0xff]
        %v840 = vld [vmem:[#allocation3 + $0x40] sm:$0xff]
        %v841 = vld [vmem:[#allocation3 + $0x48] sm:$0xff]
        %v842 = vld [vmem:[#allocation3 + $0x50] sm:$0xff]
        %v843 = vld [vmem:[#allocation3 + $0x58] sm:$0xff]
        %v844 = vld [vmem:[#allocation3 + $0x60] sm:$0xff]
        %v845 = vld [vmem:[#allocation3 + $0x68] sm:$0xff]
        %v846 = vld [vmem:[#allocation3 + $0x70] sm:$0xff]
        %v847 = vld [vmem:[#allocation3 + $0x78] sm:$0xff]
        %v848 = vld [vmem:[#allocation3 + $0x80] sm:$0xff]
        %v849 = vld [vmem:[#allocation3 + $0x88] sm:$0xff]
        %v850 = vld [vmem:[#allocation3 + $0x90] sm:$0xff]
        %v851 = vld [vmem:[#allocation3 + $0x98] sm:$0xff]
        %v852 = vld [vmem:[#allocation3 + $0xa0] sm:$0xff]
        %v853 = vld [vmem:[#allocation3 + $0xa8] sm:$0xff]
        %v854 = vld [vmem:[#allocation3 + $0xb0] sm:$0xff]
        %v855 = vld [vmem:[#allocation3 + $0xb8] sm:$0xff]
        %v856 = vld [vmem:[#allocation3 + $0xc0] sm:$0xff]
        %v857 = vld [vmem:[#allocation3 + $0xc8] sm:$0xff]
        %v858 = vld [vmem:[#allocation3 + $0xd0] sm:$0xff]
        %v859 = vld [vmem:[#allocation3 + $0xd8] sm:$0xff]
        %v860 = vld [vmem:[#allocation3 + $0xe0] sm:$0xff]
        %v861 = vld [vmem:[#allocation3 + $0xe8] sm:$0xff]
        %v862 = vld [vmem:[#allocation3 + $0xf0] sm:$0xff]
        %v863 = vld [vmem:[#allocation3 + $0xf8] sm:$0xff]
        %v864 = vld [vmem:[#allocation3 + $0x100] sm:$0xff]
        %v865 = vld [vmem:[#allocation3 + $0x108] sm:$0xff]
        %v866 = vld [vmem:[#allocation3 + $0x110] sm:$0xff]
        %v867 = vld [vmem:[#allocation3 + $0x118] sm:$0xff]
        %v868 = vld [vmem:[#allocation3 + $0x120] sm:$0xff]
        %v869 = vld [vmem:[#allocation3 + $0x128] sm:$0xff]
        %v870 = vld [vmem:[#allocation3 + $0x130] sm:$0xff]
        %v871 = vld [vmem:[#allocation3 + $0x138] sm:$0xff]
        %v872 = vld [vmem:[#allocation3 + $0x140] sm:$0xff]
        %v873 = vld [vmem:[#allocation3 + $0x148] sm:$0xff]
        %v874 = vld [vmem:[#allocation3 + $0x150] sm:$0xff]
        %v875 = vld [vmem:[#allocation3 + $0x158] sm:$0xff]
        %v876 = vld [vmem:[#allocation3 + $0x160] sm:$0xff]
        %v877 = vld [vmem:[#allocation3 + $0x168] sm:$0xff]
        %v878 = vld [vmem:[#allocation3 + $0x170] sm:$0xff]
        %v879 = vld [vmem:[#allocation3 + $0x178] sm:$0xff]
        %v880 = vrot.slane %v816, 4
        %v881 = vsel %vm324, %v804, %v880
        %s882 = scalar_lea.vmem [#allocation3], 384
        %v883 = vld [vmem:[%s882] sm:$0xff]
        %v884 = vld [vmem:[%s882 + $0x8] sm:$0xff]
        %v885 = vld [vmem:[%s882 + $0x10] sm:$0xff]
        %v886 = vld [vmem:[%s882 + $0x18] sm:$0xff]
        %v887 = vld [vmem:[%s882 + $0x20] sm:$0xff]
        %v888 = vld [vmem:[%s882 + $0x28] sm:$0xff]
        %v889 = vld [vmem:[%s882 + $0x30] sm:$0xff]
        %v890 = vld [vmem:[%s882 + $0x38] sm:$0xff]
        %v891 = vld [vmem:[%s882 + $0x40] sm:$0xff]
        %v892 = vld [vmem:[%s882 + $0x48] sm:$0xff]
        %v893 = vld [vmem:[%s882 + $0x50] sm:$0xff]
        %v894 = vld [vmem:[%s882 + $0x58] sm:$0xff]
        %v895 = vld [vmem:[%s882 + $0x60] sm:$0xff]
        %v896 = vld [vmem:[%s882 + $0x68] sm:$0xff]
        %v897 = vld [vmem:[%s882 + $0x70] sm:$0xff]
        %v898 = vld [vmem:[%s882 + $0x78] sm:$0xff]
        %v899 = vld [vmem:[%s882 + $0x80] sm:$0xff]
        %v900 = vld [vmem:[%s882 + $0x88] sm:$0xff]
        %v901 = vld [vmem:[%s882 + $0x90] sm:$0xff]
        %v902 = vld [vmem:[%s882 + $0x98] sm:$0xff]
        %v903 = vld [vmem:[%s882 + $0xa0] sm:$0xff]
        %v904 = vld [vmem:[%s882 + $0xa8] sm:$0xff]
        %v905 = vld [vmem:[%s882 + $0xb0] sm:$0xff]
        %v906 = vld [vmem:[%s882 + $0xb8] sm:$0xff]
        %v907 = vld [vmem:[%s882 + $0xc0] sm:$0xff]
        %v908 = vld [vmem:[%s882 + $0xc8] sm:$0xff]
        %v909 = vld [vmem:[%s882 + $0xd0] sm:$0xff]
        %v910 = vld [vmem:[%s882 + $0xd8] sm:$0xff]
        %v911 = vld [vmem:[%s882 + $0xe0] sm:$0xff]
        %v912 = vld [vmem:[%s882 + $0xe8] sm:$0xff]
        %v913 = vld [vmem:[%s882 + $0xf0] sm:$0xff]
        %v914 = vld [vmem:[%s882 + $0xf8] sm:$0xff]
        %v915 = vld [vmem:[%s882 + $0x100] sm:$0xff]
        %v916 = vld [vmem:[%s882 + $0x108] sm:$0xff]
        %v917 = vld [vmem:[%s882 + $0x110] sm:$0xff]
        %v918 = vld [vmem:[%s882 + $0x118] sm:$0xff]
        %v919 = vld [vmem:[%s882 + $0x120] sm:$0xff]
        %v920 = vld [vmem:[%s882 + $0x128] sm:$0xff]
        %v921 = vld [vmem:[%s882 + $0x130] sm:$0xff]
        %v922 = vld [vmem:[%s882 + $0x138] sm:$0xff]
        %v923 = vld [vmem:[%s882 + $0x140] sm:$0xff]
        %v924 = vld [vmem:[%s882 + $0x148] sm:$0xff]
        %v925 = vld [vmem:[%s882 + $0x150] sm:$0xff]
        %v926 = vld [vmem:[%s882 + $0x158] sm:$0xff]
        %v927 = vld [vmem:[%s882 + $0x160] sm:$0xff]
        %v928 = vld [vmem:[%s882 + $0x168] sm:$0xff]
        %v929 = vld [vmem:[%s882 + $0x170] sm:$0xff]
        %v930 = vld [vmem:[%s882 + $0x178] sm:$0xff]
        %931 = vst [vmem:[#allocation1] ss:$2 sm:$0xff] %v829
        %s932 = scalar_lea.vmem [#allocation1], 1
        %933 = vst [vmem:[%s932] ss:$2 sm:$0xff] %v830
        %s934 = scalar_lea.vmem [#allocation1], 16
        %935 = vst [vmem:[%s934] ss:$2 sm:$0xff] %v819
        %s936 = scalar_lea.vmem [#allocation1], 17
        %937 = vst [vmem:[%s936] ss:$2 sm:$0xff] %v820
        %s938 = scalar_lea.vmem [#allocation1], 32
        %939 = vst [vmem:[%s938] ss:$2 sm:$0xff] %v831
        %s940 = scalar_lea.vmem [#allocation1], 33
        %941 = vst [vmem:[%s940] ss:$2 sm:$0xff] %v881
        %s942 = scalar_lea.vmem [#allocation1], 48
        %943 = vst [vmem:[%s942] ss:$2 sm:$0xff] %v821
        %s944 = scalar_lea.vmem [#allocation1], 49
        %945 = vst [vmem:[%s944] ss:$2 sm:$0xff] %v822
        %v946 = vld.sshfl [vmem:[#allocation1] sm:$0xff pattern:$0x75316420]
        %v947 = vld.sshfl [vmem:[#allocation1 + $0x8] sm:$0xff pattern:$0x75316420]
        %v948 = vld.sshfl [vmem:[#allocation1 + $0x10] sm:$0xff pattern:$0x75316420]
        %v949 = vld.sshfl [vmem:[#allocation1 + $0x20] sm:$0xff pattern:$0x75316420]
        %v950 = vld.sshfl [vmem:[#allocation1 + $0x28] sm:$0xff pattern:$0x75316420]
        %v951 = vld.sshfl [vmem:[#allocation1 + $0x30] sm:$0xff pattern:$0x75316420]
        %958 = vmatpush.msra.mxu0 %v898
        %959 = vmatpush.msra.mxu0 %v897
        %960 = vmatpush.msra.mxu0 %v896
        %961 = vmatpush.msra.mxu0 %v895
        %962 = vmatpush.msra.mxu0 %v894
        %963 = vmatpush.msra.mxu0 %v893
        %964 = vmatpush.msra.mxu0 %v892
        %965 = vmatpush.msra.mxu0 %v891
        %966 = vmatpush.msra.mxu0 %v890
        %967 = vmatpush.msra.mxu0 %v889
        %968 = vmatpush.msra.mxu0 %v888
        %969 = vmatpush.msra.mxu0 %v887
        %970 = vmatpush.msra.mxu0 %v886
        %971 = vmatpush.msra.mxu0 %v885
        %972 = vmatpush.msra.mxu0 %v884
        %973 = vmatpush.msra.mxu0 %v883
        %974 = vmatmul.f32.gmra.mxu0 %v946
        %v975 = vpop.f32.mrf.mxu0
        %v976 = vadd.f32 0.0, %v975
        %977 = vmatmul.f32.gmra.mxu0 %v949
        %v978 = vpop.f32.mrf.mxu0
        %v979 = vadd.f32 0.0, %v978
        %980 = vdwg.mxu0
        %981 = vmatpush.msra.mxu0 %v914
        %982 = vmatpush.msra.mxu0 %v913
        %983 = vmatpush.msra.mxu0 %v912
        %984 = vmatpush.msra.mxu0 %v911
        %985 = vmatpush.msra.mxu0 %v910
        %986 = vmatpush.msra.mxu0 %v909
        %987 = vmatpush.msra.mxu0 %v908
        %988 = vmatpush.msra.mxu0 %v907
        %989 = vmatpush.msra.mxu0 %v906
        %990 = vmatpush.msra.mxu0 %v905
        %991 = vmatpush.msra.mxu0 %v904
        %992 = vmatpush.msra.mxu0 %v903
        %993 = vmatpush.msra.mxu0 %v902
        %994 = vmatpush.msra.mxu0 %v901
        %995 = vmatpush.msra.mxu0 %v900
        %996 = vmatpush.msra.mxu0 %v899
        %997 = vmatmul.f32.gmra.mxu0 %v947
        %v998 = vpop.f32.mrf.mxu0
        %v999 = vadd.f32 %v976, %v998
        %1000 = vmatmul.f32.gmra.mxu0 %v950
        %v1001 = vpop.f32.mrf.mxu0
        %v1002 = vadd.f32 %v979, %v1001
        %1003 = vdwg.mxu0
        %1004 = vmatpush.msra.mxu0 %v930
        %1005 = vmatpush.msra.mxu0 %v929
        %1006 = vmatpush.msra.mxu0 %v928
        %1007 = vmatpush.msra.mxu0 %v927
        %1008 = vmatpush.msra.mxu0 %v926
        %1009 = vmatpush.msra.mxu0 %v925
        %1010 = vmatpush.msra.mxu0 %v924
        %1011 = vmatpush.msra.mxu0 %v923
        %1012 = vmatpush.msra.mxu0 %v922
        %1013 = vmatpush.msra.mxu0 %v921
        %1014 = vmatpush.msra.mxu0 %v920
        %1015 = vmatpush.msra.mxu0 %v919
        %1016 = vmatpush.msra.mxu0 %v918
        %1017 = vmatpush.msra.mxu0 %v917
        %1018 = vmatpush.msra.mxu0 %v916
        %1019 = vmatpush.msra.mxu0 %v915
        %1020 = vmatmul.f32.gmra.mxu0 %v948
        %v1021 = vpop.f32.mrf.mxu0
        %v1022 = vadd.f32 %v999, %v1021
        %1023 = vmatmul.f32.gmra.mxu0 %v951
        %v1024 = vpop.f32.mrf.mxu0
        %v1025 = vadd.f32 %v1002, %v1024
        %1026 = vdwg.mxu0
        %1027 = vst [vmem:[#allocation1] ss:$2 sm:$0xff] %v828
        %s1028 = scalar_lea.vmem [#allocation1], 1
        %1029 = vst [vmem:[%s1028] ss:$2 sm:$0xff] %v829
        %s1030 = scalar_lea.vmem [#allocation1], 16
        %1031 = vst [vmem:[%s1030] ss:$2 sm:$0xff] %v818
        %s1032 = scalar_lea.vmem [#allocation1], 17
        %1033 = vst [vmem:[%s1032] ss:$2 sm:$0xff] %v819
        %s1034 = scalar_lea.vmem [#allocation1], 32
        %1035 = vst [vmem:[%s1034] ss:$2 sm:$0xff] %v830
        %s1036 = scalar_lea.vmem [#allocation1], 33
        %1037 = vst [vmem:[%s1036] ss:$2 sm:$0xff] %v831
        %s1038 = scalar_lea.vmem [#allocation1], 48
        %1039 = vst [vmem:[%s1038] ss:$2 sm:$0xff] %v820
        %s1040 = scalar_lea.vmem [#allocation1], 49
        %1041 = vst [vmem:[%s1040] ss:$2 sm:$0xff] %v821
        %v1042 = vld.sshfl [vmem:[#allocation1] sm:$0xff pattern:$0x75316420]
        %v1043 = vld.sshfl [vmem:[#allocation1 + $0x8] sm:$0xff pattern:$0x75316420]
        %v1044 = vld.sshfl [vmem:[#allocation1 + $0x10] sm:$0xff pattern:$0x75316420]
        %v1045 = vld.sshfl [vmem:[#allocation1 + $0x20] sm:$0xff pattern:$0x75316420]
        %v1046 = vld.sshfl [vmem:[#allocation1 + $0x28] sm:$0xff pattern:$0x75316420]
        %v1047 = vld.sshfl [vmem:[#allocation1 + $0x30] sm:$0xff pattern:$0x75316420]
        %1054 = vmatpush.msra.mxu0 %v847
        %1055 = vmatpush.msra.mxu0 %v846
        %1056 = vmatpush.msra.mxu0 %v845
        %1057 = vmatpush.msra.mxu0 %v844
        %1058 = vmatpush.msra.mxu0 %v843
        %1059 = vmatpush.msra.mxu0 %v842
        %1060 = vmatpush.msra.mxu0 %v841
        %1061 = vmatpush.msra.mxu0 %v840
        %1062 = vmatpush.msra.mxu0 %v839
        %1063 = vmatpush.msra.mxu0 %v838
        %1064 = vmatpush.msra.mxu0 %v837
        %1065 = vmatpush.msra.mxu0 %v836
        %1066 = vmatpush.msra.mxu0 %v835
        %1067 = vmatpush.msra.mxu0 %v834
        %1068 = vmatpush.msra.mxu0 %v833
        %1069 = vmatpush.msra.mxu0 %v832
        %1070 = vmatmul.f32.gmra.mxu0 %v1042
        %v1071 = vpop.f32.mrf.mxu0
        %v1072 = vadd.f32 %v1022, %v1071
        %1073 = vmatmul.f32.gmra.mxu0 %v1045
        %v1074 = vpop.f32.mrf.mxu0
        %v1075 = vadd.f32 %v1025, %v1074
        %1076 = vdwg.mxu0
        %1077 = vmatpush.msra.mxu0 %v863
        %1078 = vmatpush.msra.mxu0 %v862
        %1079 = vmatpush.msra.mxu0 %v861
        %1080 = vmatpush.msra.mxu0 %v860
        %1081 = vmatpush.msra.mxu0 %v859
        %1082 = vmatpush.msra.mxu0 %v858
        %1083 = vmatpush.msra.mxu0 %v857
        %1084 = vmatpush.msra.mxu0 %v856
        %1085 = vmatpush.msra.mxu0 %v855
        %1086 = vmatpush.msra.mxu0 %v854
        %1087 = vmatpush.msra.mxu0 %v853
        %1088 = vmatpush.msra.mxu0 %v852
        %1089 = vmatpush.msra.mxu0 %v851
        %1090 = vmatpush.msra.mxu0 %v850
        %1091 = vmatpush.msra.mxu0 %v849
        %1092 = vmatpush.msra.mxu0 %v848
        %1093 = vmatmul.f32.gmra.mxu0 %v1043
        %v1094 = vpop.f32.mrf.mxu0
        %v1095 = vadd.f32 %v1072, %v1094
        %1096 = vmatmul.f32.gmra.mxu0 %v1046
        %v1097 = vpop.f32.mrf.mxu0
        %v1098 = vadd.f32 %v1075, %v1097
        %1099 = vdwg.mxu0
        %1100 = vmatpush.msra.mxu0 %v879
        %1101 = vmatpush.msra.mxu0 %v878
        %1102 = vmatpush.msra.mxu0 %v877
        %1103 = vmatpush.msra.mxu0 %v876
        %1104 = vmatpush.msra.mxu0 %v875
        %1105 = vmatpush.msra.mxu0 %v874
        %1106 = vmatpush.msra.mxu0 %v873
        %1107 = vmatpush.msra.mxu0 %v872
        %1108 = vmatpush.msra.mxu0 %v871
        %1109 = vmatpush.msra.mxu0 %v870
        %1110 = vmatpush.msra.mxu0 %v869
        %1111 = vmatpush.msra.mxu0 %v868
        %1112 = vmatpush.msra.mxu0 %v867
        %1113 = vmatpush.msra.mxu0 %v866
        %1114 = vmatpush.msra.mxu0 %v865
        %1115 = vmatpush.msra.mxu0 %v864
        %1116 = vmatmul.f32.gmra.mxu0 %v1044
        %v1117 = vpop.f32.mrf.mxu0
        %v1118 = vadd.f32 %v1095, %v1117
        %1119 = vmatmul.f32.gmra.mxu0 %v1047
        %v1120 = vpop.f32.mrf.mxu0
        %v1121 = vadd.f32 %v1098, %v1120
        %1122 = vdwg.mxu0
        %v1123 = vrot.slane %v817, 4
        %v1124 = vsel %vm324, %v805, %v1123
        %s1125 = scalar_lea.vmem [#allocation3], 768
        %v1126 = vld [vmem:[%s1125] sm:$0xff]
        %v1127 = vld [vmem:[%s1125 + $0x8] sm:$0xff]
        %v1128 = vld [vmem:[%s1125 + $0x10] sm:$0xff]
        %v1129 = vld [vmem:[%s1125 + $0x18] sm:$0xff]
        %v1130 = vld [vmem:[%s1125 + $0x20] sm:$0xff]
        %v1131 = vld [vmem:[%s1125 + $0x28] sm:$0xff]
        %v1132 = vld [vmem:[%s1125 + $0x30] sm:$0xff]
        %v1133 = vld [vmem:[%s1125 + $0x38] sm:$0xff]
        %v1134 = vld [vmem:[%s1125 + $0x40] sm:$0xff]
        %v1135 = vld [vmem:[%s1125 + $0x48] sm:$0xff]
        %v1136 = vld [vmem:[%s1125 + $0x50] sm:$0xff]
        %v1137 = vld [vmem:[%s1125 + $0x58] sm:$0xff]
        %v1138 = vld [vmem:[%s1125 + $0x60] sm:$0xff]
        %v1139 = vld [vmem:[%s1125 + $0x68] sm:$0xff]
        %v1140 = vld [vmem:[%s1125 + $0x70] sm:$0xff]
        %v1141 = vld [vmem:[%s1125 + $0x78] sm:$0xff]
        %v1142 = vld [vmem:[%s1125 + $0x80] sm:$0xff]
        %v1143 = vld [vmem:[%s1125 + $0x88] sm:$0xff]
        %v1144 = vld [vmem:[%s1125 + $0x90] sm:$0xff]
        %v1145 = vld [vmem:[%s1125 + $0x98] sm:$0xff]
        %v1146 = vld [vmem:[%s1125 + $0xa0] sm:$0xff]
        %v1147 = vld [vmem:[%s1125 + $0xa8] sm:$0xff]
        %v1148 = vld [vmem:[%s1125 + $0xb0] sm:$0xff]
        %v1149 = vld [vmem:[%s1125 + $0xb8] sm:$0xff]
        %v1150 = vld [vmem:[%s1125 + $0xc0] sm:$0xff]
        %v1151 = vld [vmem:[%s1125 + $0xc8] sm:$0xff]
        %v1152 = vld [vmem:[%s1125 + $0xd0] sm:$0xff]
        %v1153 = vld [vmem:[%s1125 + $0xd8] sm:$0xff]
        %v1154 = vld [vmem:[%s1125 + $0xe0] sm:$0xff]
        %v1155 = vld [vmem:[%s1125 + $0xe8] sm:$0xff]
        %v1156 = vld [vmem:[%s1125 + $0xf0] sm:$0xff]
        %v1157 = vld [vmem:[%s1125 + $0xf8] sm:$0xff]
        %v1158 = vld [vmem:[%s1125 + $0x100] sm:$0xff]
        %v1159 = vld [vmem:[%s1125 + $0x108] sm:$0xff]
        %v1160 = vld [vmem:[%s1125 + $0x110] sm:$0xff]
        %v1161 = vld [vmem:[%s1125 + $0x118] sm:$0xff]
        %v1162 = vld [vmem:[%s1125 + $0x120] sm:$0xff]
        %v1163 = vld [vmem:[%s1125 + $0x128] sm:$0xff]
        %v1164 = vld [vmem:[%s1125 + $0x130] sm:$0xff]
        %v1165 = vld [vmem:[%s1125 + $0x138] sm:$0xff]
        %v1166 = vld [vmem:[%s1125 + $0x140] sm:$0xff]
        %v1167 = vld [vmem:[%s1125 + $0x148] sm:$0xff]
        %v1168 = vld [vmem:[%s1125 + $0x150] sm:$0xff]
        %v1169 = vld [vmem:[%s1125 + $0x158] sm:$0xff]
        %v1170 = vld [vmem:[%s1125 + $0x160] sm:$0xff]
        %v1171 = vld [vmem:[%s1125 + $0x168] sm:$0xff]
        %v1172 = vld [vmem:[%s1125 + $0x170] sm:$0xff]
        %v1173 = vld [vmem:[%s1125 + $0x178] sm:$0xff]
        %1174 = vst [vmem:[#allocation1] ss:$2 sm:$0xff] %v830
        %s1175 = scalar_lea.vmem [#allocation1], 1
        %1176 = vst [vmem:[%s1175] ss:$2 sm:$0xff] %v831
        %s1177 = scalar_lea.vmem [#allocation1], 16
        %1178 = vst [vmem:[%s1177] ss:$2 sm:$0xff] %v820
        %s1179 = scalar_lea.vmem [#allocation1], 17
        %1180 = vst [vmem:[%s1179] ss:$2 sm:$0xff] %v821
        %s1181 = scalar_lea.vmem [#allocation1], 32
        %1182 = vst [vmem:[%s1181] ss:$2 sm:$0xff] %v881
        %s1183 = scalar_lea.vmem [#allocation1], 33
        %1184 = vst [vmem:[%s1183] ss:$2 sm:$0xff] %v1124
        %s1185 = scalar_lea.vmem [#allocation1], 48
        %1186 = vst [vmem:[%s1185] ss:$2 sm:$0xff] %v822
        %s1187 = scalar_lea.vmem [#allocation1], 49
        %1188 = vst [vmem:[%s1187] ss:$2 sm:$0xff] %v823
        %v1189 = vld.sshfl [vmem:[#allocation1] sm:$0xff pattern:$0x75316420]
        %v1190 = vld.sshfl [vmem:[#allocation1 + $0x8] sm:$0xff pattern:$0x75316420]
        %v1191 = vld.sshfl [vmem:[#allocation1 + $0x10] sm:$0xff pattern:$0x75316420]
        %v1192 = vld.sshfl [vmem:[#allocation1 + $0x20] sm:$0xff pattern:$0x75316420]
        %v1193 = vld.sshfl [vmem:[#allocation1 + $0x28] sm:$0xff pattern:$0x75316420]
        %v1194 = vld.sshfl [vmem:[#allocation1 + $0x30] sm:$0xff pattern:$0x75316420]
        %1201 = vmatpush.msra.mxu0 %v1141
        %1202 = vmatpush.msra.mxu0 %v1140
        %1203 = vmatpush.msra.mxu0 %v1139
        %1204 = vmatpush.msra.mxu0 %v1138
        %1205 = vmatpush.msra.mxu0 %v1137
        %1206 = vmatpush.msra.mxu0 %v1136
        %1207 = vmatpush.msra.mxu0 %v1135
        %1208 = vmatpush.msra.mxu0 %v1134
        %1209 = vmatpush.msra.mxu0 %v1133
        %1210 = vmatpush.msra.mxu0 %v1132
        %1211 = vmatpush.msra.mxu0 %v1131
        %1212 = vmatpush.msra.mxu0 %v1130
        %1213 = vmatpush.msra.mxu0 %v1129
        %1214 = vmatpush.msra.mxu0 %v1128
        %1215 = vmatpush.msra.mxu0 %v1127
        %1216 = vmatpush.msra.mxu0 %v1126
        %1217 = vmatmul.f32.gmra.mxu0 %v1189
        %v1218 = vpop.f32.mrf.mxu0
        %v1219 = vadd.f32 0.0, %v1218
        %1220 = vmatmul.f32.gmra.mxu0 %v1192
        %v1221 = vpop.f32.mrf.mxu0
        %v1222 = vadd.f32 0.0, %v1221
        %1223 = vdwg.mxu0
        %1224 = vmatpush.msra.mxu0 %v1157
        %1225 = vmatpush.msra.mxu0 %v1156
        %1226 = vmatpush.msra.mxu0 %v1155
        %1227 = vmatpush.msra.mxu0 %v1154
        %1228 = vmatpush.msra.mxu0 %v1153
        %1229 = vmatpush.msra.mxu0 %v1152
        %1230 = vmatpush.msra.mxu0 %v1151
        %1231 = vmatpush.msra.mxu0 %v1150
        %1232 = vmatpush.msra.mxu0 %v1149
        %1233 = vmatpush.msra.mxu0 %v1148
        %1234 = vmatpush.msra.mxu0 %v1147
        %1235 = vmatpush.msra.mxu0 %v1146
        %1236 = vmatpush.msra.mxu0 %v1145
        %1237 = vmatpush.msra.mxu0 %v1144
        %1238 = vmatpush.msra.mxu0 %v1143
        %1239 = vmatpush.msra.mxu0 %v1142
        %1240 = vmatmul.f32.gmra.mxu0 %v1190
        %v1241 = vpop.f32.mrf.mxu0
        %v1242 = vadd.f32 %v1219, %v1241
        %1243 = vmatmul.f32.gmra.mxu0 %v1193
        %v1244 = vpop.f32.mrf.mxu0
        %v1245 = vadd.f32 %v1222, %v1244
        %1246 = vdwg.mxu0
        %1247 = vmatpush.msra.mxu0 %v1173
        %1248 = vmatpush.msra.mxu0 %v1172
        %1249 = vmatpush.msra.mxu0 %v1171
        %1250 = vmatpush.msra.mxu0 %v1170
        %1251 = vmatpush.msra.mxu0 %v1169
        %1252 = vmatpush.msra.mxu0 %v1168
        %1253 = vmatpush.msra.mxu0 %v1167
        %1254 = vmatpush.msra.mxu0 %v1166
        %1255 = vmatpush.msra.mxu0 %v1165
        %1256 = vmatpush.msra.mxu0 %v1164
        %1257 = vmatpush.msra.mxu0 %v1163
        %1258 = vmatpush.msra.mxu0 %v1162
        %1259 = vmatpush.msra.mxu0 %v1161
        %1260 = vmatpush.msra.mxu0 %v1160
        %1261 = vmatpush.msra.mxu0 %v1159
        %1262 = vmatpush.msra.mxu0 %v1158
        %1263 = vmatmul.f32.gmra.mxu0 %v1191
        %v1264 = vpop.f32.mrf.mxu0
        %v1265 = vadd.f32 %v1242, %v1264
        %1266 = vmatmul.f32.gmra.mxu0 %v1194
        %v1267 = vpop.f32.mrf.mxu0
        %v1268 = vadd.f32 %v1245, %v1267
        %1269 = vdwg.mxu0
        %v1270 = vadd.f32 %v1118, %v1265
        %v1271 = vadd.f32 %v1121, %v1268
        %v1272 = vld [vmem:[%s5] sm:$0x1]
        %v1274 = vperm.slane %v1272, 0
        %v1276 = vmul.f32 %v1270, %v1274
        %v1277 = vmul.f32 %v1271, %v1274
        %v1278 = vld [vmem:[%s6] sm:$0x1]
        %v1280 = vperm.slane %v1278, 0
        %v1282 = vadd.f32 %v1276, %v1280
        %v1283 = vadd.f32 %v1277, %v1280
        %v1284 = vrot.slane %v297, 4
        %v1285 = vrot.slane %v298, 4
        %v1286 = vrot.slane %v299, 4
        %v1287 = vrot.slane %v300, 4
        %vm1288 = vcmask 1042432
        %vm1289 = vcmask 1046532
        %vm1290 = vmor %vm1288, %vm1289
        %v1291 = vrot.slane %v297, 5
        %v1292 = vrot.slane %v1291, 4
        %v1293 = vrot.slane %v1284, 5
        %v1294 = vsel %vm1290, %v1292, %v1293
        %v1295 = vrot.slane %v298, 5
        %v1296 = vrot.slane %v1295, 4
        %v1297 = vrot.slane %v1285, 5
        %v1298 = vsel %vm1290, %v1296, %v1297
        %v1299 = vrot.slane %v299, 5
        %v1300 = vrot.slane %v1299, 4
        %v1301 = vrot.slane %v1286, 5
        %v1302 = vsel %vm1290, %v1300, %v1301
        %v1303 = vrot.slane %v300, 5
        %v1304 = vrot.slane %v1303, 4
        %v1305 = vrot.slane %v1287, 5
        %v1306 = vsel %vm1290, %v1304, %v1305
        %1307 = vst [vmem:[#allocation1] ss:$2 sm:$0xff] %v1294
        %s1308 = scalar_lea.vmem [#allocation1], 1
        %1309 = vst [vmem:[%s1308] ss:$2 sm:$0xff] %v1298
        %s1310 = scalar_lea.vmem [#allocation1], 16
        %1311 = vst [vmem:[%s1310] ss:$2 sm:$0xff] %v1302
        %s1312 = scalar_lea.vmem [#allocation1], 17
        %1313 = vst [vmem:[%s1312] ss:$2 sm:$0xff] %v1306
        %v1314 = vld.sshfl [vmem:[#allocation1] sm:$0xff pattern:$0x75316420]
        %v1315 = vld.sshfl [vmem:[#allocation1 + $0x10] sm:$0xff pattern:$0x75316420]
        %v1318 = vadd.f32 %v1282, %v1314
        %v1319 = vadd.f32 %v1283, %v1315
        %v1320 = vmax.f32 %v1318, 0.0
        %v1321 = vmax.f32 %v1319, 0.0
        %1322 = vst [vmem:[%s295] sm:$0x3f] 0.0
        %1323 = vst [vmem:[%s295 + $0x8] sm:$0x3f] 0.0
        %1324 = vst [vmem:[%s295 + $0x10] sm:$0x3f] 0.0
        %1325 = vst [vmem:[%s295 + $0x18] sm:$0x3f] 0.0
        %1326 = vst [vmem:[%s295 + $0x20] sm:$0x3f] 0.0
        %1327 = vst [vmem:[%s295 + $0x28] sm:$0x3f] 0.0
        %v1330 = vrot.slane %v1320, 4
        %v1331 = vrot.slane %v1321, 4
        %s1334 = scalar_lea.vmem %s295, 8
        %1335 = vst [vmem:[%s1334 + $0x1] sm:$0xf] %v1320
        %1336 = vst [vmem:[%s1334 + $0x9] sm:$0xf] %v1330
        %1337 = vst [vmem:[%s1334 + $0x11] sm:$0xf] %v1321
        %1338 = vst [vmem:[%s1334 + $0x19] sm:$0xf] %v1331
        %p1339 = scmp.lt.s32.totalorder %s19, 1
        %s1340 = scalar_select %p1339, %s19, 1
        %s1341 = smul.addr %s1340, 6
        %s1342 = smul.addr %s1341, 8
        %s1343 = scalar_lea.vmem %s7, %s1342
        // Predicated region
        $region53: #{encoder_forward.8} parent=47 // pred_check
          %p1344 = pneg %p189
        $region54: #{encoder_forward.8} parent=47 // pred_check_branch
          %1346 = sbr.rel (%p1344) target = $region56
        $region55: #{encoder_forward.8} parent=47 // pred_region
          _
        $region56: #{encoder_forward.8} parent=47 // pred_fallthru
          _
      $region48: #{encoder_forward.8} parent=5 // pred_fallthru
        _
      %p1347 = scmp.le.s32.totalorder 2, %s14
      // Predicated region
      $region57: #{encoder_forward.8} parent=5 // pred_check
        %p1348 = pneg %p1347
      $region58: #{encoder_forward.8} parent=5 // pred_check_branch
        %1350 = sbr.rel (%p1348) target = $region60
      $region59: #{encoder_forward.8} parent=5 // pred_region
        %s1351 = ssub.s32 %s14, 2
        // Predicated region
        $region61: #{encoder_forward.8} parent=59 // pred_check
          %p1352 = pneg %p195
        $region62: #{encoder_forward.8} parent=59 // pred_check_branch
          %1354 = sbr.rel (%p1352) target = $region64
        $region63: #{encoder_forward.8} parent=59 // pred_region
          %p1355 = scmp.lt.s32.totalorder %s20, 1
          %s1356 = scalar_select %p1355, %s20, 1
          %s1357 = smul.addr %s1356, 6
          %s1358 = smul.addr %s1357, 8
          %s1359 = scalar_lea.vmem %s7, %s1358
        $region64: #{encoder_forward.8} parent=59 // pred_fallthru
          _
      $region60: #{encoder_forward.8} parent=5 // pred_fallthru
        _
    $region6: #{encoder_forward.8} parent=1 // loop_footer
      %s18 = sadd.s32 1, %s14
    $region7: #{encoder_forward.8} parent=1 // loop_footer_branch
      %13 = sbr.rel target = $region3
    $region8: #{encoder_forward.8} parent=1 // loop_exit
      _
    %1360 = vsyncpa [#allocation4], 1
    %s1361 = scalar_lea.sflag [#allocation4], 1
    %1362 = vsyncpa %s1361, 1

// kernel: encoder_forward.7
$region0: #{encoder_forward.7}
  #allocation0 [shape = 'u32[]', space=smem, size = 0x4, offset = 0x4, fixed_abs, tag = 'smem constant byte address 0x4 - core index']
  #allocation1 [shape = 'u32[72,128]{1,0:T(1,128)}', space=vmem, size = 0x9000, scoped, tag = 'internal scratch']
  #allocation2 [shape = 'f32[6,6,128]{2,1,0:T(8,128)}', space=vmem, size = 0x6000, scoped, tag = 'scratch operand']
  %s0 = inlined_call_operand.vmem [shape: f32[2,6,6,128], index: 0, kind: input, shape index: {}]
  %s1 = inlined_call_operand.vmem [shape: f32[3,384,128], index: 1, kind: input, shape index: {}]
  %s2 = inlined_call_operand.vmem [shape: f32[1,128], index: 2, kind: input, shape index: {}]
  %s3 = inlined_call_operand.vmem [shape: f32[1,128], index: 3, kind: input, shape index: {}]
  %s4 = inlined_call_operand.vmem [shape: f32[3,384,128], index: 4, kind: input, shape index: {}]
  %s5 = inlined_call_operand.vmem [shape: f32[1,128], index: 5, kind: input, shape index: {}]
  %s6 = inlined_call_operand.vmem [shape: f32[1,128], index: 6, kind: input, shape index: {}]
  %s7 = inlined_call_operand.vmem [shape: f32[2,6,6,128], index: 7, kind: output, shape index: {}]
  %s8 = sld [smem:[#allocation0]]
  $region61: #{encoder_forward.7} parent=0
    _
  %s10 = ssub.s32 1, %s8
  %s11 = scalar_select 0, %s10, %s8
  loop: start=0, step=1, limit=4
  $region2: #{encoder_forward.7} parent=0 // loop_pre_header
    _
  $region3: #{encoder_forward.7} parent=0 // loop_header
    %s13 = sphi 0, %s17
    %p14 = scmp.ge.s32.totalorder %s13, 4
    %s23 = sphi 0, %s25
    %s26 = sphi 0, %s23
    %s27 = sphi 0, %s26
    %s43 = sphi 0, %s27
    %s47 = sphi 0, %s47
    %s49 = sphi 0, %s47
    %s50 = sphi 0, %s49
    %s64 = sphi 0, %s50
    %s68 = sphi 0, %s68
    %s70 = sphi 0, %s68
    %s71 = sphi 0, %s70
    %s85 = sphi 0, %s71
    %s89 = sphi 0, %s89
    %s91 = sphi 0, %s89
    %s92 = sphi 0, %s91
    %s106 = sphi 0, %s92
    %s110 = sphi 0, %s110
    %s112 = sphi 0, %s110
    %s113 = sphi 0, %s112
    %s127 = sphi 0, %s113
    %s131 = sphi 0, %s131
    %s133 = sphi 0, %s131
    %s134 = sphi 0, %s133
    %s148 = sphi 0, %s134
    %s152 = sphi 0, %s152
    %s154 = sphi 0, %s152
    %s155 = sphi 0, %s154
    %s169 = sphi 0, %s155
    %s175 = sphi 0, %s177
    %s178 = sphi 0, %s175
    %s179 = sphi 0, %s178
    %s195 = sphi 0, %s179
  $region4: #{encoder_forward.7} parent=0 // loop_header_branch
    %16 = sbr.rel (%p14) target = $region8
  $region5: #{encoder_forward.7} parent=0 // loop_body
    %s18 = ssub.s32 %s13, 1
    %s19 = ssub.s32 %s13, 2
    %s20 = sadd.s32 %s13, 1
    %s21 = ssub.s32 %s13, %s20
    %p22 = scmp.eq.s32.totalorder %s21, 0
    %s24 = sadd.s32 %s23, 1
    %s25 = scalar_select %p22, %s23, %s24
    %p28 = pneg %p22
    %p29 = scmp.eq.s32.totalorder %s13, 1
    %p30 = por %p28, %p29
    %p31 = scmp.ne.s32.totalorder %s23, %s26
    %p32 = scmp.eq.s32.totalorder %s13, 0
    %p33 = por %p31, %p32
    %p34 = scmp.ne.s32.totalorder %s23, %s26
    %p35 = scmp.eq.s32.totalorder %s18, 1
    %p36 = por %p34, %p35
    %p37 = scmp.ne.s32.totalorder %s26, %s27
    %p38 = scmp.eq.s32.totalorder %s18, 0
    %p39 = por %p37, %p38
    %p40 = scmp.ne.s32.totalorder %s26, %s27
    %p41 = scmp.eq.s32.totalorder %s19, 1
    %p42 = por %p40, %p41
    %p44 = scmp.ne.s32.totalorder %s27, %s43
    %p45 = scmp.eq.s32.totalorder %s19, 0
    %p46 = por %p44, %p45
    %s48 = sadd.s32 %s47, 1
    %p51 = scmp.eq.s32.totalorder %s13, 1
    %p52 = scmp.ne.s32.totalorder %s47, %s49
    %p53 = scmp.eq.s32.totalorder %s13, 0
    %p54 = por %p52, %p53
    %p55 = scmp.ne.s32.totalorder %s47, %s49
    %p56 = scmp.eq.s32.totalorder %s18, 1
    %p57 = por %p55, %p56
    %p58 = scmp.ne.s32.totalorder %s49, %s50
    %p59 = scmp.eq.s32.totalorder %s18, 0
    %p60 = por %p58, %p59
    %p61 = scmp.ne.s32.totalorder %s49, %s50
    %p62 = scmp.eq.s32.totalorder %s19, 1
    %p63 = por %p61, %p62
    %p65 = scmp.ne.s32.totalorder %s50, %s64
    %p66 = scmp.eq.s32.totalorder %s19, 0
    %p67 = por %p65, %p66
    %s69 = sadd.s32 %s68, 1
    %p72 = scmp.eq.s32.totalorder %s13, 1
    %p73 = scmp.ne.s32.totalorder %s68, %s70
    %p74 = scmp.eq.s32.totalorder %s13, 0
    %p75 = por %p73, %p74
    %p76 = scmp.ne.s32.totalorder %s68, %s70
    %p77 = scmp.eq.s32.totalorder %s18, 1
    %p78 = por %p76, %p77
    %p79 = scmp.ne.s32.totalorder %s70, %s71
    %p80 = scmp.eq.s32.totalorder %s18, 0
    %p81 = por %p79, %p80
    %p82 = scmp.ne.s32.totalorder %s70, %s71
    %p83 = scmp.eq.s32.totalorder %s19, 1
    %p84 = por %p82, %p83
    %p86 = scmp.ne.s32.totalorder %s71, %s85
    %p87 = scmp.eq.s32.totalorder %s19, 0
    %p88 = por %p86, %p87
    %s90 = sadd.s32 %s89, 1
    %p93 = scmp.eq.s32.totalorder %s13, 1
    %p94 = scmp.ne.s32.totalorder %s89, %s91
    %p95 = scmp.eq.s32.totalorder %s13, 0
    %p96 = por %p94, %p95
    %p97 = scmp.ne.s32.totalorder %s89, %s91
    %p98 = scmp.eq.s32.totalorder %s18, 1
    %p99 = por %p97, %p98
    %p100 = scmp.ne.s32.totalorder %s91, %s92
    %p101 = scmp.eq.s32.totalorder %s18, 0
    %p102 = por %p100, %p101
    %p103 = scmp.ne.s32.totalorder %s91, %s92
    %p104 = scmp.eq.s32.totalorder %s19, 1
    %p105 = por %p103, %p104
    %p107 = scmp.ne.s32.totalorder %s92, %s106
    %p108 = scmp.eq.s32.totalorder %s19, 0
    %p109 = por %p107, %p108
    %s111 = sadd.s32 %s110, 1
    %p114 = scmp.eq.s32.totalorder %s13, 1
    %p115 = scmp.ne.s32.totalorder %s110, %s112
    %p116 = scmp.eq.s32.totalorder %s13, 0
    %p117 = por %p115, %p116
    %p118 = scmp.ne.s32.totalorder %s110, %s112
    %p119 = scmp.eq.s32.totalorder %s18, 1
    %p120 = por %p118, %p119
    %p121 = scmp.ne.s32.totalorder %s112, %s113
    %p122 = scmp.eq.s32.totalorder %s18, 0
    %p123 = por %p121, %p122
    %p124 = scmp.ne.s32.totalorder %s112, %s113
    %p125 = scmp.eq.s32.totalorder %s19, 1
    %p126 = por %p124, %p125
    %p128 = scmp.ne.s32.totalorder %s113, %s127
    %p129 = scmp.eq.s32.totalorder %s19, 0
    %p130 = por %p128, %p129
    %s132 = sadd.s32 %s131, 1
    %p135 = scmp.eq.s32.totalorder %s13, 1
    %p136 = scmp.ne.s32.totalorder %s131, %s133
    %p137 = scmp.eq.s32.totalorder %s13, 0
    %p138 = por %p136, %p137
    %p139 = scmp.ne.s32.totalorder %s131, %s133
    %p140 = scmp.eq.s32.totalorder %s18, 1
    %p141 = por %p139, %p140
    %p142 = scmp.ne.s32.totalorder %s133, %s134
    %p143 = scmp.eq.s32.totalorder %s18, 0
    %p144 = por %p142, %p143
    %p145 = scmp.ne.s32.totalorder %s133, %s134
    %p146 = scmp.eq.s32.totalorder %s19, 1
    %p147 = por %p145, %p146
    %p149 = scmp.ne.s32.totalorder %s134, %s148
    %p150 = scmp.eq.s32.totalorder %s19, 0
    %p151 = por %p149, %p150
    %s153 = sadd.s32 %s152, 1
    %p156 = scmp.eq.s32.totalorder %s13, 1
    %p157 = scmp.ne.s32.totalorder %s152, %s154
    %p158 = scmp.eq.s32.totalorder %s13, 0
    %p159 = por %p157, %p158
    %p160 = scmp.ne.s32.totalorder %s152, %s154
    %p161 = scmp.eq.s32.totalorder %s18, 1
    %p162 = por %p160, %p161
    %p163 = scmp.ne.s32.totalorder %s154, %s155
    %p164 = scmp.eq.s32.totalorder %s18, 0
    %p165 = por %p163, %p164
    %p166 = scmp.ne.s32.totalorder %s154, %s155
    %p167 = scmp.eq.s32.totalorder %s19, 1
    %p168 = por %p166, %p167
    %p170 = scmp.ne.s32.totalorder %s155, %s169
    %p171 = scmp.eq.s32.totalorder %s19, 0
    %p172 = por %p170, %p171
    %s173 = ssub.s32 %s13, %s20
    %p174 = scmp.eq.s32.totalorder %s173, 0
    %s176 = sadd.s32 %s175, 1
    %s177 = scalar_select %p174, %s175, %s176
    %p180 = pneg %p174
    %p181 = scmp.eq.s32.totalorder %s13, 1
    %p182 = por %p180, %p181
    %p183 = scmp.ne.s32.totalorder %s175, %s178
    %p184 = scmp.eq.s32.totalorder %s13, 0
    %p185 = por %p183, %p184
    %p186 = scmp.ne.s32.totalorder %s175, %s178
    %p187 = scmp.eq.s32.totalorder %s18, 1
    %p188 = por %p186, %p187
    %p189 = scmp.ne.s32.totalorder %s178, %s179
    %p190 = scmp.eq.s32.totalorder %s18, 0
    %p191 = por %p189, %p190
    %p192 = scmp.ne.s32.totalorder %s178, %s179
    %p193 = scmp.eq.s32.totalorder %s19, 1
    %p194 = por %p192, %p193
    %p196 = scmp.ne.s32.totalorder %s179, %s195
    %p197 = scmp.eq.s32.totalorder %s19, 0
    %p198 = por %p196, %p197
    %p199 = scmp.le.s32.totalorder 1, %s13
    %p200 = scmp.lt.s32.totalorder %s13, 3
    %p201 = pnand %p199, %p200
    %p202 = pneg %p201
    // Predicated region
    $region9: #{encoder_forward.7} parent=5 // pred_check
      _
    $region10: #{encoder_forward.7} parent=5 // pred_check_branch
      %204 = sbr.rel (%p201) target = $region12
    $region11: #{encoder_forward.7} parent=5 // pred_region
      %s205 = ssub.s32 %s13, 1
      // Predicated region
      $region13: #{encoder_forward.7} parent=11 // pred_check
        %p206 = pneg %p60
      $region14: #{encoder_forward.7} parent=11 // pred_check_branch
        %208 = sbr.rel (%p206) target = $region16
      $region15: #{encoder_forward.7} parent=11 // pred_region
        _
      $region16: #{encoder_forward.7} parent=11 // pred_fallthru
        _
      // Predicated region
      $region17: #{encoder_forward.7} parent=11 // pred_check
        %p209 = pneg %p81
      $region18: #{encoder_forward.7} parent=11 // pred_check_branch
        %211 = sbr.rel (%p209) target = $region20
      $region19: #{encoder_forward.7} parent=11 // pred_region
        _
      $region20: #{encoder_forward.7} parent=11 // pred_fallthru
        _
      // Predicated region
      $region21: #{encoder_forward.7} parent=11 // pred_check
        %p212 = pneg %p102
      $region22: #{encoder_forward.7} parent=11 // pred_check_branch
        %214 = sbr.rel (%p212) target = $region24
      $region23: #{encoder_forward.7} parent=11 // pred_region
        _
      $region24: #{encoder_forward.7} parent=11 // pred_fallthru
        _
      // Predicated region
      $region25: #{encoder_forward.7} parent=11 // pred_check
        %p215 = pneg %p123
      $region26: #{encoder_forward.7} parent=11 // pred_check_branch
        %217 = sbr.rel (%p215) target = $region28
      $region27: #{encoder_forward.7} parent=11 // pred_region
        _
      $region28: #{encoder_forward.7} parent=11 // pred_fallthru
        _
      // Predicated region
      $region29: #{encoder_forward.7} parent=11 // pred_check
        %p218 = pneg %p144
      $region30: #{encoder_forward.7} parent=11 // pred_check_branch
        %220 = sbr.rel (%p218) target = $region32
      $region31: #{encoder_forward.7} parent=11 // pred_region
        _
      $region32: #{encoder_forward.7} parent=11 // pred_fallthru
        _
      // Predicated region
      $region33: #{encoder_forward.7} parent=11 // pred_check
        %p221 = pneg %p165
      $region34: #{encoder_forward.7} parent=11 // pred_check_branch
        %223 = sbr.rel (%p221) target = $region36
      $region35: #{encoder_forward.7} parent=11 // pred_region
        _
      $region36: #{encoder_forward.7} parent=11 // pred_fallthru
        _
    $region12: #{encoder_forward.7} parent=5 // pred_fallthru
      _
    %p224 = scmp.lt.s32.totalorder %s13, 2
    // Predicated region
    $region37: #{encoder_forward.7} parent=5 // pred_check
      %p225 = pneg %p224
    $region38: #{encoder_forward.7} parent=5 // pred_check_branch
      %227 = sbr.rel (%p225) target = $region40
    $region39: #{encoder_forward.7} parent=5 // pred_region
      // Predicated region
      $region41: #{encoder_forward.7} parent=39 // pred_check
        %p228 = pneg %p33
      $region42: #{encoder_forward.7} parent=39 // pred_check_branch
        %230 = sbr.rel (%p228) target = $region44
      $region43: #{encoder_forward.7} parent=39 // pred_region
        %p231 = scmp.lt.s32.totalorder %s13, 1
        %s232 = scalar_select %p231, %s13, 1
        %s233 = smul.addr %s232, 6
        %s234 = smul.addr %s233, 8
        %s235 = scalar_lea.vmem %s0, %s234
      $region44: #{encoder_forward.7} parent=39 // pred_fallthru
        _
    $region40: #{encoder_forward.7} parent=5 // pred_fallthru
      _
    %p236 = scmp.le.s32.totalorder 1, %s13
    %p237 = scmp.lt.s32.totalorder %s13, 3
    %p238 = pnand %p236, %p237
    %p239 = pneg %p238
    // Predicated region
    $region45: #{encoder_forward.7} parent=5 // pred_check
      _
    $region46: #{encoder_forward.7} parent=5 // pred_check_branch
      %241 = sbr.rel (%p238) target = $region48
    $region47: #{encoder_forward.7} parent=5 // pred_region
      %s242 = ssub.s32 %s13, 1
      %p243 = scmp.lt.s32.totalorder %s18, 1
      %s244 = scalar_select %p243, %s18, 1
      %s245 = smul.addr %s244, 6
      %s246 = smul.addr %s245, 8
      %s247 = scalar_lea.vmem %s0, %s246
      %p248 = pneg %p39
      %p249 = pneg %p36
      %p250 = pneg %p60
      %p251 = pneg %p57
      %p252 = pneg %p81
      %p253 = pneg %p78
      %p254 = pneg %p102
      %p255 = pneg %p99
      %p256 = pneg %p123
      %p257 = pneg %p120
      %p258 = pneg %p144
      %p259 = pneg %p141
      %p260 = pneg %p165
      %p261 = pneg %p162
      %p262 = pneg %p191
      %p263 = pneg %p188
      %p264 = scmp.lt.s32.totalorder %s18, 1
      %s265 = scalar_select %p264, %s18, 1
      %s266 = smul.addr %s265, 6
      %s267 = smul.addr %s266, 8
      %s268 = scalar_lea.vmem %s7, %s267
      %p269 = scmp.lt.s32.totalorder %s18, 1
      %s270 = scalar_select %p269, %s18, 1
      %s271 = smul.addr %s270, 6
      %s272 = smul.addr %s271, 8
      %s273 = scalar_lea.vmem %s0, %s272
      %p274 = scmp.lt.s32.totalorder %s18, 1
      %s275 = scalar_select %p274, %s18, 1
      %s276 = smul.addr %s275, 6
      %s277 = smul.addr %s276, 8
      %s278 = scalar_lea.vmem %s7, %s277
      %v279 = vld [vmem:[%s273] sm:$0x3f]
      %v280 = vld [vmem:[%s273 + $0x8] sm:$0x3f]
      %v281 = vld [vmem:[%s273 + $0x10] sm:$0x3f]
      %v282 = vld [vmem:[%s273 + $0x18] sm:$0x3f]
      %v283 = vld [vmem:[%s273 + $0x20] sm:$0x3f]
      %v284 = vld [vmem:[%s273 + $0x28] sm:$0x3f]
      %v291 = vrot.slane %v279, 1
      %v292 = vrot.slane %v280, 1
      %v293 = vrot.slane %v281, 1
      %v294 = vrot.slane %v282, 1
      %v295 = vrot.slane %v283, 1
      %v296 = vrot.slane %v284, 1
      %v297 = vrot.slane %v279, 2
      %v298 = vrot.slane %v280, 2
      %v299 = vrot.slane %v281, 2
      %v300 = vrot.slane %v282, 2
      %v301 = vrot.slane %v283, 2
      %v302 = vrot.slane %v284, 2
      %v303 = vrot.slane %v291, 4
      %v304 = vrot.slane %v292, 4
      %v305 = vrot.slane %v293, 4
      %v306 = vrot.slane %v294, 4
      %vm307 = vcmask 1043456
      %v308 = vsel %vm307, %v279, %v303
      %v309 = vsel %vm307, %v280, %v304
      %v310 = vsel %vm307, %v281, %v305
      %v311 = vsel %vm307, %v282, %v306
      %v312 = vld [vmem:[%s1] sm:$0xff]
      %v313 = vld [vmem:[%s1 + $0x8] sm:$0xff]
      %v314 = vld [vmem:[%s1 + $0x10] sm:$0xff]
      %v315 = vld [vmem:[%s1 + $0x18] sm:$0xff]
      %v316 = vld [vmem:[%s1 + $0x20] sm:$0xff]
      %v317 = vld [vmem:[%s1 + $0x28] sm:$0xff]
      %v318 = vld [vmem:[%s1 + $0x30] sm:$0xff]
      %v319 = vld [vmem:[%s1 + $0x38] sm:$0xff]
      %v320 = vld [vmem:[%s1 + $0x40] sm:$0xff]
      %v321 = vld [vmem:[%s1 + $0x48] sm:$0xff]
      %v322 = vld [vmem:[%s1 + $0x50] sm:$0xff]
      %v323 = vld [vmem:[%s1 + $0x58] sm:$0xff]
      %v324 = vld [vmem:[%s1 + $0x60] sm:$0xff]
      %v325 = vld [vmem:[%s1 + $0x68] sm:$0xff]
      %v326 = vld [vmem:[%s1 + $0x70] sm:$0xff]
      %v327 = vld [vmem:[%s1 + $0x78] sm:$0xff]
      %v328 = vld [vmem:[%s1 + $0x80] sm:$0xff]
      %v329 = vld [vmem:[%s1 + $0x88] sm:$0xff]
      %v330 = vld [vmem:[%s1 + $0x90] sm:$0xff]
      %v331 = vld [vmem:[%s1 + $0x98] sm:$0xff]
      %v332 = vld [vmem:[%s1 + $0xa0] sm:$0xff]
      %v333 = vld [vmem:[%s1 + $0xa8] sm:$0xff]
      %v334 = vld [vmem:[%s1 + $0xb0] sm:$0xff]
      %v335 = vld [vmem:[%s1 + $0xb8] sm:$0xff]
      %v336 = vld [vmem:[%s1 + $0xc0] sm:$0xff]
      %v337 = vld [vmem:[%s1 + $0xc8] sm:$0xff]
      %v338 = vld [vmem:[%s1 + $0xd0] sm:$0xff]
      %v339 = vld [vmem:[%s1 + $0xd8] sm:$0xff]
      %v340 = vld [vmem:[%s1 + $0xe0] sm:$0xff]
      %v341 = vld [vmem:[%s1 + $0xe8] sm:$0xff]
      %v342 = vld [vmem:[%s1 + $0xf0] sm:$0xff]
      %v343 = vld [vmem:[%s1 + $0xf8] sm:$0xff]
      %v344 = vld [vmem:[%s1 + $0x100] sm:$0xff]
      %v345 = vld [vmem:[%s1 + $0x108] sm:$0xff]
      %v346 = vld [vmem:[%s1 + $0x110] sm:$0xff]
      %v347 = vld [vmem:[%s1 + $0x118] sm:$0xff]
      %v348 = vld [vmem:[%s1 + $0x120] sm:$0xff]
      %v349 = vld [vmem:[%s1 + $0x128] sm:$0xff]
      %v350 = vld [vmem:[%s1 + $0x130] sm:$0xff]
      %v351 = vld [vmem:[%s1 + $0x138] sm:$0xff]
      %v352 = vld [vmem:[%s1 + $0x140] sm:$0xff]
      %v353 = vld [vmem:[%s1 + $0x148] sm:$0xff]
      %v354 = vld [vmem:[%s1 + $0x150] sm:$0xff]
      %v355 = vld [vmem:[%s1 + $0x158] sm:$0xff]
      %v356 = vld [vmem:[%s1 + $0x160] sm:$0xff]
      %v357 = vld [vmem:[%s1 + $0x168] sm:$0xff]
      %v358 = vld [vmem:[%s1 + $0x170] sm:$0xff]
      %v359 = vld [vmem:[%s1 + $0x178] sm:$0xff]
      %v360 = vrot.slane %v295, 4
      %v361 = vsel %vm307, %v283, %v360
      %s362 = scalar_lea.vmem %s1, 384
      %v363 = vld [vmem:[%s362] sm:$0xff]
      %v364 = vld [vmem:[%s362 + $0x8] sm:$0xff]
      %v365 = vld [vmem:[%s362 + $0x10] sm:$0xff]
      %v366 = vld [vmem:[%s362 + $0x18] sm:$0xff]
      %v367 = vld [vmem:[%s362 + $0x20] sm:$0xff]
      %v368 = vld [vmem:[%s362 + $0x28] sm:$0xff]
      %v369 = vld [vmem:[%s362 + $0x30] sm:$0xff]
      %v370 = vld [vmem:[%s362 + $0x38] sm:$0xff]
      %v371 = vld [vmem:[%s362 + $0x40] sm:$0xff]
      %v372 = vld [vmem:[%s362 + $0x48] sm:$0xff]
      %v373 = vld [vmem:[%s362 + $0x50] sm:$0xff]
      %v374 = vld [vmem:[%s362 + $0x58] sm:$0xff]
      %v375 = vld [vmem:[%s362 + $0x60] sm:$0xff]
      %v376 = vld [vmem:[%s362 + $0x68] sm:$0xff]
      %v377 = vld [vmem:[%s362 + $0x70] sm:$0xff]
      %v378 = vld [vmem:[%s362 + $0x78] sm:$0xff]
      %v379 = vld [vmem:[%s362 + $0x80] sm:$0xff]
      %v380 = vld [vmem:[%s362 + $0x88] sm:$0xff]
      %v381 = vld [vmem:[%s362 + $0x90] sm:$0xff]
      %v382 = vld [vmem:[%s362 + $0x98] sm:$0xff]
      %v383 = vld [vmem:[%s362 + $0xa0] sm:$0xff]
      %v384 = vld [vmem:[%s362 + $0xa8] sm:$0xff]
      %v385 = vld [vmem:[%s362 + $0xb0] sm:$0xff]
      %v386 = vld [vmem:[%s362 + $0xb8] sm:$0xff]
      %v387 = vld [vmem:[%s362 + $0xc0] sm:$0xff]
      %v388 = vld [vmem:[%s362 + $0xc8] sm:$0xff]
      %v389 = vld [vmem:[%s362 + $0xd0] sm:$0xff]
      %v390 = vld [vmem:[%s362 + $0xd8] sm:$0xff]
      %v391 = vld [vmem:[%s362 + $0xe0] sm:$0xff]
      %v392 = vld [vmem:[%s362 + $0xe8] sm:$0xff]
      %v393 = vld [vmem:[%s362 + $0xf0] sm:$0xff]
      %v394 = vld [vmem:[%s362 + $0xf8] sm:$0xff]
      %v395 = vld [vmem:[%s362 + $0x100] sm:$0xff]
      %v396 = vld [vmem:[%s362 + $0x108] sm:$0xff]
      %v397 = vld [vmem:[%s362 + $0x110] sm:$0xff]
      %v398 = vld [vmem:[%s362 + $0x118] sm:$0xff]
      %v399 = vld [vmem:[%s362 + $0x120] sm:$0xff]
      %v400 = vld [vmem:[%s362 + $0x128] sm:$0xff]
      %v401 = vld [vmem:[%s362 + $0x130] sm:$0xff]
      %v402 = vld [vmem:[%s362 + $0x138] sm:$0xff]
      %v403 = vld [vmem:[%s362 + $0x140] sm:$0xff]
      %v404 = vld [vmem:[%s362 + $0x148] sm:$0xff]
      %v405 = vld [vmem:[%s362 + $0x150] sm:$0xff]
      %v406 = vld [vmem:[%s362 + $0x158] sm:$0xff]
      %v407 = vld [vmem:[%s362 + $0x160] sm:$0xff]
      %v408 = vld [vmem:[%s362 + $0x168] sm:$0xff]
      %v409 = vld [vmem:[%s362 + $0x170] sm:$0xff]
      %v410 = vld [vmem:[%s362 + $0x178] sm:$0xff]
      %411 = vst [vmem:[#allocation1] ss:$2 sm:$0xff] %v309
      %s412 = scalar_lea.vmem [#allocation1], 1
      %413 = vst [vmem:[%s412] ss:$2 sm:$0xff] %v310
      %s414 = scalar_lea.vmem [#allocation1], 16
      %415 = vst [vmem:[%s414] ss:$2 sm:$0xff] %v298
      %s416 = scalar_lea.vmem [#allocation1], 17
      %417 = vst [vmem:[%s416] ss:$2 sm:$0xff] %v299
      %s418 = scalar_lea.vmem [#allocation1], 32
      %419 = vst [vmem:[%s418] ss:$2 sm:$0xff] %v311
      %s420 = scalar_lea.vmem [#allocation1], 33
      %421 = vst [vmem:[%s420] ss:$2 sm:$0xff] %v361
      %s422 = scalar_lea.vmem [#allocation1], 48
      %423 = vst [vmem:[%s422] ss:$2 sm:$0xff] %v300
      %s424 = scalar_lea.vmem [#allocation1], 49
      %425 = vst [vmem:[%s424] ss:$2 sm:$0xff] %v301
      %v426 = vld.sshfl [vmem:[#allocation1] sm:$0xff pattern:$0x75316420]
      %v427 = vld.sshfl [vmem:[#allocation1 + $0x8] sm:$0xff pattern:$0x75316420]
      %v428 = vld.sshfl [vmem:[#allocation1 + $0x10] sm:$0xff pattern:$0x75316420]
      %v429 = vld.sshfl [vmem:[#allocation1 + $0x20] sm:$0xff pattern:$0x75316420]
      %v430 = vld.sshfl [vmem:[#allocation1 + $0x28] sm:$0xff pattern:$0x75316420]
      %v431 = vld.sshfl [vmem:[#allocation1 + $0x30] sm:$0xff pattern:$0x75316420]
      %438 = vmatpush.msra.mxu0 %v378
      %439 = vmatpush.msra.mxu0 %v377
      %440 = vmatpush.msra.mxu0 %v376
      %441 = vmatpush.msra.mxu0 %v375
      %442 = vmatpush.msra.mxu0 %v374
      %443 = vmatpush.msra.mxu0 %v373
      %444 = vmatpush.msra.mxu0 %v372
      %445 = vmatpush.msra.mxu0 %v371
      %446 = vmatpush.msra.mxu0 %v370
      %447 = vmatpush.msra.mxu0 %v369
      %448 = vmatpush.msra.mxu0 %v368
      %449 = vmatpush.msra.mxu0 %v367
      %450 = vmatpush.msra.mxu0 %v366
      %451 = vmatpush.msra.mxu0 %v365
      %452 = vmatpush.msra.mxu0 %v364
      %453 = vmatpush.msra.mxu0 %v363
      %454 = vmatmul.f32.gmra.mxu0 %v426
      %v455 = vpop.f32.mrf.mxu0
      %v456 = vadd.f32 0.0, %v455
      %457 = vmatmul.f32.gmra.mxu0 %v429
      %v458 = vpop.f32.mrf.mxu0
      %v459 = vadd.f32 0.0, %v458
      %460 = vdwg.mxu0
      %461 = vmatpush.msra.mxu0 %v394
      %462 = vmatpush.msra.mxu0 %v393
      %463 = vmatpush.msra.mxu0 %v392
      %464 = vmatpush.msra.mxu0 %v391
      %465 = vmatpush.msra.mxu0 %v390
      %466 = vmatpush.msra.mxu0 %v389
      %467 = vmatpush.msra.mxu0 %v388
      %468 = vmatpush.msra.mxu0 %v387
      %469 = vmatpush.msra.mxu0 %v386
      %470 = vmatpush.msra.mxu0 %v385
      %471 = vmatpush.msra.mxu0 %v384
      %472 = vmatpush.msra.mxu0 %v383
      %473 = vmatpush.msra.mxu0 %v382
      %474 = vmatpush.msra.mxu0 %v381
      %475 = vmatpush.msra.mxu0 %v380
      %476 = vmatpush.msra.mxu0 %v379
      %477 = vmatmul.f32.gmra.mxu0 %v427
      %v478 = vpop.f32.mrf.mxu0
      %v479 = vadd.f32 %v456, %v478
      %480 = vmatmul.f32.gmra.mxu0 %v430
      %v481 = vpop.f32.mrf.mxu0
      %v482 = vadd.f32 %v459, %v481
      %483 = vdwg.mxu0
      %484 = vmatpush.msra.mxu0 %v410
      %485 = vmatpush.msra.mxu0 %v409
      %486 = vmatpush.msra.mxu0 %v408
      %487 = vmatpush.msra.mxu0 %v407
      %488 = vmatpush.msra.mxu0 %v406
      %489 = vmatpush.msra.mxu0 %v405
      %490 = vmatpush.msra.mxu0 %v404
      %491 = vmatpush.msra.mxu0 %v403
      %492 = vmatpush.msra.mxu0 %v402
      %493 = vmatpush.msra.mxu0 %v401
      %494 = vmatpush.msra.mxu0 %v400
      %495 = vmatpush.msra.mxu0 %v399
      %496 = vmatpush.msra.mxu0 %v398
      %497 = vmatpush.msra.mxu0 %v397
      %498 = vmatpush.msra.mxu0 %v396
      %499 = vmatpush.msra.mxu0 %v395
      %500 = vmatmul.f32.gmra.mxu0 %v428
      %v501 = vpop.f32.mrf.mxu0
      %v502 = vadd.f32 %v479, %v501
      %503 = vmatmul.f32.gmra.mxu0 %v431
      %v504 = vpop.f32.mrf.mxu0
      %v505 = vadd.f32 %v482, %v504
      %506 = vdwg.mxu0
      %507 = vst [vmem:[#allocation1] ss:$2 sm:$0xff] %v308
      %s508 = scalar_lea.vmem [#allocation1], 1
      %509 = vst [vmem:[%s508] ss:$2 sm:$0xff] %v309
      %s510 = scalar_lea.vmem [#allocation1], 16
      %511 = vst [vmem:[%s510] ss:$2 sm:$0xff] %v297
      %s512 = scalar_lea.vmem [#allocation1], 17
      %513 = vst [vmem:[%s512] ss:$2 sm:$0xff] %v298
      %s514 = scalar_lea.vmem [#allocation1], 32
      %515 = vst [vmem:[%s514] ss:$2 sm:$0xff] %v310
      %s516 = scalar_lea.vmem [#allocation1], 33
      %517 = vst [vmem:[%s516] ss:$2 sm:$0xff] %v311
      %s518 = scalar_lea.vmem [#allocation1], 48
      %519 = vst [vmem:[%s518] ss:$2 sm:$0xff] %v299
      %s520 = scalar_lea.vmem [#allocation1], 49
      %521 = vst [vmem:[%s520] ss:$2 sm:$0xff] %v300
      %v522 = vld.sshfl [vmem:[#allocation1] sm:$0xff pattern:$0x75316420]
      %v523 = vld.sshfl [vmem:[#allocation1 + $0x8] sm:$0xff pattern:$0x75316420]
      %v524 = vld.sshfl [vmem:[#allocation1 + $0x10] sm:$0xff pattern:$0x75316420]
      %v525 = vld.sshfl [vmem:[#allocation1 + $0x20] sm:$0xff pattern:$0x75316420]
      %v526 = vld.sshfl [vmem:[#allocation1 + $0x28] sm:$0xff pattern:$0x75316420]
      %v527 = vld.sshfl [vmem:[#allocation1 + $0x30] sm:$0xff pattern:$0x75316420]
      %534 = vmatpush.msra.mxu0 %v327
      %535 = vmatpush.msra.mxu0 %v326
      %536 = vmatpush.msra.mxu0 %v325
      %537 = vmatpush.msra.mxu0 %v324
      %538 = vmatpush.msra.mxu0 %v323
      %539 = vmatpush.msra.mxu0 %v322
      %540 = vmatpush.msra.mxu0 %v321
      %541 = vmatpush.msra.mxu0 %v320
      %542 = vmatpush.msra.mxu0 %v319
      %543 = vmatpush.msra.mxu0 %v318
      %544 = vmatpush.msra.mxu0 %v317
      %545 = vmatpush.msra.mxu0 %v316
      %546 = vmatpush.msra.mxu0 %v315
      %547 = vmatpush.msra.mxu0 %v314
      %548 = vmatpush.msra.mxu0 %v313
      %549 = vmatpush.msra.mxu0 %v312
      %550 = vmatmul.f32.gmra.mxu0 %v522
      %v551 = vpop.f32.mrf.mxu0
      %v552 = vadd.f32 %v502, %v551
      %553 = vmatmul.f32.gmra.mxu0 %v525
      %v554 = vpop.f32.mrf.mxu0
      %v555 = vadd.f32 %v505, %v554
      %556 = vdwg.mxu0
      %557 = vmatpush.msra.mxu0 %v343
      %558 = vmatpush.msra.mxu0 %v342
      %559 = vmatpush.msra.mxu0 %v341
      %560 = vmatpush.msra.mxu0 %v340
      %561 = vmatpush.msra.mxu0 %v339
      %562 = vmatpush.msra.mxu0 %v338
      %563 = vmatpush.msra.mxu0 %v337
      %564 = vmatpush.msra.mxu0 %v336
      %565 = vmatpush.msra.mxu0 %v335
      %566 = vmatpush.msra.mxu0 %v334
      %567 = vmatpush.msra.mxu0 %v333
      %568 = vmatpush.msra.mxu0 %v332
      %569 = vmatpush.msra.mxu0 %v331
      %570 = vmatpush.msra.mxu0 %v330
      %571 = vmatpush.msra.mxu0 %v329
      %572 = vmatpush.msra.mxu0 %v328
      %573 = vmatmul.f32.gmra.mxu0 %v523
      %v574 = vpop.f32.mrf.mxu0
      %v575 = vadd.f32 %v552, %v574
      %576 = vmatmul.f32.gmra.mxu0 %v526
      %v577 = vpop.f32.mrf.mxu0
      %v578 = vadd.f32 %v555, %v577
      %579 = vdwg.mxu0
      %580 = vmatpush.msra.mxu0 %v359
      %581 = vmatpush.msra.mxu0 %v358
      %582 = vmatpush.msra.mxu0 %v357
      %583 = vmatpush.msra.mxu0 %v356
      %584 = vmatpush.msra.mxu0 %v355
      %585 = vmatpush.msra.mxu0 %v354
      %586 = vmatpush.msra.mxu0 %v353
      %587 = vmatpush.msra.mxu0 %v352
      %588 = vmatpush.msra.mxu0 %v351
      %589 = vmatpush.msra.mxu0 %v350
      %590 = vmatpush.msra.mxu0 %v349
      %591 = vmatpush.msra.mxu0 %v348
      %592 = vmatpush.msra.mxu0 %v347
      %593 = vmatpush.msra.mxu0 %v346
      %594 = vmatpush.msra.mxu0 %v345
      %595 = vmatpush.msra.mxu0 %v344
      %596 = vmatmul.f32.gmra.mxu0 %v524
      %v597 = vpop.f32.mrf.mxu0
      %v598 = vadd.f32 %v575, %v597
      %599 = vmatmul.f32.gmra.mxu0 %v527
      %v600 = vpop.f32.mrf.mxu0
      %v601 = vadd.f32 %v578, %v600
      %602 = vdwg.mxu0
      %v603 = vrot.slane %v296, 4
      %v604 = vsel %vm307, %v284, %v603
      %s605 = scalar_lea.vmem %s1, 768
      %v606 = vld [vmem:[%s605] sm:$0xff]
      %v607 = vld [vmem:[%s605 + $0x8] sm:$0xff]
      %v608 = vld [vmem:[%s605 + $0x10] sm:$0xff]
      %v609 = vld [vmem:[%s605 + $0x18] sm:$0xff]
      %v610 = vld [vmem:[%s605 + $0x20] sm:$0xff]
      %v611 = vld [vmem:[%s605 + $0x28] sm:$0xff]
      %v612 = vld [vmem:[%s605 + $0x30] sm:$0xff]
      %v613 = vld [vmem:[%s605 + $0x38] sm:$0xff]
      %v614 = vld [vmem:[%s605 + $0x40] sm:$0xff]
      %v615 = vld [vmem:[%s605 + $0x48] sm:$0xff]
      %v616 = vld [vmem:[%s605 + $0x50] sm:$0xff]
      %v617 = vld [vmem:[%s605 + $0x58] sm:$0xff]
      %v618 = vld [vmem:[%s605 + $0x60] sm:$0xff]
      %v619 = vld [vmem:[%s605 + $0x68] sm:$0xff]
      %v620 = vld [vmem:[%s605 + $0x70] sm:$0xff]
      %v621 = vld [vmem:[%s605 + $0x78] sm:$0xff]
      %v622 = vld [vmem:[%s605 + $0x80] sm:$0xff]
      %v623 = vld [vmem:[%s605 + $0x88] sm:$0xff]
      %v624 = vld [vmem:[%s605 + $0x90] sm:$0xff]
      %v625 = vld [vmem:[%s605 + $0x98] sm:$0xff]
      %v626 = vld [vmem:[%s605 + $0xa0] sm:$0xff]
      %v627 = vld [vmem:[%s605 + $0xa8] sm:$0xff]
      %v628 = vld [vmem:[%s605 + $0xb0] sm:$0xff]
      %v629 = vld [vmem:[%s605 + $0xb8] sm:$0xff]
      %v630 = vld [vmem:[%s605 + $0xc0] sm:$0xff]
      %v631 = vld [vmem:[%s605 + $0xc8] sm:$0xff]
      %v632 = vld [vmem:[%s605 + $0xd0] sm:$0xff]
      %v633 = vld [vmem:[%s605 + $0xd8] sm:$0xff]
      %v634 = vld [vmem:[%s605 + $0xe0] sm:$0xff]
      %v635 = vld [vmem:[%s605 + $0xe8] sm:$0xff]
      %v636 = vld [vmem:[%s605 + $0xf0] sm:$0xff]
      %v637 = vld [vmem:[%s605 + $0xf8] sm:$0xff]
      %v638 = vld [vmem:[%s605 + $0x100] sm:$0xff]
      %v639 = vld [vmem:[%s605 + $0x108] sm:$0xff]
      %v640 = vld [vmem:[%s605 + $0x110] sm:$0xff]
      %v641 = vld [vmem:[%s605 + $0x118] sm:$0xff]
      %v642 = vld [vmem:[%s605 + $0x120] sm:$0xff]
      %v643 = vld [vmem:[%s605 + $0x128] sm:$0xff]
      %v644 = vld [vmem:[%s605 + $0x130] sm:$0xff]
      %v645 = vld [vmem:[%s605 + $0x138] sm:$0xff]
      %v646 = vld [vmem:[%s605 + $0x140] sm:$0xff]
      %v647 = vld [vmem:[%s605 + $0x148] sm:$0xff]
      %v648 = vld [vmem:[%s605 + $0x150] sm:$0xff]
      %v649 = vld [vmem:[%s605 + $0x158] sm:$0xff]
      %v650 = vld [vmem:[%s605 + $0x160] sm:$0xff]
      %v651 = vld [vmem:[%s605 + $0x168] sm:$0xff]
      %v652 = vld [vmem:[%s605 + $0x170] sm:$0xff]
      %v653 = vld [vmem:[%s605 + $0x178] sm:$0xff]
      %654 = vst [vmem:[#allocation1] ss:$2 sm:$0xff] %v310
      %s655 = scalar_lea.vmem [#allocation1], 1
      %656 = vst [vmem:[%s655] ss:$2 sm:$0xff] %v311
      %s657 = scalar_lea.vmem [#allocation1], 16
      %658 = vst [vmem:[%s657] ss:$2 sm:$0xff] %v299
      %s659 = scalar_lea.vmem [#allocation1], 17
      %660 = vst [vmem:[%s659] ss:$2 sm:$0xff] %v300
      %s661 = scalar_lea.vmem [#allocation1], 32
      %662 = vst [vmem:[%s661] ss:$2 sm:$0xff] %v361
      %s663 = scalar_lea.vmem [#allocation1], 33
      %664 = vst [vmem:[%s663] ss:$2 sm:$0xff] %v604
      %s665 = scalar_lea.vmem [#allocation1], 48
      %666 = vst [vmem:[%s665] ss:$2 sm:$0xff] %v301
      %s667 = scalar_lea.vmem [#allocation1], 49
      %668 = vst [vmem:[%s667] ss:$2 sm:$0xff] %v302
      %v669 = vld.sshfl [vmem:[#allocation1] sm:$0xff pattern:$0x75316420]
      %v670 = vld.sshfl [vmem:[#allocation1 + $0x8] sm:$0xff pattern:$0x75316420]
      %v671 = vld.sshfl [vmem:[#allocation1 + $0x10] sm:$0xff pattern:$0x75316420]
      %v672 = vld.sshfl [vmem:[#allocation1 + $0x20] sm:$0xff pattern:$0x75316420]
      %v673 = vld.sshfl [vmem:[#allocation1 + $0x28] sm:$0xff pattern:$0x75316420]
      %v674 = vld.sshfl [vmem:[#allocation1 + $0x30] sm:$0xff pattern:$0x75316420]
      %681 = vmatpush.msra.mxu0 %v621
      %682 = vmatpush.msra.mxu0 %v620
      %683 = vmatpush.msra.mxu0 %v619
      %684 = vmatpush.msra.mxu0 %v618
      %685 = vmatpush.msra.mxu0 %v617
      %686 = vmatpush.msra.mxu0 %v616
      %687 = vmatpush.msra.mxu0 %v615
      %688 = vmatpush.msra.mxu0 %v614
      %689 = vmatpush.msra.mxu0 %v613
      %690 = vmatpush.msra.mxu0 %v612
      %691 = vmatpush.msra.mxu0 %v611
      %692 = vmatpush.msra.mxu0 %v610
      %693 = vmatpush.msra.mxu0 %v609
      %694 = vmatpush.msra.mxu0 %v608
      %695 = vmatpush.msra.mxu0 %v607
      %696 = vmatpush.msra.mxu0 %v606
      %697 = vmatmul.f32.gmra.mxu0 %v669
      %v698 = vpop.f32.mrf.mxu0
      %v699 = vadd.f32 0.0, %v698
      %700 = vmatmul.f32.gmra.mxu0 %v672
      %v701 = vpop.f32.mrf.mxu0
      %v702 = vadd.f32 0.0, %v701
      %703 = vdwg.mxu0
      %704 = vmatpush.msra.mxu0 %v637
      %705 = vmatpush.msra.mxu0 %v636
      %706 = vmatpush.msra.mxu0 %v635
      %707 = vmatpush.msra.mxu0 %v634
      %708 = vmatpush.msra.mxu0 %v633
      %709 = vmatpush.msra.mxu0 %v632
      %710 = vmatpush.msra.mxu0 %v631
      %711 = vmatpush.msra.mxu0 %v630
      %712 = vmatpush.msra.mxu0 %v629
      %713 = vmatpush.msra.mxu0 %v628
      %714 = vmatpush.msra.mxu0 %v627
      %715 = vmatpush.msra.mxu0 %v626
      %716 = vmatpush.msra.mxu0 %v625
      %717 = vmatpush.msra.mxu0 %v624
      %718 = vmatpush.msra.mxu0 %v623
      %719 = vmatpush.msra.mxu0 %v622
      %720 = vmatmul.f32.gmra.mxu0 %v670
      %v721 = vpop.f32.mrf.mxu0
      %v722 = vadd.f32 %v699, %v721
      %723 = vmatmul.f32.gmra.mxu0 %v673
      %v724 = vpop.f32.mrf.mxu0
      %v725 = vadd.f32 %v702, %v724
      %726 = vdwg.mxu0
      %727 = vmatpush.msra.mxu0 %v653
      %728 = vmatpush.msra.mxu0 %v652
      %729 = vmatpush.msra.mxu0 %v651
      %730 = vmatpush.msra.mxu0 %v650
      %731 = vmatpush.msra.mxu0 %v649
      %732 = vmatpush.msra.mxu0 %v648
      %733 = vmatpush.msra.mxu0 %v647
      %734 = vmatpush.msra.mxu0 %v646
      %735 = vmatpush.msra.mxu0 %v645
      %736 = vmatpush.msra.mxu0 %v644
      %737 = vmatpush.msra.mxu0 %v643
      %738 = vmatpush.msra.mxu0 %v642
      %739 = vmatpush.msra.mxu0 %v641
      %740 = vmatpush.msra.mxu0 %v640
      %741 = vmatpush.msra.mxu0 %v639
      %742 = vmatpush.msra.mxu0 %v638
      %743 = vmatmul.f32.gmra.mxu0 %v671
      %v744 = vpop.f32.mrf.mxu0
      %v745 = vadd.f32 %v722, %v744
      %746 = vmatmul.f32.gmra.mxu0 %v674
      %v747 = vpop.f32.mrf.mxu0
      %v748 = vadd.f32 %v725, %v747
      %749 = vdwg.mxu0
      %v750 = vadd.f32 %v598, %v745
      %v751 = vadd.f32 %v601, %v748
      %v752 = vld [vmem:[%s2] sm:$0x1]
      %v754 = vperm.slane %v752, 0
      %v756 = vmul.f32 %v750, %v754
      %v757 = vmul.f32 %v751, %v754
      %v758 = vld [vmem:[%s3] sm:$0x1]
      %v760 = vperm.slane %v758, 0
      %v762 = vadd.f32 %v756, %v760
      %v763 = vadd.f32 %v757, %v760
      %v764 = vmax.f32 %v762, 0.0
      %v765 = vmax.f32 %v763, 0.0
      %766 = vst [vmem:[#allocation2] sm:$0x3f] 0.0
      %767 = vst [vmem:[#allocation2 + $0x8] sm:$0x3f] 0.0
      %768 = vst [vmem:[#allocation2 + $0x10] sm:$0x3f] 0.0
      %769 = vst [vmem:[#allocation2 + $0x18] sm:$0x3f] 0.0
      %770 = vst [vmem:[#allocation2 + $0x20] sm:$0x3f] 0.0
      %771 = vst [vmem:[#allocation2 + $0x28] sm:$0x3f] 0.0
      %v774 = vrot.slane %v764, 4
      %v775 = vrot.slane %v765, 4
      %s778 = scalar_lea.vmem [#allocation2], 8
      %779 = vst [vmem:[%s778 + $0x1] sm:$0xf] %v764
      %780 = vst [vmem:[%s778 + $0x9] sm:$0xf] %v774
      %781 = vst [vmem:[%s778 + $0x11] sm:$0xf] %v765
      %782 = vst [vmem:[%s778 + $0x19] sm:$0xf] %v775
      %v783 = vld [vmem:[#allocation2] sm:$0x3f]
      %v784 = vld [vmem:[#allocation2 + $0x8] sm:$0x3f]
      %v785 = vld [vmem:[#allocation2 + $0x10] sm:$0x3f]
      %v786 = vld [vmem:[#allocation2 + $0x18] sm:$0x3f]
      %v787 = vld [vmem:[#allocation2 + $0x20] sm:$0x3f]
      %v788 = vld [vmem:[#allocation2 + $0x28] sm:$0x3f]
      %v795 = vrot.slane %v783, 1
      %v796 = vrot.slane %v784, 1
      %v797 = vrot.slane %v785, 1
      %v798 = vrot.slane %v786, 1
      %v799 = vrot.slane %v787, 1
      %v800 = vrot.slane %v788, 1
      %v801 = vrot.slane %v783, 2
      %v802 = vrot.slane %v784, 2
      %v803 = vrot.slane %v785, 2
      %v804 = vrot.slane %v786, 2
      %v805 = vrot.slane %v787, 2
      %v806 = vrot.slane %v788, 2
      %v807 = vrot.slane %v795, 4
      %v808 = vrot.slane %v796, 4
      %v809 = vrot.slane %v797, 4
      %v810 = vrot.slane %v798, 4
      %v811 = vsel %vm307, %v783, %v807
      %v812 = vsel %vm307, %v784, %v808
      %v813 = vsel %vm307, %v785, %v809
      %v814 = vsel %vm307, %v786, %v810
      %v815 = vld [vmem:[%s4] sm:$0xff]
      %v816 = vld [vmem:[%s4 + $0x8] sm:$0xff]
      %v817 = vld [vmem:[%s4 + $0x10] sm:$0xff]
      %v818 = vld [vmem:[%s4 + $0x18] sm:$0xff]
      %v819 = vld [vmem:[%s4 + $0x20] sm:$0xff]
      %v820 = vld [vmem:[%s4 + $0x28] sm:$0xff]
      %v821 = vld [vmem:[%s4 + $0x30] sm:$0xff]
      %v822 = vld [vmem:[%s4 + $0x38] sm:$0xff]
      %v823 = vld [vmem:[%s4 + $0x40] sm:$0xff]
      %v824 = vld [vmem:[%s4 + $0x48] sm:$0xff]
      %v825 = vld [vmem:[%s4 + $0x50] sm:$0xff]
      %v826 = vld [vmem:[%s4 + $0x58] sm:$0xff]
      %v827 = vld [vmem:[%s4 + $0x60] sm:$0xff]
      %v828 = vld [vmem:[%s4 + $0x68] sm:$0xff]
      %v829 = vld [vmem:[%s4 + $0x70] sm:$0xff]
      %v830 = vld [vmem:[%s4 + $0x78] sm:$0xff]
      %v831 = vld [vmem:[%s4 + $0x80] sm:$0xff]
      %v832 = vld [vmem:[%s4 + $0x88] sm:$0xff]
      %v833 = vld [vmem:[%s4 + $0x90] sm:$0xff]
      %v834 = vld [vmem:[%s4 + $0x98] sm:$0xff]
      %v835 = vld [vmem:[%s4 + $0xa0] sm:$0xff]
      %v836 = vld [vmem:[%s4 + $0xa8] sm:$0xff]
      %v837 = vld [vmem:[%s4 + $0xb0] sm:$0xff]
      %v838 = vld [vmem:[%s4 + $0xb8] sm:$0xff]
      %v839 = vld [vmem:[%s4 + $0xc0] sm:$0xff]
      %v840 = vld [vmem:[%s4 + $0xc8] sm:$0xff]
      %v841 = vld [vmem:[%s4 + $0xd0] sm:$0xff]
      %v842 = vld [vmem:[%s4 + $0xd8] sm:$0xff]
      %v843 = vld [vmem:[%s4 + $0xe0] sm:$0xff]
      %v844 = vld [vmem:[%s4 + $0xe8] sm:$0xff]
      %v845 = vld [vmem:[%s4 + $0xf0] sm:$0xff]
      %v846 = vld [vmem:[%s4 + $0xf8] sm:$0xff]
      %v847 = vld [vmem:[%s4 + $0x100] sm:$0xff]
      %v848 = vld [vmem:[%s4 + $0x108] sm:$0xff]
      %v849 = vld [vmem:[%s4 + $0x110] sm:$0xff]
      %v850 = vld [vmem:[%s4 + $0x118] sm:$0xff]
      %v851 = vld [vmem:[%s4 + $0x120] sm:$0xff]
      %v852 = vld [vmem:[%s4 + $0x128] sm:$0xff]
      %v853 = vld [vmem:[%s4 + $0x130] sm:$0xff]
      %v854 = vld [vmem:[%s4 + $0x138] sm:$0xff]
      %v855 = vld [vmem:[%s4 + $0x140] sm:$0xff]
      %v856 = vld [vmem:[%s4 + $0x148] sm:$0xff]
      %v857 = vld [vmem:[%s4 + $0x150] sm:$0xff]
      %v858 = vld [vmem:[%s4 + $0x158] sm:$0xff]
      %v859 = vld [vmem:[%s4 + $0x160] sm:$0xff]
      %v860 = vld [vmem:[%s4 + $0x168] sm:$0xff]
      %v861 = vld [vmem:[%s4 + $0x170] sm:$0xff]
      %v862 = vld [vmem:[%s4 + $0x178] sm:$0xff]
      %v863 = vrot.slane %v799, 4
      %v864 = vsel %vm307, %v787, %v863
      %s865 = scalar_lea.vmem %s4, 384
      %v866 = vld [vmem:[%s865] sm:$0xff]
      %v867 = vld [vmem:[%s865 + $0x8] sm:$0xff]
      %v868 = vld [vmem:[%s865 + $0x10] sm:$0xff]
      %v869 = vld [vmem:[%s865 + $0x18] sm:$0xff]
      %v870 = vld [vmem:[%s865 + $0x20] sm:$0xff]
      %v871 = vld [vmem:[%s865 + $0x28] sm:$0xff]
      %v872 = vld [vmem:[%s865 + $0x30] sm:$0xff]
      %v873 = vld [vmem:[%s865 + $0x38] sm:$0xff]
      %v874 = vld [vmem:[%s865 + $0x40] sm:$0xff]
      %v875 = vld [vmem:[%s865 + $0x48] sm:$0xff]
      %v876 = vld [vmem:[%s865 + $0x50] sm:$0xff]
      %v877 = vld [vmem:[%s865 + $0x58] sm:$0xff]
      %v878 = vld [vmem:[%s865 + $0x60] sm:$0xff]
      %v879 = vld [vmem:[%s865 + $0x68] sm:$0xff]
      %v880 = vld [vmem:[%s865 + $0x70] sm:$0xff]
      %v881 = vld [vmem:[%s865 + $0x78] sm:$0xff]
      %v882 = vld [vmem:[%s865 + $0x80] sm:$0xff]
      %v883 = vld [vmem:[%s865 + $0x88] sm:$0xff]
      %v884 = vld [vmem:[%s865 + $0x90] sm:$0xff]
      %v885 = vld [vmem:[%s865 + $0x98] sm:$0xff]
      %v886 = vld [vmem:[%s865 + $0xa0] sm:$0xff]
      %v887 = vld [vmem:[%s865 + $0xa8] sm:$0xff]
      %v888 = vld [vmem:[%s865 + $0xb0] sm:$0xff]
      %v889 = vld [vmem:[%s865 + $0xb8] sm:$0xff]
      %v890 = vld [vmem:[%s865 + $0xc0] sm:$0xff]
      %v891 = vld [vmem:[%s865 + $0xc8] sm:$0xff]
      %v892 = vld [vmem:[%s865 + $0xd0] sm:$0xff]
      %v893 = vld [vmem:[%s865 + $0xd8] sm:$0xff]
      %v894 = vld [vmem:[%s865 + $0xe0] sm:$0xff]
      %v895 = vld [vmem:[%s865 + $0xe8] sm:$0xff]
      %v896 = vld [vmem:[%s865 + $0xf0] sm:$0xff]
      %v897 = vld [vmem:[%s865 + $0xf8] sm:$0xff]
      %v898 = vld [vmem:[%s865 + $0x100] sm:$0xff]
      %v899 = vld [vmem:[%s865 + $0x108] sm:$0xff]
      %v900 = vld [vmem:[%s865 + $0x110] sm:$0xff]
      %v901 = vld [vmem:[%s865 + $0x118] sm:$0xff]
      %v902 = vld [vmem:[%s865 + $0x120] sm:$0xff]
      %v903 = vld [vmem:[%s865 + $0x128] sm:$0xff]
      %v904 = vld [vmem:[%s865 + $0x130] sm:$0xff]
      %v905 = vld [vmem:[%s865 + $0x138] sm:$0xff]
      %v906 = vld [vmem:[%s865 + $0x140] sm:$0xff]
      %v907 = vld [vmem:[%s865 + $0x148] sm:$0xff]
      %v908 = vld [vmem:[%s865 + $0x150] sm:$0xff]
      %v909 = vld [vmem:[%s865 + $0x158] sm:$0xff]
      %v910 = vld [vmem:[%s865 + $0x160] sm:$0xff]
      %v911 = vld [vmem:[%s865 + $0x168] sm:$0xff]
      %v912 = vld [vmem:[%s865 + $0x170] sm:$0xff]
      %v913 = vld [vmem:[%s865 + $0x178] sm:$0xff]
      %914 = vst [vmem:[#allocation1] ss:$2 sm:$0xff] %v812
      %s915 = scalar_lea.vmem [#allocation1], 1
      %916 = vst [vmem:[%s915] ss:$2 sm:$0xff] %v813
      %s917 = scalar_lea.vmem [#allocation1], 16
      %918 = vst [vmem:[%s917] ss:$2 sm:$0xff] %v802
      %s919 = scalar_lea.vmem [#allocation1], 17
      %920 = vst [vmem:[%s919] ss:$2 sm:$0xff] %v803
      %s921 = scalar_lea.vmem [#allocation1], 32
      %922 = vst [vmem:[%s921] ss:$2 sm:$0xff] %v814
      %s923 = scalar_lea.vmem [#allocation1], 33
      %924 = vst [vmem:[%s923] ss:$2 sm:$0xff] %v864
      %s925 = scalar_lea.vmem [#allocation1], 48
      %926 = vst [vmem:[%s925] ss:$2 sm:$0xff] %v804
      %s927 = scalar_lea.vmem [#allocation1], 49
      %928 = vst [vmem:[%s927] ss:$2 sm:$0xff] %v805
      %v929 = vld.sshfl [vmem:[#allocation1] sm:$0xff pattern:$0x75316420]
      %v930 = vld.sshfl [vmem:[#allocation1 + $0x8] sm:$0xff pattern:$0x75316420]
      %v931 = vld.sshfl [vmem:[#allocation1 + $0x10] sm:$0xff pattern:$0x75316420]
      %v932 = vld.sshfl [vmem:[#allocation1 + $0x20] sm:$0xff pattern:$0x75316420]
      %v933 = vld.sshfl [vmem:[#allocation1 + $0x28] sm:$0xff pattern:$0x75316420]
      %v934 = vld.sshfl [vmem:[#allocation1 + $0x30] sm:$0xff pattern:$0x75316420]
      %941 = vmatpush.msra.mxu0 %v881
      %942 = vmatpush.msra.mxu0 %v880
      %943 = vmatpush.msra.mxu0 %v879
      %944 = vmatpush.msra.mxu0 %v878
      %945 = vmatpush.msra.mxu0 %v877
      %946 = vmatpush.msra.mxu0 %v876
      %947 = vmatpush.msra.mxu0 %v875
      %948 = vmatpush.msra.mxu0 %v874
      %949 = vmatpush.msra.mxu0 %v873
      %950 = vmatpush.msra.mxu0 %v872
      %951 = vmatpush.msra.mxu0 %v871
      %952 = vmatpush.msra.mxu0 %v870
      %953 = vmatpush.msra.mxu0 %v869
      %954 = vmatpush.msra.mxu0 %v868
      %955 = vmatpush.msra.mxu0 %v867
      %956 = vmatpush.msra.mxu0 %v866
      %957 = vmatmul.f32.gmra.mxu0 %v929
      %v958 = vpop.f32.mrf.mxu0
      %v959 = vadd.f32 0.0, %v958
      %960 = vmatmul.f32.gmra.mxu0 %v932
      %v961 = vpop.f32.mrf.mxu0
      %v962 = vadd.f32 0.0, %v961
      %963 = vdwg.mxu0
      %964 = vmatpush.msra.mxu0 %v897
      %965 = vmatpush.msra.mxu0 %v896
      %966 = vmatpush.msra.mxu0 %v895
      %967 = vmatpush.msra.mxu0 %v894
      %968 = vmatpush.msra.mxu0 %v893
      %969 = vmatpush.msra.mxu0 %v892
      %970 = vmatpush.msra.mxu0 %v891
      %971 = vmatpush.msra.mxu0 %v890
      %972 = vmatpush.msra.mxu0 %v889
      %973 = vmatpush.msra.mxu0 %v888
      %974 = vmatpush.msra.mxu0 %v887
      %975 = vmatpush.msra.mxu0 %v886
      %976 = vmatpush.msra.mxu0 %v885
      %977 = vmatpush.msra.mxu0 %v884
      %978 = vmatpush.msra.mxu0 %v883
      %979 = vmatpush.msra.mxu0 %v882
      %980 = vmatmul.f32.gmra.mxu0 %v930
      %v981 = vpop.f32.mrf.mxu0
      %v982 = vadd.f32 %v959, %v981
      %983 = vmatmul.f32.gmra.mxu0 %v933
      %v984 = vpop.f32.mrf.mxu0
      %v985 = vadd.f32 %v962, %v984
      %986 = vdwg.mxu0
      %987 = vmatpush.msra.mxu0 %v913
      %988 = vmatpush.msra.mxu0 %v912
      %989 = vmatpush.msra.mxu0 %v911
      %990 = vmatpush.msra.mxu0 %v910
      %991 = vmatpush.msra.mxu0 %v909
      %992 = vmatpush.msra.mxu0 %v908
      %993 = vmatpush.msra.mxu0 %v907
      %994 = vmatpush.msra.mxu0 %v906
      %995 = vmatpush.msra.mxu0 %v905
      %996 = vmatpush.msra.mxu0 %v904
      %997 = vmatpush.msra.mxu0 %v903
      %998 = vmatpush.msra.mxu0 %v902
      %999 = vmatpush.msra.mxu0 %v901
      %1000 = vmatpush.msra.mxu0 %v900
      %1001 = vmatpush.msra.mxu0 %v899
      %1002 = vmatpush.msra.mxu0 %v898
      %1003 = vmatmul.f32.gmra.mxu0 %v931
      %v1004 = vpop.f32.mrf.mxu0
      %v1005 = vadd.f32 %v982, %v1004
      %1006 = vmatmul.f32.gmra.mxu0 %v934
      %v1007 = vpop.f32.mrf.mxu0
      %v1008 = vadd.f32 %v985, %v1007
      %1009 = vdwg.mxu0
      %1010 = vst [vmem:[#allocation1] ss:$2 sm:$0xff] %v811
      %s1011 = scalar_lea.vmem [#allocation1], 1
      %1012 = vst [vmem:[%s1011] ss:$2 sm:$0xff] %v812
      %s1013 = scalar_lea.vmem [#allocation1], 16
      %1014 = vst [vmem:[%s1013] ss:$2 sm:$0xff] %v801
      %s1015 = scalar_lea.vmem [#allocation1], 17
      %1016 = vst [vmem:[%s1015] ss:$2 sm:$0xff] %v802
      %s1017 = scalar_lea.vmem [#allocation1], 32
      %1018 = vst [vmem:[%s1017] ss:$2 sm:$0xff] %v813
      %s1019 = scalar_lea.vmem [#allocation1], 33
      %1020 = vst [vmem:[%s1019] ss:$2 sm:$0xff] %v814
      %s1021 = scalar_lea.vmem [#allocation1], 48
      %1022 = vst [vmem:[%s1021] ss:$2 sm:$0xff] %v803
      %s1023 = scalar_lea.vmem [#allocation1], 49
      %1024 = vst [vmem:[%s1023] ss:$2 sm:$0xff] %v804
      %v1025 = vld.sshfl [vmem:[#allocation1] sm:$0xff pattern:$0x75316420]
      %v1026 = vld.sshfl [vmem:[#allocation1 + $0x8] sm:$0xff pattern:$0x75316420]
      %v1027 = vld.sshfl [vmem:[#allocation1 + $0x10] sm:$0xff pattern:$0x75316420]
      %v1028 = vld.sshfl [vmem:[#allocation1 + $0x20] sm:$0xff pattern:$0x75316420]
      %v1029 = vld.sshfl [vmem:[#allocation1 + $0x28] sm:$0xff pattern:$0x75316420]
      %v1030 = vld.sshfl [vmem:[#allocation1 + $0x30] sm:$0xff pattern:$0x75316420]
      %1037 = vmatpush.msra.mxu0 %v830
      %1038 = vmatpush.msra.mxu0 %v829
      %1039 = vmatpush.msra.mxu0 %v828
      %1040 = vmatpush.msra.mxu0 %v827
      %1041 = vmatpush.msra.mxu0 %v826
      %1042 = vmatpush.msra.mxu0 %v825
      %1043 = vmatpush.msra.mxu0 %v824
      %1044 = vmatpush.msra.mxu0 %v823
      %1045 = vmatpush.msra.mxu0 %v822
      %1046 = vmatpush.msra.mxu0 %v821
      %1047 = vmatpush.msra.mxu0 %v820
      %1048 = vmatpush.msra.mxu0 %v819
      %1049 = vmatpush.msra.mxu0 %v818
      %1050 = vmatpush.msra.mxu0 %v817
      %1051 = vmatpush.msra.mxu0 %v816
      %1052 = vmatpush.msra.mxu0 %v815
      %1053 = vmatmul.f32.gmra.mxu0 %v1025
      %v1054 = vpop.f32.mrf.mxu0
      %v1055 = vadd.f32 %v1005, %v1054
      %1056 = vmatmul.f32.gmra.mxu0 %v1028
      %v1057 = vpop.f32.mrf.mxu0
      %v1058 = vadd.f32 %v1008, %v1057
      %1059 = vdwg.mxu0
      %1060 = vmatpush.msra.mxu0 %v846
      %1061 = vmatpush.msra.mxu0 %v845
      %1062 = vmatpush.msra.mxu0 %v844
      %1063 = vmatpush.msra.mxu0 %v843
      %1064 = vmatpush.msra.mxu0 %v842
      %1065 = vmatpush.msra.mxu0 %v841
      %1066 = vmatpush.msra.mxu0 %v840
      %1067 = vmatpush.msra.mxu0 %v839
      %1068 = vmatpush.msra.mxu0 %v838
      %1069 = vmatpush.msra.mxu0 %v837
      %1070 = vmatpush.msra.mxu0 %v836
      %1071 = vmatpush.msra.mxu0 %v835
      %1072 = vmatpush.msra.mxu0 %v834
      %1073 = vmatpush.msra.mxu0 %v833
      %1074 = vmatpush.msra.mxu0 %v832
      %1075 = vmatpush.msra.mxu0 %v831
      %1076 = vmatmul.f32.gmra.mxu0 %v1026
      %v1077 = vpop.f32.mrf.mxu0
      %v1078 = vadd.f32 %v1055, %v1077
      %1079 = vmatmul.f32.gmra.mxu0 %v1029
      %v1080 = vpop.f32.mrf.mxu0
      %v1081 = vadd.f32 %v1058, %v1080
      %1082 = vdwg.mxu0
      %1083 = vmatpush.msra.mxu0 %v862
      %1084 = vmatpush.msra.mxu0 %v861
      %1085 = vmatpush.msra.mxu0 %v860
      %1086 = vmatpush.msra.mxu0 %v859
      %1087 = vmatpush.msra.mxu0 %v858
      %1088 = vmatpush.msra.mxu0 %v857
      %1089 = vmatpush.msra.mxu0 %v856
      %1090 = vmatpush.msra.mxu0 %v855
      %1091 = vmatpush.msra.mxu0 %v854
      %1092 = vmatpush.msra.mxu0 %v853
      %1093 = vmatpush.msra.mxu0 %v852
      %1094 = vmatpush.msra.mxu0 %v851
      %1095 = vmatpush.msra.mxu0 %v850
      %1096 = vmatpush.msra.mxu0 %v849
      %1097 = vmatpush.msra.mxu0 %v848
      %1098 = vmatpush.msra.mxu0 %v847
      %1099 = vmatmul.f32.gmra.mxu0 %v1027
      %v1100 = vpop.f32.mrf.mxu0
      %v1101 = vadd.f32 %v1078, %v1100
      %1102 = vmatmul.f32.gmra.mxu0 %v1030
      %v1103 = vpop.f32.mrf.mxu0
      %v1104 = vadd.f32 %v1081, %v1103
      %1105 = vdwg.mxu0
      %v1106 = vrot.slane %v800, 4
      %v1107 = vsel %vm307, %v788, %v1106
      %s1108 = scalar_lea.vmem %s4, 768
      %v1109 = vld [vmem:[%s1108] sm:$0xff]
      %v1110 = vld [vmem:[%s1108 + $0x8] sm:$0xff]
      %v1111 = vld [vmem:[%s1108 + $0x10] sm:$0xff]
      %v1112 = vld [vmem:[%s1108 + $0x18] sm:$0xff]
      %v1113 = vld [vmem:[%s1108 + $0x20] sm:$0xff]
      %v1114 = vld [vmem:[%s1108 + $0x28] sm:$0xff]
      %v1115 = vld [vmem:[%s1108 + $0x30] sm:$0xff]
      %v1116 = vld [vmem:[%s1108 + $0x38] sm:$0xff]
      %v1117 = vld [vmem:[%s1108 + $0x40] sm:$0xff]
      %v1118 = vld [vmem:[%s1108 + $0x48] sm:$0xff]
      %v1119 = vld [vmem:[%s1108 + $0x50] sm:$0xff]
      %v1120 = vld [vmem:[%s1108 + $0x58] sm:$0xff]
      %v1121 = vld [vmem:[%s1108 + $0x60] sm:$0xff]
      %v1122 = vld [vmem:[%s1108 + $0x68] sm:$0xff]
      %v1123 = vld [vmem:[%s1108 + $0x70] sm:$0xff]
      %v1124 = vld [vmem:[%s1108 + $0x78] sm:$0xff]
      %v1125 = vld [vmem:[%s1108 + $0x80] sm:$0xff]
      %v1126 = vld [vmem:[%s1108 + $0x88] sm:$0xff]
      %v1127 = vld [vmem:[%s1108 + $0x90] sm:$0xff]
      %v1128 = vld [vmem:[%s1108 + $0x98] sm:$0xff]
      %v1129 = vld [vmem:[%s1108 + $0xa0] sm:$0xff]
      %v1130 = vld [vmem:[%s1108 + $0xa8] sm:$0xff]
      %v1131 = vld [vmem:[%s1108 + $0xb0] sm:$0xff]
      %v1132 = vld [vmem:[%s1108 + $0xb8] sm:$0xff]
      %v1133 = vld [vmem:[%s1108 + $0xc0] sm:$0xff]
      %v1134 = vld [vmem:[%s1108 + $0xc8] sm:$0xff]
      %v1135 = vld [vmem:[%s1108 + $0xd0] sm:$0xff]
      %v1136 = vld [vmem:[%s1108 + $0xd8] sm:$0xff]
      %v1137 = vld [vmem:[%s1108 + $0xe0] sm:$0xff]
      %v1138 = vld [vmem:[%s1108 + $0xe8] sm:$0xff]
      %v1139 = vld [vmem:[%s1108 + $0xf0] sm:$0xff]
      %v1140 = vld [vmem:[%s1108 + $0xf8] sm:$0xff]
      %v1141 = vld [vmem:[%s1108 + $0x100] sm:$0xff]
      %v1142 = vld [vmem:[%s1108 + $0x108] sm:$0xff]
      %v1143 = vld [vmem:[%s1108 + $0x110] sm:$0xff]
      %v1144 = vld [vmem:[%s1108 + $0x118] sm:$0xff]
      %v1145 = vld [vmem:[%s1108 + $0x120] sm:$0xff]
      %v1146 = vld [vmem:[%s1108 + $0x128] sm:$0xff]
      %v1147 = vld [vmem:[%s1108 + $0x130] sm:$0xff]
      %v1148 = vld [vmem:[%s1108 + $0x138] sm:$0xff]
      %v1149 = vld [vmem:[%s1108 + $0x140] sm:$0xff]
      %v1150 = vld [vmem:[%s1108 + $0x148] sm:$0xff]
      %v1151 = vld [vmem:[%s1108 + $0x150] sm:$0xff]
      %v1152 = vld [vmem:[%s1108 + $0x158] sm:$0xff]
      %v1153 = vld [vmem:[%s1108 + $0x160] sm:$0xff]
      %v1154 = vld [vmem:[%s1108 + $0x168] sm:$0xff]
      %v1155 = vld [vmem:[%s1108 + $0x170] sm:$0xff]
      %v1156 = vld [vmem:[%s1108 + $0x178] sm:$0xff]
      %1157 = vst [vmem:[#allocation1] ss:$2 sm:$0xff] %v813
      %s1158 = scalar_lea.vmem [#allocation1], 1
      %1159 = vst [vmem:[%s1158] ss:$2 sm:$0xff] %v814
      %s1160 = scalar_lea.vmem [#allocation1], 16
      %1161 = vst [vmem:[%s1160] ss:$2 sm:$0xff] %v803
      %s1162 = scalar_lea.vmem [#allocation1], 17
      %1163 = vst [vmem:[%s1162] ss:$2 sm:$0xff] %v804
      %s1164 = scalar_lea.vmem [#allocation1], 32
      %1165 = vst [vmem:[%s1164] ss:$2 sm:$0xff] %v864
      %s1166 = scalar_lea.vmem [#allocation1], 33
      %1167 = vst [vmem:[%s1166] ss:$2 sm:$0xff] %v1107
      %s1168 = scalar_lea.vmem [#allocation1], 48
      %1169 = vst [vmem:[%s1168] ss:$2 sm:$0xff] %v805
      %s1170 = scalar_lea.vmem [#allocation1], 49
      %1171 = vst [vmem:[%s1170] ss:$2 sm:$0xff] %v806
      %v1172 = vld.sshfl [vmem:[#allocation1] sm:$0xff pattern:$0x75316420]
      %v1173 = vld.sshfl [vmem:[#allocation1 + $0x8] sm:$0xff pattern:$0x75316420]
      %v1174 = vld.sshfl [vmem:[#allocation1 + $0x10] sm:$0xff pattern:$0x75316420]
      %v1175 = vld.sshfl [vmem:[#allocation1 + $0x20] sm:$0xff pattern:$0x75316420]
      %v1176 = vld.sshfl [vmem:[#allocation1 + $0x28] sm:$0xff pattern:$0x75316420]
      %v1177 = vld.sshfl [vmem:[#allocation1 + $0x30] sm:$0xff pattern:$0x75316420]
      %1184 = vmatpush.msra.mxu0 %v1124
      %1185 = vmatpush.msra.mxu0 %v1123
      %1186 = vmatpush.msra.mxu0 %v1122
      %1187 = vmatpush.msra.mxu0 %v1121
      %1188 = vmatpush.msra.mxu0 %v1120
      %1189 = vmatpush.msra.mxu0 %v1119
      %1190 = vmatpush.msra.mxu0 %v1118
      %1191 = vmatpush.msra.mxu0 %v1117
      %1192 = vmatpush.msra.mxu0 %v1116
      %1193 = vmatpush.msra.mxu0 %v1115
      %1194 = vmatpush.msra.mxu0 %v1114
      %1195 = vmatpush.msra.mxu0 %v1113
      %1196 = vmatpush.msra.mxu0 %v1112
      %1197 = vmatpush.msra.mxu0 %v1111
      %1198 = vmatpush.msra.mxu0 %v1110
      %1199 = vmatpush.msra.mxu0 %v1109
      %1200 = vmatmul.f32.gmra.mxu0 %v1172
      %v1201 = vpop.f32.mrf.mxu0
      %v1202 = vadd.f32 0.0, %v1201
      %1203 = vmatmul.f32.gmra.mxu0 %v1175
      %v1204 = vpop.f32.mrf.mxu0
      %v1205 = vadd.f32 0.0, %v1204
      %1206 = vdwg.mxu0
      %1207 = vmatpush.msra.mxu0 %v1140
      %1208 = vmatpush.msra.mxu0 %v1139
      %1209 = vmatpush.msra.mxu0 %v1138
      %1210 = vmatpush.msra.mxu0 %v1137
      %1211 = vmatpush.msra.mxu0 %v1136
      %1212 = vmatpush.msra.mxu0 %v1135
      %1213 = vmatpush.msra.mxu0 %v1134
      %1214 = vmatpush.msra.mxu0 %v1133
      %1215 = vmatpush.msra.mxu0 %v1132
      %1216 = vmatpush.msra.mxu0 %v1131
      %1217 = vmatpush.msra.mxu0 %v1130
      %1218 = vmatpush.msra.mxu0 %v1129
      %1219 = vmatpush.msra.mxu0 %v1128
      %1220 = vmatpush.msra.mxu0 %v1127
      %1221 = vmatpush.msra.mxu0 %v1126
      %1222 = vmatpush.msra.mxu0 %v1125
      %1223 = vmatmul.f32.gmra.mxu0 %v1173
      %v1224 = vpop.f32.mrf.mxu0
      %v1225 = vadd.f32 %v1202, %v1224
      %1226 = vmatmul.f32.gmra.mxu0 %v1176
      %v1227 = vpop.f32.mrf.mxu0
      %v1228 = vadd.f32 %v1205, %v1227
      %1229 = vdwg.mxu0
      %1230 = vmatpush.msra.mxu0 %v1156
      %1231 = vmatpush.msra.mxu0 %v1155
      %1232 = vmatpush.msra.mxu0 %v1154
      %1233 = vmatpush.msra.mxu0 %v1153
      %1234 = vmatpush.msra.mxu0 %v1152
      %1235 = vmatpush.msra.mxu0 %v1151
      %1236 = vmatpush.msra.mxu0 %v1150
      %1237 = vmatpush.msra.mxu0 %v1149
      %1238 = vmatpush.msra.mxu0 %v1148
      %1239 = vmatpush.msra.mxu0 %v1147
      %1240 = vmatpush.msra.mxu0 %v1146
      %1241 = vmatpush.msra.mxu0 %v1145
      %1242 = vmatpush.msra.mxu0 %v1144
      %1243 = vmatpush.msra.mxu0 %v1143
      %1244 = vmatpush.msra.mxu0 %v1142
      %1245 = vmatpush.msra.mxu0 %v1141
      %1246 = vmatmul.f32.gmra.mxu0 %v1174
      %v1247 = vpop.f32.mrf.mxu0
      %v1248 = vadd.f32 %v1225, %v1247
      %1249 = vmatmul.f32.gmra.mxu0 %v1177
      %v1250 = vpop.f32.mrf.mxu0
      %v1251 = vadd.f32 %v1228, %v1250
      %1252 = vdwg.mxu0
      %v1253 = vadd.f32 %v1101, %v1248
      %v1254 = vadd.f32 %v1104, %v1251
      %v1255 = vld [vmem:[%s5] sm:$0x1]
      %v1257 = vperm.slane %v1255, 0
      %v1259 = vmul.f32 %v1253, %v1257
      %v1260 = vmul.f32 %v1254, %v1257
      %v1261 = vld [vmem:[%s6] sm:$0x1]
      %v1263 = vperm.slane %v1261, 0
      %v1265 = vadd.f32 %v1259, %v1263
      %v1266 = vadd.f32 %v1260, %v1263
      %v1267 = vrot.slane %v280, 4
      %v1268 = vrot.slane %v281, 4
      %v1269 = vrot.slane %v282, 4
      %v1270 = vrot.slane %v283, 4
      %vm1271 = vcmask 1042432
      %vm1272 = vcmask 1046532
      %vm1273 = vmor %vm1271, %vm1272
      %v1274 = vrot.slane %v280, 5
      %v1275 = vrot.slane %v1274, 4
      %v1276 = vrot.slane %v1267, 5
      %v1277 = vsel %vm1273, %v1275, %v1276
      %v1278 = vrot.slane %v281, 5
      %v1279 = vrot.slane %v1278, 4
      %v1280 = vrot.slane %v1268, 5
      %v1281 = vsel %vm1273, %v1279, %v1280
      %v1282 = vrot.slane %v282, 5
      %v1283 = vrot.slane %v1282, 4
      %v1284 = vrot.slane %v1269, 5
      %v1285 = vsel %vm1273, %v1283, %v1284
      %v1286 = vrot.slane %v283, 5
      %v1287 = vrot.slane %v1286, 4
      %v1288 = vrot.slane %v1270, 5
      %v1289 = vsel %vm1273, %v1287, %v1288
      %1290 = vst [vmem:[#allocation1] ss:$2 sm:$0xff] %v1277
      %s1291 = scalar_lea.vmem [#allocation1], 1
      %1292 = vst [vmem:[%s1291] ss:$2 sm:$0xff] %v1281
      %s1293 = scalar_lea.vmem [#allocation1], 16
      %1294 = vst [vmem:[%s1293] ss:$2 sm:$0xff] %v1285
      %s1295 = scalar_lea.vmem [#allocation1], 17
      %1296 = vst [vmem:[%s1295] ss:$2 sm:$0xff] %v1289
      %v1297 = vld.sshfl [vmem:[#allocation1] sm:$0xff pattern:$0x75316420]
      %v1298 = vld.sshfl [vmem:[#allocation1 + $0x10] sm:$0xff pattern:$0x75316420]
      %v1301 = vadd.f32 %v1265, %v1297
      %v1302 = vadd.f32 %v1266, %v1298
      %v1303 = vmax.f32 %v1301, 0.0
      %v1304 = vmax.f32 %v1302, 0.0
      %1305 = vst [vmem:[%s278] sm:$0x3f] 0.0
      %1306 = vst [vmem:[%s278 + $0x8] sm:$0x3f] 0.0
      %1307 = vst [vmem:[%s278 + $0x10] sm:$0x3f] 0.0
      %1308 = vst [vmem:[%s278 + $0x18] sm:$0x3f] 0.0
      %1309 = vst [vmem:[%s278 + $0x20] sm:$0x3f] 0.0
      %1310 = vst [vmem:[%s278 + $0x28] sm:$0x3f] 0.0
      %v1313 = vrot.slane %v1303, 4
      %v1314 = vrot.slane %v1304, 4
      %s1317 = scalar_lea.vmem %s278, 8
      %1318 = vst [vmem:[%s1317 + $0x1] sm:$0xf] %v1303
      %1319 = vst [vmem:[%s1317 + $0x9] sm:$0xf] %v1313
      %1320 = vst [vmem:[%s1317 + $0x11] sm:$0xf] %v1304
      %1321 = vst [vmem:[%s1317 + $0x19] sm:$0xf] %v1314
      %p1322 = scmp.lt.s32.totalorder %s18, 1
      %s1323 = scalar_select %p1322, %s18, 1
      %s1324 = smul.addr %s1323, 6
      %s1325 = smul.addr %s1324, 8
      %s1326 = scalar_lea.vmem %s7, %s1325
      // Predicated region
      $region49: #{encoder_forward.7} parent=47 // pred_check
        %p1327 = pneg %p188
      $region50: #{encoder_forward.7} parent=47 // pred_check_branch
        %1329 = sbr.rel (%p1327) target = $region52
      $region51: #{encoder_forward.7} parent=47 // pred_region
        _
      $region52: #{encoder_forward.7} parent=47 // pred_fallthru
        _
    $region48: #{encoder_forward.7} parent=5 // pred_fallthru
      _
    %p1330 = scmp.le.s32.totalorder 2, %s13
    // Predicated region
    $region53: #{encoder_forward.7} parent=5 // pred_check
      %p1331 = pneg %p1330
    $region54: #{encoder_forward.7} parent=5 // pred_check_branch
      %1333 = sbr.rel (%p1331) target = $region56
    $region55: #{encoder_forward.7} parent=5 // pred_region
      %s1334 = ssub.s32 %s13, 2
      // Predicated region
      $region57: #{encoder_forward.7} parent=55 // pred_check
        %p1335 = pneg %p194
      $region58: #{encoder_forward.7} parent=55 // pred_check_branch
        %1337 = sbr.rel (%p1335) target = $region60
      $region59: #{encoder_forward.7} parent=55 // pred_region
        %p1338 = scmp.lt.s32.totalorder %s19, 1
        %s1339 = scalar_select %p1338, %s19, 1
        %s1340 = smul.addr %s1339, 6
        %s1341 = smul.addr %s1340, 8
        %s1342 = scalar_lea.vmem %s7, %s1341
      $region60: #{encoder_forward.7} parent=55 // pred_fallthru
        _
    $region56: #{encoder_forward.7} parent=5 // pred_fallthru
      _
  $region6: #{encoder_forward.7} parent=0 // loop_footer
    %s17 = sadd.s32 1, %s13
  $region7: #{encoder_forward.7} parent=0 // loop_footer_branch
    %12 = sbr.rel target = $region3
  $region8: #{encoder_forward.7} parent=0 // loop_exit
    _

// kernel: encoder_forward.6
$region0: #{encoder_forward.6}
  #allocation0 [shape = 'u32[]', space=smem, size = 0x4, offset = 0x4, fixed_abs, tag = 'smem constant byte address 0x4 - core index']
  #allocation1 [shape = 'u32[72,128]{1,0:T(1,128)}', space=vmem, size = 0x9000, scoped, tag = 'internal scratch']
  #allocation2 [shape = 'f32[6,6,128]{2,1,0:T(8,128)}', space=vmem, size = 0x6000, scoped, tag = 'scratch operand']
  %s0 = inlined_call_operand.vmem [shape: f32[2,5,5,256], index: 0, kind: input, shape index: {}]
  %s1 = inlined_call_operand.vmem [shape: f32[2,5,5,256], index: 1, kind: input, shape index: {}]
  %s2 = inlined_call_operand.hbm [shape: f32[3,256,128], index: 2, kind: input, shape index: {}]
  %s3 = inlined_call_operand.hbm [shape: f32[3,128,128], index: 3, kind: input, shape index: {}]
  %s4 = inlined_call_operand.vmem [shape: f32[1,128], index: 4, kind: input, shape index: {}]
  %s5 = inlined_call_operand.vmem [shape: f32[1,128], index: 5, kind: input, shape index: {}]
  %s6 = inlined_call_operand.vmem [shape: f32[3,384,128], index: 6, kind: input, shape index: {}]
  %s7 = inlined_call_operand.vmem [shape: f32[1,128], index: 7, kind: input, shape index: {}]
  %s8 = inlined_call_operand.vmem [shape: f32[1,128], index: 8, kind: input, shape index: {}]
  %s9 = inlined_call_operand.hbm [shape: f32[128,128], index: 9, kind: input, shape index: {}]
  %s10 = inlined_call_operand.vmem [shape: f32[1,128], index: 10, kind: input, shape index: {}]
  %s11 = inlined_call_operand.vmem [shape: f32[1,128], index: 11, kind: input, shape index: {}]
  %s12 = inlined_call_operand.vmem [shape: f32[2,6,6,128], index: 12, kind: output, shape index: {}]
  %s13 = sld [smem:[#allocation0]]
  $region93: #{encoder_forward.6} parent=0
    _
  %s15 = ssub.s32 1, %s13
  %s16 = scalar_select 0, %s15, %s13
  $region1: #{encoder_forward.6} parent=0
    #allocation3 [shape = 'u8[393216]{0}', space=vmem, size = 0x60000, scoped, tag = 'input window, operand 2, single buffered']
    #allocation4 [shape = 's32[2]{0}', space=sflag, size = 0x8, scoped, tag = 'scoped memory for encoder_forward.6']
    #allocation5 [shape = 'u8[196608]{0}', space=vmem, size = 0x30000, scoped, tag = 'input window, operand 3, single buffered']
    #allocation6 [shape = 's32[1]{0}', space=sflag, size = 0x4, scoped, tag = 'scoped memory for encoder_forward.6']
    #allocation7 [shape = 'u8[65536]{0}', space=vmem, size = 0x10000, scoped, tag = 'input window, operand 9, single buffered']
    %17 = vsyncpa [#allocation4], 0
    %18 = vsyncpa [#allocation6], 0
    loop: start=0, step=1, limit=4
    $region2: #{encoder_forward.6} parent=1 // loop_pre_header
      _
    $region3: #{encoder_forward.6} parent=1 // loop_header
      %s20 = sphi 0, %s24
      %p21 = scmp.ge.s32.totalorder %s20, 4
      %s30 = sphi 0, %s32
      %s33 = sphi 0, %s30
      %s34 = sphi 0, %s33
      %s50 = sphi 0, %s34
      %s56 = sphi 0, %s58
      %s59 = sphi 0, %s56
      %s60 = sphi 0, %s59
      %s76 = sphi 0, %s60
      %s80 = sphi 0, %s80
      %s82 = sphi 0, %s80
      %s83 = sphi 0, %s82
      %s97 = sphi 0, %s83
      %s101 = sphi 0, %s101
      %s103 = sphi 0, %s101
      %s104 = sphi 0, %s103
      %s118 = sphi 0, %s104
      %s122 = sphi 0, %s122
      %s124 = sphi 0, %s122
      %s125 = sphi 0, %s124
      %s139 = sphi 0, %s125
      %s143 = sphi 0, %s143
      %s145 = sphi 0, %s143
      %s146 = sphi 0, %s145
      %s160 = sphi 0, %s146
      %s164 = sphi 0, %s164
      %s166 = sphi 0, %s164
      %s167 = sphi 0, %s166
      %s181 = sphi 0, %s167
      %s185 = sphi 0, %s185
      %s187 = sphi 0, %s185
      %s188 = sphi 0, %s187
      %s202 = sphi 0, %s188
      %s206 = sphi 0, %s206
      %s208 = sphi 0, %s206
      %s209 = sphi 0, %s208
      %s223 = sphi 0, %s209
      %s227 = sphi 0, %s227
      %s229 = sphi 0, %s227
      %s230 = sphi 0, %s229
      %s244 = sphi 0, %s230
      %s248 = sphi 0, %s248
      %s250 = sphi 0, %s248
      %s251 = sphi 0, %s250
      %s265 = sphi 0, %s251
      %s269 = sphi 0, %s269
      %s271 = sphi 0, %s269
      %s272 = sphi 0, %s271
      %s286 = sphi 0, %s272
      %s292 = sphi 0, %s294
      %s295 = sphi 0, %s292
      %s296 = sphi 0, %s295
      %s312 = sphi 0, %s296
    $region4: #{encoder_forward.6} parent=1 // loop_header_branch
      %23 = sbr.rel (%p21) target = $region8
    $region5: #{encoder_forward.6} parent=1 // loop_body
      %s25 = ssub.s32 %s20, 1
      %s26 = ssub.s32 %s20, 2
      %s27 = sadd.s32 %s20, 1
      %s28 = ssub.s32 %s20, %s27
      %p29 = scmp.eq.s32.totalorder %s28, 0
      %s31 = sadd.s32 %s30, 1
      %s32 = scalar_select %p29, %s30, %s31
      %p35 = pneg %p29
      %p36 = scmp.eq.s32.totalorder %s20, 1
      %p37 = por %p35, %p36
      %p38 = scmp.ne.s32.totalorder %s30, %s33
      %p39 = scmp.eq.s32.totalorder %s20, 0
      %p40 = por %p38, %p39
      %p41 = scmp.ne.s32.totalorder %s30, %s33
      %p42 = scmp.eq.s32.totalorder %s25, 1
      %p43 = por %p41, %p42
      %p44 = scmp.ne.s32.totalorder %s33, %s34
      %p45 = scmp.eq.s32.totalorder %s25, 0
      %p46 = por %p44, %p45
      %p47 = scmp.ne.s32.totalorder %s33, %s34
      %p48 = scmp.eq.s32.totalorder %s26, 1
      %p49 = por %p47, %p48
      %p51 = scmp.ne.s32.totalorder %s34, %s50
      %p52 = scmp.eq.s32.totalorder %s26, 0
      %p53 = por %p51, %p52
      %s54 = ssub.s32 %s20, %s27
      %p55 = scmp.eq.s32.totalorder %s54, 0
      %s57 = sadd.s32 %s56, 1
      %s58 = scalar_select %p55, %s56, %s57
      %p61 = pneg %p55
      %p62 = scmp.eq.s32.totalorder %s20, 1
      %p63 = por %p61, %p62
      %p64 = scmp.ne.s32.totalorder %s56, %s59
      %p65 = scmp.eq.s32.totalorder %s20, 0
      %p66 = por %p64, %p65
      %p67 = scmp.ne.s32.totalorder %s56, %s59
      %p68 = scmp.eq.s32.totalorder %s25, 1
      %p69 = por %p67, %p68
      %p70 = scmp.ne.s32.totalorder %s59, %s60
      %p71 = scmp.eq.s32.totalorder %s25, 0
      %p72 = por %p70, %p71
      %p73 = scmp.ne.s32.totalorder %s59, %s60
      %p74 = scmp.eq.s32.totalorder %s26, 1
      %p75 = por %p73, %p74
      %p77 = scmp.ne.s32.totalorder %s60, %s76
      %p78 = scmp.eq.s32.totalorder %s26, 0
      %p79 = por %p77, %p78
      %s81 = sadd.s32 %s80, 1
      %p84 = scmp.eq.s32.totalorder %s20, 1
      %p85 = scmp.ne.s32.totalorder %s80, %s82
      %p86 = scmp.eq.s32.totalorder %s20, 0
      %p87 = por %p85, %p86
      %p88 = scmp.ne.s32.totalorder %s80, %s82
      %p89 = scmp.eq.s32.totalorder %s25, 1
      %p90 = por %p88, %p89
      %p91 = scmp.ne.s32.totalorder %s82, %s83
      %p92 = scmp.eq.s32.totalorder %s25, 0
      %p93 = por %p91, %p92
      %p94 = scmp.ne.s32.totalorder %s82, %s83
      %p95 = scmp.eq.s32.totalorder %s26, 1
      %p96 = por %p94, %p95
      %p98 = scmp.ne.s32.totalorder %s83, %s97
      %p99 = scmp.eq.s32.totalorder %s26, 0
      %p100 = por %p98, %p99
      %s102 = sadd.s32 %s101, 1
      %p105 = scmp.eq.s32.totalorder %s20, 1
      %p106 = scmp.ne.s32.totalorder %s101, %s103
      %p107 = scmp.eq.s32.totalorder %s20, 0
      %p108 = por %p106, %p107
      %p109 = scmp.ne.s32.totalorder %s101, %s103
      %p110 = scmp.eq.s32.totalorder %s25, 1
      %p111 = por %p109, %p110
      %p112 = scmp.ne.s32.totalorder %s103, %s104
      %p113 = scmp.eq.s32.totalorder %s25, 0
      %p114 = por %p112, %p113
      %p115 = scmp.ne.s32.totalorder %s103, %s104
      %p116 = scmp.eq.s32.totalorder %s26, 1
      %p117 = por %p115, %p116
      %p119 = scmp.ne.s32.totalorder %s104, %s118
      %p120 = scmp.eq.s32.totalorder %s26, 0
      %p121 = por %p119, %p120
      %s123 = sadd.s32 %s122, 1
      %p126 = scmp.eq.s32.totalorder %s20, 1
      %p127 = scmp.ne.s32.totalorder %s122, %s124
      %p128 = scmp.eq.s32.totalorder %s20, 0
      %p129 = por %p127, %p128
      %p130 = scmp.ne.s32.totalorder %s122, %s124
      %p131 = scmp.eq.s32.totalorder %s25, 1
      %p132 = por %p130, %p131
      %p133 = scmp.ne.s32.totalorder %s124, %s125
      %p134 = scmp.eq.s32.totalorder %s25, 0
      %p135 = por %p133, %p134
      %p136 = scmp.ne.s32.totalorder %s124, %s125
      %p137 = scmp.eq.s32.totalorder %s26, 1
      %p138 = por %p136, %p137
      %p140 = scmp.ne.s32.totalorder %s125, %s139
      %p141 = scmp.eq.s32.totalorder %s26, 0
      %p142 = por %p140, %p141
      %s144 = sadd.s32 %s143, 1
      %p147 = scmp.eq.s32.totalorder %s20, 1
      %p148 = scmp.ne.s32.totalorder %s143, %s145
      %p149 = scmp.eq.s32.totalorder %s20, 0
      %p150 = por %p148, %p149
      %p151 = scmp.ne.s32.totalorder %s143, %s145
      %p152 = scmp.eq.s32.totalorder %s25, 1
      %p153 = por %p151, %p152
      %p154 = scmp.ne.s32.totalorder %s145, %s146
      %p155 = scmp.eq.s32.totalorder %s25, 0
      %p156 = por %p154, %p155
      %p157 = scmp.ne.s32.totalorder %s145, %s146
      %p158 = scmp.eq.s32.totalorder %s26, 1
      %p159 = por %p157, %p158
      %p161 = scmp.ne.s32.totalorder %s146, %s160
      %p162 = scmp.eq.s32.totalorder %s26, 0
      %p163 = por %p161, %p162
      %s165 = sadd.s32 %s164, 1
      %p168 = scmp.eq.s32.totalorder %s20, 1
      %p169 = scmp.ne.s32.totalorder %s164, %s166
      %p170 = scmp.eq.s32.totalorder %s20, 0
      %p171 = por %p169, %p170
      %p172 = scmp.ne.s32.totalorder %s164, %s166
      %p173 = scmp.eq.s32.totalorder %s25, 1
      %p174 = por %p172, %p173
      %p175 = scmp.ne.s32.totalorder %s166, %s167
      %p176 = scmp.eq.s32.totalorder %s25, 0
      %p177 = por %p175, %p176
      %p178 = scmp.ne.s32.totalorder %s166, %s167
      %p179 = scmp.eq.s32.totalorder %s26, 1
      %p180 = por %p178, %p179
      %p182 = scmp.ne.s32.totalorder %s167, %s181
      %p183 = scmp.eq.s32.totalorder %s26, 0
      %p184 = por %p182, %p183
      %s186 = sadd.s32 %s185, 1
      %p189 = scmp.eq.s32.totalorder %s20, 1
      %p190 = scmp.ne.s32.totalorder %s185, %s187
      %p191 = scmp.eq.s32.totalorder %s20, 0
      %p192 = por %p190, %p191
      %p193 = scmp.ne.s32.totalorder %s185, %s187
      %p194 = scmp.eq.s32.totalorder %s25, 1
      %p195 = por %p193, %p194
      %p196 = scmp.ne.s32.totalorder %s187, %s188
      %p197 = scmp.eq.s32.totalorder %s25, 0
      %p198 = por %p196, %p197
      %p199 = scmp.ne.s32.totalorder %s187, %s188
      %p200 = scmp.eq.s32.totalorder %s26, 1
      %p201 = por %p199, %p200
      %p203 = scmp.ne.s32.totalorder %s188, %s202
      %p204 = scmp.eq.s32.totalorder %s26, 0
      %p205 = por %p203, %p204
      %s207 = sadd.s32 %s206, 1
      %p210 = scmp.eq.s32.totalorder %s20, 1
      %p211 = scmp.ne.s32.totalorder %s206, %s208
      %p212 = scmp.eq.s32.totalorder %s20, 0
      %p213 = por %p211, %p212
      %p214 = scmp.ne.s32.totalorder %s206, %s208
      %p215 = scmp.eq.s32.totalorder %s25, 1
      %p216 = por %p214, %p215
      %p217 = scmp.ne.s32.totalorder %s208, %s209
      %p218 = scmp.eq.s32.totalorder %s25, 0
      %p219 = por %p217, %p218
      %p220 = scmp.ne.s32.totalorder %s208, %s209
      %p221 = scmp.eq.s32.totalorder %s26, 1
      %p222 = por %p220, %p221
      %p224 = scmp.ne.s32.totalorder %s209, %s223
      %p225 = scmp.eq.s32.totalorder %s26, 0
      %p226 = por %p224, %p225
      %s228 = sadd.s32 %s227, 1
      %p231 = scmp.eq.s32.totalorder %s20, 1
      %p232 = scmp.ne.s32.totalorder %s227, %s229
      %p233 = scmp.eq.s32.totalorder %s20, 0
      %p234 = por %p232, %p233
      %p235 = scmp.ne.s32.totalorder %s227, %s229
      %p236 = scmp.eq.s32.totalorder %s25, 1
      %p237 = por %p235, %p236
      %p238 = scmp.ne.s32.totalorder %s229, %s230
      %p239 = scmp.eq.s32.totalorder %s25, 0
      %p240 = por %p238, %p239
      %p241 = scmp.ne.s32.totalorder %s229, %s230
      %p242 = scmp.eq.s32.totalorder %s26, 1
      %p243 = por %p241, %p242
      %p245 = scmp.ne.s32.totalorder %s230, %s244
      %p246 = scmp.eq.s32.totalorder %s26, 0
      %p247 = por %p245, %p246
      %s249 = sadd.s32 %s248, 1
      %p252 = scmp.eq.s32.totalorder %s20, 1
      %p253 = scmp.ne.s32.totalorder %s248, %s250
      %p254 = scmp.eq.s32.totalorder %s20, 0
      %p255 = por %p253, %p254
      %p256 = scmp.ne.s32.totalorder %s248, %s250
      %p257 = scmp.eq.s32.totalorder %s25, 1
      %p258 = por %p256, %p257
      %p259 = scmp.ne.s32.totalorder %s250, %s251
      %p260 = scmp.eq.s32.totalorder %s25, 0
      %p261 = por %p259, %p260
      %p262 = scmp.ne.s32.totalorder %s250, %s251
      %p263 = scmp.eq.s32.totalorder %s26, 1
      %p264 = por %p262, %p263
      %p266 = scmp.ne.s32.totalorder %s251, %s265
      %p267 = scmp.eq.s32.totalorder %s26, 0
      %p268 = por %p266, %p267
      %s270 = sadd.s32 %s269, 1
      %p273 = scmp.eq.s32.totalorder %s20, 1
      %p274 = scmp.ne.s32.totalorder %s269, %s271
      %p275 = scmp.eq.s32.totalorder %s20, 0
      %p276 = por %p274, %p275
      %p277 = scmp.ne.s32.totalorder %s269, %s271
      %p278 = scmp.eq.s32.totalorder %s25, 1
      %p279 = por %p277, %p278
      %p280 = scmp.ne.s32.totalorder %s271, %s272
      %p281 = scmp.eq.s32.totalorder %s25, 0
      %p282 = por %p280, %p281
      %p283 = scmp.ne.s32.totalorder %s271, %s272
      %p284 = scmp.eq.s32.totalorder %s26, 1
      %p285 = por %p283, %p284
      %p287 = scmp.ne.s32.totalorder %s272, %s286
      %p288 = scmp.eq.s32.totalorder %s26, 0
      %p289 = por %p287, %p288
      %s290 = ssub.s32 %s20, %s27
      %p291 = scmp.eq.s32.totalorder %s290, 0
      %s293 = sadd.s32 %s292, 1
      %s294 = scalar_select %p291, %s292, %s293
      %p297 = pneg %p291
      %p298 = scmp.eq.s32.totalorder %s20, 1
      %p299 = por %p297, %p298
      %p300 = scmp.ne.s32.totalorder %s292, %s295
      %p301 = scmp.eq.s32.totalorder %s20, 0
      %p302 = por %p300, %p301
      %p303 = scmp.ne.s32.totalorder %s292, %s295
      %p304 = scmp.eq.s32.totalorder %s25, 1
      %p305 = por %p303, %p304
      %p306 = scmp.ne.s32.totalorder %s295, %s296
      %p307 = scmp.eq.s32.totalorder %s25, 0
      %p308 = por %p306, %p307
      %p309 = scmp.ne.s32.totalorder %s295, %s296
      %p310 = scmp.eq.s32.totalorder %s26, 1
      %p311 = por %p309, %p310
      %p313 = scmp.ne.s32.totalorder %s296, %s312
      %p314 = scmp.eq.s32.totalorder %s26, 0
      %p315 = por %p313, %p314
      %p316 = scmp.le.s32.totalorder 1, %s20
      %p317 = scmp.lt.s32.totalorder %s20, 3
      %p318 = pnand %p316, %p317
      %p319 = pneg %p318
      // Predicated region
      $region9: #{encoder_forward.6} parent=5 // pred_check
        _
      $region10: #{encoder_forward.6} parent=5 // pred_check_branch
        %321 = sbr.rel (%p318) target = $region12
      $region11: #{encoder_forward.6} parent=5 // pred_region
        %s322 = ssub.s32 %s20, 1
        // Predicated region
        $region13: #{encoder_forward.6} parent=11 // pred_check
          %p323 = pneg %p93
        $region14: #{encoder_forward.6} parent=11 // pred_check_branch
          %325 = sbr.rel (%p323) target = $region16
        $region15: #{encoder_forward.6} parent=11 // pred_region
          %327 = vsyncadd [#allocation4], 0
          %s328 = sshll.u32 %s2, 4
          %s329 = int_to_ptr.hbm [resolvable:$true] %s328
          %s330 = sshll.u32 [#allocation3], 4
          %s331 = int_to_ptr.vmem [resolvable:$true] %s330
          %336 = dma.hbm_to_vmem [thread:$0]  %s329, 12288, %s331, [#allocation4], 128, 128, 8
        $region16: #{encoder_forward.6} parent=11 // pred_fallthru
          _
        // Predicated region
        $region17: #{encoder_forward.6} parent=11 // pred_check
          %p337 = pneg %p114
        $region18: #{encoder_forward.6} parent=11 // pred_check_branch
          %339 = sbr.rel (%p337) target = $region20
        $region19: #{encoder_forward.6} parent=11 // pred_region
          %341 = vsyncadd [#allocation6], 0
          %s342 = sshll.u32 %s3, 4
          %s343 = int_to_ptr.hbm [resolvable:$true] %s342
          %s344 = sshll.u32 [#allocation5], 4
          %s345 = int_to_ptr.vmem [resolvable:$true] %s344
          %350 = dma.hbm_to_vmem [thread:$0]  %s343, 6144, %s345, [#allocation6], 128, 128, 8
        $region20: #{encoder_forward.6} parent=11 // pred_fallthru
          _
        // Predicated region
        $region21: #{encoder_forward.6} parent=11 // pred_check
          %p351 = pneg %p135
        $region22: #{encoder_forward.6} parent=11 // pred_check_branch
          %353 = sbr.rel (%p351) target = $region24
        $region23: #{encoder_forward.6} parent=11 // pred_region
          _
        $region24: #{encoder_forward.6} parent=11 // pred_fallthru
          _
        // Predicated region
        $region25: #{encoder_forward.6} parent=11 // pred_check
          %p354 = pneg %p156
        $region26: #{encoder_forward.6} parent=11 // pred_check_branch
          %356 = sbr.rel (%p354) target = $region28
        $region27: #{encoder_forward.6} parent=11 // pred_region
          _
        $region28: #{encoder_forward.6} parent=11 // pred_fallthru
          _
        // Predicated region
        $region29: #{encoder_forward.6} parent=11 // pred_check
          %p357 = pneg %p177
        $region30: #{encoder_forward.6} parent=11 // pred_check_branch
          %359 = sbr.rel (%p357) target = $region32
        $region31: #{encoder_forward.6} parent=11 // pred_region
          _
        $region32: #{encoder_forward.6} parent=11 // pred_fallthru
          _
        // Predicated region
        $region33: #{encoder_forward.6} parent=11 // pred_check
          %p360 = pneg %p198
        $region34: #{encoder_forward.6} parent=11 // pred_check_branch
          %362 = sbr.rel (%p360) target = $region36
        $region35: #{encoder_forward.6} parent=11 // pred_region
          _
        $region36: #{encoder_forward.6} parent=11 // pred_fallthru
          _
        // Predicated region
        $region37: #{encoder_forward.6} parent=11 // pred_check
          %p363 = pneg %p219
        $region38: #{encoder_forward.6} parent=11 // pred_check_branch
          %365 = sbr.rel (%p363) target = $region40
        $region39: #{encoder_forward.6} parent=11 // pred_region
          _
        $region40: #{encoder_forward.6} parent=11 // pred_fallthru
          _
        // Predicated region
        $region41: #{encoder_forward.6} parent=11 // pred_check
          %p366 = pneg %p240
        $region42: #{encoder_forward.6} parent=11 // pred_check_branch
          %368 = sbr.rel (%p366) target = $region44
        $region43: #{encoder_forward.6} parent=11 // pred_region
          %370 = vsyncadd [#allocation6], 0
          %s371 = sshll.u32 %s9, 4
          %s372 = int_to_ptr.hbm [resolvable:$true] %s371
          %s373 = sshll.u32 [#allocation7], 4
          %s374 = int_to_ptr.vmem [resolvable:$true] %s373
          %379 = dma.hbm_to_vmem [thread:$0]  %s372, 2048, %s374, [#allocation6], 128, 128, 8
        $region44: #{encoder_forward.6} parent=11 // pred_fallthru
          _
        // Predicated region
        $region45: #{encoder_forward.6} parent=11 // pred_check
          %p380 = pneg %p261
        $region46: #{encoder_forward.6} parent=11 // pred_check_branch
          %382 = sbr.rel (%p380) target = $region48
        $region47: #{encoder_forward.6} parent=11 // pred_region
          _
        $region48: #{encoder_forward.6} parent=11 // pred_fallthru
          _
        // Predicated region
        $region49: #{encoder_forward.6} parent=11 // pred_check
          %p383 = pneg %p282
        $region50: #{encoder_forward.6} parent=11 // pred_check_branch
          %385 = sbr.rel (%p383) target = $region52
        $region51: #{encoder_forward.6} parent=11 // pred_region
          _
        $region52: #{encoder_forward.6} parent=11 // pred_fallthru
          _
      $region12: #{encoder_forward.6} parent=5 // pred_fallthru
        _
      %p386 = scmp.lt.s32.totalorder %s20, 2
      // Predicated region
      $region53: #{encoder_forward.6} parent=5 // pred_check
        %p387 = pneg %p386
      $region54: #{encoder_forward.6} parent=5 // pred_check_branch
        %389 = sbr.rel (%p387) target = $region56
      $region55: #{encoder_forward.6} parent=5 // pred_region
        // Predicated region
        $region57: #{encoder_forward.6} parent=55 // pred_check
          %p390 = pneg %p40
        $region58: #{encoder_forward.6} parent=55 // pred_check_branch
          %392 = sbr.rel (%p390) target = $region60
        $region59: #{encoder_forward.6} parent=55 // pred_region
          %p393 = scmp.lt.s32.totalorder %s20, 1
          %s394 = scalar_select %p393, %s20, 1
          %s395 = smul.addr %s394, 10
          %s396 = smul.addr %s395, 8
          %s397 = scalar_lea.vmem %s0, %s396
        $region60: #{encoder_forward.6} parent=55 // pred_fallthru
          _
        // Predicated region
        $region61: #{encoder_forward.6} parent=55 // pred_check
          %p398 = pneg %p66
        $region62: #{encoder_forward.6} parent=55 // pred_check_branch
          %400 = sbr.rel (%p398) target = $region64
        $region63: #{encoder_forward.6} parent=55 // pred_region
          %p401 = scmp.lt.s32.totalorder %s20, 1
          %s402 = scalar_select %p401, %s20, 1
          %s403 = smul.addr %s402, 10
          %s404 = smul.addr %s403, 8
          %s405 = scalar_lea.vmem %s1, %s404
        $region64: #{encoder_forward.6} parent=55 // pred_fallthru
          _
      $region56: #{encoder_forward.6} parent=5 // pred_fallthru
        _
      %p406 = scmp.le.s32.totalorder 1, %s20
      %p407 = scmp.lt.s32.totalorder %s20, 3
      %p408 = pnand %p406, %p407
      %p409 = pneg %p408
      // Predicated region
      $region65: #{encoder_forward.6} parent=5 // pred_check
        _
      $region66: #{encoder_forward.6} parent=5 // pred_check_branch
        %411 = sbr.rel (%p408) target = $region68
      $region67: #{encoder_forward.6} parent=5 // pred_region
        %s412 = ssub.s32 %s20, 1
        // Predicated region
        $region69: #{encoder_forward.6} parent=67 // pred_check
          %p413 = pneg %p93
        $region70: #{encoder_forward.6} parent=67 // pred_check_branch
          %415 = sbr.rel (%p413) target = $region72
        $region71: #{encoder_forward.6} parent=67 // pred_region
          %417 = dma.done [#allocation4], 12288
        $region72: #{encoder_forward.6} parent=67 // pred_fallthru
          _
        // Predicated region
        $region73: #{encoder_forward.6} parent=67 // pred_check
          %p418 = pneg %p114
        $region74: #{encoder_forward.6} parent=67 // pred_check_branch
          %420 = sbr.rel (%p418) target = $region76
        $region75: #{encoder_forward.6} parent=67 // pred_region
          %422 = dma.done [#allocation6], 6144
        $region76: #{encoder_forward.6} parent=67 // pred_fallthru
          _
        // Predicated region
        $region77: #{encoder_forward.6} parent=67 // pred_check
          %p423 = pneg %p240
        $region78: #{encoder_forward.6} parent=67 // pred_check_branch
          %425 = sbr.rel (%p423) target = $region80
        $region79: #{encoder_forward.6} parent=67 // pred_region
          %427 = dma.done [#allocation6], 2048
        $region80: #{encoder_forward.6} parent=67 // pred_fallthru
          _
        %p428 = scmp.lt.s32.totalorder %s25, 1
        %s429 = scalar_select %p428, %s25, 1
        %s430 = smul.addr %s429, 10
        %s431 = smul.addr %s430, 8
        %s432 = scalar_lea.vmem %s0, %s431
        %p433 = pneg %p46
        %p434 = pneg %p43
        %p435 = scmp.lt.s32.totalorder %s25, 1
        %s436 = scalar_select %p435, %s25, 1
        %s437 = smul.addr %s436, 10
        %s438 = smul.addr %s437, 8
        %s439 = scalar_lea.vmem %s1, %s438
        %p440 = pneg %p72
        %p441 = pneg %p69
        %p442 = pneg %p93
        %p443 = pneg %p90
        %p444 = pneg %p114
        %p445 = pneg %p111
        %p446 = pneg %p135
        %p447 = pneg %p132
        %p448 = pneg %p156
        %p449 = pneg %p153
        %p450 = pneg %p177
        %p451 = pneg %p174
        %p452 = pneg %p198
        %p453 = pneg %p195
        %p454 = pneg %p219
        %p455 = pneg %p216
        %p456 = pneg %p240
        %p457 = pneg %p237
        %p458 = pneg %p261
        %p459 = pneg %p258
        %p460 = pneg %p282
        %p461 = pneg %p279
        %p462 = pneg %p308
        %p463 = pneg %p305
        %p464 = scmp.lt.s32.totalorder %s25, 1
        %s465 = scalar_select %p464, %s25, 1
        %s466 = smul.addr %s465, 6
        %s467 = smul.addr %s466, 8
        %s468 = scalar_lea.vmem %s12, %s467
        %p469 = scmp.lt.s32.totalorder %s25, 1
        %s470 = scalar_select %p469, %s25, 1
        %s471 = smul.addr %s470, 10
        %s472 = smul.addr %s471, 8
        %s473 = scalar_lea.vmem %s0, %s472
        %p474 = scmp.lt.s32.totalorder %s25, 1
        %s475 = scalar_select %p474, %s25, 1
        %s476 = smul.addr %s475, 10
        %s477 = smul.addr %s476, 8
        %s478 = scalar_lea.vmem %s1, %s477
        %p479 = scmp.lt.s32.totalorder %s25, 1
        %s480 = scalar_select %p479, %s25, 1
        %s481 = smul.addr %s480, 6
        %s482 = smul.addr %s481, 8
        %s483 = scalar_lea.vmem %s12, %s482
        %v484 = vld [vmem:[%s473] sm:$0x1f]
        %v485 = vld [vmem:[%s473 + $0x8] sm:$0x1f]
        %v486 = vld [vmem:[%s473 + $0x10] sm:$0x1f]
        %v487 = vld [vmem:[%s473 + $0x18] sm:$0x1f]
        %v488 = vld [vmem:[%s473 + $0x20] sm:$0x1f]
        %v489 = vld [vmem:[%s473 + $0x28] sm:$0x1f]
        %v490 = vld [vmem:[%s473 + $0x30] sm:$0x1f]
        %v491 = vld [vmem:[%s473 + $0x38] sm:$0x1f]
        %v492 = vld [vmem:[%s473 + $0x40] sm:$0x1f]
        %v493 = vld [vmem:[%s473 + $0x48] sm:$0x1f]
        %v494 = vld [vmem:[%s478] sm:$0x1f]
        %v495 = vld [vmem:[%s478 + $0x8] sm:$0x1f]
        %v496 = vld [vmem:[%s478 + $0x10] sm:$0x1f]
        %v497 = vld [vmem:[%s478 + $0x18] sm:$0x1f]
        %v498 = vld [vmem:[%s478 + $0x20] sm:$0x1f]
        %v499 = vld [vmem:[%s478 + $0x28] sm:$0x1f]
        %v500 = vld [vmem:[%s478 + $0x30] sm:$0x1f]
        %v501 = vld [vmem:[%s478 + $0x38] sm:$0x1f]
        %v510 = vrot.slane %v485, 4
        %v511 = vrot.slane %v487, 4
        %v512 = vrot.slane %v489, 4
        %v513 = vrot.slane %v491, 4
        %vm514 = vcmask 1043456
        %v515 = vsel %vm514, %v484, %v510
        %v516 = vsel %vm514, %v486, %v511
        %v517 = vsel %vm514, %v488, %v512
        %v518 = vsel %vm514, %v490, %v513
        %v519 = vld [vmem:[#allocation3] sm:$0xff]
        %v520 = vld [vmem:[#allocation3 + $0x8] sm:$0xff]
        %v521 = vld [vmem:[#allocation3 + $0x10] sm:$0xff]
        %v522 = vld [vmem:[#allocation3 + $0x18] sm:$0xff]
        %v523 = vld [vmem:[#allocation3 + $0x20] sm:$0xff]
        %v524 = vld [vmem:[#allocation3 + $0x28] sm:$0xff]
        %v525 = vld [vmem:[#allocation3 + $0x30] sm:$0xff]
        %v526 = vld [vmem:[#allocation3 + $0x38] sm:$0xff]
        %v527 = vld [vmem:[#allocation3 + $0x40] sm:$0xff]
        %v528 = vld [vmem:[#allocation3 + $0x48] sm:$0xff]
        %v529 = vld [vmem:[#allocation3 + $0x50] sm:$0xff]
        %v530 = vld [vmem:[#allocation3 + $0x58] sm:$0xff]
        %v531 = vld [vmem:[#allocation3 + $0x60] sm:$0xff]
        %v532 = vld [vmem:[#allocation3 + $0x68] sm:$0xff]
        %v533 = vld [vmem:[#allocation3 + $0x70] sm:$0xff]
        %v534 = vld [vmem:[#allocation3 + $0x78] sm:$0xff]
        %v535 = vld [vmem:[#allocation3 + $0x80] sm:$0xff]
        %v536 = vld [vmem:[#allocation3 + $0x88] sm:$0xff]
        %v537 = vld [vmem:[#allocation3 + $0x90] sm:$0xff]
        %v538 = vld [vmem:[#allocation3 + $0x98] sm:$0xff]
        %v539 = vld [vmem:[#allocation3 + $0xa0] sm:$0xff]
        %v540 = vld [vmem:[#allocation3 + $0xa8] sm:$0xff]
        %v541 = vld [vmem:[#allocation3 + $0xb0] sm:$0xff]
        %v542 = vld [vmem:[#allocation3 + $0xb8] sm:$0xff]
        %v543 = vld [vmem:[#allocation3 + $0xc0] sm:$0xff]
        %v544 = vld [vmem:[#allocation3 + $0xc8] sm:$0xff]
        %v545 = vld [vmem:[#allocation3 + $0xd0] sm:$0xff]
        %v546 = vld [vmem:[#allocation3 + $0xd8] sm:$0xff]
        %v547 = vld [vmem:[#allocation3 + $0xe0] sm:$0xff]
        %v548 = vld [vmem:[#allocation3 + $0xe8] sm:$0xff]
        %v549 = vld [vmem:[#allocation3 + $0xf0] sm:$0xff]
        %v550 = vld [vmem:[#allocation3 + $0xf8] sm:$0xff]
        %v551 = vrot.slane %v484, 4
        %v552 = vrot.slane %v486, 4
        %v553 = vrot.slane %v488, 4
        %v554 = vrot.slane %v490, 4
        %vm555 = vcmask 1042432
        %vm556 = vcmask 1046532
        %vm557 = vmor %vm555, %vm556
        %v558 = vrot.slane %v484, 5
        %v559 = vrot.slane %v558, 4
        %v560 = vrot.slane %v551, 5
        %v561 = vsel %vm557, %v559, %v560
        %v562 = vrot.slane %v486, 5
        %v563 = vrot.slane %v562, 4
        %v564 = vrot.slane %v552, 5
        %v565 = vsel %vm557, %v563, %v564
        %v566 = vrot.slane %v488, 5
        %v567 = vrot.slane %v566, 4
        %v568 = vrot.slane %v553, 5
        %v569 = vsel %vm557, %v567, %v568
        %v570 = vrot.slane %v490, 5
        %v571 = vrot.slane %v570, 4
        %v572 = vrot.slane %v554, 5
        %v573 = vsel %vm557, %v571, %v572
        %v574 = vld [vmem:[#allocation5] sm:$0xff]
        %v575 = vld [vmem:[#allocation5 + $0x8] sm:$0xff]
        %v576 = vld [vmem:[#allocation5 + $0x10] sm:$0xff]
        %v577 = vld [vmem:[#allocation5 + $0x18] sm:$0xff]
        %v578 = vld [vmem:[#allocation5 + $0x20] sm:$0xff]
        %v579 = vld [vmem:[#allocation5 + $0x28] sm:$0xff]
        %v580 = vld [vmem:[#allocation5 + $0x30] sm:$0xff]
        %v581 = vld [vmem:[#allocation5 + $0x38] sm:$0xff]
        %v582 = vld [vmem:[#allocation5 + $0x40] sm:$0xff]
        %v583 = vld [vmem:[#allocation5 + $0x48] sm:$0xff]
        %v584 = vld [vmem:[#allocation5 + $0x50] sm:$0xff]
        %v585 = vld [vmem:[#allocation5 + $0x58] sm:$0xff]
        %v586 = vld [vmem:[#allocation5 + $0x60] sm:$0xff]
        %v587 = vld [vmem:[#allocation5 + $0x68] sm:$0xff]
        %v588 = vld [vmem:[#allocation5 + $0x70] sm:$0xff]
        %v589 = vld [vmem:[#allocation5 + $0x78] sm:$0xff]
        %590 = vst [vmem:[#allocation1] ss:$2 sm:$0xff] %v561
        %s591 = scalar_lea.vmem [#allocation1], 1
        %592 = vst [vmem:[%s591] ss:$2 sm:$0xff] %v565
        %s593 = scalar_lea.vmem [#allocation1], 16
        %594 = vst [vmem:[%s593] ss:$2 sm:$0xff] %v569
        %s595 = scalar_lea.vmem [#allocation1], 17
        %596 = vst [vmem:[%s595] ss:$2 sm:$0xff] %v573
        %v597 = vld.sshfl [vmem:[#allocation1] sm:$0xff pattern:$0x75316420]
        %v598 = vld.sshfl [vmem:[#allocation1 + $0x10] sm:$0xff pattern:$0x75316420]
        %601 = vmatpush.msra.mxu0 %v589
        %602 = vmatpush.msra.mxu0 %v588
        %603 = vmatpush.msra.mxu0 %v587
        %604 = vmatpush.msra.mxu0 %v586
        %605 = vmatpush.msra.mxu0 %v585
        %606 = vmatpush.msra.mxu0 %v584
        %607 = vmatpush.msra.mxu0 %v583
        %608 = vmatpush.msra.mxu0 %v582
        %609 = vmatpush.msra.mxu0 %v581
        %610 = vmatpush.msra.mxu0 %v580
        %611 = vmatpush.msra.mxu0 %v579
        %612 = vmatpush.msra.mxu0 %v578
        %613 = vmatpush.msra.mxu0 %v577
        %614 = vmatpush.msra.mxu0 %v576
        %615 = vmatpush.msra.mxu0 %v575
        %616 = vmatpush.msra.mxu0 %v574
        %617 = vmatmul.f32.gmra.mxu0 %v597
        %v618 = vpop.f32.mrf.mxu0
        %v619 = vadd.f32 0.0, %v618
        %620 = vmatmul.f32.gmra.mxu0 %v598
        %v621 = vpop.f32.mrf.mxu0
        %v622 = vadd.f32 0.0, %v621
        %623 = vdwg.mxu0
        %624 = vst [vmem:[#allocation1] ss:$2 sm:$0xff] %v515
        %s625 = scalar_lea.vmem [#allocation1], 1
        %626 = vst [vmem:[%s625] ss:$2 sm:$0xff] %v516
        %s627 = scalar_lea.vmem [#allocation1], 16
        %628 = vst [vmem:[%s627] ss:$2 sm:$0xff] %v517
        %s629 = scalar_lea.vmem [#allocation1], 17
        %630 = vst [vmem:[%s629] ss:$2 sm:$0xff] %v518
        %v631 = vld.sshfl [vmem:[#allocation1] sm:$0xff pattern:$0x75316420]
        %v632 = vld.sshfl [vmem:[#allocation1 + $0x8] sm:$0xff pattern:$0x75316420]
        %v633 = vld.sshfl [vmem:[#allocation1 + $0x10] sm:$0xff pattern:$0x75316420]
        %v634 = vld.sshfl [vmem:[#allocation1 + $0x18] sm:$0xff pattern:$0x75316420]
        %639 = vmatpush.msra.mxu0 %v534
        %640 = vmatpush.msra.mxu0 %v533
        %641 = vmatpush.msra.mxu0 %v532
        %642 = vmatpush.msra.mxu0 %v531
        %643 = vmatpush.msra.mxu0 %v530
        %644 = vmatpush.msra.mxu0 %v529
        %645 = vmatpush.msra.mxu0 %v528
        %646 = vmatpush.msra.mxu0 %v527
        %647 = vmatpush.msra.mxu0 %v526
        %648 = vmatpush.msra.mxu0 %v525
        %649 = vmatpush.msra.mxu0 %v524
        %650 = vmatpush.msra.mxu0 %v523
        %651 = vmatpush.msra.mxu0 %v522
        %652 = vmatpush.msra.mxu0 %v521
        %653 = vmatpush.msra.mxu0 %v520
        %654 = vmatpush.msra.mxu0 %v519
        %655 = vmatmul.f32.gmra.mxu0 %v631
        %v656 = vpop.f32.mrf.mxu0
        %v657 = vadd.f32 %v619, %v656
        %658 = vmatmul.f32.gmra.mxu0 %v633
        %v659 = vpop.f32.mrf.mxu0
        %v660 = vadd.f32 %v622, %v659
        %661 = vdwg.mxu0
        %662 = vmatpush.msra.mxu0 %v550
        %663 = vmatpush.msra.mxu0 %v549
        %664 = vmatpush.msra.mxu0 %v548
        %665 = vmatpush.msra.mxu0 %v547
        %666 = vmatpush.msra.mxu0 %v546
        %667 = vmatpush.msra.mxu0 %v545
        %668 = vmatpush.msra.mxu0 %v544
        %669 = vmatpush.msra.mxu0 %v543
        %670 = vmatpush.msra.mxu0 %v542
        %671 = vmatpush.msra.mxu0 %v541
        %672 = vmatpush.msra.mxu0 %v540
        %673 = vmatpush.msra.mxu0 %v539
        %674 = vmatpush.msra.mxu0 %v538
        %675 = vmatpush.msra.mxu0 %v537
        %676 = vmatpush.msra.mxu0 %v536
        %677 = vmatpush.msra.mxu0 %v535
        %678 = vmatmul.f32.gmra.mxu0 %v632
        %v679 = vpop.f32.mrf.mxu0
        %v680 = vadd.f32 %v657, %v679
        %681 = vmatmul.f32.gmra.mxu0 %v634
        %v682 = vpop.f32.mrf.mxu0
        %v683 = vadd.f32 %v660, %v682
        %684 = vdwg.mxu0
        %v693 = vrot.slane %v495, 4
        %v694 = vrot.slane %v497, 4
        %v695 = vrot.slane %v499, 4
        %v696 = vrot.slane %v501, 4
        %v697 = vsel %vm514, %v494, %v693
        %v698 = vsel %vm514, %v496, %v694
        %v699 = vsel %vm514, %v498, %v695
        %v700 = vsel %vm514, %v500, %v696
        %s701 = scalar_lea.vmem [#allocation3], 256
        %v702 = vld [vmem:[%s701] sm:$0xff]
        %v703 = vld [vmem:[%s701 + $0x8] sm:$0xff]
        %v704 = vld [vmem:[%s701 + $0x10] sm:$0xff]
        %v705 = vld [vmem:[%s701 + $0x18] sm:$0xff]
        %v706 = vld [vmem:[%s701 + $0x20] sm:$0xff]
        %v707 = vld [vmem:[%s701 + $0x28] sm:$0xff]
        %v708 = vld [vmem:[%s701 + $0x30] sm:$0xff]
        %v709 = vld [vmem:[%s701 + $0x38] sm:$0xff]
        %v710 = vld [vmem:[%s701 + $0x40] sm:$0xff]
        %v711 = vld [vmem:[%s701 + $0x48] sm:$0xff]
        %v712 = vld [vmem:[%s701 + $0x50] sm:$0xff]
        %v713 = vld [vmem:[%s701 + $0x58] sm:$0xff]
        %v714 = vld [vmem:[%s701 + $0x60] sm:$0xff]
        %v715 = vld [vmem:[%s701 + $0x68] sm:$0xff]
        %v716 = vld [vmem:[%s701 + $0x70] sm:$0xff]
        %v717 = vld [vmem:[%s701 + $0x78] sm:$0xff]
        %v718 = vld [vmem:[%s701 + $0x80] sm:$0xff]
        %v719 = vld [vmem:[%s701 + $0x88] sm:$0xff]
        %v720 = vld [vmem:[%s701 + $0x90] sm:$0xff]
        %v721 = vld [vmem:[%s701 + $0x98] sm:$0xff]
        %v722 = vld [vmem:[%s701 + $0xa0] sm:$0xff]
        %v723 = vld [vmem:[%s701 + $0xa8] sm:$0xff]
        %v724 = vld [vmem:[%s701 + $0xb0] sm:$0xff]
        %v725 = vld [vmem:[%s701 + $0xb8] sm:$0xff]
        %v726 = vld [vmem:[%s701 + $0xc0] sm:$0xff]
        %v727 = vld [vmem:[%s701 + $0xc8] sm:$0xff]
        %v728 = vld [vmem:[%s701 + $0xd0] sm:$0xff]
        %v729 = vld [vmem:[%s701 + $0xd8] sm:$0xff]
        %v730 = vld [vmem:[%s701 + $0xe0] sm:$0xff]
        %v731 = vld [vmem:[%s701 + $0xe8] sm:$0xff]
        %v732 = vld [vmem:[%s701 + $0xf0] sm:$0xff]
        %v733 = vld [vmem:[%s701 + $0xf8] sm:$0xff]
        %734 = vst [vmem:[#allocation1] ss:$2 sm:$0xff] %v697
        %s735 = scalar_lea.vmem [#allocation1], 1
        %736 = vst [vmem:[%s735] ss:$2 sm:$0xff] %v698
        %s737 = scalar_lea.vmem [#allocation1], 16
        %738 = vst [vmem:[%s737] ss:$2 sm:$0xff] %v699
        %s739 = scalar_lea.vmem [#allocation1], 17
        %740 = vst [vmem:[%s739] ss:$2 sm:$0xff] %v700
        %v741 = vld.sshfl [vmem:[#allocation1] sm:$0xff pattern:$0x75316420]
        %v742 = vld.sshfl [vmem:[#allocation1 + $0x8] sm:$0xff pattern:$0x75316420]
        %v743 = vld.sshfl [vmem:[#allocation1 + $0x10] sm:$0xff pattern:$0x75316420]
        %v744 = vld.sshfl [vmem:[#allocation1 + $0x18] sm:$0xff pattern:$0x75316420]
        %749 = vmatpush.msra.mxu0 %v717
        %750 = vmatpush.msra.mxu0 %v716
        %751 = vmatpush.msra.mxu0 %v715
        %752 = vmatpush.msra.mxu0 %v714
        %753 = vmatpush.msra.mxu0 %v713
        %754 = vmatpush.msra.mxu0 %v712
        %755 = vmatpush.msra.mxu0 %v711
        %756 = vmatpush.msra.mxu0 %v710
        %757 = vmatpush.msra.mxu0 %v709
        %758 = vmatpush.msra.mxu0 %v708
        %759 = vmatpush.msra.mxu0 %v707
        %760 = vmatpush.msra.mxu0 %v706
        %761 = vmatpush.msra.mxu0 %v705
        %762 = vmatpush.msra.mxu0 %v704
        %763 = vmatpush.msra.mxu0 %v703
        %764 = vmatpush.msra.mxu0 %v702
        %765 = vmatmul.f32.gmra.mxu0 %v741
        %v766 = vpop.f32.mrf.mxu0
        %v767 = vadd.f32 0.0, %v766
        %768 = vmatmul.f32.gmra.mxu0 %v743
        %v769 = vpop.f32.mrf.mxu0
        %v770 = vadd.f32 0.0, %v769
        %771 = vdwg.mxu0
        %772 = vmatpush.msra.mxu0 %v733
        %773 = vmatpush.msra.mxu0 %v732
        %774 = vmatpush.msra.mxu0 %v731
        %775 = vmatpush.msra.mxu0 %v730
        %776 = vmatpush.msra.mxu0 %v729
        %777 = vmatpush.msra.mxu0 %v728
        %778 = vmatpush.msra.mxu0 %v727
        %779 = vmatpush.msra.mxu0 %v726
        %780 = vmatpush.msra.mxu0 %v725
        %781 = vmatpush.msra.mxu0 %v724
        %782 = vmatpush.msra.mxu0 %v723
        %783 = vmatpush.msra.mxu0 %v722
        %784 = vmatpush.msra.mxu0 %v721
        %785 = vmatpush.msra.mxu0 %v720
        %786 = vmatpush.msra.mxu0 %v719
        %787 = vmatpush.msra.mxu0 %v718
        %788 = vmatmul.f32.gmra.mxu0 %v742
        %v789 = vpop.f32.mrf.mxu0
        %v790 = vadd.f32 %v767, %v789
        %791 = vmatmul.f32.gmra.mxu0 %v744
        %v792 = vpop.f32.mrf.mxu0
        %v793 = vadd.f32 %v770, %v792
        %794 = vdwg.mxu0
        %v795 = vadd.f32 %v680, %v790
        %v796 = vadd.f32 %v683, %v793
        %v797 = vrot.slane %v494, 4
        %v798 = vrot.slane %v496, 4
        %v799 = vrot.slane %v498, 4
        %v800 = vrot.slane %v500, 4
        %v801 = vrot.slane %v494, 5
        %v802 = vrot.slane %v801, 4
        %v803 = vrot.slane %v797, 5
        %v804 = vsel %vm557, %v802, %v803
        %v805 = vrot.slane %v496, 5
        %v806 = vrot.slane %v805, 4
        %v807 = vrot.slane %v798, 5
        %v808 = vsel %vm557, %v806, %v807
        %v809 = vrot.slane %v498, 5
        %v810 = vrot.slane %v809, 4
        %v811 = vrot.slane %v799, 5
        %v812 = vsel %vm557, %v810, %v811
        %v813 = vrot.slane %v500, 5
        %v814 = vrot.slane %v813, 4
        %v815 = vrot.slane %v800, 5
        %v816 = vsel %vm557, %v814, %v815
        %s817 = scalar_lea.vmem [#allocation5], 128
        %v818 = vld [vmem:[%s817] sm:$0xff]
        %v819 = vld [vmem:[%s817 + $0x8] sm:$0xff]
        %v820 = vld [vmem:[%s817 + $0x10] sm:$0xff]
        %v821 = vld [vmem:[%s817 + $0x18] sm:$0xff]
        %v822 = vld [vmem:[%s817 + $0x20] sm:$0xff]
        %v823 = vld [vmem:[%s817 + $0x28] sm:$0xff]
        %v824 = vld [vmem:[%s817 + $0x30] sm:$0xff]
        %v825 = vld [vmem:[%s817 + $0x38] sm:$0xff]
        %v826 = vld [vmem:[%s817 + $0x40] sm:$0xff]
        %v827 = vld [vmem:[%s817 + $0x48] sm:$0xff]
        %v828 = vld [vmem:[%s817 + $0x50] sm:$0xff]
        %v829 = vld [vmem:[%s817 + $0x58] sm:$0xff]
        %v830 = vld [vmem:[%s817 + $0x60] sm:$0xff]
        %v831 = vld [vmem:[%s817 + $0x68] sm:$0xff]
        %v832 = vld [vmem:[%s817 + $0x70] sm:$0xff]
        %v833 = vld [vmem:[%s817 + $0x78] sm:$0xff]
        %834 = vst [vmem:[#allocation1] ss:$2 sm:$0xff] %v804
        %s835 = scalar_lea.vmem [#allocation1], 1
        %836 = vst [vmem:[%s835] ss:$2 sm:$0xff] %v808
        %s837 = scalar_lea.vmem [#allocation1], 16
        %838 = vst [vmem:[%s837] ss:$2 sm:$0xff] %v812
        %s839 = scalar_lea.vmem [#allocation1], 17
        %840 = vst [vmem:[%s839] ss:$2 sm:$0xff] %v816
        %v841 = vld.sshfl [vmem:[#allocation1] sm:$0xff pattern:$0x75316420]
        %v842 = vld.sshfl [vmem:[#allocation1 + $0x10] sm:$0xff pattern:$0x75316420]
        %845 = vmatpush.msra.mxu0 %v833
        %846 = vmatpush.msra.mxu0 %v832
        %847 = vmatpush.msra.mxu0 %v831
        %848 = vmatpush.msra.mxu0 %v830
        %849 = vmatpush.msra.mxu0 %v829
        %850 = vmatpush.msra.mxu0 %v828
        %851 = vmatpush.msra.mxu0 %v827
        %852 = vmatpush.msra.mxu0 %v826
        %853 = vmatpush.msra.mxu0 %v825
        %854 = vmatpush.msra.mxu0 %v824
        %855 = vmatpush.msra.mxu0 %v823
        %856 = vmatpush.msra.mxu0 %v822
        %857 = vmatpush.msra.mxu0 %v821
        %858 = vmatpush.msra.mxu0 %v820
        %859 = vmatpush.msra.mxu0 %v819
        %860 = vmatpush.msra.mxu0 %v818
        %861 = vmatmul.f32.gmra.mxu0 %v841
        %v862 = vpop.f32.mrf.mxu0
        %v863 = vadd.f32 0.0, %v862
        %864 = vmatmul.f32.gmra.mxu0 %v842
        %v865 = vpop.f32.mrf.mxu0
        %v866 = vadd.f32 0.0, %v865
        %867 = vdwg.mxu0
        %v868 = vadd.f32 %v795, %v863
        %v869 = vadd.f32 %v796, %v866
        %v872 = vrot.slane %v493, 4
        %v873 = vsel %vm514, %v492, %v872
        %s874 = scalar_lea.vmem [#allocation3], 512
        %v875 = vld [vmem:[%s874] sm:$0xff]
        %v876 = vld [vmem:[%s874 + $0x8] sm:$0xff]
        %v877 = vld [vmem:[%s874 + $0x10] sm:$0xff]
        %v878 = vld [vmem:[%s874 + $0x18] sm:$0xff]
        %v879 = vld [vmem:[%s874 + $0x20] sm:$0xff]
        %v880 = vld [vmem:[%s874 + $0x28] sm:$0xff]
        %v881 = vld [vmem:[%s874 + $0x30] sm:$0xff]
        %v882 = vld [vmem:[%s874 + $0x38] sm:$0xff]
        %v883 = vld [vmem:[%s874 + $0x40] sm:$0xff]
        %v884 = vld [vmem:[%s874 + $0x48] sm:$0xff]
        %v885 = vld [vmem:[%s874 + $0x50] sm:$0xff]
        %v886 = vld [vmem:[%s874 + $0x58] sm:$0xff]
        %v887 = vld [vmem:[%s874 + $0x60] sm:$0xff]
        %v888 = vld [vmem:[%s874 + $0x68] sm:$0xff]
        %v889 = vld [vmem:[%s874 + $0x70] sm:$0xff]
        %v890 = vld [vmem:[%s874 + $0x78] sm:$0xff]
        %v891 = vld [vmem:[%s874 + $0x80] sm:$0xff]
        %v892 = vld [vmem:[%s874 + $0x88] sm:$0xff]
        %v893 = vld [vmem:[%s874 + $0x90] sm:$0xff]
        %v894 = vld [vmem:[%s874 + $0x98] sm:$0xff]
        %v895 = vld [vmem:[%s874 + $0xa0] sm:$0xff]
        %v896 = vld [vmem:[%s874 + $0xa8] sm:$0xff]
        %v897 = vld [vmem:[%s874 + $0xb0] sm:$0xff]
        %v898 = vld [vmem:[%s874 + $0xb8] sm:$0xff]
        %v899 = vld [vmem:[%s874 + $0xc0] sm:$0xff]
        %v900 = vld [vmem:[%s874 + $0xc8] sm:$0xff]
        %v901 = vld [vmem:[%s874 + $0xd0] sm:$0xff]
        %v902 = vld [vmem:[%s874 + $0xd8] sm:$0xff]
        %v903 = vld [vmem:[%s874 + $0xe0] sm:$0xff]
        %v904 = vld [vmem:[%s874 + $0xe8] sm:$0xff]
        %v905 = vld [vmem:[%s874 + $0xf0] sm:$0xff]
        %v906 = vld [vmem:[%s874 + $0xf8] sm:$0xff]
        %907 = vst [vmem:[#allocation1] ss:$2 sm:$0xff] %v516
        %s908 = scalar_lea.vmem [#allocation1], 1
        %909 = vst [vmem:[%s908] ss:$2 sm:$0xff] %v517
        %s910 = scalar_lea.vmem [#allocation1], 16
        %911 = vst [vmem:[%s910] ss:$2 sm:$0xff] %v518
        %s912 = scalar_lea.vmem [#allocation1], 17
        %913 = vst [vmem:[%s912] ss:$2 sm:$0xff] %v873
        %v914 = vld.sshfl [vmem:[#allocation1] sm:$0xff pattern:$0x75316420]
        %v915 = vld.sshfl [vmem:[#allocation1 + $0x8] sm:$0xff pattern:$0x75316420]
        %v916 = vld.sshfl [vmem:[#allocation1 + $0x10] sm:$0xff pattern:$0x75316420]
        %v917 = vld.sshfl [vmem:[#allocation1 + $0x18] sm:$0xff pattern:$0x75316420]
        %922 = vmatpush.msra.mxu0 %v890
        %923 = vmatpush.msra.mxu0 %v889
        %924 = vmatpush.msra.mxu0 %v888
        %925 = vmatpush.msra.mxu0 %v887
        %926 = vmatpush.msra.mxu0 %v886
        %927 = vmatpush.msra.mxu0 %v885
        %928 = vmatpush.msra.mxu0 %v884
        %929 = vmatpush.msra.mxu0 %v883
        %930 = vmatpush.msra.mxu0 %v882
        %931 = vmatpush.msra.mxu0 %v881
        %932 = vmatpush.msra.mxu0 %v880
        %933 = vmatpush.msra.mxu0 %v879
        %934 = vmatpush.msra.mxu0 %v878
        %935 = vmatpush.msra.mxu0 %v877
        %936 = vmatpush.msra.mxu0 %v876
        %937 = vmatpush.msra.mxu0 %v875
        %938 = vmatmul.f32.gmra.mxu0 %v914
        %v939 = vpop.f32.mrf.mxu0
        %v940 = vadd.f32 0.0, %v939
        %941 = vmatmul.f32.gmra.mxu0 %v916
        %v942 = vpop.f32.mrf.mxu0
        %v943 = vadd.f32 0.0, %v942
        %944 = vdwg.mxu0
        %945 = vmatpush.msra.mxu0 %v906
        %946 = vmatpush.msra.mxu0 %v905
        %947 = vmatpush.msra.mxu0 %v904
        %948 = vmatpush.msra.mxu0 %v903
        %949 = vmatpush.msra.mxu0 %v902
        %950 = vmatpush.msra.mxu0 %v901
        %951 = vmatpush.msra.mxu0 %v900
        %952 = vmatpush.msra.mxu0 %v899
        %953 = vmatpush.msra.mxu0 %v898
        %954 = vmatpush.msra.mxu0 %v897
        %955 = vmatpush.msra.mxu0 %v896
        %956 = vmatpush.msra.mxu0 %v895
        %957 = vmatpush.msra.mxu0 %v894
        %958 = vmatpush.msra.mxu0 %v893
        %959 = vmatpush.msra.mxu0 %v892
        %960 = vmatpush.msra.mxu0 %v891
        %961 = vmatmul.f32.gmra.mxu0 %v915
        %v962 = vpop.f32.mrf.mxu0
        %v963 = vadd.f32 %v940, %v962
        %964 = vmatmul.f32.gmra.mxu0 %v917
        %v965 = vpop.f32.mrf.mxu0
        %v966 = vadd.f32 %v943, %v965
        %967 = vdwg.mxu0
        %v968 = vadd.f32 %v868, %v963
        %v969 = vadd.f32 %v869, %v966
        %v970 = vrot.slane %v492, 4
        %v971 = vrot.slane %v492, 5
        %v972 = vrot.slane %v971, 4
        %v973 = vrot.slane %v970, 5
        %v974 = vsel %vm557, %v972, %v973
        %s975 = scalar_lea.vmem [#allocation5], 256
        %v976 = vld [vmem:[%s975] sm:$0xff]
        %v977 = vld [vmem:[%s975 + $0x8] sm:$0xff]
        %v978 = vld [vmem:[%s975 + $0x10] sm:$0xff]
        %v979 = vld [vmem:[%s975 + $0x18] sm:$0xff]
        %v980 = vld [vmem:[%s975 + $0x20] sm:$0xff]
        %v981 = vld [vmem:[%s975 + $0x28] sm:$0xff]
        %v982 = vld [vmem:[%s975 + $0x30] sm:$0xff]
        %v983 = vld [vmem:[%s975 + $0x38] sm:$0xff]
        %v984 = vld [vmem:[%s975 + $0x40] sm:$0xff]
        %v985 = vld [vmem:[%s975 + $0x48] sm:$0xff]
        %v986 = vld [vmem:[%s975 + $0x50] sm:$0xff]
        %v987 = vld [vmem:[%s975 + $0x58] sm:$0xff]
        %v988 = vld [vmem:[%s975 + $0x60] sm:$0xff]
        %v989 = vld [vmem:[%s975 + $0x68] sm:$0xff]
        %v990 = vld [vmem:[%s975 + $0x70] sm:$0xff]
        %v991 = vld [vmem:[%s975 + $0x78] sm:$0xff]
        %992 = vst [vmem:[#allocation1] ss:$2 sm:$0xff] %v565
        %s993 = scalar_lea.vmem [#allocation1], 1
        %994 = vst [vmem:[%s993] ss:$2 sm:$0xff] %v569
        %s995 = scalar_lea.vmem [#allocation1], 16
        %996 = vst [vmem:[%s995] ss:$2 sm:$0xff] %v573
        %s997 = scalar_lea.vmem [#allocation1], 17
        %998 = vst [vmem:[%s997] ss:$2 sm:$0xff] %v974
        %v999 = vld.sshfl [vmem:[#allocation1] sm:$0xff pattern:$0x75316420]
        %v1000 = vld.sshfl [vmem:[#allocation1 + $0x10] sm:$0xff pattern:$0x75316420]
        %1003 = vmatpush.msra.mxu0 %v991
        %1004 = vmatpush.msra.mxu0 %v990
        %1005 = vmatpush.msra.mxu0 %v989
        %1006 = vmatpush.msra.mxu0 %v988
        %1007 = vmatpush.msra.mxu0 %v987
        %1008 = vmatpush.msra.mxu0 %v986
        %1009 = vmatpush.msra.mxu0 %v985
        %1010 = vmatpush.msra.mxu0 %v984
        %1011 = vmatpush.msra.mxu0 %v983
        %1012 = vmatpush.msra.mxu0 %v982
        %1013 = vmatpush.msra.mxu0 %v981
        %1014 = vmatpush.msra.mxu0 %v980
        %1015 = vmatpush.msra.mxu0 %v979
        %1016 = vmatpush.msra.mxu0 %v978
        %1017 = vmatpush.msra.mxu0 %v977
        %1018 = vmatpush.msra.mxu0 %v976
        %1019 = vmatmul.f32.gmra.mxu0 %v999
        %v1020 = vpop.f32.mrf.mxu0
        %v1021 = vadd.f32 0.0, %v1020
        %1022 = vmatmul.f32.gmra.mxu0 %v1000
        %v1023 = vpop.f32.mrf.mxu0
        %v1024 = vadd.f32 0.0, %v1023
        %1025 = vdwg.mxu0
        %v1026 = vadd.f32 %v968, %v1021
        %v1027 = vadd.f32 %v969, %v1024
        %v1028 = vld [vmem:[%s4] sm:$0x1]
        %v1030 = vperm.slane %v1028, 0
        %v1032 = vmul.f32 %v1026, %v1030
        %v1033 = vmul.f32 %v1027, %v1030
        %v1034 = vld [vmem:[%s5] sm:$0x1]
        %v1036 = vperm.slane %v1034, 0
        %v1038 = vadd.f32 %v1032, %v1036
        %v1039 = vadd.f32 %v1033, %v1036
        %v1040 = vmax.f32 %v1038, 0.0
        %v1041 = vmax.f32 %v1039, 0.0
        %1042 = vst [vmem:[#allocation2] sm:$0x3f] 0.0
        %1043 = vst [vmem:[#allocation2 + $0x8] sm:$0x3f] 0.0
        %1044 = vst [vmem:[#allocation2 + $0x10] sm:$0x3f] 0.0
        %1045 = vst [vmem:[#allocation2 + $0x18] sm:$0x3f] 0.0
        %1046 = vst [vmem:[#allocation2 + $0x20] sm:$0x3f] 0.0
        %1047 = vst [vmem:[#allocation2 + $0x28] sm:$0x3f] 0.0
        %v1050 = vrot.slane %v1040, 4
        %v1051 = vrot.slane %v1041, 4
        %s1054 = scalar_lea.vmem [#allocation2], 8
        %1055 = vst [vmem:[%s1054 + $0x1] sm:$0xf] %v1040
        %1056 = vst [vmem:[%s1054 + $0x9] sm:$0xf] %v1050
        %1057 = vst [vmem:[%s1054 + $0x11] sm:$0xf] %v1041
        %1058 = vst [vmem:[%s1054 + $0x19] sm:$0xf] %v1051
        %v1059 = vld [vmem:[#allocation2] sm:$0x3f]
        %v1060 = vld [vmem:[#allocation2 + $0x8] sm:$0x3f]
        %v1061 = vld [vmem:[#allocation2 + $0x10] sm:$0x3f]
        %v1062 = vld [vmem:[#allocation2 + $0x18] sm:$0x3f]
        %v1063 = vld [vmem:[#allocation2 + $0x20] sm:$0x3f]
        %v1064 = vld [vmem:[#allocation2 + $0x28] sm:$0x3f]
        %v1071 = vrot.slane %v1059, 1
        %v1072 = vrot.slane %v1060, 1
        %v1073 = vrot.slane %v1061, 1
        %v1074 = vrot.slane %v1062, 1
        %v1075 = vrot.slane %v1063, 1
        %v1076 = vrot.slane %v1064, 1
        %v1077 = vrot.slane %v1059, 2
        %v1078 = vrot.slane %v1060, 2
        %v1079 = vrot.slane %v1061, 2
        %v1080 = vrot.slane %v1062, 2
        %v1081 = vrot.slane %v1063, 2
        %v1082 = vrot.slane %v1064, 2
        %v1083 = vrot.slane %v1071, 4
        %v1084 = vrot.slane %v1072, 4
        %v1085 = vrot.slane %v1073, 4
        %v1086 = vrot.slane %v1074, 4
        %v1087 = vsel %vm514, %v1059, %v1083
        %v1088 = vsel %vm514, %v1060, %v1084
        %v1089 = vsel %vm514, %v1061, %v1085
        %v1090 = vsel %vm514, %v1062, %v1086
        %v1091 = vld [vmem:[%s6] sm:$0xff]
        %v1092 = vld [vmem:[%s6 + $0x8] sm:$0xff]
        %v1093 = vld [vmem:[%s6 + $0x10] sm:$0xff]
        %v1094 = vld [vmem:[%s6 + $0x18] sm:$0xff]
        %v1095 = vld [vmem:[%s6 + $0x20] sm:$0xff]
        %v1096 = vld [vmem:[%s6 + $0x28] sm:$0xff]
        %v1097 = vld [vmem:[%s6 + $0x30] sm:$0xff]
        %v1098 = vld [vmem:[%s6 + $0x38] sm:$0xff]
        %v1099 = vld [vmem:[%s6 + $0x40] sm:$0xff]
        %v1100 = vld [vmem:[%s6 + $0x48] sm:$0xff]
        %v1101 = vld [vmem:[%s6 + $0x50] sm:$0xff]
        %v1102 = vld [vmem:[%s6 + $0x58] sm:$0xff]
        %v1103 = vld [vmem:[%s6 + $0x60] sm:$0xff]
        %v1104 = vld [vmem:[%s6 + $0x68] sm:$0xff]
        %v1105 = vld [vmem:[%s6 + $0x70] sm:$0xff]
        %v1106 = vld [vmem:[%s6 + $0x78] sm:$0xff]
        %v1107 = vld [vmem:[%s6 + $0x80] sm:$0xff]
        %v1108 = vld [vmem:[%s6 + $0x88] sm:$0xff]
        %v1109 = vld [vmem:[%s6 + $0x90] sm:$0xff]
        %v1110 = vld [vmem:[%s6 + $0x98] sm:$0xff]
        %v1111 = vld [vmem:[%s6 + $0xa0] sm:$0xff]
        %v1112 = vld [vmem:[%s6 + $0xa8] sm:$0xff]
        %v1113 = vld [vmem:[%s6 + $0xb0] sm:$0xff]
        %v1114 = vld [vmem:[%s6 + $0xb8] sm:$0xff]
        %v1115 = vld [vmem:[%s6 + $0xc0] sm:$0xff]
        %v1116 = vld [vmem:[%s6 + $0xc8] sm:$0xff]
        %v1117 = vld [vmem:[%s6 + $0xd0] sm:$0xff]
        %v1118 = vld [vmem:[%s6 + $0xd8] sm:$0xff]
        %v1119 = vld [vmem:[%s6 + $0xe0] sm:$0xff]
        %v1120 = vld [vmem:[%s6 + $0xe8] sm:$0xff]
        %v1121 = vld [vmem:[%s6 + $0xf0] sm:$0xff]
        %v1122 = vld [vmem:[%s6 + $0xf8] sm:$0xff]
        %v1123 = vld [vmem:[%s6 + $0x100] sm:$0xff]
        %v1124 = vld [vmem:[%s6 + $0x108] sm:$0xff]
        %v1125 = vld [vmem:[%s6 + $0x110] sm:$0xff]
        %v1126 = vld [vmem:[%s6 + $0x118] sm:$0xff]
        %v1127 = vld [vmem:[%s6 + $0x120] sm:$0xff]
        %v1128 = vld [vmem:[%s6 + $0x128] sm:$0xff]
        %v1129 = vld [vmem:[%s6 + $0x130] sm:$0xff]
        %v1130 = vld [vmem:[%s6 + $0x138] sm:$0xff]
        %v1131 = vld [vmem:[%s6 + $0x140] sm:$0xff]
        %v1132 = vld [vmem:[%s6 + $0x148] sm:$0xff]
        %v1133 = vld [vmem:[%s6 + $0x150] sm:$0xff]
        %v1134 = vld [vmem:[%s6 + $0x158] sm:$0xff]
        %v1135 = vld [vmem:[%s6 + $0x160] sm:$0xff]
        %v1136 = vld [vmem:[%s6 + $0x168] sm:$0xff]
        %v1137 = vld [vmem:[%s6 + $0x170] sm:$0xff]
        %v1138 = vld [vmem:[%s6 + $0x178] sm:$0xff]
        %v1139 = vrot.slane %v1075, 4
        %v1140 = vsel %vm514, %v1063, %v1139
        %s1141 = scalar_lea.vmem %s6, 384
        %v1142 = vld [vmem:[%s1141] sm:$0xff]
        %v1143 = vld [vmem:[%s1141 + $0x8] sm:$0xff]
        %v1144 = vld [vmem:[%s1141 + $0x10] sm:$0xff]
        %v1145 = vld [vmem:[%s1141 + $0x18] sm:$0xff]
        %v1146 = vld [vmem:[%s1141 + $0x20] sm:$0xff]
        %v1147 = vld [vmem:[%s1141 + $0x28] sm:$0xff]
        %v1148 = vld [vmem:[%s1141 + $0x30] sm:$0xff]
        %v1149 = vld [vmem:[%s1141 + $0x38] sm:$0xff]
        %v1150 = vld [vmem:[%s1141 + $0x40] sm:$0xff]
        %v1151 = vld [vmem:[%s1141 + $0x48] sm:$0xff]
        %v1152 = vld [vmem:[%s1141 + $0x50] sm:$0xff]
        %v1153 = vld [vmem:[%s1141 + $0x58] sm:$0xff]
        %v1154 = vld [vmem:[%s1141 + $0x60] sm:$0xff]
        %v1155 = vld [vmem:[%s1141 + $0x68] sm:$0xff]
        %v1156 = vld [vmem:[%s1141 + $0x70] sm:$0xff]
        %v1157 = vld [vmem:[%s1141 + $0x78] sm:$0xff]
        %v1158 = vld [vmem:[%s1141 + $0x80] sm:$0xff]
        %v1159 = vld [vmem:[%s1141 + $0x88] sm:$0xff]
        %v1160 = vld [vmem:[%s1141 + $0x90] sm:$0xff]
        %v1161 = vld [vmem:[%s1141 + $0x98] sm:$0xff]
        %v1162 = vld [vmem:[%s1141 + $0xa0] sm:$0xff]
        %v1163 = vld [vmem:[%s1141 + $0xa8] sm:$0xff]
        %v1164 = vld [vmem:[%s1141 + $0xb0] sm:$0xff]
        %v1165 = vld [vmem:[%s1141 + $0xb8] sm:$0xff]
        %v1166 = vld [vmem:[%s1141 + $0xc0] sm:$0xff]
        %v1167 = vld [vmem:[%s1141 + $0xc8] sm:$0xff]
        %v1168 = vld [vmem:[%s1141 + $0xd0] sm:$0xff]
        %v1169 = vld [vmem:[%s1141 + $0xd8] sm:$0xff]
        %v1170 = vld [vmem:[%s1141 + $0xe0] sm:$0xff]
        %v1171 = vld [vmem:[%s1141 + $0xe8] sm:$0xff]
        %v1172 = vld [vmem:[%s1141 + $0xf0] sm:$0xff]
        %v1173 = vld [vmem:[%s1141 + $0xf8] sm:$0xff]
        %v1174 = vld [vmem:[%s1141 + $0x100] sm:$0xff]
        %v1175 = vld [vmem:[%s1141 + $0x108] sm:$0xff]
        %v1176 = vld [vmem:[%s1141 + $0x110] sm:$0xff]
        %v1177 = vld [vmem:[%s1141 + $0x118] sm:$0xff]
        %v1178 = vld [vmem:[%s1141 + $0x120] sm:$0xff]
        %v1179 = vld [vmem:[%s1141 + $0x128] sm:$0xff]
        %v1180 = vld [vmem:[%s1141 + $0x130] sm:$0xff]
        %v1181 = vld [vmem:[%s1141 + $0x138] sm:$0xff]
        %v1182 = vld [vmem:[%s1141 + $0x140] sm:$0xff]
        %v1183 = vld [vmem:[%s1141 + $0x148] sm:$0xff]
        %v1184 = vld [vmem:[%s1141 + $0x150] sm:$0xff]
        %v1185 = vld [vmem:[%s1141 + $0x158] sm:$0xff]
        %v1186 = vld [vmem:[%s1141 + $0x160] sm:$0xff]
        %v1187 = vld [vmem:[%s1141 + $0x168] sm:$0xff]
        %v1188 = vld [vmem:[%s1141 + $0x170] sm:$0xff]
        %v1189 = vld [vmem:[%s1141 + $0x178] sm:$0xff]
        %1190 = vst [vmem:[#allocation1] ss:$2 sm:$0xff] %v1088
        %s1191 = scalar_lea.vmem [#allocation1], 1
        %1192 = vst [vmem:[%s1191] ss:$2 sm:$0xff] %v1089
        %s1193 = scalar_lea.vmem [#allocation1], 16
        %1194 = vst [vmem:[%s1193] ss:$2 sm:$0xff] %v1078
        %s1195 = scalar_lea.vmem [#allocation1], 17
        %1196 = vst [vmem:[%s1195] ss:$2 sm:$0xff] %v1079
        %s1197 = scalar_lea.vmem [#allocation1], 32
        %1198 = vst [vmem:[%s1197] ss:$2 sm:$0xff] %v1090
        %s1199 = scalar_lea.vmem [#allocation1], 33
        %1200 = vst [vmem:[%s1199] ss:$2 sm:$0xff] %v1140
        %s1201 = scalar_lea.vmem [#allocation1], 48
        %1202 = vst [vmem:[%s1201] ss:$2 sm:$0xff] %v1080
        %s1203 = scalar_lea.vmem [#allocation1], 49
        %1204 = vst [vmem:[%s1203] ss:$2 sm:$0xff] %v1081
        %v1205 = vld.sshfl [vmem:[#allocation1] sm:$0xff pattern:$0x75316420]
        %v1206 = vld.sshfl [vmem:[#allocation1 + $0x8] sm:$0xff pattern:$0x75316420]
        %v1207 = vld.sshfl [vmem:[#allocation1 + $0x10] sm:$0xff pattern:$0x75316420]
        %v1208 = vld.sshfl [vmem:[#allocation1 + $0x20] sm:$0xff pattern:$0x75316420]
        %v1209 = vld.sshfl [vmem:[#allocation1 + $0x28] sm:$0xff pattern:$0x75316420]
        %v1210 = vld.sshfl [vmem:[#allocation1 + $0x30] sm:$0xff pattern:$0x75316420]
        %1217 = vmatpush.msra.mxu0 %v1157
        %1218 = vmatpush.msra.mxu0 %v1156
        %1219 = vmatpush.msra.mxu0 %v1155
        %1220 = vmatpush.msra.mxu0 %v1154
        %1221 = vmatpush.msra.mxu0 %v1153
        %1222 = vmatpush.msra.mxu0 %v1152
        %1223 = vmatpush.msra.mxu0 %v1151
        %1224 = vmatpush.msra.mxu0 %v1150
        %1225 = vmatpush.msra.mxu0 %v1149
        %1226 = vmatpush.msra.mxu0 %v1148
        %1227 = vmatpush.msra.mxu0 %v1147
        %1228 = vmatpush.msra.mxu0 %v1146
        %1229 = vmatpush.msra.mxu0 %v1145
        %1230 = vmatpush.msra.mxu0 %v1144
        %1231 = vmatpush.msra.mxu0 %v1143
        %1232 = vmatpush.msra.mxu0 %v1142
        %1233 = vmatmul.f32.gmra.mxu0 %v1205
        %v1234 = vpop.f32.mrf.mxu0
        %v1235 = vadd.f32 0.0, %v1234
        %1236 = vmatmul.f32.gmra.mxu0 %v1208
        %v1237 = vpop.f32.mrf.mxu0
        %v1238 = vadd.f32 0.0, %v1237
        %1239 = vdwg.mxu0
        %1240 = vmatpush.msra.mxu0 %v1173
        %1241 = vmatpush.msra.mxu0 %v1172
        %1242 = vmatpush.msra.mxu0 %v1171
        %1243 = vmatpush.msra.mxu0 %v1170
        %1244 = vmatpush.msra.mxu0 %v1169
        %1245 = vmatpush.msra.mxu0 %v1168
        %1246 = vmatpush.msra.mxu0 %v1167
        %1247 = vmatpush.msra.mxu0 %v1166
        %1248 = vmatpush.msra.mxu0 %v1165
        %1249 = vmatpush.msra.mxu0 %v1164
        %1250 = vmatpush.msra.mxu0 %v1163
        %1251 = vmatpush.msra.mxu0 %v1162
        %1252 = vmatpush.msra.mxu0 %v1161
        %1253 = vmatpush.msra.mxu0 %v1160
        %1254 = vmatpush.msra.mxu0 %v1159
        %1255 = vmatpush.msra.mxu0 %v1158
        %1256 = vmatmul.f32.gmra.mxu0 %v1206
        %v1257 = vpop.f32.mrf.mxu0
        %v1258 = vadd.f32 %v1235, %v1257
        %1259 = vmatmul.f32.gmra.mxu0 %v1209
        %v1260 = vpop.f32.mrf.mxu0
        %v1261 = vadd.f32 %v1238, %v1260
        %1262 = vdwg.mxu0
        %1263 = vmatpush.msra.mxu0 %v1189
        %1264 = vmatpush.msra.mxu0 %v1188
        %1265 = vmatpush.msra.mxu0 %v1187
        %1266 = vmatpush.msra.mxu0 %v1186
        %1267 = vmatpush.msra.mxu0 %v1185
        %1268 = vmatpush.msra.mxu0 %v1184
        %1269 = vmatpush.msra.mxu0 %v1183
        %1270 = vmatpush.msra.mxu0 %v1182
        %1271 = vmatpush.msra.mxu0 %v1181
        %1272 = vmatpush.msra.mxu0 %v1180
        %1273 = vmatpush.msra.mxu0 %v1179
        %1274 = vmatpush.msra.mxu0 %v1178
        %1275 = vmatpush.msra.mxu0 %v1177
        %1276 = vmatpush.msra.mxu0 %v1176
        %1277 = vmatpush.msra.mxu0 %v1175
        %1278 = vmatpush.msra.mxu0 %v1174
        %1279 = vmatmul.f32.gmra.mxu0 %v1207
        %v1280 = vpop.f32.mrf.mxu0
        %v1281 = vadd.f32 %v1258, %v1280
        %1282 = vmatmul.f32.gmra.mxu0 %v1210
        %v1283 = vpop.f32.mrf.mxu0
        %v1284 = vadd.f32 %v1261, %v1283
        %1285 = vdwg.mxu0
        %1286 = vst [vmem:[#allocation1] ss:$2 sm:$0xff] %v1087
        %s1287 = scalar_lea.vmem [#allocation1], 1
        %1288 = vst [vmem:[%s1287] ss:$2 sm:$0xff] %v1088
        %s1289 = scalar_lea.vmem [#allocation1], 16
        %1290 = vst [vmem:[%s1289] ss:$2 sm:$0xff] %v1077
        %s1291 = scalar_lea.vmem [#allocation1], 17
        %1292 = vst [vmem:[%s1291] ss:$2 sm:$0xff] %v1078
        %s1293 = scalar_lea.vmem [#allocation1], 32
        %1294 = vst [vmem:[%s1293] ss:$2 sm:$0xff] %v1089
        %s1295 = scalar_lea.vmem [#allocation1], 33
        %1296 = vst [vmem:[%s1295] ss:$2 sm:$0xff] %v1090
        %s1297 = scalar_lea.vmem [#allocation1], 48
        %1298 = vst [vmem:[%s1297] ss:$2 sm:$0xff] %v1079
        %s1299 = scalar_lea.vmem [#allocation1], 49
        %1300 = vst [vmem:[%s1299] ss:$2 sm:$0xff] %v1080
        %v1301 = vld.sshfl [vmem:[#allocation1] sm:$0xff pattern:$0x75316420]
        %v1302 = vld.sshfl [vmem:[#allocation1 + $0x8] sm:$0xff pattern:$0x75316420]
        %v1303 = vld.sshfl [vmem:[#allocation1 + $0x10] sm:$0xff pattern:$0x75316420]
        %v1304 = vld.sshfl [vmem:[#allocation1 + $0x20] sm:$0xff pattern:$0x75316420]
        %v1305 = vld.sshfl [vmem:[#allocation1 + $0x28] sm:$0xff pattern:$0x75316420]
        %v1306 = vld.sshfl [vmem:[#allocation1 + $0x30] sm:$0xff pattern:$0x75316420]
        %1313 = vmatpush.msra.mxu0 %v1106
        %1314 = vmatpush.msra.mxu0 %v1105
        %1315 = vmatpush.msra.mxu0 %v1104
        %1316 = vmatpush.msra.mxu0 %v1103
        %1317 = vmatpush.msra.mxu0 %v1102
        %1318 = vmatpush.msra.mxu0 %v1101
        %1319 = vmatpush.msra.mxu0 %v1100
        %1320 = vmatpush.msra.mxu0 %v1099
        %1321 = vmatpush.msra.mxu0 %v1098
        %1322 = vmatpush.msra.mxu0 %v1097
        %1323 = vmatpush.msra.mxu0 %v1096
        %1324 = vmatpush.msra.mxu0 %v1095
        %1325 = vmatpush.msra.mxu0 %v1094
        %1326 = vmatpush.msra.mxu0 %v1093
        %1327 = vmatpush.msra.mxu0 %v1092
        %1328 = vmatpush.msra.mxu0 %v1091
        %1329 = vmatmul.f32.gmra.mxu0 %v1301
        %v1330 = vpop.f32.mrf.mxu0
        %v1331 = vadd.f32 %v1281, %v1330
        %1332 = vmatmul.f32.gmra.mxu0 %v1304
        %v1333 = vpop.f32.mrf.mxu0
        %v1334 = vadd.f32 %v1284, %v1333
        %1335 = vdwg.mxu0
        %1336 = vmatpush.msra.mxu0 %v1122
        %1337 = vmatpush.msra.mxu0 %v1121
        %1338 = vmatpush.msra.mxu0 %v1120
        %1339 = vmatpush.msra.mxu0 %v1119
        %1340 = vmatpush.msra.mxu0 %v1118
        %1341 = vmatpush.msra.mxu0 %v1117
        %1342 = vmatpush.msra.mxu0 %v1116
        %1343 = vmatpush.msra.mxu0 %v1115
        %1344 = vmatpush.msra.mxu0 %v1114
        %1345 = vmatpush.msra.mxu0 %v1113
        %1346 = vmatpush.msra.mxu0 %v1112
        %1347 = vmatpush.msra.mxu0 %v1111
        %1348 = vmatpush.msra.mxu0 %v1110
        %1349 = vmatpush.msra.mxu0 %v1109
        %1350 = vmatpush.msra.mxu0 %v1108
        %1351 = vmatpush.msra.mxu0 %v1107
        %1352 = vmatmul.f32.gmra.mxu0 %v1302
        %v1353 = vpop.f32.mrf.mxu0
        %v1354 = vadd.f32 %v1331, %v1353
        %1355 = vmatmul.f32.gmra.mxu0 %v1305
        %v1356 = vpop.f32.mrf.mxu0
        %v1357 = vadd.f32 %v1334, %v1356
        %1358 = vdwg.mxu0
        %1359 = vmatpush.msra.mxu0 %v1138
        %1360 = vmatpush.msra.mxu0 %v1137
        %1361 = vmatpush.msra.mxu0 %v1136
        %1362 = vmatpush.msra.mxu0 %v1135
        %1363 = vmatpush.msra.mxu0 %v1134
        %1364 = vmatpush.msra.mxu0 %v1133
        %1365 = vmatpush.msra.mxu0 %v1132
        %1366 = vmatpush.msra.mxu0 %v1131
        %1367 = vmatpush.msra.mxu0 %v1130
        %1368 = vmatpush.msra.mxu0 %v1129
        %1369 = vmatpush.msra.mxu0 %v1128
        %1370 = vmatpush.msra.mxu0 %v1127
        %1371 = vmatpush.msra.mxu0 %v1126
        %1372 = vmatpush.msra.mxu0 %v1125
        %1373 = vmatpush.msra.mxu0 %v1124
        %1374 = vmatpush.msra.mxu0 %v1123
        %1375 = vmatmul.f32.gmra.mxu0 %v1303
        %v1376 = vpop.f32.mrf.mxu0
        %v1377 = vadd.f32 %v1354, %v1376
        %1378 = vmatmul.f32.gmra.mxu0 %v1306
        %v1379 = vpop.f32.mrf.mxu0
        %v1380 = vadd.f32 %v1357, %v1379
        %1381 = vdwg.mxu0
        %v1382 = vrot.slane %v1076, 4
        %v1383 = vsel %vm514, %v1064, %v1382
        %s1384 = scalar_lea.vmem %s6, 768
        %v1385 = vld [vmem:[%s1384] sm:$0xff]
        %v1386 = vld [vmem:[%s1384 + $0x8] sm:$0xff]
        %v1387 = vld [vmem:[%s1384 + $0x10] sm:$0xff]
        %v1388 = vld [vmem:[%s1384 + $0x18] sm:$0xff]
        %v1389 = vld [vmem:[%s1384 + $0x20] sm:$0xff]
        %v1390 = vld [vmem:[%s1384 + $0x28] sm:$0xff]
        %v1391 = vld [vmem:[%s1384 + $0x30] sm:$0xff]
        %v1392 = vld [vmem:[%s1384 + $0x38] sm:$0xff]
        %v1393 = vld [vmem:[%s1384 + $0x40] sm:$0xff]
        %v1394 = vld [vmem:[%s1384 + $0x48] sm:$0xff]
        %v1395 = vld [vmem:[%s1384 + $0x50] sm:$0xff]
        %v1396 = vld [vmem:[%s1384 + $0x58] sm:$0xff]
        %v1397 = vld [vmem:[%s1384 + $0x60] sm:$0xff]
        %v1398 = vld [vmem:[%s1384 + $0x68] sm:$0xff]
        %v1399 = vld [vmem:[%s1384 + $0x70] sm:$0xff]
        %v1400 = vld [vmem:[%s1384 + $0x78] sm:$0xff]
        %v1401 = vld [vmem:[%s1384 + $0x80] sm:$0xff]
        %v1402 = vld [vmem:[%s1384 + $0x88] sm:$0xff]
        %v1403 = vld [vmem:[%s1384 + $0x90] sm:$0xff]
        %v1404 = vld [vmem:[%s1384 + $0x98] sm:$0xff]
        %v1405 = vld [vmem:[%s1384 + $0xa0] sm:$0xff]
        %v1406 = vld [vmem:[%s1384 + $0xa8] sm:$0xff]
        %v1407 = vld [vmem:[%s1384 + $0xb0] sm:$0xff]
        %v1408 = vld [vmem:[%s1384 + $0xb8] sm:$0xff]
        %v1409 = vld [vmem:[%s1384 + $0xc0] sm:$0xff]
        %v1410 = vld [vmem:[%s1384 + $0xc8] sm:$0xff]
        %v1411 = vld [vmem:[%s1384 + $0xd0] sm:$0xff]
        %v1412 = vld [vmem:[%s1384 + $0xd8] sm:$0xff]
        %v1413 = vld [vmem:[%s1384 + $0xe0] sm:$0xff]
        %v1414 = vld [vmem:[%s1384 + $0xe8] sm:$0xff]
        %v1415 = vld [vmem:[%s1384 + $0xf0] sm:$0xff]
        %v1416 = vld [vmem:[%s1384 + $0xf8] sm:$0xff]
        %v1417 = vld [vmem:[%s1384 + $0x100] sm:$0xff]
        %v1418 = vld [vmem:[%s1384 + $0x108] sm:$0xff]
        %v1419 = vld [vmem:[%s1384 + $0x110] sm:$0xff]
        %v1420 = vld [vmem:[%s1384 + $0x118] sm:$0xff]
        %v1421 = vld [vmem:[%s1384 + $0x120] sm:$0xff]
        %v1422 = vld [vmem:[%s1384 + $0x128] sm:$0xff]
        %v1423 = vld [vmem:[%s1384 + $0x130] sm:$0xff]
        %v1424 = vld [vmem:[%s1384 + $0x138] sm:$0xff]
        %v1425 = vld [vmem:[%s1384 + $0x140] sm:$0xff]
        %v1426 = vld [vmem:[%s1384 + $0x148] sm:$0xff]
        %v1427 = vld [vmem:[%s1384 + $0x150] sm:$0xff]
        %v1428 = vld [vmem:[%s1384 + $0x158] sm:$0xff]
        %v1429 = vld [vmem:[%s1384 + $0x160] sm:$0xff]
        %v1430 = vld [vmem:[%s1384 + $0x168] sm:$0xff]
        %v1431 = vld [vmem:[%s1384 + $0x170] sm:$0xff]
        %v1432 = vld [vmem:[%s1384 + $0x178] sm:$0xff]
        %1433 = vst [vmem:[#allocation1] ss:$2 sm:$0xff] %v1089
        %s1434 = scalar_lea.vmem [#allocation1], 1
        %1435 = vst [vmem:[%s1434] ss:$2 sm:$0xff] %v1090
        %s1436 = scalar_lea.vmem [#allocation1], 16
        %1437 = vst [vmem:[%s1436] ss:$2 sm:$0xff] %v1079
        %s1438 = scalar_lea.vmem [#allocation1], 17
        %1439 = vst [vmem:[%s1438] ss:$2 sm:$0xff] %v1080
        %s1440 = scalar_lea.vmem [#allocation1], 32
        %1441 = vst [vmem:[%s1440] ss:$2 sm:$0xff] %v1140
        %s1442 = scalar_lea.vmem [#allocation1], 33
        %1443 = vst [vmem:[%s1442] ss:$2 sm:$0xff] %v1383
        %s1444 = scalar_lea.vmem [#allocation1], 48
        %1445 = vst [vmem:[%s1444] ss:$2 sm:$0xff] %v1081
        %s1446 = scalar_lea.vmem [#allocation1], 49
        %1447 = vst [vmem:[%s1446] ss:$2 sm:$0xff] %v1082
        %v1448 = vld.sshfl [vmem:[#allocation1] sm:$0xff pattern:$0x75316420]
        %v1449 = vld.sshfl [vmem:[#allocation1 + $0x8] sm:$0xff pattern:$0x75316420]
        %v1450 = vld.sshfl [vmem:[#allocation1 + $0x10] sm:$0xff pattern:$0x75316420]
        %v1451 = vld.sshfl [vmem:[#allocation1 + $0x20] sm:$0xff pattern:$0x75316420]
        %v1452 = vld.sshfl [vmem:[#allocation1 + $0x28] sm:$0xff pattern:$0x75316420]
        %v1453 = vld.sshfl [vmem:[#allocation1 + $0x30] sm:$0xff pattern:$0x75316420]
        %1460 = vmatpush.msra.mxu0 %v1400
        %1461 = vmatpush.msra.mxu0 %v1399
        %1462 = vmatpush.msra.mxu0 %v1398
        %1463 = vmatpush.msra.mxu0 %v1397
        %1464 = vmatpush.msra.mxu0 %v1396
        %1465 = vmatpush.msra.mxu0 %v1395
        %1466 = vmatpush.msra.mxu0 %v1394
        %1467 = vmatpush.msra.mxu0 %v1393
        %1468 = vmatpush.msra.mxu0 %v1392
        %1469 = vmatpush.msra.mxu0 %v1391
        %1470 = vmatpush.msra.mxu0 %v1390
        %1471 = vmatpush.msra.mxu0 %v1389
        %1472 = vmatpush.msra.mxu0 %v1388
        %1473 = vmatpush.msra.mxu0 %v1387
        %1474 = vmatpush.msra.mxu0 %v1386
        %1475 = vmatpush.msra.mxu0 %v1385
        %1476 = vmatmul.f32.gmra.mxu0 %v1448
        %v1477 = vpop.f32.mrf.mxu0
        %v1478 = vadd.f32 0.0, %v1477
        %1479 = vmatmul.f32.gmra.mxu0 %v1451
        %v1480 = vpop.f32.mrf.mxu0
        %v1481 = vadd.f32 0.0, %v1480
        %1482 = vdwg.mxu0
        %1483 = vmatpush.msra.mxu0 %v1416
        %1484 = vmatpush.msra.mxu0 %v1415
        %1485 = vmatpush.msra.mxu0 %v1414
        %1486 = vmatpush.msra.mxu0 %v1413
        %1487 = vmatpush.msra.mxu0 %v1412
        %1488 = vmatpush.msra.mxu0 %v1411
        %1489 = vmatpush.msra.mxu0 %v1410
        %1490 = vmatpush.msra.mxu0 %v1409
        %1491 = vmatpush.msra.mxu0 %v1408
        %1492 = vmatpush.msra.mxu0 %v1407
        %1493 = vmatpush.msra.mxu0 %v1406
        %1494 = vmatpush.msra.mxu0 %v1405
        %1495 = vmatpush.msra.mxu0 %v1404
        %1496 = vmatpush.msra.mxu0 %v1403
        %1497 = vmatpush.msra.mxu0 %v1402
        %1498 = vmatpush.msra.mxu0 %v1401
        %1499 = vmatmul.f32.gmra.mxu0 %v1449
        %v1500 = vpop.f32.mrf.mxu0
        %v1501 = vadd.f32 %v1478, %v1500
        %1502 = vmatmul.f32.gmra.mxu0 %v1452
        %v1503 = vpop.f32.mrf.mxu0
        %v1504 = vadd.f32 %v1481, %v1503
        %1505 = vdwg.mxu0
        %1506 = vmatpush.msra.mxu0 %v1432
        %1507 = vmatpush.msra.mxu0 %v1431
        %1508 = vmatpush.msra.mxu0 %v1430
        %1509 = vmatpush.msra.mxu0 %v1429
        %1510 = vmatpush.msra.mxu0 %v1428
        %1511 = vmatpush.msra.mxu0 %v1427
        %1512 = vmatpush.msra.mxu0 %v1426
        %1513 = vmatpush.msra.mxu0 %v1425
        %1514 = vmatpush.msra.mxu0 %v1424
        %1515 = vmatpush.msra.mxu0 %v1423
        %1516 = vmatpush.msra.mxu0 %v1422
        %1517 = vmatpush.msra.mxu0 %v1421
        %1518 = vmatpush.msra.mxu0 %v1420
        %1519 = vmatpush.msra.mxu0 %v1419
        %1520 = vmatpush.msra.mxu0 %v1418
        %1521 = vmatpush.msra.mxu0 %v1417
        %1522 = vmatmul.f32.gmra.mxu0 %v1450
        %v1523 = vpop.f32.mrf.mxu0
        %v1524 = vadd.f32 %v1501, %v1523
        %1525 = vmatmul.f32.gmra.mxu0 %v1453
        %v1526 = vpop.f32.mrf.mxu0
        %v1527 = vadd.f32 %v1504, %v1526
        %1528 = vdwg.mxu0
        %v1529 = vadd.f32 %v1377, %v1524
        %v1530 = vadd.f32 %v1380, %v1527
        %v1531 = vld [vmem:[%s7] sm:$0x1]
        %v1533 = vperm.slane %v1531, 0
        %v1535 = vmul.f32 %v1529, %v1533
        %v1536 = vmul.f32 %v1530, %v1533
        %v1537 = vld [vmem:[%s8] sm:$0x1]
        %v1539 = vperm.slane %v1537, 0
        %v1541 = vadd.f32 %v1535, %v1539
        %v1542 = vadd.f32 %v1536, %v1539
        %v1543 = vld [vmem:[#allocation7] sm:$0xff]
        %v1544 = vld [vmem:[#allocation7 + $0x8] sm:$0xff]
        %v1545 = vld [vmem:[#allocation7 + $0x10] sm:$0xff]
        %v1546 = vld [vmem:[#allocation7 + $0x18] sm:$0xff]
        %v1547 = vld [vmem:[#allocation7 + $0x20] sm:$0xff]
        %v1548 = vld [vmem:[#allocation7 + $0x28] sm:$0xff]
        %v1549 = vld [vmem:[#allocation7 + $0x30] sm:$0xff]
        %v1550 = vld [vmem:[#allocation7 + $0x38] sm:$0xff]
        %v1551 = vld [vmem:[#allocation7 + $0x40] sm:$0xff]
        %v1552 = vld [vmem:[#allocation7 + $0x48] sm:$0xff]
        %v1553 = vld [vmem:[#allocation7 + $0x50] sm:$0xff]
        %v1554 = vld [vmem:[#allocation7 + $0x58] sm:$0xff]
        %v1555 = vld [vmem:[#allocation7 + $0x60] sm:$0xff]
        %v1556 = vld [vmem:[#allocation7 + $0x68] sm:$0xff]
        %v1557 = vld [vmem:[#allocation7 + $0x70] sm:$0xff]
        %v1558 = vld [vmem:[#allocation7 + $0x78] sm:$0xff]
        %1559 = vst [vmem:[#allocation1] ss:$2 sm:$0xff] %v495
        %s1560 = scalar_lea.vmem [#allocation1], 1
        %1561 = vst [vmem:[%s1560] ss:$2 sm:$0xff] %v497
        %s1562 = scalar_lea.vmem [#allocation1], 16
        %1563 = vst [vmem:[%s1562] ss:$2 sm:$0xff] %v499
        %s1564 = scalar_lea.vmem [#allocation1], 17
        %1565 = vst [vmem:[%s1564] ss:$2 sm:$0xff] %v501
        %v1566 = vld.sshfl [vmem:[#allocation1] sm:$0xff pattern:$0x75316420]
        %v1567 = vld.sshfl [vmem:[#allocation1 + $0x10] sm:$0xff pattern:$0x75316420]
        %1570 = vmatpush.msra.mxu0 %v1558
        %1571 = vmatpush.msra.mxu0 %v1557
        %1572 = vmatpush.msra.mxu0 %v1556
        %1573 = vmatpush.msra.mxu0 %v1555
        %1574 = vmatpush.msra.mxu0 %v1554
        %1575 = vmatpush.msra.mxu0 %v1553
        %1576 = vmatpush.msra.mxu0 %v1552
        %1577 = vmatpush.msra.mxu0 %v1551
        %1578 = vmatpush.msra.mxu0 %v1550
        %1579 = vmatpush.msra.mxu0 %v1549
        %1580 = vmatpush.msra.mxu0 %v1548
        %1581 = vmatpush.msra.mxu0 %v1547
        %1582 = vmatpush.msra.mxu0 %v1546
        %1583 = vmatpush.msra.mxu0 %v1545
        %1584 = vmatpush.msra.mxu0 %v1544
        %1585 = vmatpush.msra.mxu0 %v1543
        %1586 = vmatmul.f32.gmra.mxu0 %v1566
        %v1587 = vpop.f32.mrf.mxu0
        %v1588 = vadd.f32 0.0, %v1587
        %1589 = vmatmul.f32.gmra.mxu0 %v1567
        %v1590 = vpop.f32.mrf.mxu0
        %v1591 = vadd.f32 0.0, %v1590
        %1592 = vdwg.mxu0
        %v1593 = vld [vmem:[%s10] sm:$0x1]
        %v1595 = vperm.slane %v1593, 0
        %v1597 = vmul.f32 %v1588, %v1595
        %v1598 = vmul.f32 %v1591, %v1595
        %v1599 = vld [vmem:[%s11] sm:$0x1]
        %v1601 = vperm.slane %v1599, 0
        %v1603 = vadd.f32 %v1597, %v1601
        %v1604 = vadd.f32 %v1598, %v1601
        %v1605 = vadd.f32 %v1541, %v1603
        %v1606 = vadd.f32 %v1542, %v1604
        %v1607 = vmax.f32 %v1605, 0.0
        %v1608 = vmax.f32 %v1606, 0.0
        %1609 = vst [vmem:[%s483] sm:$0x3f] 0.0
        %1610 = vst [vmem:[%s483 + $0x8] sm:$0x3f] 0.0
        %1611 = vst [vmem:[%s483 + $0x10] sm:$0x3f] 0.0
        %1612 = vst [vmem:[%s483 + $0x18] sm:$0x3f] 0.0
        %1613 = vst [vmem:[%s483 + $0x20] sm:$0x3f] 0.0
        %1614 = vst [vmem:[%s483 + $0x28] sm:$0x3f] 0.0
        %v1617 = vrot.slane %v1607, 4
        %v1618 = vrot.slane %v1608, 4
        %s1621 = scalar_lea.vmem %s483, 8
        %1622 = vst [vmem:[%s1621 + $0x1] sm:$0xf] %v1607
        %1623 = vst [vmem:[%s1621 + $0x9] sm:$0xf] %v1617
        %1624 = vst [vmem:[%s1621 + $0x11] sm:$0xf] %v1608
        %1625 = vst [vmem:[%s1621 + $0x19] sm:$0xf] %v1618
        %p1626 = scmp.lt.s32.totalorder %s25, 1
        %s1627 = scalar_select %p1626, %s25, 1
        %s1628 = smul.addr %s1627, 6
        %s1629 = smul.addr %s1628, 8
        %s1630 = scalar_lea.vmem %s12, %s1629
        // Predicated region
        $region81: #{encoder_forward.6} parent=67 // pred_check
          %p1631 = pneg %p305
        $region82: #{encoder_forward.6} parent=67 // pred_check_branch
          %1633 = sbr.rel (%p1631) target = $region84
        $region83: #{encoder_forward.6} parent=67 // pred_region
          _
        $region84: #{encoder_forward.6} parent=67 // pred_fallthru
          _
      $region68: #{encoder_forward.6} parent=5 // pred_fallthru
        _
      %p1634 = scmp.le.s32.totalorder 2, %s20
      // Predicated region
      $region85: #{encoder_forward.6} parent=5 // pred_check
        %p1635 = pneg %p1634
      $region86: #{encoder_forward.6} parent=5 // pred_check_branch
        %1637 = sbr.rel (%p1635) target = $region88
      $region87: #{encoder_forward.6} parent=5 // pred_region
        %s1638 = ssub.s32 %s20, 2
        // Predicated region
        $region89: #{encoder_forward.6} parent=87 // pred_check
          %p1639 = pneg %p311
        $region90: #{encoder_forward.6} parent=87 // pred_check_branch
          %1641 = sbr.rel (%p1639) target = $region92
        $region91: #{encoder_forward.6} parent=87 // pred_region
          %p1642 = scmp.lt.s32.totalorder %s26, 1
          %s1643 = scalar_select %p1642, %s26, 1
          %s1644 = smul.addr %s1643, 6
          %s1645 = smul.addr %s1644, 8
          %s1646 = scalar_lea.vmem %s12, %s1645
        $region92: #{encoder_forward.6} parent=87 // pred_fallthru
          _
      $region88: #{encoder_forward.6} parent=5 // pred_fallthru
        _
    $region6: #{encoder_forward.6} parent=1 // loop_footer
      %s24 = sadd.s32 1, %s20
    $region7: #{encoder_forward.6} parent=1 // loop_footer_branch
      %19 = sbr.rel target = $region3
    $region8: #{encoder_forward.6} parent=1 // loop_exit
      _
    %1647 = vsyncpa [#allocation4], 1
    %s1648 = scalar_lea.sflag [#allocation4], 1
    %1649 = vsyncpa %s1648, 1
    %1650 = vsyncpa [#allocation6], 1

// kernel: encoder_forward.9
$region0: #{encoder_forward.9}
  #allocation0 [shape = 'u32[]', space=smem, size = 0x4, offset = 0x4, fixed_abs, tag = 'smem constant byte address 0x4 - core index']
  #allocation1 [shape = 'u32[72,128]{1,0:T(1,128)}', space=vmem, size = 0x9000, scoped, tag = 'internal scratch']
  #allocation2 [shape = 'f32[1,1]{1,0:T(1,128)S(1)}', space=vmem, size = 0x200, scoped, tag = 'scoped memory for encoder_forward.9']
  %s0 = inlined_call_operand.vmem [shape: f32[2,6,6,128], index: 0, kind: input, shape index: {}]
  %s1 = inlined_call_operand.vmem [shape: f32[128,128], index: 1, kind: input, shape index: {}]
  %s2 = inlined_call_operand.vmem [shape: f32[1,128], index: 2, kind: input, shape index: {}]
  %s3 = inlined_call_operand.hbm [shape: f32[128,128], index: 3, kind: input, shape index: {}]
  %s4 = inlined_call_operand.vmem [shape: f32[1,128], index: 4, kind: input, shape index: {}]
  %s5 = inlined_call_operand.hbm [shape: f32[128,128], index: 5, kind: input, shape index: {}]
  %s6 = inlined_call_operand.vmem [shape: f32[1,128], index: 6, kind: input, shape index: {}]
  %s7 = inlined_call_operand.vmem [shape: f32[128,1], index: 7, kind: input, shape index: {}]
  %s8 = inlined_call_operand.<no memory space> [shape: f32[1,1], index: 8, kind: input, shape index: {}]
  %s9 = inlined_call_operand.vmem [shape: f32[2,1], index: 9, kind: output, shape index: {}]
  %s10 = sld [smem:[#allocation0]]
  $region54: #{encoder_forward.9} parent=0
    _
  %s12 = ssub.s32 1, %s10
  %s13 = scalar_select 0, %s12, %s10
  %v14 = vstv %s8
  %15 = vst [vmem:[#allocation2] sm:$0x1] %v14
  $region1: #{encoder_forward.9} parent=0
    #allocation3 [shape = 'u8[65536]{0}', space=vmem, size = 0x10000, scoped, tag = 'input window, operand 3, single buffered']
    #allocation4 [shape = 's32[1]{0}', space=sflag, size = 0x4, scoped, tag = 'scoped memory for encoder_forward.9']
    #allocation5 [shape = 'u8[65536]{0}', space=vmem, size = 0x10000, scoped, tag = 'input window, operand 5, single buffered']
    #allocation6 [shape = 's32[1]{0}', space=sflag, size = 0x4, scoped, tag = 'scoped memory for encoder_forward.9']
    %16 = vsyncpa [#allocation4], 0
    %17 = vsyncpa [#allocation6], 0
    // Predicated region
    $region2: #{encoder_forward.9} parent=1 // pred_check
      _
    $region3: #{encoder_forward.9} parent=1 // pred_check_branch
      %19 = sbr.rel (0) target = $region5
    $region4: #{encoder_forward.9} parent=1 // pred_region
      _
    $region5: #{encoder_forward.9} parent=1 // pred_fallthru
      _
    // Predicated region
    $region6: #{encoder_forward.9} parent=1 // pred_check
      _
    $region7: #{encoder_forward.9} parent=1 // pred_check_branch
      %21 = sbr.rel (0) target = $region9
    $region8: #{encoder_forward.9} parent=1 // pred_region
      _
    $region9: #{encoder_forward.9} parent=1 // pred_fallthru
      _
    // Predicated region
    $region10: #{encoder_forward.9} parent=1 // pred_check
      _
    $region11: #{encoder_forward.9} parent=1 // pred_check_branch
      %23 = sbr.rel (0) target = $region13
    $region12: #{encoder_forward.9} parent=1 // pred_region
      _
    $region13: #{encoder_forward.9} parent=1 // pred_fallthru
      _
    // Predicated region
    $region14: #{encoder_forward.9} parent=1 // pred_check
      _
    $region15: #{encoder_forward.9} parent=1 // pred_check_branch
      %25 = sbr.rel (0) target = $region17
    $region16: #{encoder_forward.9} parent=1 // pred_region
      %27 = vsyncadd [#allocation4], 0
      %s28 = sshll.u32 %s3, 4
      %s29 = int_to_ptr.hbm [resolvable:$true] %s28
      %s30 = sshll.u32 [#allocation3], 4
      %s31 = int_to_ptr.vmem [resolvable:$true] %s30
      %36 = dma.hbm_to_vmem [thread:$0]  %s29, 2048, %s31, [#allocation4], 128, 128, 8
    $region17: #{encoder_forward.9} parent=1 // pred_fallthru
      _
    // Predicated region
    $region18: #{encoder_forward.9} parent=1 // pred_check
      _
    $region19: #{encoder_forward.9} parent=1 // pred_check_branch
      %38 = sbr.rel (0) target = $region21
    $region20: #{encoder_forward.9} parent=1 // pred_region
      _
    $region21: #{encoder_forward.9} parent=1 // pred_fallthru
      _
    // Predicated region
    $region22: #{encoder_forward.9} parent=1 // pred_check
      _
    $region23: #{encoder_forward.9} parent=1 // pred_check_branch
      %40 = sbr.rel (0) target = $region25
    $region24: #{encoder_forward.9} parent=1 // pred_region
      %42 = vsyncadd [#allocation6], 0
      %s43 = sshll.u32 %s5, 4
      %s44 = int_to_ptr.hbm [resolvable:$true] %s43
      %s45 = sshll.u32 [#allocation5], 4
      %s46 = int_to_ptr.vmem [resolvable:$true] %s45
      %51 = dma.hbm_to_vmem [thread:$0]  %s44, 2048, %s46, [#allocation6], 128, 128, 8
    $region25: #{encoder_forward.9} parent=1 // pred_fallthru
      _
    // Predicated region
    $region26: #{encoder_forward.9} parent=1 // pred_check
      _
    $region27: #{encoder_forward.9} parent=1 // pred_check_branch
      %53 = sbr.rel (0) target = $region29
    $region28: #{encoder_forward.9} parent=1 // pred_region
      _
    $region29: #{encoder_forward.9} parent=1 // pred_fallthru
      _
    // Predicated region
    $region30: #{encoder_forward.9} parent=1 // pred_check
      _
    $region31: #{encoder_forward.9} parent=1 // pred_check_branch
      %55 = sbr.rel (0) target = $region33
    $region32: #{encoder_forward.9} parent=1 // pred_region
      _
    $region33: #{encoder_forward.9} parent=1 // pred_fallthru
      _
    // Predicated region
    $region34: #{encoder_forward.9} parent=1 // pred_check
      _
    $region35: #{encoder_forward.9} parent=1 // pred_check_branch
      %57 = sbr.rel (0) target = $region37
    $region36: #{encoder_forward.9} parent=1 // pred_region
      _
    $region37: #{encoder_forward.9} parent=1 // pred_fallthru
      _
    // Predicated region
    $region38: #{encoder_forward.9} parent=1 // pred_check
      _
    $region39: #{encoder_forward.9} parent=1 // pred_check_branch
      %59 = sbr.rel (0) target = $region41
    $region40: #{encoder_forward.9} parent=1 // pred_region
      %61 = dma.done [#allocation4], 2048
    $region41: #{encoder_forward.9} parent=1 // pred_fallthru
      _
    // Predicated region
    $region42: #{encoder_forward.9} parent=1 // pred_check
      _
    $region43: #{encoder_forward.9} parent=1 // pred_check_branch
      %63 = sbr.rel (0) target = $region45
    $region44: #{encoder_forward.9} parent=1 // pred_region
      %65 = dma.done [#allocation6], 2048
    $region45: #{encoder_forward.9} parent=1 // pred_fallthru
      _
    %v66 = vld [vmem:[%s0 + $0x8] sm:$0x3f]
    %v67 = vld [vmem:[%s0 + $0x10] sm:$0x3f]
    %v68 = vld [vmem:[%s0 + $0x18] sm:$0x3f]
    %v69 = vld [vmem:[%s0 + $0x20] sm:$0x3f]
    %v70 = vld [vmem:[%s0 + $0x38] sm:$0x3f]
    %v71 = vld [vmem:[%s0 + $0x40] sm:$0x3f]
    %v72 = vld [vmem:[%s0 + $0x48] sm:$0x3f]
    %v73 = vld [vmem:[%s0 + $0x50] sm:$0x3f]
    %v74 = vmax.f32 %v66, 0.0
    %v75 = vmax.f32 %v67, 0.0
    %v76 = vmax.f32 %v68, 0.0
    %v77 = vmax.f32 %v69, 0.0
    %v78 = vmax.f32 %v70, 0.0
    %v79 = vmax.f32 %v71, 0.0
    %v80 = vmax.f32 %v72, 0.0
    %v81 = vmax.f32 %v73, 0.0
    %v90 = vrot.slane %v74, 1
    %v91 = vrot.slane %v75, 1
    %v92 = vrot.slane %v76, 1
    %v93 = vrot.slane %v77, 1
    %v94 = vrot.slane %v78, 1
    %v95 = vrot.slane %v79, 1
    %v96 = vrot.slane %v80, 1
    %v97 = vrot.slane %v81, 1
    %vm106 = vcmask 1043456
    %v107 = vsel %vm106, %v90, 0.0
    %v108 = vsel %vm106, %v91, 0.0
    %v109 = vadd.f32 %v107, %v108
    %v110 = vsel %vm106, %v92, 0.0
    %v111 = vadd.f32 %v109, %v110
    %v112 = vsel %vm106, %v93, 0.0
    %v113 = vadd.f32 %v111, %v112
    %v114 = vrot.slane %v113, 4
    %v115 = vadd.f32 %v113, %v114
    %v116 = vrot.slane %v115, 2
    %v117 = vadd.f32 %v115, %v116
    %v118 = vrot.slane %v117, 1
    %v119 = vadd.f32 %v117, %v118
    %v120 = vsel %vm106, %v94, 0.0
    %v121 = vsel %vm106, %v95, 0.0
    %v122 = vadd.f32 %v120, %v121
    %v123 = vsel %vm106, %v96, 0.0
    %v124 = vadd.f32 %v122, %v123
    %v125 = vsel %vm106, %v97, 0.0
    %v126 = vadd.f32 %v124, %v125
    %v127 = vrot.slane %v126, 4
    %v128 = vadd.f32 %v126, %v127
    %v129 = vrot.slane %v128, 2
    %v130 = vadd.f32 %v128, %v129
    %v131 = vrot.slane %v130, 1
    %v132 = vadd.f32 %v130, %v131
    %v133 = vrcp.pop 16.0
    %v134 = vmul.f32 16.0, %v133
    %v135 = vsub.f32 1.0, %v134
    %v136 = vmul.f32 %v133, %v135
    %v137 = vadd.f32 %v133, %v136
    %vm138 = vweird.f32 %v133
    %v139 = vsel %vm138, %v133, %v137
    %v140 = vmul.f32 %v119, %v139
    %v141 = vmul.f32 %v132, %v139
    %v142 = vld [vmem:[%s1] sm:$0xff]
    %v143 = vld [vmem:[%s1 + $0x8] sm:$0xff]
    %v144 = vld [vmem:[%s1 + $0x10] sm:$0xff]
    %v145 = vld [vmem:[%s1 + $0x18] sm:$0xff]
    %v146 = vld [vmem:[%s1 + $0x20] sm:$0xff]
    %v147 = vld [vmem:[%s1 + $0x28] sm:$0xff]
    %v148 = vld [vmem:[%s1 + $0x30] sm:$0xff]
    %v149 = vld [vmem:[%s1 + $0x38] sm:$0xff]
    %v150 = vld [vmem:[%s1 + $0x40] sm:$0xff]
    %v151 = vld [vmem:[%s1 + $0x48] sm:$0xff]
    %v152 = vld [vmem:[%s1 + $0x50] sm:$0xff]
    %v153 = vld [vmem:[%s1 + $0x58] sm:$0xff]
    %v154 = vld [vmem:[%s1 + $0x60] sm:$0xff]
    %v155 = vld [vmem:[%s1 + $0x68] sm:$0xff]
    %v156 = vld [vmem:[%s1 + $0x70] sm:$0xff]
    %v157 = vld [vmem:[%s1 + $0x78] sm:$0xff]
    %v158 = vld [vmem:[%s2] sm:$0x1]
    %v160 = vperm.slane %v158, 0
    %vm164 = vcmask 1041409
    %v165 = vsel %vm164, %v141, %v140
    %167 = vmatpush.msra.mxu0 %v157
    %168 = vmatpush.msra.mxu0 %v156
    %169 = vmatpush.msra.mxu0 %v155
    %170 = vmatpush.msra.mxu0 %v154
    %171 = vmatpush.msra.mxu0 %v153
    %172 = vmatpush.msra.mxu0 %v152
    %173 = vmatpush.msra.mxu0 %v151
    %174 = vmatpush.msra.mxu0 %v150
    %175 = vmatpush.msra.mxu0 %v149
    %176 = vmatpush.msra.mxu0 %v148
    %177 = vmatpush.msra.mxu0 %v147
    %178 = vmatpush.msra.mxu0 %v146
    %179 = vmatpush.msra.mxu0 %v145
    %180 = vmatpush.msra.mxu0 %v144
    %181 = vmatpush.msra.mxu0 %v143
    %182 = vmatpush.msra.mxu0 %v142
    %183 = vmatmul.f32.gmra.mxu0 %v165
    %v184 = vpop.f32.mrf.mxu0
    %v185 = vadd.f32 %v160, %v184
    %186 = vdwg.mxu0
    %v187 = vmul.f32 %v185, %v185
    %vm188 = vcmask 1041408
    %v189 = vsel %vm188, %v187, 0.0
    %190 = vadd.xlane.f32.xlu0 %v189
    %v191 = vpop.xlane.xlu0 %190
    %v192 = vrsqrt.pop %v191
    %v193 = vmul.f32 %v192, %v191
    %v194 = vmul.f32 %v193, %v192
    %v195 = vmul.f32 0.5, %v194
    %v196 = vsub.f32 1.5, %v195
    %v197 = vmul.f32 %v192, %v196
    %v198 = vmul.f32 %v191, %v197
    %vm199 = vcmp.eq.f32.partialorder %v191, inf
    %v200 = vsel %vm199, %v191, %v198
    %vm201 = vcmp.eq.f32.partialorder %v191, 0.0
    %v202 = vand.u32 %v191, 2147483648
    %v203 = vsel %vm201, %v202, %v200
    %v204 = vmax.f32 %v203, 1e-12
    %v205 = vrcp.pop %v204
    %v206 = vmul.f32 %v204, %v205
    %v207 = vsub.f32 1.0, %v206
    %v208 = vmul.f32 %v205, %v207
    %v209 = vadd.f32 %v205, %v208
    %vm210 = vweird.f32 %v204
    %vm211 = vweird.f32 %v205
    %vm212 = vmor %vm210, %vm211
    %v213 = vsel %vm212, %v205, %v209
    %v214 = vand.u32 2147483647, %v204
    %vm215 = vcmp.eq.f32.partialorder %v214, 8.507059e+37
    %v216 = vand.u32 %v204, 2147483648
    %v217 = vor.u32 1.1754944e-38, %v216
    %v218 = vsel %vm215, %v217, %v213
    %v219 = vmul.f32 %v185, %v218
    %v220 = vld [vmem:[#allocation3] sm:$0xff]
    %v221 = vld [vmem:[#allocation3 + $0x8] sm:$0xff]
    %v222 = vld [vmem:[#allocation3 + $0x10] sm:$0xff]
    %v223 = vld [vmem:[#allocation3 + $0x18] sm:$0xff]
    %v224 = vld [vmem:[#allocation3 + $0x20] sm:$0xff]
    %v225 = vld [vmem:[#allocation3 + $0x28] sm:$0xff]
    %v226 = vld [vmem:[#allocation3 + $0x30] sm:$0xff]
    %v227 = vld [vmem:[#allocation3 + $0x38] sm:$0xff]
    %v228 = vld [vmem:[#allocation3 + $0x40] sm:$0xff]
    %v229 = vld [vmem:[#allocation3 + $0x48] sm:$0xff]
    %v230 = vld [vmem:[#allocation3 + $0x50] sm:$0xff]
    %v231 = vld [vmem:[#allocation3 + $0x58] sm:$0xff]
    %v232 = vld [vmem:[#allocation3 + $0x60] sm:$0xff]
    %v233 = vld [vmem:[#allocation3 + $0x68] sm:$0xff]
    %v234 = vld [vmem:[#allocation3 + $0x70] sm:$0xff]
    %v235 = vld [vmem:[#allocation3 + $0x78] sm:$0xff]
    %v236 = vld [vmem:[%s4] sm:$0x1]
    %v238 = vperm.slane %v236, 0
    %240 = vmatpush.msra.mxu0 %v235
    %241 = vmatpush.msra.mxu0 %v234
    %242 = vmatpush.msra.mxu0 %v233
    %243 = vmatpush.msra.mxu0 %v232
    %244 = vmatpush.msra.mxu0 %v231
    %245 = vmatpush.msra.mxu0 %v230
    %246 = vmatpush.msra.mxu0 %v229
    %247 = vmatpush.msra.mxu0 %v228
    %248 = vmatpush.msra.mxu0 %v227
    %249 = vmatpush.msra.mxu0 %v226
    %250 = vmatpush.msra.mxu0 %v225
    %251 = vmatpush.msra.mxu0 %v224
    %252 = vmatpush.msra.mxu0 %v223
    %253 = vmatpush.msra.mxu0 %v222
    %254 = vmatpush.msra.mxu0 %v221
    %255 = vmatpush.msra.mxu0 %v220
    %256 = vmatmul.f32.gmra.mxu0 %v219
    %v257 = vpop.f32.mrf.mxu0
    %v258 = vadd.f32 %v238, %v257
    %259 = vdwg.mxu0
    %v260 = vmax.f32 %v258, 0.0
    %v261 = vld [vmem:[#allocation5] sm:$0xff]
    %v262 = vld [vmem:[#allocation5 + $0x8] sm:$0xff]
    %v263 = vld [vmem:[#allocation5 + $0x10] sm:$0xff]
    %v264 = vld [vmem:[#allocation5 + $0x18] sm:$0xff]
    %v265 = vld [vmem:[#allocation5 + $0x20] sm:$0xff]
    %v266 = vld [vmem:[#allocation5 + $0x28] sm:$0xff]
    %v267 = vld [vmem:[#allocation5 + $0x30] sm:$0xff]
    %v268 = vld [vmem:[#allocation5 + $0x38] sm:$0xff]
    %v269 = vld [vmem:[#allocation5 + $0x40] sm:$0xff]
    %v270 = vld [vmem:[#allocation5 + $0x48] sm:$0xff]
    %v271 = vld [vmem:[#allocation5 + $0x50] sm:$0xff]
    %v272 = vld [vmem:[#allocation5 + $0x58] sm:$0xff]
    %v273 = vld [vmem:[#allocation5 + $0x60] sm:$0xff]
    %v274 = vld [vmem:[#allocation5 + $0x68] sm:$0xff]
    %v275 = vld [vmem:[#allocation5 + $0x70] sm:$0xff]
    %v276 = vld [vmem:[#allocation5 + $0x78] sm:$0xff]
    %v277 = vld [vmem:[%s6] sm:$0x1]
    %v279 = vperm.slane %v277, 0
    %281 = vmatpush.msra.mxu0 %v276
    %282 = vmatpush.msra.mxu0 %v275
    %283 = vmatpush.msra.mxu0 %v274
    %284 = vmatpush.msra.mxu0 %v273
    %285 = vmatpush.msra.mxu0 %v272
    %286 = vmatpush.msra.mxu0 %v271
    %287 = vmatpush.msra.mxu0 %v270
    %288 = vmatpush.msra.mxu0 %v269
    %289 = vmatpush.msra.mxu0 %v268
    %290 = vmatpush.msra.mxu0 %v267
    %291 = vmatpush.msra.mxu0 %v266
    %292 = vmatpush.msra.mxu0 %v265
    %293 = vmatpush.msra.mxu0 %v264
    %294 = vmatpush.msra.mxu0 %v263
    %295 = vmatpush.msra.mxu0 %v262
    %296 = vmatpush.msra.mxu0 %v261
    %297 = vmatmul.f32.gmra.mxu0 %v260
    %v298 = vpop.f32.mrf.mxu0
    %v299 = vadd.f32 %v279, %v298
    %300 = vdwg.mxu0
    %v301 = vmax.f32 %v299, 0.0
    %v302 = vld [vmem:[%s7] sm:$0xff]
    %v303 = vld [vmem:[%s7 + $0x8] sm:$0xff]
    %v304 = vld [vmem:[%s7 + $0x10] sm:$0xff]
    %v305 = vld [vmem:[%s7 + $0x18] sm:$0xff]
    %v306 = vld [vmem:[%s7 + $0x20] sm:$0xff]
    %v307 = vld [vmem:[%s7 + $0x28] sm:$0xff]
    %v308 = vld [vmem:[%s7 + $0x30] sm:$0xff]
    %v309 = vld [vmem:[%s7 + $0x38] sm:$0xff]
    %v310 = vld [vmem:[%s7 + $0x40] sm:$0xff]
    %v311 = vld [vmem:[%s7 + $0x48] sm:$0xff]
    %v312 = vld [vmem:[%s7 + $0x50] sm:$0xff]
    %v313 = vld [vmem:[%s7 + $0x58] sm:$0xff]
    %v314 = vld [vmem:[%s7 + $0x60] sm:$0xff]
    %v315 = vld [vmem:[%s7 + $0x68] sm:$0xff]
    %v316 = vld [vmem:[%s7 + $0x70] sm:$0xff]
    %v317 = vld [vmem:[%s7 + $0x78] sm:$0xff]
    %v318 = vld [vmem:[#allocation2] sm:$0x1]
    %v320 = vperm.slane %v318, 0
    %322 = vmatpush.msra.mxu0 %v317
    %323 = vmatpush.msra.mxu0 %v316
    %324 = vmatpush.msra.mxu0 %v315
    %325 = vmatpush.msra.mxu0 %v314
    %326 = vmatpush.msra.mxu0 %v313
    %327 = vmatpush.msra.mxu0 %v312
    %328 = vmatpush.msra.mxu0 %v311
    %329 = vmatpush.msra.mxu0 %v310
    %330 = vmatpush.msra.mxu0 %v309
    %331 = vmatpush.msra.mxu0 %v308
    %332 = vmatpush.msra.mxu0 %v307
    %333 = vmatpush.msra.mxu0 %v306
    %334 = vmatpush.msra.mxu0 %v305
    %335 = vmatpush.msra.mxu0 %v304
    %336 = vmatpush.msra.mxu0 %v303
    %337 = vmatpush.msra.mxu0 %v302
    %338 = vmatmul.f32.gmra.mxu0 %v301
    %v339 = vpop.f32.mrf.mxu0
    %v340 = vadd.f32 %v320, %v339
    %341 = vdwg.mxu0
    %vm342 = vcmask 1024
    %343 = vst.msk [vmem:[%s9] sm:$0x3] %vm342, %v340
    // Predicated region
    $region46: #{encoder_forward.9} parent=1 // pred_check
      _
    $region47: #{encoder_forward.9} parent=1 // pred_check_branch
      %345 = sbr.rel (0) target = $region49
    $region48: #{encoder_forward.9} parent=1 // pred_region
      _
    $region49: #{encoder_forward.9} parent=1 // pred_fallthru
      _
    // Predicated region
    $region50: #{encoder_forward.9} parent=1 // pred_check
      _
    $region51: #{encoder_forward.9} parent=1 // pred_check_branch
      %347 = sbr.rel (0) target = $region53
    $region52: #{encoder_forward.9} parent=1 // pred_region
      _
    $region53: #{encoder_forward.9} parent=1 // pred_fallthru
      _
    %348 = vsyncpa [#allocation4], 1
    %349 = vsyncpa [#allocation6], 1

</llo_original>
